<compile_context>
chip_gen: v7x
topology: tpu7x:2x2x1
jax: 0.10.0
libtpu: 0.0.40
codegen_flags: <defaults>
</compile_context>

<pallas_src>
import functools

import jax
import jax.numpy as jnp
from jax.experimental import pallas as pl
from jax.experimental.pallas import tpu as pltpu

LANES = 128     # padded channel / class lane width (lane-dense GEMMs & stores)
K1_PAD = 128    # conv1 im2col K: 25 -> 128
HID_PAD = 512   # fc1 hidden: 500 -> 512
KH = KW = 5     # conv kernel size
POOL = 2


# ---------------------------------------------------------------------------
# The single fused Pallas kernel
# ---------------------------------------------------------------------------

def _membrane_kernel(a1_ref, w1_ref, b1_ref, w2_ref, b2_ref,
                     fw1_ref, fb1_ref, fw2_ref, fb2_ref, o_ref):
    n = o_ref.shape[0]                        # batch
    m1 = a1_ref.shape[0] // 4                 # pooled conv1 pixels = 12*12*n, rows (h, w, n)
    s_h, s_w = 12 * n, n                      # row strides of the (h, w, n) flattening
    r2 = 7 * s_h + 7 * s_w + n                # conv2 rows needed (covers all valid 8x8 outputs)
    pwin = 6 * s_h + 6 * s_w + n              # row window containing every pooled conv2 output

    # ---- conv1: ONE MXU pass over all 4 pool-window members, then window-max + bias + ReLU.
    z = jnp.dot(a1_ref[...], w1_ref[...], preferred_element_type=jnp.float32)   # (4*m1, 128)
    zmax = jnp.maximum(jnp.maximum(z[0:m1], z[m1:2 * m1]),
                       jnp.maximum(z[2 * m1:3 * m1], z[3 * m1:4 * m1]))
    y1 = jnp.maximum(zmax + b1_ref[...], 0.0)        # (m1, 128) == maxpool(relu(conv1 + b1))

    # ---- conv2: in-kernel im2col.  Tap (i, j) of every output pixel is the y1 row
    # shifted by i*s_h + j*s_w, so 25 static contiguous slices + one lane-concat build
    # the full patch matrix in VMEM; a single K=25*128 MXU dot follows.
    taps = [y1[i * s_h + j * s_w: i * s_h + j * s_w + r2, :]
            for i in range(KH) for j in range(KW)]
    lhs2 = jnp.concatenate(taps, axis=1).astype(jnp.bfloat16)               # (r2, 3200)
    c2 = jnp.dot(lhs2, w2_ref[...], preferred_element_type=jnp.float32)     # (r2, 128)

    # ---- 2x2 max-pool as shift-and-max over rows, then bias + ReLU.
    pooled = jnp.maximum(jnp.maximum(c2[0:pwin], c2[s_w:s_w + pwin]),
                         jnp.maximum(c2[s_h:s_h + pwin],
                                     c2[s_h + s_w:s_h + s_w + pwin]))
    y2 = jnp.maximum(pooled + b2_ref[...], 0.0)      # pooled value for (hp, wp, n) sits at
                                                     # row 2*hp*s_h + 2*wp*s_w + n

    # ---- flatten: the 16 pooled spatial positions are contiguous n-row slices;
    # lane-concat them into the (n, 16*128) fc1 input (weights were permuted to match).
    xf = jnp.concatenate(
        [y2[2 * hp * s_h + 2 * wp * s_w: 2 * hp * s_h + 2 * wp * s_w + n, :]
         for hp in range(4) for wp in range(4)], axis=1)

    # ---- fc1 + ReLU + fc2 + log-softmax (hidden never leaves vregs/VMEM).
    h = jnp.dot(xf.astype(jnp.bfloat16), fw1_ref[...], preferred_element_type=jnp.float32)
    h = jnp.maximum(h + fb1_ref[...], 0.0)
    logits = jnp.dot(h.astype(jnp.bfloat16), fw2_ref[...],
                     preferred_element_type=jnp.float32) + fb2_ref[...]
    mx = jnp.max(logits, axis=-1, keepdims=True)
    shifted = logits - mx
    lse = jnp.log(jnp.sum(jnp.exp(shifted), axis=-1, keepdims=True))
    o_ref[...] = (shifted - lse).astype(o_ref.dtype)


def membrane_fused_call(a1, w1, b1, w2, b2, fw1, fb1, fw2, fb2, *, batch):
    n = batch
    assert a1.shape[0] == 4 * 144 * n, "28x28 input implied by fc1 in_features=800"
    r2 = 92 * n
    inputs = (a1, w1, b1, w2, b2, fw1, fb1, fw2, fb2)
    flops = 2 * (a1.shape[0] * a1.shape[1] * LANES        # conv1
                 + r2 * w2.shape[0] * LANES               # conv2
                 + n * fw1.shape[0] * fw1.shape[1]        # fc1
                 + n * fw2.shape[0] * fw2.shape[1])       # fc2
    bytes_accessed = sum(x.size * x.dtype.itemsize for x in inputs) + n * LANES * 4

    def full_spec(arr):
        nd = arr.ndim
        return pl.BlockSpec(arr.shape, lambda i, _nd=nd: (0,) * _nd)

    return pl.pallas_call(
        _membrane_kernel,
        out_shape=jax.ShapeDtypeStruct((n, LANES), jnp.float32),
        grid=(1,),
        in_specs=[full_spec(x) for x in inputs],
        out_specs=pl.BlockSpec((n, LANES), lambda i: (0, 0)),
        compiler_params=pltpu.CompilerParams(dimension_semantics=("arbitrary",)),
        cost_estimate=pl.CostEstimate(flops=int(flops),
                                      transcendentals=int(n * (LANES + 1)),
                                      bytes_accessed=int(bytes_accessed)),
    )(*inputs)


# ---------------------------------------------------------------------------
# XLA-side glue: pool-aware im2col of the raw 28x28 input only (6 KB, layout plumbing)
# ---------------------------------------------------------------------------

def _conv1_pool_im2col(x_nchw, kh=KH, kw=KW, k_pad=K1_PAD):
    """(N, C, H, W) -> (4 * Hp*Wp*N, k_pad) bf16.

    Rows are ordered (pool-member, h, w, n); member m's row (h, w, n) holds the 5x5
    patch feeding conv1-output position (2h + p, 2w + q).  K order = (kh, kw, cin).
    """
    n, c, hgt, wid = x_nchw.shape
    x = jnp.moveaxis(x_nchw, 1, -1)                      # NHWC; layout no-op for c == 1
    ho, wo = hgt - kh + 1, wid - kw + 1
    hp, wp = ho // POOL, wo // POOL
    k = kh * kw * c
    taps = [x[:, i:i + ho, j:j + wo, :] for i in range(kh) for j in range(kw)]
    pat = jnp.stack(taps, axis=3)                        # (n, ho, wo, kh*kw, c)
    pat = pat.reshape(n, hp, POOL, wp, POOL, k)          # split the 2x2 pooling phases
    pat = jnp.transpose(pat, (2, 4, 1, 3, 0, 5))         # (p, q, hp, wp, n, k)
    a = pat.reshape(4 * hp * wp * n, k)
    if k_pad > k:
        a = jnp.pad(a, ((0, 0), (0, k_pad - k)))
    return a.astype(jnp.bfloat16)


# ---------------------------------------------------------------------------
# Parameters (PyTorch-default-style init) + one-time packing
# ---------------------------------------------------------------------------

def init_params(key, num_channels, classes):
    def uniform(k, shape, fan_in):
        bound = 1.0 / jnp.sqrt(jnp.float32(fan_in))
        return jax.random.uniform(k, shape, jnp.float32, -bound, bound)

    ks = jax.random.split(key, 8)
    return {
        "c1_w": uniform(ks[0], (20, num_channels, 5, 5), num_channels * 25),
        "c1_b": uniform(ks[1], (20,), num_channels * 25),
        "c2_w": uniform(ks[2], (50, 20, 5, 5), 20 * 25),
        "c2_b": uniform(ks[3], (50,), 20 * 25),
        "fc1_w": uniform(ks[4], (500, 800), 800),        # PyTorch Linear layout: (out, in)
        "fc1_b": uniform(ks[5], (500,), 800),
        "fc2_w": uniform(ks[6], (classes, 500), 500),
        "fc2_b": uniform(ks[7], (classes,), 500),
    }


def pack_params(p, num_channels, classes):
    """One-time repack: PyTorch layouts -> padded bf16 GEMM operands + f32 biases."""
    f32, bf16 = jnp.float32, jnp.bfloat16
    pp = {}

    # conv1 weight: (20, cin, 5, 5) -> (K1_PAD, 128), K order (kh, kw, cin).
    w = jnp.transpose(p["c1_w"], (2, 3, 1, 0)).reshape(-1, p["c1_w"].shape[0])
    pp["c1_w"] = jnp.pad(w, ((0, K1_PAD - w.shape[0]), (0, LANES - w.shape[1]))).astype(bf16)
    pp["c1_b"] = jnp.pad(p["c1_b"].reshape(1, -1),
                         ((0, 0), (0, LANES - p["c1_b"].shape[0]))).astype(f32)

    # conv2 weight: (50, 20, 5, 5) -> (25*128, 128); K order = tap (i, j) major, then the
    # 128 conv1-output lanes (20 real + zero pad), matching the kernel's tap-concat order.
    w = jnp.transpose(p["c2_w"], (2, 3, 1, 0))           # (5, 5, 20, 50)
    w = jnp.pad(w, ((0, 0), (0, 0), (0, LANES - w.shape[2]), (0, LANES - w.shape[3])))
    pp["c2_w"] = w.reshape(KH * KW * LANES, LANES).astype(bf16)
    pp["c2_b"] = jnp.pad(p["c2_b"].reshape(1, -1),
                         ((0, 0), (0, LANES - p["c2_b"].shape[0]))).astype(f32)

    # fc1: torch flatten order is (c, hp, wp); kernel feature order is (s = hp*4+wp, c_pad).
    c2_out = p["c2_w"].shape[0]                          # 50
    spatial = p["fc1_w"].shape[1] // c2_out              # 16
    w = p["fc1_w"].T.reshape(c2_out, spatial, -1)        # (c, s, out)
    w = jnp.transpose(w, (1, 0, 2))                      # (s, c, out)
    w = jnp.pad(w, ((0, 0), (0, LANES - c2_out), (0, 0))).reshape(spatial * LANES, -1)
    pp["fc1_w"] = jnp.pad(w, ((0, 0), (0, HID_PAD - w.shape[1]))).astype(bf16)
    pp["fc1_b"] = jnp.pad(p["fc1_b"].reshape(1, -1),
                          ((0, 0), (0, HID_PAD - p["fc1_b"].shape[0]))).astype(f32)

    # fc2: (classes, 500) -> (512, 128); padded class lanes get a -1e30 bias so they
    # contribute nothing to the in-kernel log-softmax (safe in f32).
    w = jnp.pad(p["fc2_w"].T, ((0, HID_PAD - p["fc2_w"].shape[1]), (0, LANES - classes)))
    pp["fc2_w"] = w.astype(bf16)
    pp["fc2_b"] = jnp.full((1, LANES), -1e30, f32).at[0, :classes].set(p["fc2_b"])
    return pp


# ---------------------------------------------------------------------------
# Full forward pass
# ---------------------------------------------------------------------------

def membrane_net_forward(pp, x_nchw, *, classes):
    """x_nchw: (N, numChannels, 28, 28) float32 -> (N, classes) log-probs."""
    n = x_nchw.shape[0]
    a1 = _conv1_pool_im2col(x_nchw)
    logp = membrane_fused_call(a1, pp["c1_w"], pp["c1_b"], pp["c2_w"], pp["c2_b"],
                               pp["fc1_w"], pp["fc1_b"], pp["fc2_w"], pp["fc2_b"],
                               batch=n)
    return logp[:, :classes]


# ---------------------------------------------------------------------------
# Main
# ---------------------------------------------------------------------------

if __name__ == "__main__":
    num_channels, classes = 1, 10
    batch = 2

    key = jax.random.PRNGKey(0)
    k_params, k_x = jax.random.split(key)

    params = init_params(k_params, num_channels, classes)
    packed = pack_params(params, num_channels, classes)   # one-time repack (outside jit)

    # fc1 in_features=800 = 50*4*4 implies a 28x28 spatial input.
    x = jax.random.uniform(k_x, (batch, num_channels, 28, 28), jnp.float32)

    fwd = jax.jit(functools.partial(membrane_net_forward, classes=classes))
    out = jax.block_until_ready(fwd(packed, x))

    assert out.shape == (batch, classes)
    assert bool(jnp.all(jnp.isfinite(out)))
    # log-softmax rows must exponentiate to probability distributions
    row_sums = jnp.sum(jnp.exp(out), axis=1)
    assert bool(jnp.allclose(row_sums, 1.0, atol=1e-4))

    print("KERNEL_OK")
</pallas_src>

<mosaic_0001>
module attributes {stable_mosaic.version = 11 : i64} {
  func.func @_membrane_kernel(%arg0: i32, %arg1: memref<1152x128xbf16, #tpu.memory_space<vmem>>, %arg2: memref<128x128xbf16, #tpu.memory_space<vmem>>, %arg3: memref<1x128xf32, #tpu.memory_space<vmem>>, %arg4: memref<3200x128xbf16, #tpu.memory_space<vmem>>, %arg5: memref<1x128xf32, #tpu.memory_space<vmem>>, %arg6: memref<2048x512xbf16, #tpu.memory_space<vmem>>, %arg7: memref<1x512xf32, #tpu.memory_space<vmem>>, %arg8: memref<512x128xbf16, #tpu.memory_space<vmem>>, %arg9: memref<1x128xf32, #tpu.memory_space<vmem>>, %arg10: memref<2x128xf32, #tpu.memory_space<vmem>>) attributes {dimension_semantics = [#tpu.dimension_semantics<arbitrary>], iteration_bounds = array<i64: 1>, scalar_prefetch = 0 : i64, scratch_operands = 0 : i64, tpu.core_type = #tpu.core_type<tc>, window_params = [{pipeline_mode = #tpu.pipeline_mode<synchronous>, transform_indices = @transform_0, window_bounds = array<i64: 1152, 128>}, {pipeline_mode = #tpu.pipeline_mode<synchronous>, transform_indices = @transform_1, window_bounds = array<i64: 128, 128>}, {pipeline_mode = #tpu.pipeline_mode<synchronous>, transform_indices = @transform_2, window_bounds = array<i64: 1, 128>}, {pipeline_mode = #tpu.pipeline_mode<synchronous>, transform_indices = @transform_3, window_bounds = array<i64: 3200, 128>}, {pipeline_mode = #tpu.pipeline_mode<synchronous>, transform_indices = @transform_4, window_bounds = array<i64: 1, 128>}, {pipeline_mode = #tpu.pipeline_mode<synchronous>, transform_indices = @transform_5, window_bounds = array<i64: 2048, 512>}, {pipeline_mode = #tpu.pipeline_mode<synchronous>, transform_indices = @transform_6, window_bounds = array<i64: 1, 512>}, {pipeline_mode = #tpu.pipeline_mode<synchronous>, transform_indices = @transform_7, window_bounds = array<i64: 512, 128>}, {pipeline_mode = #tpu.pipeline_mode<synchronous>, transform_indices = @transform_8, window_bounds = array<i64: 1, 128>}, {pipeline_mode = #tpu.pipeline_mode<synchronous>, transform_indices = @transform_9, window_bounds = array<i64: 2, 128>}]} {
    %c0 = arith.constant 0 : index
    %c0_0 = arith.constant 0 : index
    %0 = vector.load %arg1[%c0, %c0_0] : memref<1152x128xbf16, #tpu.memory_space<vmem>>, vector<1152x128xbf16>
    %c0_1 = arith.constant 0 : index
    %c0_2 = arith.constant 0 : index
    %1 = vector.load %arg2[%c0_1, %c0_2] : memref<128x128xbf16, #tpu.memory_space<vmem>>, vector<128x128xbf16>
    %cst = arith.constant dense<0.000000e+00> : vector<1152x128xf32>
    %2 = tpu.matmul %0, %1, %cst {dimension_numbers = #tpu.dot_dimension_numbers<[1], [0], [0], [1], [0, 0, 1, 1], [], []>} : vector<1152x128xbf16>, vector<128x128xbf16>, vector<1152x128xf32> -> vector<1152x128xf32>
    %3 = vector.extract_strided_slice %2 {offsets = [0, 0], sizes = [288, 128], strides = [1, 1]} : vector<1152x128xf32> to vector<288x128xf32>
    %4 = vector.extract_strided_slice %2 {offsets = [288, 0], sizes = [288, 128], strides = [1, 1]} : vector<1152x128xf32> to vector<288x128xf32>
    %5 = arith.maximumf %3, %4 : vector<288x128xf32>
    %6 = vector.extract_strided_slice %2 {offsets = [576, 0], sizes = [288, 128], strides = [1, 1]} : vector<1152x128xf32> to vector<288x128xf32>
    %7 = vector.extract_strided_slice %2 {offsets = [864, 0], sizes = [288, 128], strides = [1, 1]} : vector<1152x128xf32> to vector<288x128xf32>
    %8 = arith.maximumf %6, %7 : vector<288x128xf32>
    %9 = arith.maximumf %5, %8 : vector<288x128xf32>
    %c0_3 = arith.constant 0 : index
    %c0_4 = arith.constant 0 : index
    %10 = vector.load %arg3[%c0_3, %c0_4] : memref<1x128xf32, #tpu.memory_space<vmem>>, vector<1x128xf32>
    %11 = vector.broadcast %10 : vector<1x128xf32> to vector<288x128xf32>
    %12 = arith.addf %9, %11 : vector<288x128xf32>
    %cst_5 = arith.constant 0.000000e+00 : f32
    %13 = vector.broadcast %cst_5 : f32 to vector<288x128xf32>
    %14 = arith.maximumf %12, %13 : vector<288x128xf32>
    %15 = vector.extract_strided_slice %14 {offsets = [0, 0], sizes = [184, 128], strides = [1, 1]} : vector<288x128xf32> to vector<184x128xf32>
    %16 = vector.extract_strided_slice %14 {offsets = [2, 0], sizes = [184, 128], strides = [1, 1]} : vector<288x128xf32> to vector<184x128xf32>
    %17 = vector.extract_strided_slice %14 {offsets = [4, 0], sizes = [184, 128], strides = [1, 1]} : vector<288x128xf32> to vector<184x128xf32>
    %18 = vector.extract_strided_slice %14 {offsets = [6, 0], sizes = [184, 128], strides = [1, 1]} : vector<288x128xf32> to vector<184x128xf32>
    %19 = vector.extract_strided_slice %14 {offsets = [8, 0], sizes = [184, 128], strides = [1, 1]} : vector<288x128xf32> to vector<184x128xf32>
    %20 = vector.extract_strided_slice %14 {offsets = [24, 0], sizes = [184, 128], strides = [1, 1]} : vector<288x128xf32> to vector<184x128xf32>
    %21 = vector.extract_strided_slice %14 {offsets = [26, 0], sizes = [184, 128], strides = [1, 1]} : vector<288x128xf32> to vector<184x128xf32>
    %22 = vector.extract_strided_slice %14 {offsets = [28, 0], sizes = [184, 128], strides = [1, 1]} : vector<288x128xf32> to vector<184x128xf32>
    %23 = vector.extract_strided_slice %14 {offsets = [30, 0], sizes = [184, 128], strides = [1, 1]} : vector<288x128xf32> to vector<184x128xf32>
    %24 = vector.extract_strided_slice %14 {offsets = [32, 0], sizes = [184, 128], strides = [1, 1]} : vector<288x128xf32> to vector<184x128xf32>
    %25 = vector.extract_strided_slice %14 {offsets = [48, 0], sizes = [184, 128], strides = [1, 1]} : vector<288x128xf32> to vector<184x128xf32>
    %26 = vector.extract_strided_slice %14 {offsets = [50, 0], sizes = [184, 128], strides = [1, 1]} : vector<288x128xf32> to vector<184x128xf32>
    %27 = vector.extract_strided_slice %14 {offsets = [52, 0], sizes = [184, 128], strides = [1, 1]} : vector<288x128xf32> to vector<184x128xf32>
    %28 = vector.extract_strided_slice %14 {offsets = [54, 0], sizes = [184, 128], strides = [1, 1]} : vector<288x128xf32> to vector<184x128xf32>
    %29 = vector.extract_strided_slice %14 {offsets = [56, 0], sizes = [184, 128], strides = [1, 1]} : vector<288x128xf32> to vector<184x128xf32>
    %30 = vector.extract_strided_slice %14 {offsets = [72, 0], sizes = [184, 128], strides = [1, 1]} : vector<288x128xf32> to vector<184x128xf32>
    %31 = vector.extract_strided_slice %14 {offsets = [74, 0], sizes = [184, 128], strides = [1, 1]} : vector<288x128xf32> to vector<184x128xf32>
    %32 = vector.extract_strided_slice %14 {offsets = [76, 0], sizes = [184, 128], strides = [1, 1]} : vector<288x128xf32> to vector<184x128xf32>
    %33 = vector.extract_strided_slice %14 {offsets = [78, 0], sizes = [184, 128], strides = [1, 1]} : vector<288x128xf32> to vector<184x128xf32>
    %34 = vector.extract_strided_slice %14 {offsets = [80, 0], sizes = [184, 128], strides = [1, 1]} : vector<288x128xf32> to vector<184x128xf32>
    %35 = vector.extract_strided_slice %14 {offsets = [96, 0], sizes = [184, 128], strides = [1, 1]} : vector<288x128xf32> to vector<184x128xf32>
    %36 = vector.extract_strided_slice %14 {offsets = [98, 0], sizes = [184, 128], strides = [1, 1]} : vector<288x128xf32> to vector<184x128xf32>
    %37 = vector.extract_strided_slice %14 {offsets = [100, 0], sizes = [184, 128], strides = [1, 1]} : vector<288x128xf32> to vector<184x128xf32>
    %38 = vector.extract_strided_slice %14 {offsets = [102, 0], sizes = [184, 128], strides = [1, 1]} : vector<288x128xf32> to vector<184x128xf32>
    %39 = vector.extract_strided_slice %14 {offsets = [104, 0], sizes = [184, 128], strides = [1, 1]} : vector<288x128xf32> to vector<184x128xf32>
    %40 = tpu.concatenate %15, %16, %17, %18, %19, %20, %21, %22, %23, %24, %25, %26, %27, %28, %29, %30 in 1 : vector<184x128xf32>, vector<184x128xf32>, vector<184x128xf32>, vector<184x128xf32>, vector<184x128xf32>, vector<184x128xf32>, vector<184x128xf32>, vector<184x128xf32>, vector<184x128xf32>, vector<184x128xf32>, vector<184x128xf32>, vector<184x128xf32>, vector<184x128xf32>, vector<184x128xf32>, vector<184x128xf32>, vector<184x128xf32> -> vector<184x2048xf32>
    %41 = tpu.concatenate %31, %32, %33, %34, %35, %36, %37, %38, %39 in 1 : vector<184x128xf32>, vector<184x128xf32>, vector<184x128xf32>, vector<184x128xf32>, vector<184x128xf32>, vector<184x128xf32>, vector<184x128xf32>, vector<184x128xf32>, vector<184x128xf32> -> vector<184x1152xf32>
    %42 = tpu.concatenate %40, %41 in 1 : vector<184x2048xf32>, vector<184x1152xf32> -> vector<184x3200xf32>
    %43 = arith.truncf %42 : vector<184x3200xf32> to vector<184x3200xbf16>
    %c0_6 = arith.constant 0 : index
    %c0_7 = arith.constant 0 : index
    %44 = vector.load %arg4[%c0_6, %c0_7] : memref<3200x128xbf16, #tpu.memory_space<vmem>>, vector<3200x128xbf16>
    %cst_8 = arith.constant dense<0.000000e+00> : vector<184x128xf32>
    %45 = tpu.matmul %43, %44, %cst_8 {dimension_numbers = #tpu.dot_dimension_numbers<[1], [0], [0], [1], [0, 0, 1, 1], [], []>} : vector<184x3200xbf16>, vector<3200x128xbf16>, vector<184x128xf32> -> vector<184x128xf32>
    %46 = vector.extract_strided_slice %45 {offsets = [0, 0], sizes = [158, 128], strides = [1, 1]} : vector<184x128xf32> to vector<158x128xf32>
    %47 = vector.extract_strided_slice %45 {offsets = [2, 0], sizes = [158, 128], strides = [1, 1]} : vector<184x128xf32> to vector<158x128xf32>
    %48 = arith.maximumf %46, %47 : vector<158x128xf32>
    %49 = vector.extract_strided_slice %45 {offsets = [24, 0], sizes = [158, 128], strides = [1, 1]} : vector<184x128xf32> to vector<158x128xf32>
    %50 = vector.extract_strided_slice %45 {offsets = [26, 0], sizes = [158, 128], strides = [1, 1]} : vector<184x128xf32> to vector<158x128xf32>
    %51 = arith.maximumf %49, %50 : vector<158x128xf32>
    %52 = arith.maximumf %48, %51 : vector<158x128xf32>
    %c0_9 = arith.constant 0 : index
    %c0_10 = arith.constant 0 : index
    %53 = vector.load %arg5[%c0_9, %c0_10] : memref<1x128xf32, #tpu.memory_space<vmem>>, vector<1x128xf32>
    %54 = vector.broadcast %53 : vector<1x128xf32> to vector<158x128xf32>
    %55 = arith.addf %52, %54 : vector<158x128xf32>
    %cst_11 = arith.constant 0.000000e+00 : f32
    %56 = vector.broadcast %cst_11 : f32 to vector<158x128xf32>
    %57 = arith.maximumf %55, %56 : vector<158x128xf32>
    %58 = vector.extract_strided_slice %57 {offsets = [0, 0], sizes = [2, 128], strides = [1, 1]} : vector<158x128xf32> to vector<2x128xf32>
    %59 = vector.extract_strided_slice %57 {offsets = [4, 0], sizes = [2, 128], strides = [1, 1]} : vector<158x128xf32> to vector<2x128xf32>
    %60 = vector.extract_strided_slice %57 {offsets = [8, 0], sizes = [2, 128], strides = [1, 1]} : vector<158x128xf32> to vector<2x128xf32>
    %61 = vector.extract_strided_slice %57 {offsets = [12, 0], sizes = [2, 128], strides = [1, 1]} : vector<158x128xf32> to vector<2x128xf32>
    %62 = vector.extract_strided_slice %57 {offsets = [48, 0], sizes = [2, 128], strides = [1, 1]} : vector<158x128xf32> to vector<2x128xf32>
    %63 = vector.extract_strided_slice %57 {offsets = [52, 0], sizes = [2, 128], strides = [1, 1]} : vector<158x128xf32> to vector<2x128xf32>
    %64 = vector.extract_strided_slice %57 {offsets = [56, 0], sizes = [2, 128], strides = [1, 1]} : vector<158x128xf32> to vector<2x128xf32>
    %65 = vector.extract_strided_slice %57 {offsets = [60, 0], sizes = [2, 128], strides = [1, 1]} : vector<158x128xf32> to vector<2x128xf32>
    %66 = vector.extract_strided_slice %57 {offsets = [96, 0], sizes = [2, 128], strides = [1, 1]} : vector<158x128xf32> to vector<2x128xf32>
    %67 = vector.extract_strided_slice %57 {offsets = [100, 0], sizes = [2, 128], strides = [1, 1]} : vector<158x128xf32> to vector<2x128xf32>
    %68 = vector.extract_strided_slice %57 {offsets = [104, 0], sizes = [2, 128], strides = [1, 1]} : vector<158x128xf32> to vector<2x128xf32>
    %69 = vector.extract_strided_slice %57 {offsets = [108, 0], sizes = [2, 128], strides = [1, 1]} : vector<158x128xf32> to vector<2x128xf32>
    %70 = vector.extract_strided_slice %57 {offsets = [144, 0], sizes = [2, 128], strides = [1, 1]} : vector<158x128xf32> to vector<2x128xf32>
    %71 = vector.extract_strided_slice %57 {offsets = [148, 0], sizes = [2, 128], strides = [1, 1]} : vector<158x128xf32> to vector<2x128xf32>
    %72 = vector.extract_strided_slice %57 {offsets = [152, 0], sizes = [2, 128], strides = [1, 1]} : vector<158x128xf32> to vector<2x128xf32>
    %73 = vector.extract_strided_slice %57 {offsets = [156, 0], sizes = [2, 128], strides = [1, 1]} : vector<158x128xf32> to vector<2x128xf32>
    %74 = tpu.concatenate %58, %59, %60, %61, %62, %63, %64, %65, %66, %67, %68, %69, %70, %71, %72, %73 in 1 : vector<2x128xf32>, vector<2x128xf32>, vector<2x128xf32>, vector<2x128xf32>, vector<2x128xf32>, vector<2x128xf32>, vector<2x128xf32>, vector<2x128xf32>, vector<2x128xf32>, vector<2x128xf32>, vector<2x128xf32>, vector<2x128xf32>, vector<2x128xf32>, vector<2x128xf32>, vector<2x128xf32>, vector<2x128xf32> -> vector<2x2048xf32>
    %75 = arith.truncf %74 : vector<2x2048xf32> to vector<2x2048xbf16>
    %c0_12 = arith.constant 0 : index
    %c0_13 = arith.constant 0 : index
    %76 = vector.load %arg6[%c0_12, %c0_13] : memref<2048x512xbf16, #tpu.memory_space<vmem>>, vector<2048x512xbf16>
    %cst_14 = arith.constant dense<0.000000e+00> : vector<2x512xf32>
    %77 = tpu.matmul %75, %76, %cst_14 {dimension_numbers = #tpu.dot_dimension_numbers<[1], [0], [0], [1], [0, 0, 1, 1], [], []>} : vector<2x2048xbf16>, vector<2048x512xbf16>, vector<2x512xf32> -> vector<2x512xf32>
    %c0_15 = arith.constant 0 : index
    %c0_16 = arith.constant 0 : index
    %78 = vector.load %arg7[%c0_15, %c0_16] : memref<1x512xf32, #tpu.memory_space<vmem>>, vector<1x512xf32>
    %79 = vector.broadcast %78 : vector<1x512xf32> to vector<2x512xf32>
    %80 = arith.addf %77, %79 : vector<2x512xf32>
    %cst_17 = arith.constant 0.000000e+00 : f32
    %81 = vector.broadcast %cst_17 : f32 to vector<2x512xf32>
    %82 = arith.maximumf %80, %81 : vector<2x512xf32>
    %83 = arith.truncf %82 : vector<2x512xf32> to vector<2x512xbf16>
    %c0_18 = arith.constant 0 : index
    %c0_19 = arith.constant 0 : index
    %84 = vector.load %arg8[%c0_18, %c0_19] : memref<512x128xbf16, #tpu.memory_space<vmem>>, vector<512x128xbf16>
    %cst_20 = arith.constant dense<0.000000e+00> : vector<2x128xf32>
    %85 = tpu.matmul %83, %84, %cst_20 {dimension_numbers = #tpu.dot_dimension_numbers<[1], [0], [0], [1], [0, 0, 1, 1], [], []>} : vector<2x512xbf16>, vector<512x128xbf16>, vector<2x128xf32> -> vector<2x128xf32>
    %c0_21 = arith.constant 0 : index
    %c0_22 = arith.constant 0 : index
    %86 = vector.load %arg9[%c0_21, %c0_22] : memref<1x128xf32, #tpu.memory_space<vmem>>, vector<1x128xf32>
    %87 = vector.broadcast %86 : vector<1x128xf32> to vector<2x128xf32>
    %88 = arith.addf %85, %87 : vector<2x128xf32>
    %cst_23 = arith.constant dense<0xFF800000> : vector<2xf32>
    %89 = vector.multi_reduction <maximumf>, %88, %cst_23 [1] : vector<2x128xf32> to vector<2xf32>
    %90 = vector.shape_cast %89 : vector<2xf32> to vector<2x1xf32>
    %91 = vector.broadcast %90 : vector<2x1xf32> to vector<2x128xf32>
    %92 = arith.subf %88, %91 : vector<2x128xf32>
    %93 = math.exp %92 : vector<2x128xf32>
    %cst_24 = arith.constant dense<0.000000e+00> : vector<2xf32>
    %94 = vector.multi_reduction <add>, %93, %cst_24 [1] : vector<2x128xf32> to vector<2xf32>
    %95 = vector.shape_cast %94 : vector<2xf32> to vector<2x1xf32>
    %96 = math.log %95 : vector<2x1xf32>
    %97 = vector.broadcast %96 : vector<2x1xf32> to vector<2x128xf32>
    %98 = arith.subf %92, %97 : vector<2x128xf32>
    %c0_25 = arith.constant 0 : index
    %c0_26 = arith.constant 0 : index
    %99 = vector.load %arg10[%c0_25, %c0_26] : memref<2x128xf32, #tpu.memory_space<vmem>>, vector<2x128xf32>
    tpu.vector_store %arg10[%c0_25, %c0_26], %98 {strides = array<i32>} : memref<2x128xf32, #tpu.memory_space<vmem>>, vector<2x128xf32>,
    return
  }
  func.func @transform_0(%arg0: i32) -> (i32, i32) {
    %c0_i32 = arith.constant 0 : i32
    %c0_i32_0 = arith.constant 0 : i32
    %c0_i32_1 = arith.constant 0 : i32
    return %c0_i32, %c0_i32_0 : i32, i32
  }
  func.func @transform_1(%arg0: i32) -> (i32, i32) {
    %c0_i32 = arith.constant 0 : i32
    %c0_i32_0 = arith.constant 0 : i32
    %c0_i32_1 = arith.constant 0 : i32
    return %c0_i32, %c0_i32_0 : i32, i32
  }
  func.func @transform_2(%arg0: i32) -> (i32, i32) {
    %c0_i32 = arith.constant 0 : i32
    %c0_i32_0 = arith.constant 0 : i32
    %c0_i32_1 = arith.constant 0 : i32
    return %c0_i32, %c0_i32_0 : i32, i32
  }
  func.func @transform_3(%arg0: i32) -> (i32, i32) {
    %c0_i32 = arith.constant 0 : i32
    %c0_i32_0 = arith.constant 0 : i32
    %c0_i32_1 = arith.constant 0 : i32
    return %c0_i32, %c0_i32_0 : i32, i32
  }
  func.func @transform_4(%arg0: i32) -> (i32, i32) {
    %c0_i32 = arith.constant 0 : i32
    %c0_i32_0 = arith.constant 0 : i32
    %c0_i32_1 = arith.constant 0 : i32
    return %c0_i32, %c0_i32_0 : i32, i32
  }
  func.func @transform_5(%arg0: i32) -> (i32, i32) {
    %c0_i32 = arith.constant 0 : i32
    %c0_i32_0 = arith.constant 0 : i32
    %c0_i32_1 = arith.constant 0 : i32
    return %c0_i32, %c0_i32_0 : i32, i32
  }
  func.func @transform_6(%arg0: i32) -> (i32, i32) {
    %c0_i32 = arith.constant 0 : i32
    %c0_i32_0 = arith.constant 0 : i32
    %c0_i32_1 = arith.constant 0 : i32
    return %c0_i32, %c0_i32_0 : i32, i32
  }
  func.func @transform_7(%arg0: i32) -> (i32, i32) {
    %c0_i32 = arith.constant 0 : i32
    %c0_i32_0 = arith.constant 0 : i32
    %c0_i32_1 = arith.constant 0 : i32
    return %c0_i32, %c0_i32_0 : i32, i32
  }
  func.func @transform_8(%arg0: i32) -> (i32, i32) {
    %c0_i32 = arith.constant 0 : i32
    %c0_i32_0 = arith.constant 0 : i32
    %c0_i32_1 = arith.constant 0 : i32
    return %c0_i32, %c0_i32_0 : i32, i32
  }
  func.func @transform_9(%arg0: i32) -> (i32, i32) {
    %c0_i32 = arith.constant 0 : i32
    %c0_i32_0 = arith.constant 0 : i32
    %c0_i32_1 = arith.constant 0 : i32
    return %c0_i32, %c0_i32_0 : i32, i32
  }
}

</mosaic_0001>

<llo_original>
// kernel: membrane_net_forward.1
$region0: #{membrane_net_forward.1}
  #allocation0 [shape = 'u32[]', space=smem, size = 0x4, offset = 0x4, fixed_abs, tag = 'smem constant byte address 0x4 - core index']
  #allocation1 [shape = 'u32[144,128]{1,0:T(1,128)}', space=vmem, size = 0x12000, scoped, tag = 'internal scratch']
  %s0 = inlined_call_operand.vmem [shape: bf16[1152,128], index: 0, kind: input, shape index: {}]
  %s1 = inlined_call_operand.vmem [shape: bf16[128,128], index: 1, kind: input, shape index: {}]
  %s2 = inlined_call_operand.vmem [shape: f32[1,128], index: 2, kind: input, shape index: {}]
  %s3 = inlined_call_operand.vmem [shape: bf16[3200,128], index: 3, kind: input, shape index: {}]
  %s4 = inlined_call_operand.vmem [shape: f32[1,128], index: 4, kind: input, shape index: {}]
  %s5 = inlined_call_operand.vmem [shape: bf16[2048,512], index: 5, kind: input, shape index: {}]
  %s6 = inlined_call_operand.vmem [shape: f32[1,512], index: 6, kind: input, shape index: {}]
  %s7 = inlined_call_operand.vmem [shape: bf16[512,128], index: 7, kind: input, shape index: {}]
  %s8 = inlined_call_operand.vmem [shape: f32[1,128], index: 8, kind: input, shape index: {}]
  %s9 = inlined_call_operand.hbm [shape: f32[2,128], index: 9, kind: output, shape index: {}]
  %s10 = sld [smem:[#allocation0]]
  $region46: #{membrane_net_forward.1} parent=0
    _
  %s12 = ssub.s32 1, %s10
  %s13 = scalar_select 0, %s12, %s10
  $region1: #{membrane_net_forward.1} parent=0
    #allocation2 [shape = 'u8[1024]{0}', space=vmem, size = 0x400, scoped, tag = 'output window, operand 0, single buffered']
    #allocation3 [shape = 's32[1]{0}', space=sflag, size = 0x4, scoped, tag = 'scoped memory for membrane_net_forward.1']
    %14 = vsyncpa [#allocation3], 0
    // Predicated region
    $region2: #{membrane_net_forward.1} parent=1 // pred_check
      _
    $region3: #{membrane_net_forward.1} parent=1 // pred_check_branch
      %16 = sbr.rel (0) target = $region5
    $region4: #{membrane_net_forward.1} parent=1 // pred_region
      _
    $region5: #{membrane_net_forward.1} parent=1 // pred_fallthru
      _
    // Predicated region
    $region6: #{membrane_net_forward.1} parent=1 // pred_check
      _
    $region7: #{membrane_net_forward.1} parent=1 // pred_check_branch
      %18 = sbr.rel (0) target = $region9
    $region8: #{membrane_net_forward.1} parent=1 // pred_region
      _
    $region9: #{membrane_net_forward.1} parent=1 // pred_fallthru
      _
    // Predicated region
    $region10: #{membrane_net_forward.1} parent=1 // pred_check
      _
    $region11: #{membrane_net_forward.1} parent=1 // pred_check_branch
      %20 = sbr.rel (0) target = $region13
    $region12: #{membrane_net_forward.1} parent=1 // pred_region
      _
    $region13: #{membrane_net_forward.1} parent=1 // pred_fallthru
      _
    // Predicated region
    $region14: #{membrane_net_forward.1} parent=1 // pred_check
      _
    $region15: #{membrane_net_forward.1} parent=1 // pred_check_branch
      %22 = sbr.rel (0) target = $region17
    $region16: #{membrane_net_forward.1} parent=1 // pred_region
      _
    $region17: #{membrane_net_forward.1} parent=1 // pred_fallthru
      _
    // Predicated region
    $region18: #{membrane_net_forward.1} parent=1 // pred_check
      _
    $region19: #{membrane_net_forward.1} parent=1 // pred_check_branch
      %24 = sbr.rel (0) target = $region21
    $region20: #{membrane_net_forward.1} parent=1 // pred_region
      _
    $region21: #{membrane_net_forward.1} parent=1 // pred_fallthru
      _
    // Predicated region
    $region22: #{membrane_net_forward.1} parent=1 // pred_check
      _
    $region23: #{membrane_net_forward.1} parent=1 // pred_check_branch
      %26 = sbr.rel (0) target = $region25
    $region24: #{membrane_net_forward.1} parent=1 // pred_region
      _
    $region25: #{membrane_net_forward.1} parent=1 // pred_fallthru
      _
    // Predicated region
    $region26: #{membrane_net_forward.1} parent=1 // pred_check
      _
    $region27: #{membrane_net_forward.1} parent=1 // pred_check_branch
      %28 = sbr.rel (0) target = $region29
    $region28: #{membrane_net_forward.1} parent=1 // pred_region
      _
    $region29: #{membrane_net_forward.1} parent=1 // pred_fallthru
      _
    // Predicated region
    $region30: #{membrane_net_forward.1} parent=1 // pred_check
      _
    $region31: #{membrane_net_forward.1} parent=1 // pred_check_branch
      %30 = sbr.rel (0) target = $region33
    $region32: #{membrane_net_forward.1} parent=1 // pred_region
      _
    $region33: #{membrane_net_forward.1} parent=1 // pred_fallthru
      _
    // Predicated region
    $region34: #{membrane_net_forward.1} parent=1 // pred_check
      _
    $region35: #{membrane_net_forward.1} parent=1 // pred_check_branch
      %32 = sbr.rel (0) target = $region37
    $region36: #{membrane_net_forward.1} parent=1 // pred_region
      _
    $region37: #{membrane_net_forward.1} parent=1 // pred_fallthru
      _
    %v34 = vld [vmem:[%s0] sm:$0xf]
    %v35 = vld [vmem:[%s0 + $0x4] sm:$0xf]
    %v36 = vld [vmem:[%s0 + $0x8] sm:$0xf]
    %v37 = vld [vmem:[%s0 + $0xc] sm:$0xf]
    %v38 = vld [vmem:[%s0 + $0x10] sm:$0xf]
    %v39 = vld [vmem:[%s0 + $0x14] sm:$0xf]
    %v40 = vld [vmem:[%s0 + $0x18] sm:$0xf]
    %v41 = vld [vmem:[%s0 + $0x1c] sm:$0xf]
    %v42 = vld [vmem:[%s0 + $0x20] sm:$0xf]
    %v43 = vld [vmem:[%s0 + $0x24] sm:$0xf]
    %v44 = vld [vmem:[%s0 + $0x28] sm:$0xf]
    %v45 = vld [vmem:[%s0 + $0x2c] sm:$0xf]
    %v46 = vld [vmem:[%s0 + $0x30] sm:$0xf]
    %v47 = vld [vmem:[%s0 + $0x34] sm:$0xf]
    %v48 = vld [vmem:[%s0 + $0x38] sm:$0xf]
    %v49 = vld [vmem:[%s0 + $0x3c] sm:$0xf]
    %v50 = vld [vmem:[%s0 + $0x40] sm:$0xf]
    %v51 = vld [vmem:[%s0 + $0x44] sm:$0xf]
    %v52 = vld [vmem:[%s0 + $0x48] sm:$0xf]
    %v53 = vld [vmem:[%s0 + $0x4c] sm:$0xf]
    %v54 = vld [vmem:[%s0 + $0x50] sm:$0xf]
    %v55 = vld [vmem:[%s0 + $0x54] sm:$0xf]
    %v56 = vld [vmem:[%s0 + $0x58] sm:$0xf]
    %v57 = vld [vmem:[%s0 + $0x5c] sm:$0xf]
    %v58 = vld [vmem:[%s0 + $0x60] sm:$0xf]
    %v59 = vld [vmem:[%s0 + $0x64] sm:$0xf]
    %v60 = vld [vmem:[%s0 + $0x68] sm:$0xf]
    %v61 = vld [vmem:[%s0 + $0x6c] sm:$0xf]
    %v62 = vld [vmem:[%s0 + $0x70] sm:$0xf]
    %v63 = vld [vmem:[%s0 + $0x74] sm:$0xf]
    %v64 = vld [vmem:[%s0 + $0x78] sm:$0xf]
    %v65 = vld [vmem:[%s0 + $0x7c] sm:$0xf]
    %v66 = vld [vmem:[%s0 + $0x80] sm:$0xf]
    %v67 = vld [vmem:[%s0 + $0x84] sm:$0xf]
    %v68 = vld [vmem:[%s0 + $0x88] sm:$0xf]
    %v69 = vld [vmem:[%s0 + $0x8c] sm:$0xf]
    %v70 = vld [vmem:[%s0 + $0x90] sm:$0xf]
    %v71 = vld [vmem:[%s0 + $0x94] sm:$0xf]
    %v72 = vld [vmem:[%s0 + $0x98] sm:$0xf]
    %v73 = vld [vmem:[%s0 + $0x9c] sm:$0xf]
    %v74 = vld [vmem:[%s0 + $0xa0] sm:$0xf]
    %v75 = vld [vmem:[%s0 + $0xa4] sm:$0xf]
    %v76 = vld [vmem:[%s0 + $0xa8] sm:$0xf]
    %v77 = vld [vmem:[%s0 + $0xac] sm:$0xf]
    %v78 = vld [vmem:[%s0 + $0xb0] sm:$0xf]
    %v79 = vld [vmem:[%s0 + $0xb4] sm:$0xf]
    %v80 = vld [vmem:[%s0 + $0xb8] sm:$0xf]
    %v81 = vld [vmem:[%s0 + $0xbc] sm:$0xf]
    %v82 = vld [vmem:[%s0 + $0xc0] sm:$0xf]
    %v83 = vld [vmem:[%s0 + $0xc4] sm:$0xf]
    %v84 = vld [vmem:[%s0 + $0xc8] sm:$0xf]
    %v85 = vld [vmem:[%s0 + $0xcc] sm:$0xf]
    %v86 = vld [vmem:[%s0 + $0xd0] sm:$0xf]
    %v87 = vld [vmem:[%s0 + $0xd4] sm:$0xf]
    %v88 = vld [vmem:[%s0 + $0xd8] sm:$0xf]
    %v89 = vld [vmem:[%s0 + $0xdc] sm:$0xf]
    %v90 = vld [vmem:[%s0 + $0xe0] sm:$0xf]
    %v91 = vld [vmem:[%s0 + $0xe4] sm:$0xf]
    %v92 = vld [vmem:[%s0 + $0xe8] sm:$0xf]
    %v93 = vld [vmem:[%s0 + $0xec] sm:$0xf]
    %v94 = vld [vmem:[%s0 + $0xf0] sm:$0xf]
    %v95 = vld [vmem:[%s0 + $0xf4] sm:$0xf]
    %v96 = vld [vmem:[%s0 + $0xf8] sm:$0xf]
    %v97 = vld [vmem:[%s0 + $0xfc] sm:$0xf]
    %v98 = vld [vmem:[%s0 + $0x100] sm:$0xf]
    %v99 = vld [vmem:[%s0 + $0x104] sm:$0xf]
    %v100 = vld [vmem:[%s0 + $0x108] sm:$0xf]
    %v101 = vld [vmem:[%s0 + $0x10c] sm:$0xf]
    %v102 = vld [vmem:[%s0 + $0x110] sm:$0xf]
    %v103 = vld [vmem:[%s0 + $0x114] sm:$0xf]
    %v104 = vld [vmem:[%s0 + $0x118] sm:$0xf]
    %v105 = vld [vmem:[%s0 + $0x11c] sm:$0xf]
    %v106 = vld [vmem:[%s0 + $0x120] sm:$0xf]
    %v107 = vld [vmem:[%s0 + $0x124] sm:$0xf]
    %v108 = vld [vmem:[%s0 + $0x128] sm:$0xf]
    %v109 = vld [vmem:[%s0 + $0x12c] sm:$0xf]
    %v110 = vld [vmem:[%s0 + $0x130] sm:$0xf]
    %v111 = vld [vmem:[%s0 + $0x134] sm:$0xf]
    %v112 = vld [vmem:[%s0 + $0x138] sm:$0xf]
    %v113 = vld [vmem:[%s0 + $0x13c] sm:$0xf]
    %v114 = vld [vmem:[%s0 + $0x140] sm:$0xf]
    %v115 = vld [vmem:[%s0 + $0x144] sm:$0xf]
    %v116 = vld [vmem:[%s0 + $0x148] sm:$0xf]
    %v117 = vld [vmem:[%s0 + $0x14c] sm:$0xf]
    %v118 = vld [vmem:[%s0 + $0x150] sm:$0xf]
    %v119 = vld [vmem:[%s0 + $0x154] sm:$0xf]
    %v120 = vld [vmem:[%s0 + $0x158] sm:$0xf]
    %v121 = vld [vmem:[%s0 + $0x15c] sm:$0xf]
    %v122 = vld [vmem:[%s0 + $0x160] sm:$0xf]
    %v123 = vld [vmem:[%s0 + $0x164] sm:$0xf]
    %v124 = vld [vmem:[%s0 + $0x168] sm:$0xf]
    %v125 = vld [vmem:[%s0 + $0x16c] sm:$0xf]
    %v126 = vld [vmem:[%s0 + $0x170] sm:$0xf]
    %v127 = vld [vmem:[%s0 + $0x174] sm:$0xf]
    %v128 = vld [vmem:[%s0 + $0x178] sm:$0xf]
    %v129 = vld [vmem:[%s0 + $0x17c] sm:$0xf]
    %v130 = vld [vmem:[%s0 + $0x180] sm:$0xf]
    %v131 = vld [vmem:[%s0 + $0x184] sm:$0xf]
    %v132 = vld [vmem:[%s0 + $0x188] sm:$0xf]
    %v133 = vld [vmem:[%s0 + $0x18c] sm:$0xf]
    %v134 = vld [vmem:[%s0 + $0x190] sm:$0xf]
    %v135 = vld [vmem:[%s0 + $0x194] sm:$0xf]
    %v136 = vld [vmem:[%s0 + $0x198] sm:$0xf]
    %v137 = vld [vmem:[%s0 + $0x19c] sm:$0xf]
    %v138 = vld [vmem:[%s0 + $0x1a0] sm:$0xf]
    %v139 = vld [vmem:[%s0 + $0x1a4] sm:$0xf]
    %v140 = vld [vmem:[%s0 + $0x1a8] sm:$0xf]
    %v141 = vld [vmem:[%s0 + $0x1ac] sm:$0xf]
    %v142 = vld [vmem:[%s0 + $0x1b0] sm:$0xf]
    %v143 = vld [vmem:[%s0 + $0x1b4] sm:$0xf]
    %v144 = vld [vmem:[%s0 + $0x1b8] sm:$0xf]
    %v145 = vld [vmem:[%s0 + $0x1bc] sm:$0xf]
    %v146 = vld [vmem:[%s0 + $0x1c0] sm:$0xf]
    %v147 = vld [vmem:[%s0 + $0x1c4] sm:$0xf]
    %v148 = vld [vmem:[%s0 + $0x1c8] sm:$0xf]
    %v149 = vld [vmem:[%s0 + $0x1cc] sm:$0xf]
    %v150 = vld [vmem:[%s0 + $0x1d0] sm:$0xf]
    %v151 = vld [vmem:[%s0 + $0x1d4] sm:$0xf]
    %v152 = vld [vmem:[%s0 + $0x1d8] sm:$0xf]
    %v153 = vld [vmem:[%s0 + $0x1dc] sm:$0xf]
    %v154 = vld [vmem:[%s0 + $0x1e0] sm:$0xf]
    %v155 = vld [vmem:[%s0 + $0x1e4] sm:$0xf]
    %v156 = vld [vmem:[%s0 + $0x1e8] sm:$0xf]
    %v157 = vld [vmem:[%s0 + $0x1ec] sm:$0xf]
    %v158 = vld [vmem:[%s0 + $0x1f0] sm:$0xf]
    %v159 = vld [vmem:[%s0 + $0x1f4] sm:$0xf]
    %v160 = vld [vmem:[%s0 + $0x1f8] sm:$0xf]
    %v161 = vld [vmem:[%s0 + $0x1fc] sm:$0xf]
    %v162 = vld [vmem:[%s0 + $0x200] sm:$0xf]
    %v163 = vld [vmem:[%s0 + $0x204] sm:$0xf]
    %v164 = vld [vmem:[%s0 + $0x208] sm:$0xf]
    %v165 = vld [vmem:[%s0 + $0x20c] sm:$0xf]
    %v166 = vld [vmem:[%s0 + $0x210] sm:$0xf]
    %v167 = vld [vmem:[%s0 + $0x214] sm:$0xf]
    %v168 = vld [vmem:[%s0 + $0x218] sm:$0xf]
    %v169 = vld [vmem:[%s0 + $0x21c] sm:$0xf]
    %v170 = vld [vmem:[%s0 + $0x220] sm:$0xf]
    %v171 = vld [vmem:[%s0 + $0x224] sm:$0xf]
    %v172 = vld [vmem:[%s0 + $0x228] sm:$0xf]
    %v173 = vld [vmem:[%s0 + $0x22c] sm:$0xf]
    %v174 = vld [vmem:[%s0 + $0x230] sm:$0xf]
    %v175 = vld [vmem:[%s0 + $0x234] sm:$0xf]
    %v176 = vld [vmem:[%s0 + $0x238] sm:$0xf]
    %v177 = vld [vmem:[%s0 + $0x23c] sm:$0xf]
    %v178 = vld [vmem:[%s1] sm:$0xf]
    %v179 = vld [vmem:[%s1 + $0x4] sm:$0xf]
    %v180 = vld [vmem:[%s1 + $0x8] sm:$0xf]
    %v181 = vld [vmem:[%s1 + $0xc] sm:$0xf]
    %v182 = vld [vmem:[%s1 + $0x10] sm:$0xf]
    %v183 = vld [vmem:[%s1 + $0x14] sm:$0xf]
    %v184 = vld [vmem:[%s1 + $0x18] sm:$0xf]
    %v185 = vld [vmem:[%s1 + $0x1c] sm:$0xf]
    %v186 = vld [vmem:[%s1 + $0x20] sm:$0xf]
    %v187 = vld [vmem:[%s1 + $0x24] sm:$0xf]
    %v188 = vld [vmem:[%s1 + $0x28] sm:$0xf]
    %v189 = vld [vmem:[%s1 + $0x2c] sm:$0xf]
    %v190 = vld [vmem:[%s1 + $0x30] sm:$0xf]
    %v191 = vld [vmem:[%s1 + $0x34] sm:$0xf]
    %v192 = vld [vmem:[%s1 + $0x38] sm:$0xf]
    %v193 = vld [vmem:[%s1 + $0x3c] sm:$0xf]
    %v338 = vunpack.c.l.b16 %v34
    %v339 = vunpack.c.l.b16 %v35
    %v340 = vunpack.c.l.b16 %v36
    %v341 = vunpack.c.l.b16 %v37
    %v342 = vunpack.c.l.b16 %v38
    %v343 = vunpack.c.l.b16 %v39
    %v344 = vunpack.c.l.b16 %v40
    %v345 = vunpack.c.l.b16 %v41
    %v346 = vunpack.c.l.b16 %v42
    %v347 = vunpack.c.l.b16 %v43
    %v348 = vunpack.c.l.b16 %v44
    %v349 = vunpack.c.l.b16 %v45
    %v350 = vunpack.c.l.b16 %v46
    %v351 = vunpack.c.l.b16 %v47
    %v352 = vunpack.c.l.b16 %v48
    %v353 = vunpack.c.l.b16 %v49
    %v354 = vunpack.c.l.b16 %v50
    %v355 = vunpack.c.l.b16 %v51
    %v356 = vunpack.c.l.b16 %v52
    %v357 = vunpack.c.l.b16 %v53
    %v358 = vunpack.c.l.b16 %v54
    %v359 = vunpack.c.l.b16 %v55
    %v360 = vunpack.c.l.b16 %v56
    %v361 = vunpack.c.l.b16 %v57
    %v362 = vunpack.c.l.b16 %v58
    %v363 = vunpack.c.l.b16 %v59
    %v364 = vunpack.c.l.b16 %v60
    %v365 = vunpack.c.l.b16 %v61
    %v366 = vunpack.c.l.b16 %v62
    %v367 = vunpack.c.l.b16 %v63
    %v368 = vunpack.c.l.b16 %v64
    %v369 = vunpack.c.l.b16 %v65
    %v370 = vunpack.c.l.b16 %v66
    %v371 = vunpack.c.l.b16 %v67
    %v372 = vunpack.c.l.b16 %v68
    %v373 = vunpack.c.l.b16 %v69
    %v374 = vunpack.c.l.b16 %v70
    %v375 = vunpack.c.l.b16 %v71
    %v376 = vunpack.c.l.b16 %v72
    %v377 = vunpack.c.l.b16 %v73
    %v378 = vunpack.c.l.b16 %v74
    %v379 = vunpack.c.l.b16 %v75
    %v380 = vunpack.c.l.b16 %v76
    %v381 = vunpack.c.l.b16 %v77
    %v382 = vunpack.c.l.b16 %v78
    %v383 = vunpack.c.l.b16 %v79
    %v384 = vunpack.c.l.b16 %v80
    %v385 = vunpack.c.l.b16 %v81
    %v386 = vunpack.c.l.b16 %v82
    %v387 = vunpack.c.l.b16 %v83
    %v388 = vunpack.c.l.b16 %v84
    %v389 = vunpack.c.l.b16 %v85
    %v390 = vunpack.c.l.b16 %v86
    %v391 = vunpack.c.l.b16 %v87
    %v392 = vunpack.c.l.b16 %v88
    %v393 = vunpack.c.l.b16 %v89
    %v394 = vunpack.c.l.b16 %v90
    %v395 = vunpack.c.l.b16 %v91
    %v396 = vunpack.c.l.b16 %v92
    %v397 = vunpack.c.l.b16 %v93
    %v398 = vunpack.c.l.b16 %v94
    %v399 = vunpack.c.l.b16 %v95
    %v400 = vunpack.c.l.b16 %v96
    %v401 = vunpack.c.l.b16 %v97
    %v402 = vunpack.c.l.b16 %v98
    %v403 = vunpack.c.l.b16 %v99
    %v404 = vunpack.c.l.b16 %v100
    %v405 = vunpack.c.l.b16 %v101
    %v406 = vunpack.c.l.b16 %v102
    %v407 = vunpack.c.l.b16 %v103
    %v408 = vunpack.c.l.b16 %v104
    %v409 = vunpack.c.l.b16 %v105
    %v410 = vunpack.c.l.b16 %v106
    %v411 = vunpack.c.l.b16 %v107
    %v412 = vunpack.c.l.b16 %v108
    %v413 = vunpack.c.l.b16 %v109
    %v414 = vunpack.c.l.b16 %v110
    %v415 = vunpack.c.l.b16 %v111
    %v416 = vunpack.c.l.b16 %v112
    %v417 = vunpack.c.l.b16 %v113
    %v418 = vunpack.c.l.b16 %v114
    %v419 = vunpack.c.l.b16 %v115
    %v420 = vunpack.c.l.b16 %v116
    %v421 = vunpack.c.l.b16 %v117
    %v422 = vunpack.c.l.b16 %v118
    %v423 = vunpack.c.l.b16 %v119
    %v424 = vunpack.c.l.b16 %v120
    %v425 = vunpack.c.l.b16 %v121
    %v426 = vunpack.c.l.b16 %v122
    %v427 = vunpack.c.l.b16 %v123
    %v428 = vunpack.c.l.b16 %v124
    %v429 = vunpack.c.l.b16 %v125
    %v430 = vunpack.c.l.b16 %v126
    %v431 = vunpack.c.l.b16 %v127
    %v432 = vunpack.c.l.b16 %v128
    %v433 = vunpack.c.l.b16 %v129
    %v434 = vunpack.c.l.b16 %v130
    %v435 = vunpack.c.l.b16 %v131
    %v436 = vunpack.c.l.b16 %v132
    %v437 = vunpack.c.l.b16 %v133
    %v438 = vunpack.c.l.b16 %v134
    %v439 = vunpack.c.l.b16 %v135
    %v440 = vunpack.c.l.b16 %v136
    %v441 = vunpack.c.l.b16 %v137
    %v442 = vunpack.c.l.b16 %v138
    %v443 = vunpack.c.l.b16 %v139
    %v444 = vunpack.c.l.b16 %v140
    %v445 = vunpack.c.l.b16 %v141
    %v446 = vunpack.c.l.b16 %v142
    %v447 = vunpack.c.l.b16 %v143
    %v448 = vunpack.c.l.b16 %v144
    %v449 = vunpack.c.l.b16 %v145
    %v450 = vunpack.c.l.b16 %v146
    %v451 = vunpack.c.l.b16 %v147
    %v452 = vunpack.c.l.b16 %v148
    %v453 = vunpack.c.l.b16 %v149
    %v454 = vunpack.c.l.b16 %v150
    %v455 = vunpack.c.l.b16 %v151
    %v456 = vunpack.c.l.b16 %v152
    %v457 = vunpack.c.l.b16 %v153
    %v458 = vunpack.c.l.b16 %v154
    %v459 = vunpack.c.l.b16 %v155
    %v460 = vunpack.c.l.b16 %v156
    %v461 = vunpack.c.l.b16 %v157
    %v462 = vunpack.c.l.b16 %v158
    %v463 = vunpack.c.l.b16 %v159
    %v464 = vunpack.c.l.b16 %v160
    %v465 = vunpack.c.l.b16 %v161
    %v466 = vunpack.c.l.b16 %v162
    %v467 = vunpack.c.l.b16 %v163
    %v468 = vunpack.c.l.b16 %v164
    %v469 = vunpack.c.l.b16 %v165
    %v470 = vunpack.c.l.b16 %v166
    %v471 = vunpack.c.l.b16 %v167
    %v472 = vunpack.c.l.b16 %v168
    %v473 = vunpack.c.l.b16 %v169
    %v474 = vunpack.c.l.b16 %v170
    %v475 = vunpack.c.l.b16 %v171
    %v476 = vunpack.c.l.b16 %v172
    %v477 = vunpack.c.l.b16 %v173
    %v478 = vunpack.c.l.b16 %v174
    %v479 = vunpack.c.l.b16 %v175
    %v480 = vunpack.c.l.b16 %v176
    %v481 = vunpack.c.l.b16 %v177
    %v482 = vpack.c.b16 %v339, %v338
    %v483 = vpack.c.b16 %v341, %v340
    %v484 = vpack.c.b16 %v343, %v342
    %v485 = vpack.c.b16 %v345, %v344
    %v486 = vpack.c.b16 %v347, %v346
    %v487 = vpack.c.b16 %v349, %v348
    %v488 = vpack.c.b16 %v351, %v350
    %v489 = vpack.c.b16 %v353, %v352
    %v490 = vpack.c.b16 %v355, %v354
    %v491 = vpack.c.b16 %v357, %v356
    %v492 = vpack.c.b16 %v359, %v358
    %v493 = vpack.c.b16 %v361, %v360
    %v494 = vpack.c.b16 %v363, %v362
    %v495 = vpack.c.b16 %v365, %v364
    %v496 = vpack.c.b16 %v367, %v366
    %v497 = vpack.c.b16 %v369, %v368
    %v498 = vpack.c.b16 %v371, %v370
    %v499 = vpack.c.b16 %v373, %v372
    %v500 = vpack.c.b16 %v375, %v374
    %v501 = vpack.c.b16 %v377, %v376
    %v502 = vpack.c.b16 %v379, %v378
    %v503 = vpack.c.b16 %v381, %v380
    %v504 = vpack.c.b16 %v383, %v382
    %v505 = vpack.c.b16 %v385, %v384
    %v506 = vpack.c.b16 %v387, %v386
    %v507 = vpack.c.b16 %v389, %v388
    %v508 = vpack.c.b16 %v391, %v390
    %v509 = vpack.c.b16 %v393, %v392
    %v510 = vpack.c.b16 %v395, %v394
    %v511 = vpack.c.b16 %v397, %v396
    %v512 = vpack.c.b16 %v399, %v398
    %v513 = vpack.c.b16 %v401, %v400
    %v514 = vpack.c.b16 %v403, %v402
    %v515 = vpack.c.b16 %v405, %v404
    %v516 = vpack.c.b16 %v407, %v406
    %v517 = vpack.c.b16 %v409, %v408
    %v518 = vpack.c.b16 %v411, %v410
    %v519 = vpack.c.b16 %v413, %v412
    %v520 = vpack.c.b16 %v415, %v414
    %v521 = vpack.c.b16 %v417, %v416
    %v522 = vpack.c.b16 %v419, %v418
    %v523 = vpack.c.b16 %v421, %v420
    %v524 = vpack.c.b16 %v423, %v422
    %v525 = vpack.c.b16 %v425, %v424
    %v526 = vpack.c.b16 %v427, %v426
    %v527 = vpack.c.b16 %v429, %v428
    %v528 = vpack.c.b16 %v431, %v430
    %v529 = vpack.c.b16 %v433, %v432
    %v530 = vpack.c.b16 %v435, %v434
    %v531 = vpack.c.b16 %v437, %v436
    %v532 = vpack.c.b16 %v439, %v438
    %v533 = vpack.c.b16 %v441, %v440
    %v534 = vpack.c.b16 %v443, %v442
    %v535 = vpack.c.b16 %v445, %v444
    %v536 = vpack.c.b16 %v447, %v446
    %v537 = vpack.c.b16 %v449, %v448
    %v538 = vpack.c.b16 %v451, %v450
    %v539 = vpack.c.b16 %v453, %v452
    %v540 = vpack.c.b16 %v455, %v454
    %v541 = vpack.c.b16 %v457, %v456
    %v542 = vpack.c.b16 %v459, %v458
    %v543 = vpack.c.b16 %v461, %v460
    %v544 = vpack.c.b16 %v463, %v462
    %v545 = vpack.c.b16 %v465, %v464
    %v546 = vpack.c.b16 %v467, %v466
    %v547 = vpack.c.b16 %v469, %v468
    %v548 = vpack.c.b16 %v471, %v470
    %v549 = vpack.c.b16 %v473, %v472
    %v550 = vpack.c.b16 %v475, %v474
    %v551 = vpack.c.b16 %v477, %v476
    %v552 = vpack.c.b16 %v479, %v478
    %v553 = vpack.c.b16 %v481, %v480
    %v642 = vunpack.c.l.b16 %v178
    %v643 = vunpack.c.l.b16 %v179
    %v644 = vunpack.c.l.b16 %v180
    %v645 = vunpack.c.l.b16 %v181
    %v646 = vunpack.c.l.b16 %v182
    %v647 = vunpack.c.l.b16 %v183
    %v648 = vunpack.c.l.b16 %v184
    %v649 = vunpack.c.l.b16 %v185
    %v650 = vunpack.c.l.b16 %v186
    %v651 = vunpack.c.l.b16 %v187
    %v652 = vunpack.c.l.b16 %v188
    %v653 = vunpack.c.l.b16 %v189
    %v654 = vunpack.c.l.b16 %v190
    %v655 = vunpack.c.l.b16 %v191
    %v656 = vunpack.c.l.b16 %v192
    %v657 = vunpack.c.l.b16 %v193
    %v658 = vpack.c.b16 %v643, %v642
    %v659 = vpack.c.b16 %v645, %v644
    %v660 = vpack.c.b16 %v647, %v646
    %v661 = vpack.c.b16 %v649, %v648
    %v662 = vpack.c.b16 %v651, %v650
    %v663 = vpack.c.b16 %v653, %v652
    %v664 = vpack.c.b16 %v655, %v654
    %v665 = vpack.c.b16 %v657, %v656
    %674 = vmatprep.subr.bf16.mxu0 0
    %675 = vmatpush1.bf16.msra.mxu0 %v658
    %676 = vmatprep.subr.bf16.mxu0 0
    %677 = vmatpush1.bf16.msra.mxu0 %v659
    %678 = vmatprep.subr.bf16.mxu0 0
    %679 = vmatpush1.bf16.msra.mxu0 %v660
    %680 = vmatprep.subr.bf16.mxu0 0
    %681 = vmatpush1.bf16.msra.mxu0 %v661
    %682 = vmatprep.subr.bf16.mxu0 0
    %683 = vmatpush1.bf16.msra.mxu0 %v662
    %684 = vmatprep.subr.bf16.mxu0 0
    %685 = vmatpush1.bf16.msra.mxu0 %v663
    %686 = vmatprep.subr.bf16.mxu0 0
    %687 = vmatpush1.bf16.msra.mxu0 %v664
    %688 = vmatprep.subr.bf16.mxu0 0
    %689 = vmatpush1.bf16.msra.mxu0 %v665
    %690 = vmatprep.subr.bf16.mxu0 0
    %691 = vmatpush1.bf16.msra.mxu0 0
    %692 = vmatprep.subr.bf16.mxu0 0
    %693 = vmatpush1.bf16.msra.mxu0 0
    %694 = vmatprep.subr.bf16.mxu0 0
    %695 = vmatpush1.bf16.msra.mxu0 0
    %696 = vmatprep.subr.bf16.mxu0 0
    %697 = vmatpush1.bf16.msra.mxu0 0
    %698 = vmatprep.subr.bf16.mxu0 0
    %699 = vmatpush1.bf16.msra.mxu0 0
    %700 = vmatprep.subr.bf16.mxu0 0
    %701 = vmatpush1.bf16.msra.mxu0 0
    %702 = vmatprep.subr.bf16.mxu0 0
    %703 = vmatpush1.bf16.msra.mxu0 0
    %704 = vmatprep.subr.bf16.mxu0 0
    %705 = vmatpush1.bf16.msra.mxu0 0
    %706 = vmatprep.mubr.bf16.mxu0 0
    %707 = vmatmul.mubr.bf16.gmra.mrb[0].mxu0 %v482
    %v708 = vpop.f32.mrb[0].mxu0
    %v709 = vadd.f32 0.0, %v708
    %v710 = vpop.f32.mrb[0].mxu0
    %v711 = vpop.f32.mrb[0].mxu0
    %v712 = vadd.f32 0.0, %v711
    %v713 = vpop.f32.mrb[0].mxu0
    %714 = vmatprep.mubr.bf16.mxu0 0
    %715 = vmatmul.mubr.bf16.gmra.mrb[0].mxu0 %v483
    %v716 = vpop.f32.mrb[0].mxu0
    %v717 = vadd.f32 0.0, %v716
    %v718 = vpop.f32.mrb[0].mxu0
    %v719 = vpop.f32.mrb[0].mxu0
    %v720 = vadd.f32 0.0, %v719
    %v721 = vpop.f32.mrb[0].mxu0
    %722 = vmatprep.mubr.bf16.mxu0 0
    %723 = vmatmul.mubr.bf16.gmra.mrb[0].mxu0 %v484
    %v724 = vpop.f32.mrb[0].mxu0
    %v725 = vadd.f32 0.0, %v724
    %v726 = vpop.f32.mrb[0].mxu0
    %v727 = vpop.f32.mrb[0].mxu0
    %v728 = vadd.f32 0.0, %v727
    %v729 = vpop.f32.mrb[0].mxu0
    %730 = vmatprep.mubr.bf16.mxu0 0
    %731 = vmatmul.mubr.bf16.gmra.mrb[0].mxu0 %v485
    %v732 = vpop.f32.mrb[0].mxu0
    %v733 = vadd.f32 0.0, %v732
    %v734 = vpop.f32.mrb[0].mxu0
    %v735 = vpop.f32.mrb[0].mxu0
    %v736 = vadd.f32 0.0, %v735
    %v737 = vpop.f32.mrb[0].mxu0
    %738 = vmatprep.mubr.bf16.mxu0 0
    %739 = vmatmul.mubr.bf16.gmra.mrb[0].mxu0 %v486
    %v740 = vpop.f32.mrb[0].mxu0
    %v741 = vadd.f32 0.0, %v740
    %v742 = vpop.f32.mrb[0].mxu0
    %v743 = vpop.f32.mrb[0].mxu0
    %v744 = vadd.f32 0.0, %v743
    %v745 = vpop.f32.mrb[0].mxu0
    %746 = vmatprep.mubr.bf16.mxu0 0
    %747 = vmatmul.mubr.bf16.gmra.mrb[0].mxu0 %v487
    %v748 = vpop.f32.mrb[0].mxu0
    %v749 = vadd.f32 0.0, %v748
    %v750 = vpop.f32.mrb[0].mxu0
    %v751 = vpop.f32.mrb[0].mxu0
    %v752 = vadd.f32 0.0, %v751
    %v753 = vpop.f32.mrb[0].mxu0
    %754 = vmatprep.mubr.bf16.mxu0 0
    %755 = vmatmul.mubr.bf16.gmra.mrb[0].mxu0 %v488
    %v756 = vpop.f32.mrb[0].mxu0
    %v757 = vadd.f32 0.0, %v756
    %v758 = vpop.f32.mrb[0].mxu0
    %v759 = vpop.f32.mrb[0].mxu0
    %v760 = vadd.f32 0.0, %v759
    %v761 = vpop.f32.mrb[0].mxu0
    %762 = vmatprep.mubr.bf16.mxu0 0
    %763 = vmatmul.mubr.bf16.gmra.mrb[0].mxu0 %v489
    %v764 = vpop.f32.mrb[0].mxu0
    %v765 = vadd.f32 0.0, %v764
    %v766 = vpop.f32.mrb[0].mxu0
    %v767 = vpop.f32.mrb[0].mxu0
    %v768 = vadd.f32 0.0, %v767
    %v769 = vpop.f32.mrb[0].mxu0
    %770 = vmatprep.mubr.bf16.mxu0 0
    %771 = vmatmul.mubr.bf16.gmra.mrb[0].mxu0 %v490
    %v772 = vpop.f32.mrb[0].mxu0
    %v773 = vadd.f32 0.0, %v772
    %v774 = vpop.f32.mrb[0].mxu0
    %v775 = vpop.f32.mrb[0].mxu0
    %v776 = vadd.f32 0.0, %v775
    %v777 = vpop.f32.mrb[0].mxu0
    %778 = vmatprep.mubr.bf16.mxu0 0
    %779 = vmatmul.mubr.bf16.gmra.mrb[0].mxu0 %v491
    %v780 = vpop.f32.mrb[0].mxu0
    %v781 = vadd.f32 0.0, %v780
    %v782 = vpop.f32.mrb[0].mxu0
    %v783 = vpop.f32.mrb[0].mxu0
    %v784 = vadd.f32 0.0, %v783
    %v785 = vpop.f32.mrb[0].mxu0
    %786 = vmatprep.mubr.bf16.mxu0 0
    %787 = vmatmul.mubr.bf16.gmra.mrb[0].mxu0 %v492
    %v788 = vpop.f32.mrb[0].mxu0
    %v789 = vadd.f32 0.0, %v788
    %v790 = vpop.f32.mrb[0].mxu0
    %v791 = vpop.f32.mrb[0].mxu0
    %v792 = vadd.f32 0.0, %v791
    %v793 = vpop.f32.mrb[0].mxu0
    %794 = vmatprep.mubr.bf16.mxu0 0
    %795 = vmatmul.mubr.bf16.gmra.mrb[0].mxu0 %v493
    %v796 = vpop.f32.mrb[0].mxu0
    %v797 = vadd.f32 0.0, %v796
    %v798 = vpop.f32.mrb[0].mxu0
    %v799 = vpop.f32.mrb[0].mxu0
    %v800 = vadd.f32 0.0, %v799
    %v801 = vpop.f32.mrb[0].mxu0
    %802 = vmatprep.mubr.bf16.mxu0 0
    %803 = vmatmul.mubr.bf16.gmra.mrb[0].mxu0 %v494
    %v804 = vpop.f32.mrb[0].mxu0
    %v805 = vadd.f32 0.0, %v804
    %v806 = vpop.f32.mrb[0].mxu0
    %v807 = vpop.f32.mrb[0].mxu0
    %v808 = vadd.f32 0.0, %v807
    %v809 = vpop.f32.mrb[0].mxu0
    %810 = vmatprep.mubr.bf16.mxu0 0
    %811 = vmatmul.mubr.bf16.gmra.mrb[0].mxu0 %v495
    %v812 = vpop.f32.mrb[0].mxu0
    %v813 = vadd.f32 0.0, %v812
    %v814 = vpop.f32.mrb[0].mxu0
    %v815 = vpop.f32.mrb[0].mxu0
    %v816 = vadd.f32 0.0, %v815
    %v817 = vpop.f32.mrb[0].mxu0
    %818 = vmatprep.mubr.bf16.mxu0 0
    %819 = vmatmul.mubr.bf16.gmra.mrb[0].mxu0 %v496
    %v820 = vpop.f32.mrb[0].mxu0
    %v821 = vadd.f32 0.0, %v820
    %v822 = vpop.f32.mrb[0].mxu0
    %v823 = vpop.f32.mrb[0].mxu0
    %v824 = vadd.f32 0.0, %v823
    %v825 = vpop.f32.mrb[0].mxu0
    %826 = vmatprep.mubr.bf16.mxu0 0
    %827 = vmatmul.mubr.bf16.gmra.mrb[0].mxu0 %v497
    %v828 = vpop.f32.mrb[0].mxu0
    %v829 = vadd.f32 0.0, %v828
    %v830 = vpop.f32.mrb[0].mxu0
    %v831 = vpop.f32.mrb[0].mxu0
    %v832 = vadd.f32 0.0, %v831
    %v833 = vpop.f32.mrb[0].mxu0
    %834 = vmatprep.mubr.bf16.mxu0 0
    %835 = vmatmul.mubr.bf16.gmra.mrb[0].mxu0 %v498
    %v836 = vpop.f32.mrb[0].mxu0
    %v837 = vadd.f32 0.0, %v836
    %v838 = vpop.f32.mrb[0].mxu0
    %v839 = vpop.f32.mrb[0].mxu0
    %v840 = vadd.f32 0.0, %v839
    %v841 = vpop.f32.mrb[0].mxu0
    %842 = vmatprep.mubr.bf16.mxu0 0
    %843 = vmatmul.mubr.bf16.gmra.mrb[0].mxu0 %v499
    %v844 = vpop.f32.mrb[0].mxu0
    %v845 = vadd.f32 0.0, %v844
    %v846 = vpop.f32.mrb[0].mxu0
    %v847 = vpop.f32.mrb[0].mxu0
    %v848 = vadd.f32 0.0, %v847
    %v849 = vpop.f32.mrb[0].mxu0
    %850 = vmatprep.mubr.bf16.mxu0 0
    %851 = vmatmul.mubr.bf16.gmra.mrb[0].mxu0 %v500
    %v852 = vpop.f32.mrb[0].mxu0
    %v853 = vadd.f32 0.0, %v852
    %v854 = vpop.f32.mrb[0].mxu0
    %v855 = vpop.f32.mrb[0].mxu0
    %v856 = vadd.f32 0.0, %v855
    %v857 = vpop.f32.mrb[0].mxu0
    %858 = vmatprep.mubr.bf16.mxu0 0
    %859 = vmatmul.mubr.bf16.gmra.mrb[0].mxu0 %v501
    %v860 = vpop.f32.mrb[0].mxu0
    %v861 = vadd.f32 0.0, %v860
    %v862 = vpop.f32.mrb[0].mxu0
    %v863 = vpop.f32.mrb[0].mxu0
    %v864 = vadd.f32 0.0, %v863
    %v865 = vpop.f32.mrb[0].mxu0
    %866 = vmatprep.mubr.bf16.mxu0 0
    %867 = vmatmul.mubr.bf16.gmra.mrb[0].mxu0 %v502
    %v868 = vpop.f32.mrb[0].mxu0
    %v869 = vadd.f32 0.0, %v868
    %v870 = vpop.f32.mrb[0].mxu0
    %v871 = vpop.f32.mrb[0].mxu0
    %v872 = vadd.f32 0.0, %v871
    %v873 = vpop.f32.mrb[0].mxu0
    %874 = vmatprep.mubr.bf16.mxu0 0
    %875 = vmatmul.mubr.bf16.gmra.mrb[0].mxu0 %v503
    %v876 = vpop.f32.mrb[0].mxu0
    %v877 = vadd.f32 0.0, %v876
    %v878 = vpop.f32.mrb[0].mxu0
    %v879 = vpop.f32.mrb[0].mxu0
    %v880 = vadd.f32 0.0, %v879
    %v881 = vpop.f32.mrb[0].mxu0
    %882 = vmatprep.mubr.bf16.mxu0 0
    %883 = vmatmul.mubr.bf16.gmra.mrb[0].mxu0 %v504
    %v884 = vpop.f32.mrb[0].mxu0
    %v885 = vadd.f32 0.0, %v884
    %v886 = vpop.f32.mrb[0].mxu0
    %v887 = vpop.f32.mrb[0].mxu0
    %v888 = vadd.f32 0.0, %v887
    %v889 = vpop.f32.mrb[0].mxu0
    %890 = vmatprep.mubr.bf16.mxu0 0
    %891 = vmatmul.mubr.bf16.gmra.mrb[0].mxu0 %v505
    %v892 = vpop.f32.mrb[0].mxu0
    %v893 = vadd.f32 0.0, %v892
    %v894 = vpop.f32.mrb[0].mxu0
    %v895 = vpop.f32.mrb[0].mxu0
    %v896 = vadd.f32 0.0, %v895
    %v897 = vpop.f32.mrb[0].mxu0
    %898 = vmatprep.mubr.bf16.mxu0 0
    %899 = vmatmul.mubr.bf16.gmra.mrb[0].mxu0 %v506
    %v900 = vpop.f32.mrb[0].mxu0
    %v901 = vadd.f32 0.0, %v900
    %v902 = vpop.f32.mrb[0].mxu0
    %v903 = vpop.f32.mrb[0].mxu0
    %v904 = vadd.f32 0.0, %v903
    %v905 = vpop.f32.mrb[0].mxu0
    %906 = vmatprep.mubr.bf16.mxu0 0
    %907 = vmatmul.mubr.bf16.gmra.mrb[0].mxu0 %v507
    %v908 = vpop.f32.mrb[0].mxu0
    %v909 = vadd.f32 0.0, %v908
    %v910 = vpop.f32.mrb[0].mxu0
    %v911 = vpop.f32.mrb[0].mxu0
    %v912 = vadd.f32 0.0, %v911
    %v913 = vpop.f32.mrb[0].mxu0
    %914 = vmatprep.mubr.bf16.mxu0 0
    %915 = vmatmul.mubr.bf16.gmra.mrb[0].mxu0 %v508
    %v916 = vpop.f32.mrb[0].mxu0
    %v917 = vadd.f32 0.0, %v916
    %v918 = vpop.f32.mrb[0].mxu0
    %v919 = vpop.f32.mrb[0].mxu0
    %v920 = vadd.f32 0.0, %v919
    %v921 = vpop.f32.mrb[0].mxu0
    %922 = vmatprep.mubr.bf16.mxu0 0
    %923 = vmatmul.mubr.bf16.gmra.mrb[0].mxu0 %v509
    %v924 = vpop.f32.mrb[0].mxu0
    %v925 = vadd.f32 0.0, %v924
    %v926 = vpop.f32.mrb[0].mxu0
    %v927 = vpop.f32.mrb[0].mxu0
    %v928 = vadd.f32 0.0, %v927
    %v929 = vpop.f32.mrb[0].mxu0
    %930 = vmatprep.mubr.bf16.mxu0 0
    %931 = vmatmul.mubr.bf16.gmra.mrb[0].mxu0 %v510
    %v932 = vpop.f32.mrb[0].mxu0
    %v933 = vadd.f32 0.0, %v932
    %v934 = vpop.f32.mrb[0].mxu0
    %v935 = vpop.f32.mrb[0].mxu0
    %v936 = vadd.f32 0.0, %v935
    %v937 = vpop.f32.mrb[0].mxu0
    %938 = vmatprep.mubr.bf16.mxu0 0
    %939 = vmatmul.mubr.bf16.gmra.mrb[0].mxu0 %v511
    %v940 = vpop.f32.mrb[0].mxu0
    %v941 = vadd.f32 0.0, %v940
    %v942 = vpop.f32.mrb[0].mxu0
    %v943 = vpop.f32.mrb[0].mxu0
    %v944 = vadd.f32 0.0, %v943
    %v945 = vpop.f32.mrb[0].mxu0
    %946 = vmatprep.mubr.bf16.mxu0 0
    %947 = vmatmul.mubr.bf16.gmra.mrb[0].mxu0 %v512
    %v948 = vpop.f32.mrb[0].mxu0
    %v949 = vadd.f32 0.0, %v948
    %v950 = vpop.f32.mrb[0].mxu0
    %v951 = vpop.f32.mrb[0].mxu0
    %v952 = vadd.f32 0.0, %v951
    %v953 = vpop.f32.mrb[0].mxu0
    %954 = vmatprep.mubr.bf16.mxu0 0
    %955 = vmatmul.mubr.bf16.gmra.mrb[0].mxu0 %v513
    %v956 = vpop.f32.mrb[0].mxu0
    %v957 = vadd.f32 0.0, %v956
    %v958 = vpop.f32.mrb[0].mxu0
    %v959 = vpop.f32.mrb[0].mxu0
    %v960 = vadd.f32 0.0, %v959
    %v961 = vpop.f32.mrb[0].mxu0
    %962 = vmatprep.mubr.bf16.mxu0 0
    %963 = vmatmul.mubr.bf16.gmra.mrb[0].mxu0 %v514
    %v964 = vpop.f32.mrb[0].mxu0
    %v965 = vadd.f32 0.0, %v964
    %v966 = vpop.f32.mrb[0].mxu0
    %v967 = vpop.f32.mrb[0].mxu0
    %v968 = vadd.f32 0.0, %v967
    %v969 = vpop.f32.mrb[0].mxu0
    %970 = vmatprep.mubr.bf16.mxu0 0
    %971 = vmatmul.mubr.bf16.gmra.mrb[0].mxu0 %v515
    %v972 = vpop.f32.mrb[0].mxu0
    %v973 = vadd.f32 0.0, %v972
    %v974 = vpop.f32.mrb[0].mxu0
    %v975 = vpop.f32.mrb[0].mxu0
    %v976 = vadd.f32 0.0, %v975
    %v977 = vpop.f32.mrb[0].mxu0
    %978 = vmatprep.mubr.bf16.mxu0 0
    %979 = vmatmul.mubr.bf16.gmra.mrb[0].mxu0 %v516
    %v980 = vpop.f32.mrb[0].mxu0
    %v981 = vadd.f32 0.0, %v980
    %v982 = vpop.f32.mrb[0].mxu0
    %v983 = vpop.f32.mrb[0].mxu0
    %v984 = vadd.f32 0.0, %v983
    %v985 = vpop.f32.mrb[0].mxu0
    %986 = vmatprep.mubr.bf16.mxu0 0
    %987 = vmatmul.mubr.bf16.gmra.mrb[0].mxu0 %v517
    %v988 = vpop.f32.mrb[0].mxu0
    %v989 = vadd.f32 0.0, %v988
    %v990 = vpop.f32.mrb[0].mxu0
    %v991 = vpop.f32.mrb[0].mxu0
    %v992 = vadd.f32 0.0, %v991
    %v993 = vpop.f32.mrb[0].mxu0
    %994 = vmatprep.mubr.bf16.mxu0 0
    %995 = vmatmul.mubr.bf16.gmra.mrb[0].mxu0 %v518
    %v996 = vpop.f32.mrb[0].mxu0
    %v997 = vadd.f32 0.0, %v996
    %v998 = vpop.f32.mrb[0].mxu0
    %v999 = vpop.f32.mrb[0].mxu0
    %v1000 = vadd.f32 0.0, %v999
    %v1001 = vpop.f32.mrb[0].mxu0
    %1002 = vmatprep.mubr.bf16.mxu0 0
    %1003 = vmatmul.mubr.bf16.gmra.mrb[0].mxu0 %v519
    %v1004 = vpop.f32.mrb[0].mxu0
    %v1005 = vadd.f32 0.0, %v1004
    %v1006 = vpop.f32.mrb[0].mxu0
    %v1007 = vpop.f32.mrb[0].mxu0
    %v1008 = vadd.f32 0.0, %v1007
    %v1009 = vpop.f32.mrb[0].mxu0
    %1010 = vmatprep.mubr.bf16.mxu0 0
    %1011 = vmatmul.mubr.bf16.gmra.mrb[0].mxu0 %v520
    %v1012 = vpop.f32.mrb[0].mxu0
    %v1013 = vadd.f32 0.0, %v1012
    %v1014 = vpop.f32.mrb[0].mxu0
    %v1015 = vpop.f32.mrb[0].mxu0
    %v1016 = vadd.f32 0.0, %v1015
    %v1017 = vpop.f32.mrb[0].mxu0
    %1018 = vmatprep.mubr.bf16.mxu0 0
    %1019 = vmatmul.mubr.bf16.gmra.mrb[0].mxu0 %v521
    %v1020 = vpop.f32.mrb[0].mxu0
    %v1021 = vadd.f32 0.0, %v1020
    %v1022 = vpop.f32.mrb[0].mxu0
    %v1023 = vpop.f32.mrb[0].mxu0
    %v1024 = vadd.f32 0.0, %v1023
    %v1025 = vpop.f32.mrb[0].mxu0
    %1026 = vmatprep.mubr.bf16.mxu0 0
    %1027 = vmatmul.mubr.bf16.gmra.mrb[0].mxu0 %v522
    %v1028 = vpop.f32.mrb[0].mxu0
    %v1029 = vadd.f32 0.0, %v1028
    %v1030 = vpop.f32.mrb[0].mxu0
    %v1031 = vpop.f32.mrb[0].mxu0
    %v1032 = vadd.f32 0.0, %v1031
    %v1033 = vpop.f32.mrb[0].mxu0
    %1034 = vmatprep.mubr.bf16.mxu0 0
    %1035 = vmatmul.mubr.bf16.gmra.mrb[0].mxu0 %v523
    %v1036 = vpop.f32.mrb[0].mxu0
    %v1037 = vadd.f32 0.0, %v1036
    %v1038 = vpop.f32.mrb[0].mxu0
    %v1039 = vpop.f32.mrb[0].mxu0
    %v1040 = vadd.f32 0.0, %v1039
    %v1041 = vpop.f32.mrb[0].mxu0
    %1042 = vmatprep.mubr.bf16.mxu0 0
    %1043 = vmatmul.mubr.bf16.gmra.mrb[0].mxu0 %v524
    %v1044 = vpop.f32.mrb[0].mxu0
    %v1045 = vadd.f32 0.0, %v1044
    %v1046 = vpop.f32.mrb[0].mxu0
    %v1047 = vpop.f32.mrb[0].mxu0
    %v1048 = vadd.f32 0.0, %v1047
    %v1049 = vpop.f32.mrb[0].mxu0
    %1050 = vmatprep.mubr.bf16.mxu0 0
    %1051 = vmatmul.mubr.bf16.gmra.mrb[0].mxu0 %v525
    %v1052 = vpop.f32.mrb[0].mxu0
    %v1053 = vadd.f32 0.0, %v1052
    %v1054 = vpop.f32.mrb[0].mxu0
    %v1055 = vpop.f32.mrb[0].mxu0
    %v1056 = vadd.f32 0.0, %v1055
    %v1057 = vpop.f32.mrb[0].mxu0
    %1058 = vmatprep.mubr.bf16.mxu0 0
    %1059 = vmatmul.mubr.bf16.gmra.mrb[0].mxu0 %v526
    %v1060 = vpop.f32.mrb[0].mxu0
    %v1061 = vadd.f32 0.0, %v1060
    %v1062 = vpop.f32.mrb[0].mxu0
    %v1063 = vpop.f32.mrb[0].mxu0
    %v1064 = vadd.f32 0.0, %v1063
    %v1065 = vpop.f32.mrb[0].mxu0
    %1066 = vmatprep.mubr.bf16.mxu0 0
    %1067 = vmatmul.mubr.bf16.gmra.mrb[0].mxu0 %v527
    %v1068 = vpop.f32.mrb[0].mxu0
    %v1069 = vadd.f32 0.0, %v1068
    %v1070 = vpop.f32.mrb[0].mxu0
    %v1071 = vpop.f32.mrb[0].mxu0
    %v1072 = vadd.f32 0.0, %v1071
    %v1073 = vpop.f32.mrb[0].mxu0
    %1074 = vmatprep.mubr.bf16.mxu0 0
    %1075 = vmatmul.mubr.bf16.gmra.mrb[0].mxu0 %v528
    %v1076 = vpop.f32.mrb[0].mxu0
    %v1077 = vadd.f32 0.0, %v1076
    %v1078 = vpop.f32.mrb[0].mxu0
    %v1079 = vpop.f32.mrb[0].mxu0
    %v1080 = vadd.f32 0.0, %v1079
    %v1081 = vpop.f32.mrb[0].mxu0
    %1082 = vmatprep.mubr.bf16.mxu0 0
    %1083 = vmatmul.mubr.bf16.gmra.mrb[0].mxu0 %v529
    %v1084 = vpop.f32.mrb[0].mxu0
    %v1085 = vadd.f32 0.0, %v1084
    %v1086 = vpop.f32.mrb[0].mxu0
    %v1087 = vpop.f32.mrb[0].mxu0
    %v1088 = vadd.f32 0.0, %v1087
    %v1089 = vpop.f32.mrb[0].mxu0
    %1090 = vmatprep.mubr.bf16.mxu0 0
    %1091 = vmatmul.mubr.bf16.gmra.mrb[0].mxu0 %v530
    %v1092 = vpop.f32.mrb[0].mxu0
    %v1093 = vadd.f32 0.0, %v1092
    %v1094 = vpop.f32.mrb[0].mxu0
    %v1095 = vpop.f32.mrb[0].mxu0
    %v1096 = vadd.f32 0.0, %v1095
    %v1097 = vpop.f32.mrb[0].mxu0
    %1098 = vmatprep.mubr.bf16.mxu0 0
    %1099 = vmatmul.mubr.bf16.gmra.mrb[0].mxu0 %v531
    %v1100 = vpop.f32.mrb[0].mxu0
    %v1101 = vadd.f32 0.0, %v1100
    %v1102 = vpop.f32.mrb[0].mxu0
    %v1103 = vpop.f32.mrb[0].mxu0
    %v1104 = vadd.f32 0.0, %v1103
    %v1105 = vpop.f32.mrb[0].mxu0
    %1106 = vmatprep.mubr.bf16.mxu0 0
    %1107 = vmatmul.mubr.bf16.gmra.mrb[0].mxu0 %v532
    %v1108 = vpop.f32.mrb[0].mxu0
    %v1109 = vadd.f32 0.0, %v1108
    %v1110 = vpop.f32.mrb[0].mxu0
    %v1111 = vpop.f32.mrb[0].mxu0
    %v1112 = vadd.f32 0.0, %v1111
    %v1113 = vpop.f32.mrb[0].mxu0
    %1114 = vmatprep.mubr.bf16.mxu0 0
    %1115 = vmatmul.mubr.bf16.gmra.mrb[0].mxu0 %v533
    %v1116 = vpop.f32.mrb[0].mxu0
    %v1117 = vadd.f32 0.0, %v1116
    %v1118 = vpop.f32.mrb[0].mxu0
    %v1119 = vpop.f32.mrb[0].mxu0
    %v1120 = vadd.f32 0.0, %v1119
    %v1121 = vpop.f32.mrb[0].mxu0
    %1122 = vmatprep.mubr.bf16.mxu0 0
    %1123 = vmatmul.mubr.bf16.gmra.mrb[0].mxu0 %v534
    %v1124 = vpop.f32.mrb[0].mxu0
    %v1125 = vadd.f32 0.0, %v1124
    %v1126 = vpop.f32.mrb[0].mxu0
    %v1127 = vpop.f32.mrb[0].mxu0
    %v1128 = vadd.f32 0.0, %v1127
    %v1129 = vpop.f32.mrb[0].mxu0
    %1130 = vmatprep.mubr.bf16.mxu0 0
    %1131 = vmatmul.mubr.bf16.gmra.mrb[0].mxu0 %v535
    %v1132 = vpop.f32.mrb[0].mxu0
    %v1133 = vadd.f32 0.0, %v1132
    %v1134 = vpop.f32.mrb[0].mxu0
    %v1135 = vpop.f32.mrb[0].mxu0
    %v1136 = vadd.f32 0.0, %v1135
    %v1137 = vpop.f32.mrb[0].mxu0
    %1138 = vmatprep.mubr.bf16.mxu0 0
    %1139 = vmatmul.mubr.bf16.gmra.mrb[0].mxu0 %v536
    %v1140 = vpop.f32.mrb[0].mxu0
    %v1141 = vadd.f32 0.0, %v1140
    %v1142 = vpop.f32.mrb[0].mxu0
    %v1143 = vpop.f32.mrb[0].mxu0
    %v1144 = vadd.f32 0.0, %v1143
    %v1145 = vpop.f32.mrb[0].mxu0
    %1146 = vmatprep.mubr.bf16.mxu0 0
    %1147 = vmatmul.mubr.bf16.gmra.mrb[0].mxu0 %v537
    %v1148 = vpop.f32.mrb[0].mxu0
    %v1149 = vadd.f32 0.0, %v1148
    %v1150 = vpop.f32.mrb[0].mxu0
    %v1151 = vpop.f32.mrb[0].mxu0
    %v1152 = vadd.f32 0.0, %v1151
    %v1153 = vpop.f32.mrb[0].mxu0
    %1154 = vmatprep.mubr.bf16.mxu0 0
    %1155 = vmatmul.mubr.bf16.gmra.mrb[0].mxu0 %v538
    %v1156 = vpop.f32.mrb[0].mxu0
    %v1157 = vadd.f32 0.0, %v1156
    %v1158 = vpop.f32.mrb[0].mxu0
    %v1159 = vpop.f32.mrb[0].mxu0
    %v1160 = vadd.f32 0.0, %v1159
    %v1161 = vpop.f32.mrb[0].mxu0
    %1162 = vmatprep.mubr.bf16.mxu0 0
    %1163 = vmatmul.mubr.bf16.gmra.mrb[0].mxu0 %v539
    %v1164 = vpop.f32.mrb[0].mxu0
    %v1165 = vadd.f32 0.0, %v1164
    %v1166 = vpop.f32.mrb[0].mxu0
    %v1167 = vpop.f32.mrb[0].mxu0
    %v1168 = vadd.f32 0.0, %v1167
    %v1169 = vpop.f32.mrb[0].mxu0
    %1170 = vmatprep.mubr.bf16.mxu0 0
    %1171 = vmatmul.mubr.bf16.gmra.mrb[0].mxu0 %v540
    %v1172 = vpop.f32.mrb[0].mxu0
    %v1173 = vadd.f32 0.0, %v1172
    %v1174 = vpop.f32.mrb[0].mxu0
    %v1175 = vpop.f32.mrb[0].mxu0
    %v1176 = vadd.f32 0.0, %v1175
    %v1177 = vpop.f32.mrb[0].mxu0
    %1178 = vmatprep.mubr.bf16.mxu0 0
    %1179 = vmatmul.mubr.bf16.gmra.mrb[0].mxu0 %v541
    %v1180 = vpop.f32.mrb[0].mxu0
    %v1181 = vadd.f32 0.0, %v1180
    %v1182 = vpop.f32.mrb[0].mxu0
    %v1183 = vpop.f32.mrb[0].mxu0
    %v1184 = vadd.f32 0.0, %v1183
    %v1185 = vpop.f32.mrb[0].mxu0
    %1186 = vmatprep.mubr.bf16.mxu0 0
    %1187 = vmatmul.mubr.bf16.gmra.mrb[0].mxu0 %v542
    %v1188 = vpop.f32.mrb[0].mxu0
    %v1189 = vadd.f32 0.0, %v1188
    %v1190 = vpop.f32.mrb[0].mxu0
    %v1191 = vpop.f32.mrb[0].mxu0
    %v1192 = vadd.f32 0.0, %v1191
    %v1193 = vpop.f32.mrb[0].mxu0
    %1194 = vmatprep.mubr.bf16.mxu0 0
    %1195 = vmatmul.mubr.bf16.gmra.mrb[0].mxu0 %v543
    %v1196 = vpop.f32.mrb[0].mxu0
    %v1197 = vadd.f32 0.0, %v1196
    %v1198 = vpop.f32.mrb[0].mxu0
    %v1199 = vpop.f32.mrb[0].mxu0
    %v1200 = vadd.f32 0.0, %v1199
    %v1201 = vpop.f32.mrb[0].mxu0
    %1202 = vmatprep.mubr.bf16.mxu0 0
    %1203 = vmatmul.mubr.bf16.gmra.mrb[0].mxu0 %v544
    %v1204 = vpop.f32.mrb[0].mxu0
    %v1205 = vadd.f32 0.0, %v1204
    %v1206 = vpop.f32.mrb[0].mxu0
    %v1207 = vpop.f32.mrb[0].mxu0
    %v1208 = vadd.f32 0.0, %v1207
    %v1209 = vpop.f32.mrb[0].mxu0
    %1210 = vmatprep.mubr.bf16.mxu0 0
    %1211 = vmatmul.mubr.bf16.gmra.mrb[0].mxu0 %v545
    %v1212 = vpop.f32.mrb[0].mxu0
    %v1213 = vadd.f32 0.0, %v1212
    %v1214 = vpop.f32.mrb[0].mxu0
    %v1215 = vpop.f32.mrb[0].mxu0
    %v1216 = vadd.f32 0.0, %v1215
    %v1217 = vpop.f32.mrb[0].mxu0
    %1218 = vmatprep.mubr.bf16.mxu0 0
    %1219 = vmatmul.mubr.bf16.gmra.mrb[0].mxu0 %v546
    %v1220 = vpop.f32.mrb[0].mxu0
    %v1221 = vadd.f32 0.0, %v1220
    %v1222 = vpop.f32.mrb[0].mxu0
    %v1223 = vpop.f32.mrb[0].mxu0
    %v1224 = vadd.f32 0.0, %v1223
    %v1225 = vpop.f32.mrb[0].mxu0
    %1226 = vmatprep.mubr.bf16.mxu0 0
    %1227 = vmatmul.mubr.bf16.gmra.mrb[0].mxu0 %v547
    %v1228 = vpop.f32.mrb[0].mxu0
    %v1229 = vadd.f32 0.0, %v1228
    %v1230 = vpop.f32.mrb[0].mxu0
    %v1231 = vpop.f32.mrb[0].mxu0
    %v1232 = vadd.f32 0.0, %v1231
    %v1233 = vpop.f32.mrb[0].mxu0
    %1234 = vmatprep.mubr.bf16.mxu0 0
    %1235 = vmatmul.mubr.bf16.gmra.mrb[0].mxu0 %v548
    %v1236 = vpop.f32.mrb[0].mxu0
    %v1237 = vadd.f32 0.0, %v1236
    %v1238 = vpop.f32.mrb[0].mxu0
    %v1239 = vpop.f32.mrb[0].mxu0
    %v1240 = vadd.f32 0.0, %v1239
    %v1241 = vpop.f32.mrb[0].mxu0
    %1242 = vmatprep.mubr.bf16.mxu0 0
    %1243 = vmatmul.mubr.bf16.gmra.mrb[0].mxu0 %v549
    %v1244 = vpop.f32.mrb[0].mxu0
    %v1245 = vadd.f32 0.0, %v1244
    %v1246 = vpop.f32.mrb[0].mxu0
    %v1247 = vpop.f32.mrb[0].mxu0
    %v1248 = vadd.f32 0.0, %v1247
    %v1249 = vpop.f32.mrb[0].mxu0
    %1250 = vmatprep.mubr.bf16.mxu0 0
    %1251 = vmatmul.mubr.bf16.gmra.mrb[0].mxu0 %v550
    %v1252 = vpop.f32.mrb[0].mxu0
    %v1253 = vadd.f32 0.0, %v1252
    %v1254 = vpop.f32.mrb[0].mxu0
    %v1255 = vpop.f32.mrb[0].mxu0
    %v1256 = vadd.f32 0.0, %v1255
    %v1257 = vpop.f32.mrb[0].mxu0
    %1258 = vmatprep.mubr.bf16.mxu0 0
    %1259 = vmatmul.mubr.bf16.gmra.mrb[0].mxu0 %v551
    %v1260 = vpop.f32.mrb[0].mxu0
    %v1261 = vadd.f32 0.0, %v1260
    %v1262 = vpop.f32.mrb[0].mxu0
    %v1263 = vpop.f32.mrb[0].mxu0
    %v1264 = vadd.f32 0.0, %v1263
    %v1265 = vpop.f32.mrb[0].mxu0
    %1266 = vmatprep.mubr.bf16.mxu0 0
    %1267 = vmatmul.mubr.bf16.gmra.mrb[0].mxu0 %v552
    %v1268 = vpop.f32.mrb[0].mxu0
    %v1269 = vadd.f32 0.0, %v1268
    %v1270 = vpop.f32.mrb[0].mxu0
    %v1271 = vpop.f32.mrb[0].mxu0
    %v1272 = vadd.f32 0.0, %v1271
    %v1273 = vpop.f32.mrb[0].mxu0
    %1274 = vmatprep.mubr.bf16.mxu0 0
    %1275 = vmatmul.mubr.bf16.gmra.mrb[0].mxu0 %v553
    %v1276 = vpop.f32.mrb[0].mxu0
    %v1277 = vadd.f32 0.0, %v1276
    %v1278 = vpop.f32.mrb[0].mxu0
    %v1279 = vpop.f32.mrb[0].mxu0
    %v1280 = vadd.f32 0.0, %v1279
    %v1281 = vpop.f32.mrb[0].mxu0
    %1282 = vdwg.mxu0
    %v1283 = vmax.f32 %v709, %v853
    %v1284 = vmax.f32 %v712, %v856
    %v1285 = vmax.f32 %v717, %v861
    %v1286 = vmax.f32 %v720, %v864
    %v1287 = vmax.f32 %v725, %v869
    %v1288 = vmax.f32 %v728, %v872
    %v1289 = vmax.f32 %v733, %v877
    %v1290 = vmax.f32 %v736, %v880
    %v1291 = vmax.f32 %v741, %v885
    %v1292 = vmax.f32 %v744, %v888
    %v1293 = vmax.f32 %v749, %v893
    %v1294 = vmax.f32 %v752, %v896
    %v1295 = vmax.f32 %v757, %v901
    %v1296 = vmax.f32 %v760, %v904
    %v1297 = vmax.f32 %v765, %v909
    %v1298 = vmax.f32 %v768, %v912
    %v1299 = vmax.f32 %v773, %v917
    %v1300 = vmax.f32 %v776, %v920
    %v1301 = vmax.f32 %v781, %v925
    %v1302 = vmax.f32 %v784, %v928
    %v1303 = vmax.f32 %v789, %v933
    %v1304 = vmax.f32 %v792, %v936
    %v1305 = vmax.f32 %v797, %v941
    %v1306 = vmax.f32 %v800, %v944
    %v1307 = vmax.f32 %v805, %v949
    %v1308 = vmax.f32 %v808, %v952
    %v1309 = vmax.f32 %v813, %v957
    %v1310 = vmax.f32 %v816, %v960
    %v1311 = vmax.f32 %v821, %v965
    %v1312 = vmax.f32 %v824, %v968
    %v1313 = vmax.f32 %v829, %v973
    %v1314 = vmax.f32 %v832, %v976
    %v1315 = vmax.f32 %v837, %v981
    %v1316 = vmax.f32 %v840, %v984
    %v1317 = vmax.f32 %v845, %v989
    %v1318 = vmax.f32 %v848, %v992
    %v1319 = vmax.f32 %v997, %v1141
    %v1320 = vmax.f32 %v1000, %v1144
    %v1321 = vmax.f32 %v1005, %v1149
    %v1322 = vmax.f32 %v1008, %v1152
    %v1323 = vmax.f32 %v1013, %v1157
    %v1324 = vmax.f32 %v1016, %v1160
    %v1325 = vmax.f32 %v1021, %v1165
    %v1326 = vmax.f32 %v1024, %v1168
    %v1327 = vmax.f32 %v1029, %v1173
    %v1328 = vmax.f32 %v1032, %v1176
    %v1329 = vmax.f32 %v1037, %v1181
    %v1330 = vmax.f32 %v1040, %v1184
    %v1331 = vmax.f32 %v1045, %v1189
    %v1332 = vmax.f32 %v1048, %v1192
    %v1333 = vmax.f32 %v1053, %v1197
    %v1334 = vmax.f32 %v1056, %v1200
    %v1335 = vmax.f32 %v1061, %v1205
    %v1336 = vmax.f32 %v1064, %v1208
    %v1337 = vmax.f32 %v1069, %v1213
    %v1338 = vmax.f32 %v1072, %v1216
    %v1339 = vmax.f32 %v1077, %v1221
    %v1340 = vmax.f32 %v1080, %v1224
    %v1341 = vmax.f32 %v1085, %v1229
    %v1342 = vmax.f32 %v1088, %v1232
    %v1343 = vmax.f32 %v1093, %v1237
    %v1344 = vmax.f32 %v1096, %v1240
    %v1345 = vmax.f32 %v1101, %v1245
    %v1346 = vmax.f32 %v1104, %v1248
    %v1347 = vmax.f32 %v1109, %v1253
    %v1348 = vmax.f32 %v1112, %v1256
    %v1349 = vmax.f32 %v1117, %v1261
    %v1350 = vmax.f32 %v1120, %v1264
    %v1351 = vmax.f32 %v1125, %v1269
    %v1352 = vmax.f32 %v1128, %v1272
    %v1353 = vmax.f32 %v1133, %v1277
    %v1354 = vmax.f32 %v1136, %v1280
    %v1355 = vmax.f32 %v1283, %v1319
    %v1356 = vmax.f32 %v1284, %v1320
    %v1357 = vmax.f32 %v1285, %v1321
    %v1358 = vmax.f32 %v1286, %v1322
    %v1359 = vmax.f32 %v1287, %v1323
    %v1360 = vmax.f32 %v1288, %v1324
    %v1361 = vmax.f32 %v1289, %v1325
    %v1362 = vmax.f32 %v1290, %v1326
    %v1363 = vmax.f32 %v1291, %v1327
    %v1364 = vmax.f32 %v1292, %v1328
    %v1365 = vmax.f32 %v1293, %v1329
    %v1366 = vmax.f32 %v1294, %v1330
    %v1367 = vmax.f32 %v1295, %v1331
    %v1368 = vmax.f32 %v1296, %v1332
    %v1369 = vmax.f32 %v1297, %v1333
    %v1370 = vmax.f32 %v1298, %v1334
    %v1371 = vmax.f32 %v1299, %v1335
    %v1372 = vmax.f32 %v1300, %v1336
    %v1373 = vmax.f32 %v1301, %v1337
    %v1374 = vmax.f32 %v1302, %v1338
    %v1375 = vmax.f32 %v1303, %v1339
    %v1376 = vmax.f32 %v1304, %v1340
    %v1377 = vmax.f32 %v1305, %v1341
    %v1378 = vmax.f32 %v1306, %v1342
    %v1379 = vmax.f32 %v1307, %v1343
    %v1380 = vmax.f32 %v1308, %v1344
    %v1381 = vmax.f32 %v1309, %v1345
    %v1382 = vmax.f32 %v1310, %v1346
    %v1383 = vmax.f32 %v1311, %v1347
    %v1384 = vmax.f32 %v1312, %v1348
    %v1385 = vmax.f32 %v1313, %v1349
    %v1386 = vmax.f32 %v1314, %v1350
    %v1387 = vmax.f32 %v1315, %v1351
    %v1388 = vmax.f32 %v1316, %v1352
    %v1389 = vmax.f32 %v1317, %v1353
    %v1390 = vmax.f32 %v1318, %v1354
    %v1391 = vld [vmem:[%s2] sm:$0x1]
    %v1393 = vlaneseq
    %v1394 = vshrl.u32 %v1393, 7
    %v1395 = vsub.s32 0, %v1394
    %v1396 = vrot.slane %v1391, %v1395
    %v1398 = vadd.f32 %v1355, %v1396
    %v1399 = vadd.f32 %v1356, %v1396
    %v1400 = vadd.f32 %v1357, %v1396
    %v1401 = vadd.f32 %v1358, %v1396
    %v1402 = vadd.f32 %v1359, %v1396
    %v1403 = vadd.f32 %v1360, %v1396
    %v1404 = vadd.f32 %v1361, %v1396
    %v1405 = vadd.f32 %v1362, %v1396
    %v1406 = vadd.f32 %v1363, %v1396
    %v1407 = vadd.f32 %v1364, %v1396
    %v1408 = vadd.f32 %v1365, %v1396
    %v1409 = vadd.f32 %v1366, %v1396
    %v1410 = vadd.f32 %v1367, %v1396
    %v1411 = vadd.f32 %v1368, %v1396
    %v1412 = vadd.f32 %v1369, %v1396
    %v1413 = vadd.f32 %v1370, %v1396
    %v1414 = vadd.f32 %v1371, %v1396
    %v1415 = vadd.f32 %v1372, %v1396
    %v1416 = vadd.f32 %v1373, %v1396
    %v1417 = vadd.f32 %v1374, %v1396
    %v1418 = vadd.f32 %v1375, %v1396
    %v1419 = vadd.f32 %v1376, %v1396
    %v1420 = vadd.f32 %v1377, %v1396
    %v1421 = vadd.f32 %v1378, %v1396
    %v1422 = vadd.f32 %v1379, %v1396
    %v1423 = vadd.f32 %v1380, %v1396
    %v1424 = vadd.f32 %v1381, %v1396
    %v1425 = vadd.f32 %v1382, %v1396
    %v1426 = vadd.f32 %v1383, %v1396
    %v1427 = vadd.f32 %v1384, %v1396
    %v1428 = vadd.f32 %v1385, %v1396
    %v1429 = vadd.f32 %v1386, %v1396
    %v1430 = vadd.f32 %v1387, %v1396
    %v1431 = vadd.f32 %v1388, %v1396
    %v1432 = vadd.f32 %v1389, %v1396
    %v1433 = vadd.f32 %v1390, %v1396
    %v1434 = vmax.f32 %v1398, 0.0
    %v1435 = vmax.f32 %v1399, 0.0
    %v1436 = vmax.f32 %v1400, 0.0
    %v1437 = vmax.f32 %v1401, 0.0
    %v1438 = vmax.f32 %v1402, 0.0
    %v1439 = vmax.f32 %v1403, 0.0
    %v1440 = vmax.f32 %v1404, 0.0
    %v1441 = vmax.f32 %v1405, 0.0
    %v1442 = vmax.f32 %v1406, 0.0
    %v1443 = vmax.f32 %v1407, 0.0
    %v1444 = vmax.f32 %v1408, 0.0
    %v1445 = vmax.f32 %v1409, 0.0
    %v1446 = vmax.f32 %v1410, 0.0
    %v1447 = vmax.f32 %v1411, 0.0
    %v1448 = vmax.f32 %v1412, 0.0
    %v1449 = vmax.f32 %v1413, 0.0
    %v1450 = vmax.f32 %v1414, 0.0
    %v1451 = vmax.f32 %v1415, 0.0
    %v1452 = vmax.f32 %v1416, 0.0
    %v1453 = vmax.f32 %v1417, 0.0
    %v1454 = vmax.f32 %v1418, 0.0
    %v1455 = vmax.f32 %v1419, 0.0
    %v1456 = vmax.f32 %v1420, 0.0
    %v1457 = vmax.f32 %v1421, 0.0
    %v1458 = vmax.f32 %v1422, 0.0
    %v1459 = vmax.f32 %v1423, 0.0
    %v1460 = vmax.f32 %v1424, 0.0
    %v1461 = vmax.f32 %v1425, 0.0
    %v1462 = vmax.f32 %v1426, 0.0
    %v1463 = vmax.f32 %v1427, 0.0
    %v1464 = vmax.f32 %v1428, 0.0
    %v1465 = vmax.f32 %v1429, 0.0
    %v1466 = vmax.f32 %v1430, 0.0
    %v1467 = vmax.f32 %v1431, 0.0
    %v1468 = vmax.f32 %v1432, 0.0
    %v1469 = vmax.f32 %v1433, 0.0
    %vm1494 = vcmask 1045504
    %v1495 = vrot.slane %v1434, 2
    %v1496 = vrot.slane %v1435, 2
    %v1497 = vsel %vm1494, %v1495, %v1496
    %v1498 = vrot.slane %v1436, 2
    %v1499 = vsel %vm1494, %v1496, %v1498
    %v1500 = vrot.slane %v1437, 2
    %v1501 = vsel %vm1494, %v1498, %v1500
    %v1502 = vrot.slane %v1438, 2
    %v1503 = vsel %vm1494, %v1500, %v1502
    %v1504 = vrot.slane %v1439, 2
    %v1505 = vsel %vm1494, %v1502, %v1504
    %v1506 = vrot.slane %v1440, 2
    %v1507 = vsel %vm1494, %v1504, %v1506
    %v1508 = vrot.slane %v1441, 2
    %v1509 = vsel %vm1494, %v1506, %v1508
    %v1510 = vrot.slane %v1442, 2
    %v1511 = vsel %vm1494, %v1508, %v1510
    %v1512 = vrot.slane %v1443, 2
    %v1513 = vsel %vm1494, %v1510, %v1512
    %v1514 = vrot.slane %v1444, 2
    %v1515 = vsel %vm1494, %v1512, %v1514
    %v1516 = vrot.slane %v1445, 2
    %v1517 = vsel %vm1494, %v1514, %v1516
    %v1518 = vrot.slane %v1446, 2
    %v1519 = vsel %vm1494, %v1516, %v1518
    %v1520 = vrot.slane %v1447, 2
    %v1521 = vsel %vm1494, %v1518, %v1520
    %v1522 = vrot.slane %v1448, 2
    %v1523 = vsel %vm1494, %v1520, %v1522
    %v1524 = vrot.slane %v1449, 2
    %v1525 = vsel %vm1494, %v1522, %v1524
    %v1526 = vrot.slane %v1450, 2
    %v1527 = vsel %vm1494, %v1524, %v1526
    %v1528 = vrot.slane %v1451, 2
    %v1529 = vsel %vm1494, %v1526, %v1528
    %v1530 = vrot.slane %v1452, 2
    %v1531 = vsel %vm1494, %v1528, %v1530
    %v1532 = vrot.slane %v1453, 2
    %v1533 = vsel %vm1494, %v1530, %v1532
    %v1534 = vrot.slane %v1454, 2
    %v1535 = vsel %vm1494, %v1532, %v1534
    %v1536 = vrot.slane %v1455, 2
    %v1537 = vsel %vm1494, %v1534, %v1536
    %v1538 = vrot.slane %v1456, 2
    %v1539 = vsel %vm1494, %v1536, %v1538
    %v1540 = vrot.slane %v1457, 2
    %v1541 = vsel %vm1494, %v1538, %v1540
    %vm1565 = vcmask 1043456
    %v1566 = vrot.slane %v1434, 4
    %v1567 = vrot.slane %v1435, 4
    %v1568 = vsel %vm1565, %v1566, %v1567
    %v1569 = vrot.slane %v1436, 4
    %v1570 = vsel %vm1565, %v1567, %v1569
    %v1571 = vrot.slane %v1437, 4
    %v1572 = vsel %vm1565, %v1569, %v1571
    %v1573 = vrot.slane %v1438, 4
    %v1574 = vsel %vm1565, %v1571, %v1573
    %v1575 = vrot.slane %v1439, 4
    %v1576 = vsel %vm1565, %v1573, %v1575
    %v1577 = vrot.slane %v1440, 4
    %v1578 = vsel %vm1565, %v1575, %v1577
    %v1579 = vrot.slane %v1441, 4
    %v1580 = vsel %vm1565, %v1577, %v1579
    %v1581 = vrot.slane %v1442, 4
    %v1582 = vsel %vm1565, %v1579, %v1581
    %v1583 = vrot.slane %v1443, 4
    %v1584 = vsel %vm1565, %v1581, %v1583
    %v1585 = vrot.slane %v1444, 4
    %v1586 = vsel %vm1565, %v1583, %v1585
    %v1587 = vrot.slane %v1445, 4
    %v1588 = vsel %vm1565, %v1585, %v1587
    %v1589 = vrot.slane %v1446, 4
    %v1590 = vsel %vm1565, %v1587, %v1589
    %v1591 = vrot.slane %v1447, 4
    %v1592 = vsel %vm1565, %v1589, %v1591
    %v1593 = vrot.slane %v1448, 4
    %v1594 = vsel %vm1565, %v1591, %v1593
    %v1595 = vrot.slane %v1449, 4
    %v1596 = vsel %vm1565, %v1593, %v1595
    %v1597 = vrot.slane %v1450, 4
    %v1598 = vsel %vm1565, %v1595, %v1597
    %v1599 = vrot.slane %v1451, 4
    %v1600 = vsel %vm1565, %v1597, %v1599
    %v1601 = vrot.slane %v1452, 4
    %v1602 = vsel %vm1565, %v1599, %v1601
    %v1603 = vrot.slane %v1453, 4
    %v1604 = vsel %vm1565, %v1601, %v1603
    %v1605 = vrot.slane %v1454, 4
    %v1606 = vsel %vm1565, %v1603, %v1605
    %v1607 = vrot.slane %v1455, 4
    %v1608 = vsel %vm1565, %v1605, %v1607
    %v1609 = vrot.slane %v1456, 4
    %v1610 = vsel %vm1565, %v1607, %v1609
    %v1611 = vrot.slane %v1457, 4
    %v1612 = vsel %vm1565, %v1609, %v1611
    %vm1636 = vcmask 1041408
    %v1637 = vrot.slane %v1434, 6
    %v1638 = vrot.slane %v1435, 6
    %v1639 = vsel %vm1636, %v1637, %v1638
    %v1640 = vrot.slane %v1436, 6
    %v1641 = vsel %vm1636, %v1638, %v1640
    %v1642 = vrot.slane %v1437, 6
    %v1643 = vsel %vm1636, %v1640, %v1642
    %v1644 = vrot.slane %v1438, 6
    %v1645 = vsel %vm1636, %v1642, %v1644
    %v1646 = vrot.slane %v1439, 6
    %v1647 = vsel %vm1636, %v1644, %v1646
    %v1648 = vrot.slane %v1440, 6
    %v1649 = vsel %vm1636, %v1646, %v1648
    %v1650 = vrot.slane %v1441, 6
    %v1651 = vsel %vm1636, %v1648, %v1650
    %v1652 = vrot.slane %v1442, 6
    %v1653 = vsel %vm1636, %v1650, %v1652
    %v1654 = vrot.slane %v1443, 6
    %v1655 = vsel %vm1636, %v1652, %v1654
    %v1656 = vrot.slane %v1444, 6
    %v1657 = vsel %vm1636, %v1654, %v1656
    %v1658 = vrot.slane %v1445, 6
    %v1659 = vsel %vm1636, %v1656, %v1658
    %v1660 = vrot.slane %v1446, 6
    %v1661 = vsel %vm1636, %v1658, %v1660
    %v1662 = vrot.slane %v1447, 6
    %v1663 = vsel %vm1636, %v1660, %v1662
    %v1664 = vrot.slane %v1448, 6
    %v1665 = vsel %vm1636, %v1662, %v1664
    %v1666 = vrot.slane %v1449, 6
    %v1667 = vsel %vm1636, %v1664, %v1666
    %v1668 = vrot.slane %v1450, 6
    %v1669 = vsel %vm1636, %v1666, %v1668
    %v1670 = vrot.slane %v1451, 6
    %v1671 = vsel %vm1636, %v1668, %v1670
    %v1672 = vrot.slane %v1452, 6
    %v1673 = vsel %vm1636, %v1670, %v1672
    %v1674 = vrot.slane %v1453, 6
    %v1675 = vsel %vm1636, %v1672, %v1674
    %v1676 = vrot.slane %v1454, 6
    %v1677 = vsel %vm1636, %v1674, %v1676
    %v1678 = vrot.slane %v1455, 6
    %v1679 = vsel %vm1636, %v1676, %v1678
    %v1680 = vrot.slane %v1456, 6
    %v1681 = vsel %vm1636, %v1678, %v1680
    %v1682 = vrot.slane %v1457, 6
    %v1683 = vsel %vm1636, %v1680, %v1682
    %v1710 = vrot.slane %v1458, 2
    %v1711 = vsel %vm1494, %v1540, %v1710
    %v1712 = vrot.slane %v1459, 2
    %v1713 = vsel %vm1494, %v1710, %v1712
    %v1714 = vrot.slane %v1460, 2
    %v1715 = vsel %vm1494, %v1712, %v1714
    %v1719 = vrot.slane %v1458, 4
    %v1720 = vsel %vm1565, %v1611, %v1719
    %v1721 = vrot.slane %v1459, 4
    %v1722 = vsel %vm1565, %v1719, %v1721
    %v1723 = vrot.slane %v1460, 4
    %v1724 = vsel %vm1565, %v1721, %v1723
    %v1728 = vrot.slane %v1458, 6
    %v1729 = vsel %vm1636, %v1682, %v1728
    %v1730 = vrot.slane %v1459, 6
    %v1731 = vsel %vm1636, %v1728, %v1730
    %v1732 = vrot.slane %v1460, 6
    %v1733 = vsel %vm1636, %v1730, %v1732
    %v1740 = vrot.slane %v1461, 2
    %v1741 = vsel %vm1494, %v1714, %v1740
    %v1742 = vrot.slane %v1462, 2
    %v1743 = vsel %vm1494, %v1740, %v1742
    %v1744 = vrot.slane %v1463, 2
    %v1745 = vsel %vm1494, %v1742, %v1744
    %v1749 = vrot.slane %v1461, 4
    %v1750 = vsel %vm1565, %v1723, %v1749
    %v1751 = vrot.slane %v1462, 4
    %v1752 = vsel %vm1565, %v1749, %v1751
    %v1753 = vrot.slane %v1463, 4
    %v1754 = vsel %vm1565, %v1751, %v1753
    %v1758 = vrot.slane %v1461, 6
    %v1759 = vsel %vm1636, %v1732, %v1758
    %v1760 = vrot.slane %v1462, 6
    %v1761 = vsel %vm1636, %v1758, %v1760
    %v1762 = vrot.slane %v1463, 6
    %v1763 = vsel %vm1636, %v1760, %v1762
    %v1770 = vrot.slane %v1464, 2
    %v1771 = vsel %vm1494, %v1744, %v1770
    %v1772 = vrot.slane %v1465, 2
    %v1773 = vsel %vm1494, %v1770, %v1772
    %v1774 = vrot.slane %v1466, 2
    %v1775 = vsel %vm1494, %v1772, %v1774
    %v1776 = vrot.slane %v1464, 4
    %v1777 = vsel %vm1565, %v1753, %v1776
    %v1778 = vrot.slane %v1465, 4
    %v1779 = vsel %vm1565, %v1776, %v1778
    %v1780 = vrot.slane %v1466, 4
    %v1781 = vsel %vm1565, %v1778, %v1780
    %v1782 = vrot.slane %v1464, 6
    %v1783 = vsel %vm1636, %v1762, %v1782
    %v1784 = vrot.slane %v1465, 6
    %v1785 = vsel %vm1636, %v1782, %v1784
    %v1786 = vrot.slane %v1466, 6
    %v1787 = vsel %vm1636, %v1784, %v1786
    %v1790 = vrot.slane %v1467, 6
    %v1791 = vsel %vm1636, %v1786, %v1790
    %v1792 = vrot.slane %v1468, 6
    %v1793 = vsel %vm1636, %v1790, %v1792
    %v1795 = vrot.slane %v1467, 2
    %v1796 = vsel %vm1494, %v1774, %v1795
    %v1797 = vrot.slane %v1468, 2
    %v1798 = vsel %vm1494, %v1795, %v1797
    %v1799 = vrot.slane %v1469, 2
    %v1800 = vsel %vm1494, %v1797, %v1799
    %v1801 = vrot.slane %v1467, 4
    %v1802 = vsel %vm1565, %v1780, %v1801
    %v1803 = vrot.slane %v1468, 4
    %v1804 = vsel %vm1565, %v1801, %v1803
    %v1805 = vrot.slane %v1469, 4
    %v1806 = vsel %vm1565, %v1803, %v1805
    %v1807 = vrot.slane %v1469, 6
    %v1808 = vsel %vm1636, %v1792, %v1807
    %v1809 = vrot.slane %v1515, 2
    %v1810 = vrot.slane %v1517, 2
    %v1811 = vsel %vm1494, %v1809, %v1810
    %v1812 = vrot.slane %v1586, 2
    %v1813 = vrot.slane %v1588, 2
    %v1814 = vsel %vm1494, %v1812, %v1813
    %v1815 = vrot.slane %v1656, 2
    %v1816 = vrot.slane %v1659, 2
    %v1817 = vsel %vm1494, %v1815, %v1816
    %v1818 = vrot.slane %v1660, 2
    %v1819 = vrot.slane %v1663, 2
    %v1820 = vsel %vm1494, %v1818, %v1819
    %v1821 = vrot.slane %v1521, 2
    %v1822 = vrot.slane %v1523, 2
    %v1823 = vsel %vm1494, %v1821, %v1822
    %v1824 = vrot.slane %v1592, 2
    %v1825 = vrot.slane %v1594, 2
    %v1826 = vsel %vm1494, %v1824, %v1825
    %v1827 = vrot.slane %v1662, 2
    %v1828 = vrot.slane %v1665, 2
    %v1829 = vsel %vm1494, %v1827, %v1828
    %v1830 = vrot.slane %v1519, 2
    %v1831 = vsel %vm1494, %v1810, %v1830
    %v1832 = vrot.slane %v1590, 2
    %v1833 = vsel %vm1494, %v1813, %v1832
    %v1834 = vrot.slane %v1661, 2
    %v1835 = vsel %vm1494, %v1816, %v1834
    %v1836 = vsel %vm1494, %v1819, %v1828
    %v1837 = vrot.slane %v1525, 2
    %v1838 = vsel %vm1494, %v1822, %v1837
    %v1839 = vrot.slane %v1596, 2
    %v1840 = vsel %vm1494, %v1825, %v1839
    %v1841 = vrot.slane %v1667, 2
    %v1842 = vsel %vm1494, %v1828, %v1841
    %v1843 = vsel %vm1494, %v1830, %v1821
    %v1844 = vsel %vm1494, %v1832, %v1824
    %v1845 = vsel %vm1494, %v1834, %v1819
    %v1846 = vrot.slane %v1527, 2
    %v1847 = vsel %vm1494, %v1837, %v1846
    %v1848 = vrot.slane %v1598, 2
    %v1849 = vsel %vm1494, %v1839, %v1848
    %v1850 = vrot.slane %v1669, 2
    %v1851 = vsel %vm1494, %v1841, %v1850
    %v1852 = vrot.slane %v1529, 2
    %v1853 = vsel %vm1494, %v1846, %v1852
    %v1854 = vrot.slane %v1600, 2
    %v1855 = vsel %vm1494, %v1848, %v1854
    %v1856 = vrot.slane %v1671, 2
    %v1857 = vsel %vm1494, %v1850, %v1856
    %v1858 = vrot.slane %v1531, 2
    %v1859 = vsel %vm1494, %v1852, %v1858
    %v1860 = vrot.slane %v1602, 2
    %v1861 = vsel %vm1494, %v1854, %v1860
    %v1862 = vrot.slane %v1673, 2
    %v1863 = vsel %vm1494, %v1856, %v1862
    %v1864 = vrot.slane %v1533, 2
    %v1865 = vsel %vm1494, %v1858, %v1864
    %v1866 = vrot.slane %v1604, 2
    %v1867 = vsel %vm1494, %v1860, %v1866
    %v1868 = vrot.slane %v1675, 2
    %v1869 = vsel %vm1494, %v1862, %v1868
    %v1870 = vrot.slane %v1535, 2
    %v1871 = vsel %vm1494, %v1864, %v1870
    %v1872 = vrot.slane %v1606, 2
    %v1873 = vsel %vm1494, %v1866, %v1872
    %v1874 = vrot.slane %v1677, 2
    %v1875 = vsel %vm1494, %v1868, %v1874
    %v1876 = vrot.slane %v1537, 2
    %v1877 = vsel %vm1494, %v1870, %v1876
    %v1878 = vrot.slane %v1608, 2
    %v1879 = vsel %vm1494, %v1872, %v1878
    %v1880 = vrot.slane %v1679, 2
    %v1881 = vsel %vm1494, %v1874, %v1880
    %v1882 = vrot.slane %v1539, 2
    %v1883 = vsel %vm1494, %v1876, %v1882
    %v1884 = vrot.slane %v1610, 2
    %v1885 = vsel %vm1494, %v1878, %v1884
    %v1886 = vrot.slane %v1681, 2
    %v1887 = vsel %vm1494, %v1880, %v1886
    %v1888 = vrot.slane %v1541, 2
    %v1889 = vsel %vm1494, %v1882, %v1888
    %v1890 = vrot.slane %v1612, 2
    %v1891 = vsel %vm1494, %v1884, %v1890
    %v1892 = vrot.slane %v1683, 2
    %v1893 = vsel %vm1494, %v1886, %v1892
    %v1894 = vrot.slane %v1711, 2
    %v1895 = vsel %vm1494, %v1888, %v1894
    %v1896 = vrot.slane %v1720, 2
    %v1897 = vsel %vm1494, %v1890, %v1896
    %v1898 = vrot.slane %v1729, 2
    %v1899 = vsel %vm1494, %v1892, %v1898
    %v1900 = vrot.slane %v1713, 2
    %v1901 = vsel %vm1494, %v1894, %v1900
    %v1902 = vrot.slane %v1722, 2
    %v1903 = vsel %vm1494, %v1896, %v1902
    %v1904 = vrot.slane %v1731, 2
    %v1905 = vsel %vm1494, %v1898, %v1904
    %v1906 = vrot.slane %v1715, 2
    %v1907 = vsel %vm1494, %v1900, %v1906
    %v1908 = vrot.slane %v1724, 2
    %v1909 = vsel %vm1494, %v1902, %v1908
    %v1910 = vrot.slane %v1733, 2
    %v1911 = vsel %vm1494, %v1904, %v1910
    %v1912 = vrot.slane %v1741, 2
    %v1913 = vsel %vm1494, %v1906, %v1912
    %v1914 = vrot.slane %v1750, 2
    %v1915 = vsel %vm1494, %v1908, %v1914
    %v1916 = vrot.slane %v1759, 2
    %v1917 = vsel %vm1494, %v1910, %v1916
    %v1918 = vrot.slane %v1743, 2
    %v1919 = vsel %vm1494, %v1912, %v1918
    %v1920 = vrot.slane %v1752, 2
    %v1921 = vsel %vm1494, %v1914, %v1920
    %v1922 = vrot.slane %v1761, 2
    %v1923 = vsel %vm1494, %v1916, %v1922
    %v1924 = vrot.slane %v1745, 2
    %v1925 = vsel %vm1494, %v1918, %v1924
    %v1926 = vrot.slane %v1754, 2
    %v1927 = vsel %vm1494, %v1920, %v1926
    %v1928 = vrot.slane %v1763, 2
    %v1929 = vsel %vm1494, %v1922, %v1928
    %v1930 = vrot.slane %v1771, 2
    %v1931 = vsel %vm1494, %v1924, %v1930
    %v1932 = vrot.slane %v1777, 2
    %v1933 = vsel %vm1494, %v1926, %v1932
    %v1934 = vrot.slane %v1783, 2
    %v1935 = vsel %vm1494, %v1928, %v1934
    %v1936 = vrot.slane %v1773, 2
    %v1937 = vsel %vm1494, %v1930, %v1936
    %v1938 = vrot.slane %v1779, 2
    %v1939 = vsel %vm1494, %v1932, %v1938
    %v1940 = vrot.slane %v1785, 2
    %v1941 = vsel %vm1494, %v1934, %v1940
    %v1942 = vrot.slane %v1775, 2
    %v1943 = vsel %vm1494, %v1936, %v1942
    %v1944 = vrot.slane %v1781, 2
    %v1945 = vsel %vm1494, %v1938, %v1944
    %v1946 = vrot.slane %v1787, 2
    %v1947 = vsel %vm1494, %v1940, %v1946
    %v1948 = vrot.slane %v1796, 2
    %v1949 = vsel %vm1494, %v1942, %v1948
    %v1950 = vrot.slane %v1802, 2
    %v1951 = vsel %vm1494, %v1944, %v1950
    %v1952 = vrot.slane %v1791, 2
    %v1953 = vsel %vm1494, %v1946, %v1952
    %v1954 = vrot.slane %v1798, 2
    %v1955 = vsel %vm1494, %v1948, %v1954
    %v1956 = vrot.slane %v1804, 2
    %v1957 = vsel %vm1494, %v1950, %v1956
    %v1958 = vrot.slane %v1793, 2
    %v1959 = vsel %vm1494, %v1952, %v1958
    %v1960 = vrot.slane %v1800, 2
    %v1961 = vsel %vm1494, %v1954, %v1960
    %v1962 = vrot.slane %v1806, 2
    %v1963 = vsel %vm1494, %v1956, %v1962
    %v1964 = vrot.slane %v1808, 2
    %v1965 = vsel %vm1494, %v1958, %v1964
    %v1966 = vrot.slane %v1774, 2
    %v1967 = vsel %vm1494, %v1942, %v1966
    %v1968 = vrot.slane %v1780, 2
    %v1969 = vsel %vm1494, %v1944, %v1968
    %v1970 = vrot.slane %v1786, 2
    %v1971 = vsel %vm1494, %v1946, %v1970
    %v1972 = vrot.slane %v1792, 2
    %v1973 = vsel %vm1494, %v1958, %v1972
    %v1974 = vrot.slane %v1799, 2
    %v1975 = vsel %vm1494, %v1960, %v1974
    %v1976 = vrot.slane %v1805, 2
    %v1977 = vsel %vm1494, %v1962, %v1976
    %v1978 = vrot.slane %v1807, 2
    %v1979 = vsel %vm1494, %v1964, %v1978
    %v2070 = vpack.c.bf16 %v1435, %v1434
    %v2071 = vpack.c.bf16 %v1499, %v1497
    %v2072 = vpack.c.bf16 %v1570, %v1568
    %v2073 = vpack.c.bf16 %v1641, %v1639
    %v2074 = vpack.c.bf16 %v1436, %v1435
    %v2075 = vpack.c.bf16 %v1438, %v1437
    %v2076 = vpack.c.bf16 %v1505, %v1503
    %v2077 = vpack.c.bf16 %v1576, %v1574
    %v2078 = vpack.c.bf16 %v1647, %v1645
    %v2079 = vpack.c.bf16 %v1439, %v1438
    %v2080 = vpack.c.bf16 %v1441, %v1440
    %v2081 = vpack.c.bf16 %v1511, %v1509
    %v2082 = vpack.c.bf16 %v1582, %v1580
    %v2083 = vpack.c.bf16 %v1653, %v1651
    %v2084 = vpack.c.bf16 %v1442, %v1441
    %v2085 = vpack.c.bf16 %v1444, %v1443
    %v2086 = vpack.c.bf16 %v1517, %v1515
    %v2087 = vpack.c.bf16 %v1831, %v1811
    %v2088 = vpack.c.bf16 %v1833, %v1814
    %v2089 = vpack.c.bf16 %v1835, %v1817
    %v2090 = vpack.c.bf16 %v1836, %v1820
    %v2091 = vpack.c.bf16 %v1523, %v1521
    %v2092 = vpack.c.bf16 %v1838, %v1823
    %v2093 = vpack.c.bf16 %v1840, %v1826
    %v2094 = vpack.c.bf16 %v1842, %v1829
    %v2095 = vpack.c.bf16 %v1437, %v1436
    %v2096 = vpack.c.bf16 %v1503, %v1501
    %v2097 = vpack.c.bf16 %v1574, %v1572
    %v2098 = vpack.c.bf16 %v1645, %v1643
    %v2099 = vpack.c.bf16 %v1440, %v1439
    %v2100 = vpack.c.bf16 %v1509, %v1507
    %v2101 = vpack.c.bf16 %v1580, %v1578
    %v2102 = vpack.c.bf16 %v1651, %v1649
    %v2103 = vpack.c.bf16 %v1443, %v1442
    %v2104 = vpack.c.bf16 %v1515, %v1513
    %v2105 = vpack.c.bf16 %v1586, %v1584
    %v2106 = vpack.c.bf16 %v1657, %v1655
    %v2107 = vpack.c.bf16 %v1446, %v1445
    %v2108 = vpack.c.bf16 %v1521, %v1519
    %v2109 = vpack.c.bf16 %v1823, %v1843
    %v2110 = vpack.c.bf16 %v1826, %v1844
    %v2111 = vpack.c.bf16 %v1836, %v1845
    %v2112 = vpack.c.bf16 %v1851, %v1842
    %v2113 = vpack.c.bf16 %v1527, %v1525
    %v2114 = vpack.c.bf16 %v1853, %v1847
    %v2115 = vpack.c.bf16 %v1855, %v1849
    %v2116 = vpack.c.bf16 %v1857, %v1851
    %v2117 = vpack.c.bf16 %v1507, %v1505
    %v2118 = vpack.c.bf16 %v1578, %v1576
    %v2119 = vpack.c.bf16 %v1649, %v1647
    %v2120 = vpack.c.bf16 %v1513, %v1511
    %v2121 = vpack.c.bf16 %v1584, %v1582
    %v2122 = vpack.c.bf16 %v1655, %v1653
    %v2123 = vpack.c.bf16 %v1445, %v1444
    %v2124 = vpack.c.bf16 %v1519, %v1517
    %v2125 = vpack.c.bf16 %v1590, %v1588
    %v2126 = vpack.c.bf16 %v1661, %v1659
    %v2127 = vpack.c.bf16 %v1448, %v1447
    %v2128 = vpack.c.bf16 %v1525, %v1523
    %v2129 = vpack.c.bf16 %v1847, %v1838
    %v2130 = vpack.c.bf16 %v1849, %v1840
    %v2131 = vpack.c.bf16 %v1863, %v1857
    %v2132 = vpack.c.bf16 %v1531, %v1529
    %v2133 = vpack.c.bf16 %v1865, %v1859
    %v2134 = vpack.c.bf16 %v1867, %v1861
    %v2135 = vpack.c.bf16 %v1869, %v1863
    %v2136 = vpack.c.bf16 %v1588, %v1586
    %v2137 = vpack.c.bf16 %v1659, %v1657
    %v2138 = vpack.c.bf16 %v1447, %v1446
    %v2139 = vpack.c.bf16 %v1594, %v1592
    %v2140 = vpack.c.bf16 %v1665, %v1663
    %v2141 = vpack.c.bf16 %v1450, %v1449
    %v2142 = vpack.c.bf16 %v1529, %v1527
    %v2143 = vpack.c.bf16 %v1859, %v1853
    %v2144 = vpack.c.bf16 %v1861, %v1855
    %v2145 = vpack.c.bf16 %v1875, %v1869
    %v2146 = vpack.c.bf16 %v1535, %v1533
    %v2147 = vpack.c.bf16 %v1877, %v1871
    %v2148 = vpack.c.bf16 %v1879, %v1873
    %v2149 = vpack.c.bf16 %v1881, %v1875
    %v2150 = vpack.c.bf16 %v1592, %v1590
    %v2151 = vpack.c.bf16 %v1663, %v1661
    %v2152 = vpack.c.bf16 %v1449, %v1448
    %v2153 = vpack.c.bf16 %v1598, %v1596
    %v2154 = vpack.c.bf16 %v1669, %v1667
    %v2155 = vpack.c.bf16 %v1452, %v1451
    %v2156 = vpack.c.bf16 %v1533, %v1531
    %v2157 = vpack.c.bf16 %v1871, %v1865
    %v2158 = vpack.c.bf16 %v1873, %v1867
    %v2159 = vpack.c.bf16 %v1887, %v1881
    %v2160 = vpack.c.bf16 %v1539, %v1537
    %v2161 = vpack.c.bf16 %v1889, %v1883
    %v2162 = vpack.c.bf16 %v1891, %v1885
    %v2163 = vpack.c.bf16 %v1893, %v1887
    %v2164 = vpack.c.bf16 %v1596, %v1594
    %v2165 = vpack.c.bf16 %v1667, %v1665
    %v2166 = vpack.c.bf16 %v1451, %v1450
    %v2167 = vpack.c.bf16 %v1602, %v1600
    %v2168 = vpack.c.bf16 %v1673, %v1671
    %v2169 = vpack.c.bf16 %v1454, %v1453
    %v2170 = vpack.c.bf16 %v1537, %v1535
    %v2171 = vpack.c.bf16 %v1883, %v1877
    %v2172 = vpack.c.bf16 %v1885, %v1879
    %v2173 = vpack.c.bf16 %v1899, %v1893
    %v2174 = vpack.c.bf16 %v1711, %v1541
    %v2175 = vpack.c.bf16 %v1901, %v1895
    %v2176 = vpack.c.bf16 %v1903, %v1897
    %v2177 = vpack.c.bf16 %v1905, %v1899
    %v2178 = vpack.c.bf16 %v1600, %v1598
    %v2179 = vpack.c.bf16 %v1671, %v1669
    %v2180 = vpack.c.bf16 %v1453, %v1452
    %v2181 = vpack.c.bf16 %v1606, %v1604
    %v2182 = vpack.c.bf16 %v1677, %v1675
    %v2183 = vpack.c.bf16 %v1456, %v1455
    %v2184 = vpack.c.bf16 %v1541, %v1539
    %v2185 = vpack.c.bf16 %v1895, %v1889
    %v2186 = vpack.c.bf16 %v1897, %v1891
    %v2187 = vpack.c.bf16 %v1911, %v1905
    %v2188 = vpack.c.bf16 %v1715, %v1713
    %v2189 = vpack.c.bf16 %v1913, %v1907
    %v2190 = vpack.c.bf16 %v1915, %v1909
    %v2191 = vpack.c.bf16 %v1917, %v1911
    %v2192 = vpack.c.bf16 %v1604, %v1602
    %v2193 = vpack.c.bf16 %v1675, %v1673
    %v2194 = vpack.c.bf16 %v1455, %v1454
    %v2195 = vpack.c.bf16 %v1610, %v1608
    %v2196 = vpack.c.bf16 %v1681, %v1679
    %v2197 = vpack.c.bf16 %v1458, %v1457
    %v2198 = vpack.c.bf16 %v1713, %v1711
    %v2199 = vpack.c.bf16 %v1907, %v1901
    %v2200 = vpack.c.bf16 %v1909, %v1903
    %v2201 = vpack.c.bf16 %v1923, %v1917
    %v2202 = vpack.c.bf16 %v1743, %v1741
    %v2203 = vpack.c.bf16 %v1925, %v1919
    %v2204 = vpack.c.bf16 %v1927, %v1921
    %v2205 = vpack.c.bf16 %v1929, %v1923
    %v2206 = vpack.c.bf16 %v1608, %v1606
    %v2207 = vpack.c.bf16 %v1679, %v1677
    %v2208 = vpack.c.bf16 %v1457, %v1456
    %v2209 = vpack.c.bf16 %v1720, %v1612
    %v2210 = vpack.c.bf16 %v1729, %v1683
    %v2211 = vpack.c.bf16 %v1460, %v1459
    %v2212 = vpack.c.bf16 %v1741, %v1715
    %v2213 = vpack.c.bf16 %v1919, %v1913
    %v2214 = vpack.c.bf16 %v1921, %v1915
    %v2215 = vpack.c.bf16 %v1935, %v1929
    %v2216 = vpack.c.bf16 %v1771, %v1745
    %v2217 = vpack.c.bf16 %v1937, %v1931
    %v2218 = vpack.c.bf16 %v1939, %v1933
    %v2219 = vpack.c.bf16 %v1941, %v1935
    %v2220 = vpack.c.bf16 %v1612, %v1610
    %v2221 = vpack.c.bf16 %v1683, %v1681
    %v2222 = vpack.c.bf16 %v1459, %v1458
    %v2223 = vpack.c.bf16 %v1724, %v1722
    %v2224 = vpack.c.bf16 %v1733, %v1731
    %v2225 = vpack.c.bf16 %v1462, %v1461
    %v2226 = vpack.c.bf16 %v1745, %v1743
    %v2227 = vpack.c.bf16 %v1931, %v1925
    %v2228 = vpack.c.bf16 %v1933, %v1927
    %v2229 = vpack.c.bf16 %v1947, %v1941
    %v2230 = vpack.c.bf16 %v1775, %v1773
    %v2231 = vpack.c.bf16 %v1949, %v1943
    %v2232 = vpack.c.bf16 %v1951, %v1945
    %v2233 = vpack.c.bf16 %v1953, %v1947
    %v2234 = vpack.c.bf16 %v1722, %v1720
    %v2235 = vpack.c.bf16 %v1731, %v1729
    %v2236 = vpack.c.bf16 %v1461, %v1460
    %v2237 = vpack.c.bf16 %v1752, %v1750
    %v2238 = vpack.c.bf16 %v1761, %v1759
    %v2239 = vpack.c.bf16 %v1464, %v1463
    %v2240 = vpack.c.bf16 %v1773, %v1771
    %v2241 = vpack.c.bf16 %v1943, %v1937
    %v2242 = vpack.c.bf16 %v1945, %v1939
    %v2243 = vpack.c.bf16 %v1959, %v1953
    %v2244 = vpack.c.bf16 %v1798, %v1796
    %v2245 = vpack.c.bf16 %v1961, %v1955
    %v2246 = vpack.c.bf16 %v1963, %v1957
    %v2247 = vpack.c.bf16 %v1965, %v1959
    %v2248 = vpack.c.bf16 %v1456, %v1456
    %v2249 = vpack.c.bf16 %v1541, %v1541
    %v2250 = vpack.c.bf16 %v1612, %v1612
    %v2251 = vpack.c.bf16 %v1683, %v1683
    %v2252 = vpack.c.bf16 %v1457, %v1457
    %v2253 = vpack.c.bf16 %v1459, %v1459
    %v2254 = vpack.c.bf16 %v1715, %v1715
    %v2255 = vpack.c.bf16 %v1724, %v1724
    %v2256 = vpack.c.bf16 %v1733, %v1733
    %v2257 = vpack.c.bf16 %v1460, %v1460
    %v2258 = vpack.c.bf16 %v1462, %v1462
    %v2259 = vpack.c.bf16 %v1745, %v1745
    %v2260 = vpack.c.bf16 %v1754, %v1754
    %v2261 = vpack.c.bf16 %v1763, %v1763
    %v2262 = vpack.c.bf16 %v1463, %v1463
    %v2263 = vpack.c.bf16 %v1465, %v1465
    %v2264 = vpack.c.bf16 %v1775, %v1775
    %v2265 = vpack.c.bf16 %v1967, %v1967
    %v2266 = vpack.c.bf16 %v1969, %v1969
    %v2267 = vpack.c.bf16 %v1971, %v1971
    %v2268 = vpack.c.bf16 %v1973, %v1973
    %v2269 = vpack.c.bf16 %v1800, %v1800
    %v2270 = vpack.c.bf16 %v1975, %v1975
    %v2271 = vpack.c.bf16 %v1977, %v1977
    %v2272 = vpack.c.bf16 %v1979, %v1979
    %v2273 = vld [vmem:[%s3] sm:$0xf]
    %v2274 = vld [vmem:[%s3 + $0x4] sm:$0xf]
    %v2275 = vld [vmem:[%s3 + $0x8] sm:$0xf]
    %v2276 = vld [vmem:[%s3 + $0xc] sm:$0xf]
    %v2277 = vld [vmem:[%s3 + $0x10] sm:$0xf]
    %v2278 = vld [vmem:[%s3 + $0x14] sm:$0xf]
    %v2279 = vld [vmem:[%s3 + $0x18] sm:$0xf]
    %v2280 = vld [vmem:[%s3 + $0x1c] sm:$0xf]
    %v2281 = vld [vmem:[%s3 + $0x20] sm:$0xf]
    %v2282 = vld [vmem:[%s3 + $0x24] sm:$0xf]
    %v2283 = vld [vmem:[%s3 + $0x28] sm:$0xf]
    %v2284 = vld [vmem:[%s3 + $0x2c] sm:$0xf]
    %v2285 = vld [vmem:[%s3 + $0x30] sm:$0xf]
    %v2286 = vld [vmem:[%s3 + $0x34] sm:$0xf]
    %v2287 = vld [vmem:[%s3 + $0x38] sm:$0xf]
    %v2288 = vld [vmem:[%s3 + $0x3c] sm:$0xf]
    %v2289 = vld [vmem:[%s3 + $0x40] sm:$0xf]
    %v2290 = vld [vmem:[%s3 + $0x44] sm:$0xf]
    %v2291 = vld [vmem:[%s3 + $0x48] sm:$0xf]
    %v2292 = vld [vmem:[%s3 + $0x4c] sm:$0xf]
    %v2293 = vld [vmem:[%s3 + $0x50] sm:$0xf]
    %v2294 = vld [vmem:[%s3 + $0x54] sm:$0xf]
    %v2295 = vld [vmem:[%s3 + $0x58] sm:$0xf]
    %v2296 = vld [vmem:[%s3 + $0x5c] sm:$0xf]
    %v2297 = vld [vmem:[%s3 + $0x60] sm:$0xf]
    %v2298 = vld [vmem:[%s3 + $0x64] sm:$0xf]
    %v2299 = vld [vmem:[%s3 + $0x68] sm:$0xf]
    %v2300 = vld [vmem:[%s3 + $0x6c] sm:$0xf]
    %v2301 = vld [vmem:[%s3 + $0x70] sm:$0xf]
    %v2302 = vld [vmem:[%s3 + $0x74] sm:$0xf]
    %v2303 = vld [vmem:[%s3 + $0x78] sm:$0xf]
    %v2304 = vld [vmem:[%s3 + $0x7c] sm:$0xf]
    %v2305 = vld [vmem:[%s3 + $0x80] sm:$0xf]
    %v2306 = vld [vmem:[%s3 + $0x84] sm:$0xf]
    %v2307 = vld [vmem:[%s3 + $0x88] sm:$0xf]
    %v2308 = vld [vmem:[%s3 + $0x8c] sm:$0xf]
    %v2309 = vld [vmem:[%s3 + $0x90] sm:$0xf]
    %v2310 = vld [vmem:[%s3 + $0x94] sm:$0xf]
    %v2311 = vld [vmem:[%s3 + $0x98] sm:$0xf]
    %v2312 = vld [vmem:[%s3 + $0x9c] sm:$0xf]
    %v2313 = vld [vmem:[%s3 + $0xa0] sm:$0xf]
    %v2314 = vld [vmem:[%s3 + $0xa4] sm:$0xf]
    %v2315 = vld [vmem:[%s3 + $0xa8] sm:$0xf]
    %v2316 = vld [vmem:[%s3 + $0xac] sm:$0xf]
    %v2317 = vld [vmem:[%s3 + $0xb0] sm:$0xf]
    %v2318 = vld [vmem:[%s3 + $0xb4] sm:$0xf]
    %v2319 = vld [vmem:[%s3 + $0xb8] sm:$0xf]
    %v2320 = vld [vmem:[%s3 + $0xbc] sm:$0xf]
    %v2321 = vld [vmem:[%s3 + $0xc0] sm:$0xf]
    %v2322 = vld [vmem:[%s3 + $0xc4] sm:$0xf]
    %v2323 = vld [vmem:[%s3 + $0xc8] sm:$0xf]
    %v2324 = vld [vmem:[%s3 + $0xcc] sm:$0xf]
    %v2325 = vld [vmem:[%s3 + $0xd0] sm:$0xf]
    %v2326 = vld [vmem:[%s3 + $0xd4] sm:$0xf]
    %v2327 = vld [vmem:[%s3 + $0xd8] sm:$0xf]
    %v2328 = vld [vmem:[%s3 + $0xdc] sm:$0xf]
    %v2329 = vld [vmem:[%s3 + $0xe0] sm:$0xf]
    %v2330 = vld [vmem:[%s3 + $0xe4] sm:$0xf]
    %v2331 = vld [vmem:[%s3 + $0xe8] sm:$0xf]
    %v2332 = vld [vmem:[%s3 + $0xec] sm:$0xf]
    %v2333 = vld [vmem:[%s3 + $0xf0] sm:$0xf]
    %v2334 = vld [vmem:[%s3 + $0xf4] sm:$0xf]
    %v2335 = vld [vmem:[%s3 + $0xf8] sm:$0xf]
    %v2336 = vld [vmem:[%s3 + $0xfc] sm:$0xf]
    %v2337 = vld [vmem:[%s3 + $0x100] sm:$0xf]
    %v2338 = vld [vmem:[%s3 + $0x104] sm:$0xf]
    %v2339 = vld [vmem:[%s3 + $0x108] sm:$0xf]
    %v2340 = vld [vmem:[%s3 + $0x10c] sm:$0xf]
    %v2341 = vld [vmem:[%s3 + $0x110] sm:$0xf]
    %v2342 = vld [vmem:[%s3 + $0x114] sm:$0xf]
    %v2343 = vld [vmem:[%s3 + $0x118] sm:$0xf]
    %v2344 = vld [vmem:[%s3 + $0x11c] sm:$0xf]
    %v2345 = vld [vmem:[%s3 + $0x120] sm:$0xf]
    %v2346 = vld [vmem:[%s3 + $0x124] sm:$0xf]
    %v2347 = vld [vmem:[%s3 + $0x128] sm:$0xf]
    %v2348 = vld [vmem:[%s3 + $0x12c] sm:$0xf]
    %v2349 = vld [vmem:[%s3 + $0x130] sm:$0xf]
    %v2350 = vld [vmem:[%s3 + $0x134] sm:$0xf]
    %v2351 = vld [vmem:[%s3 + $0x138] sm:$0xf]
    %v2352 = vld [vmem:[%s3 + $0x13c] sm:$0xf]
    %v2353 = vld [vmem:[%s3 + $0x140] sm:$0xf]
    %v2354 = vld [vmem:[%s3 + $0x144] sm:$0xf]
    %v2355 = vld [vmem:[%s3 + $0x148] sm:$0xf]
    %v2356 = vld [vmem:[%s3 + $0x14c] sm:$0xf]
    %v2357 = vld [vmem:[%s3 + $0x150] sm:$0xf]
    %v2358 = vld [vmem:[%s3 + $0x154] sm:$0xf]
    %v2359 = vld [vmem:[%s3 + $0x158] sm:$0xf]
    %v2360 = vld [vmem:[%s3 + $0x15c] sm:$0xf]
    %v2361 = vld [vmem:[%s3 + $0x160] sm:$0xf]
    %v2362 = vld [vmem:[%s3 + $0x164] sm:$0xf]
    %v2363 = vld [vmem:[%s3 + $0x168] sm:$0xf]
    %v2364 = vld [vmem:[%s3 + $0x16c] sm:$0xf]
    %v2365 = vld [vmem:[%s3 + $0x170] sm:$0xf]
    %v2366 = vld [vmem:[%s3 + $0x174] sm:$0xf]
    %v2367 = vld [vmem:[%s3 + $0x178] sm:$0xf]
    %v2368 = vld [vmem:[%s3 + $0x17c] sm:$0xf]
    %v2369 = vld [vmem:[%s3 + $0x180] sm:$0xf]
    %v2370 = vld [vmem:[%s3 + $0x184] sm:$0xf]
    %v2371 = vld [vmem:[%s3 + $0x188] sm:$0xf]
    %v2372 = vld [vmem:[%s3 + $0x18c] sm:$0xf]
    %v2373 = vld [vmem:[%s3 + $0x190] sm:$0xf]
    %v2374 = vld [vmem:[%s3 + $0x194] sm:$0xf]
    %v2375 = vld [vmem:[%s3 + $0x198] sm:$0xf]
    %v2376 = vld [vmem:[%s3 + $0x19c] sm:$0xf]
    %v2377 = vld [vmem:[%s3 + $0x1a0] sm:$0xf]
    %v2378 = vld [vmem:[%s3 + $0x1a4] sm:$0xf]
    %v2379 = vld [vmem:[%s3 + $0x1a8] sm:$0xf]
    %v2380 = vld [vmem:[%s3 + $0x1ac] sm:$0xf]
    %v2381 = vld [vmem:[%s3 + $0x1b0] sm:$0xf]
    %v2382 = vld [vmem:[%s3 + $0x1b4] sm:$0xf]
    %v2383 = vld [vmem:[%s3 + $0x1b8] sm:$0xf]
    %v2384 = vld [vmem:[%s3 + $0x1bc] sm:$0xf]
    %v2385 = vld [vmem:[%s3 + $0x1c0] sm:$0xf]
    %v2386 = vld [vmem:[%s3 + $0x1c4] sm:$0xf]
    %v2387 = vld [vmem:[%s3 + $0x1c8] sm:$0xf]
    %v2388 = vld [vmem:[%s3 + $0x1cc] sm:$0xf]
    %v2389 = vld [vmem:[%s3 + $0x1d0] sm:$0xf]
    %v2390 = vld [vmem:[%s3 + $0x1d4] sm:$0xf]
    %v2391 = vld [vmem:[%s3 + $0x1d8] sm:$0xf]
    %v2392 = vld [vmem:[%s3 + $0x1dc] sm:$0xf]
    %v2393 = vld [vmem:[%s3 + $0x1e0] sm:$0xf]
    %v2394 = vld [vmem:[%s3 + $0x1e4] sm:$0xf]
    %v2395 = vld [vmem:[%s3 + $0x1e8] sm:$0xf]
    %v2396 = vld [vmem:[%s3 + $0x1ec] sm:$0xf]
    %v2397 = vld [vmem:[%s3 + $0x1f0] sm:$0xf]
    %v2398 = vld [vmem:[%s3 + $0x1f4] sm:$0xf]
    %v2399 = vld [vmem:[%s3 + $0x1f8] sm:$0xf]
    %v2400 = vld [vmem:[%s3 + $0x1fc] sm:$0xf]
    %v2401 = vld [vmem:[%s3 + $0x200] sm:$0xf]
    %v2402 = vld [vmem:[%s3 + $0x204] sm:$0xf]
    %v2403 = vld [vmem:[%s3 + $0x208] sm:$0xf]
    %v2404 = vld [vmem:[%s3 + $0x20c] sm:$0xf]
    %v2405 = vld [vmem:[%s3 + $0x210] sm:$0xf]
    %v2406 = vld [vmem:[%s3 + $0x214] sm:$0xf]
    %v2407 = vld [vmem:[%s3 + $0x218] sm:$0xf]
    %v2408 = vld [vmem:[%s3 + $0x21c] sm:$0xf]
    %v2409 = vld [vmem:[%s3 + $0x220] sm:$0xf]
    %v2410 = vld [vmem:[%s3 + $0x224] sm:$0xf]
    %v2411 = vld [vmem:[%s3 + $0x228] sm:$0xf]
    %v2412 = vld [vmem:[%s3 + $0x22c] sm:$0xf]
    %v2413 = vld [vmem:[%s3 + $0x230] sm:$0xf]
    %v2414 = vld [vmem:[%s3 + $0x234] sm:$0xf]
    %v2415 = vld [vmem:[%s3 + $0x238] sm:$0xf]
    %v2416 = vld [vmem:[%s3 + $0x23c] sm:$0xf]
    %v2417 = vld [vmem:[%s3 + $0x240] sm:$0xf]
    %v2418 = vld [vmem:[%s3 + $0x244] sm:$0xf]
    %v2419 = vld [vmem:[%s3 + $0x248] sm:$0xf]
    %v2420 = vld [vmem:[%s3 + $0x24c] sm:$0xf]
    %v2421 = vld [vmem:[%s3 + $0x250] sm:$0xf]
    %v2422 = vld [vmem:[%s3 + $0x254] sm:$0xf]
    %v2423 = vld [vmem:[%s3 + $0x258] sm:$0xf]
    %v2424 = vld [vmem:[%s3 + $0x25c] sm:$0xf]
    %v2425 = vld [vmem:[%s3 + $0x260] sm:$0xf]
    %v2426 = vld [vmem:[%s3 + $0x264] sm:$0xf]
    %v2427 = vld [vmem:[%s3 + $0x268] sm:$0xf]
    %v2428 = vld [vmem:[%s3 + $0x26c] sm:$0xf]
    %v2429 = vld [vmem:[%s3 + $0x270] sm:$0xf]
    %v2430 = vld [vmem:[%s3 + $0x274] sm:$0xf]
    %v2431 = vld [vmem:[%s3 + $0x278] sm:$0xf]
    %v2432 = vld [vmem:[%s3 + $0x27c] sm:$0xf]
    %v2433 = vld [vmem:[%s3 + $0x280] sm:$0xf]
    %v2434 = vld [vmem:[%s3 + $0x284] sm:$0xf]
    %v2435 = vld [vmem:[%s3 + $0x288] sm:$0xf]
    %v2436 = vld [vmem:[%s3 + $0x28c] sm:$0xf]
    %v2437 = vld [vmem:[%s3 + $0x290] sm:$0xf]
    %v2438 = vld [vmem:[%s3 + $0x294] sm:$0xf]
    %v2439 = vld [vmem:[%s3 + $0x298] sm:$0xf]
    %v2440 = vld [vmem:[%s3 + $0x29c] sm:$0xf]
    %v2441 = vld [vmem:[%s3 + $0x2a0] sm:$0xf]
    %v2442 = vld [vmem:[%s3 + $0x2a4] sm:$0xf]
    %v2443 = vld [vmem:[%s3 + $0x2a8] sm:$0xf]
    %v2444 = vld [vmem:[%s3 + $0x2ac] sm:$0xf]
    %v2445 = vld [vmem:[%s3 + $0x2b0] sm:$0xf]
    %v2446 = vld [vmem:[%s3 + $0x2b4] sm:$0xf]
    %v2447 = vld [vmem:[%s3 + $0x2b8] sm:$0xf]
    %v2448 = vld [vmem:[%s3 + $0x2bc] sm:$0xf]
    %v2449 = vld [vmem:[%s3 + $0x2c0] sm:$0xf]
    %v2450 = vld [vmem:[%s3 + $0x2c4] sm:$0xf]
    %v2451 = vld [vmem:[%s3 + $0x2c8] sm:$0xf]
    %v2452 = vld [vmem:[%s3 + $0x2cc] sm:$0xf]
    %v2453 = vld [vmem:[%s3 + $0x2d0] sm:$0xf]
    %v2454 = vld [vmem:[%s3 + $0x2d4] sm:$0xf]
    %v2455 = vld [vmem:[%s3 + $0x2d8] sm:$0xf]
    %v2456 = vld [vmem:[%s3 + $0x2dc] sm:$0xf]
    %v2457 = vld [vmem:[%s3 + $0x2e0] sm:$0xf]
    %v2458 = vld [vmem:[%s3 + $0x2e4] sm:$0xf]
    %v2459 = vld [vmem:[%s3 + $0x2e8] sm:$0xf]
    %v2460 = vld [vmem:[%s3 + $0x2ec] sm:$0xf]
    %v2461 = vld [vmem:[%s3 + $0x2f0] sm:$0xf]
    %v2462 = vld [vmem:[%s3 + $0x2f4] sm:$0xf]
    %v2463 = vld [vmem:[%s3 + $0x2f8] sm:$0xf]
    %v2464 = vld [vmem:[%s3 + $0x2fc] sm:$0xf]
    %v2465 = vld [vmem:[%s3 + $0x300] sm:$0xf]
    %v2466 = vld [vmem:[%s3 + $0x304] sm:$0xf]
    %v2467 = vld [vmem:[%s3 + $0x308] sm:$0xf]
    %v2468 = vld [vmem:[%s3 + $0x30c] sm:$0xf]
    %v2469 = vld [vmem:[%s3 + $0x310] sm:$0xf]
    %v2470 = vld [vmem:[%s3 + $0x314] sm:$0xf]
    %v2471 = vld [vmem:[%s3 + $0x318] sm:$0xf]
    %v2472 = vld [vmem:[%s3 + $0x31c] sm:$0xf]
    %v2473 = vld [vmem:[%s3 + $0x320] sm:$0xf]
    %v2474 = vld [vmem:[%s3 + $0x324] sm:$0xf]
    %v2475 = vld [vmem:[%s3 + $0x328] sm:$0xf]
    %v2476 = vld [vmem:[%s3 + $0x32c] sm:$0xf]
    %v2477 = vld [vmem:[%s3 + $0x330] sm:$0xf]
    %v2478 = vld [vmem:[%s3 + $0x334] sm:$0xf]
    %v2479 = vld [vmem:[%s3 + $0x338] sm:$0xf]
    %v2480 = vld [vmem:[%s3 + $0x33c] sm:$0xf]
    %v2481 = vld [vmem:[%s3 + $0x340] sm:$0xf]
    %v2482 = vld [vmem:[%s3 + $0x344] sm:$0xf]
    %v2483 = vld [vmem:[%s3 + $0x348] sm:$0xf]
    %v2484 = vld [vmem:[%s3 + $0x34c] sm:$0xf]
    %v2485 = vld [vmem:[%s3 + $0x350] sm:$0xf]
    %v2486 = vld [vmem:[%s3 + $0x354] sm:$0xf]
    %v2487 = vld [vmem:[%s3 + $0x358] sm:$0xf]
    %v2488 = vld [vmem:[%s3 + $0x35c] sm:$0xf]
    %v2489 = vld [vmem:[%s3 + $0x360] sm:$0xf]
    %v2490 = vld [vmem:[%s3 + $0x364] sm:$0xf]
    %v2491 = vld [vmem:[%s3 + $0x368] sm:$0xf]
    %v2492 = vld [vmem:[%s3 + $0x36c] sm:$0xf]
    %v2493 = vld [vmem:[%s3 + $0x370] sm:$0xf]
    %v2494 = vld [vmem:[%s3 + $0x374] sm:$0xf]
    %v2495 = vld [vmem:[%s3 + $0x378] sm:$0xf]
    %v2496 = vld [vmem:[%s3 + $0x37c] sm:$0xf]
    %v2497 = vld [vmem:[%s3 + $0x380] sm:$0xf]
    %v2498 = vld [vmem:[%s3 + $0x384] sm:$0xf]
    %v2499 = vld [vmem:[%s3 + $0x388] sm:$0xf]
    %v2500 = vld [vmem:[%s3 + $0x38c] sm:$0xf]
    %v2501 = vld [vmem:[%s3 + $0x390] sm:$0xf]
    %v2502 = vld [vmem:[%s3 + $0x394] sm:$0xf]
    %v2503 = vld [vmem:[%s3 + $0x398] sm:$0xf]
    %v2504 = vld [vmem:[%s3 + $0x39c] sm:$0xf]
    %v2505 = vld [vmem:[%s3 + $0x3a0] sm:$0xf]
    %v2506 = vld [vmem:[%s3 + $0x3a4] sm:$0xf]
    %v2507 = vld [vmem:[%s3 + $0x3a8] sm:$0xf]
    %v2508 = vld [vmem:[%s3 + $0x3ac] sm:$0xf]
    %v2509 = vld [vmem:[%s3 + $0x3b0] sm:$0xf]
    %v2510 = vld [vmem:[%s3 + $0x3b4] sm:$0xf]
    %v2511 = vld [vmem:[%s3 + $0x3b8] sm:$0xf]
    %v2512 = vld [vmem:[%s3 + $0x3bc] sm:$0xf]
    %v2513 = vld [vmem:[%s3 + $0x3c0] sm:$0xf]
    %v2514 = vld [vmem:[%s3 + $0x3c4] sm:$0xf]
    %v2515 = vld [vmem:[%s3 + $0x3c8] sm:$0xf]
    %v2516 = vld [vmem:[%s3 + $0x3cc] sm:$0xf]
    %v2517 = vld [vmem:[%s3 + $0x3d0] sm:$0xf]
    %v2518 = vld [vmem:[%s3 + $0x3d4] sm:$0xf]
    %v2519 = vld [vmem:[%s3 + $0x3d8] sm:$0xf]
    %v2520 = vld [vmem:[%s3 + $0x3dc] sm:$0xf]
    %v2521 = vld [vmem:[%s3 + $0x3e0] sm:$0xf]
    %v2522 = vld [vmem:[%s3 + $0x3e4] sm:$0xf]
    %v2523 = vld [vmem:[%s3 + $0x3e8] sm:$0xf]
    %v2524 = vld [vmem:[%s3 + $0x3ec] sm:$0xf]
    %v2525 = vld [vmem:[%s3 + $0x3f0] sm:$0xf]
    %v2526 = vld [vmem:[%s3 + $0x3f4] sm:$0xf]
    %v2527 = vld [vmem:[%s3 + $0x3f8] sm:$0xf]
    %v2528 = vld [vmem:[%s3 + $0x3fc] sm:$0xf]
    %v2529 = vld [vmem:[%s3 + $0x400] sm:$0xf]
    %v2530 = vld [vmem:[%s3 + $0x404] sm:$0xf]
    %v2531 = vld [vmem:[%s3 + $0x408] sm:$0xf]
    %v2532 = vld [vmem:[%s3 + $0x40c] sm:$0xf]
    %v2533 = vld [vmem:[%s3 + $0x410] sm:$0xf]
    %v2534 = vld [vmem:[%s3 + $0x414] sm:$0xf]
    %v2535 = vld [vmem:[%s3 + $0x418] sm:$0xf]
    %v2536 = vld [vmem:[%s3 + $0x41c] sm:$0xf]
    %v2537 = vld [vmem:[%s3 + $0x420] sm:$0xf]
    %v2538 = vld [vmem:[%s3 + $0x424] sm:$0xf]
    %v2539 = vld [vmem:[%s3 + $0x428] sm:$0xf]
    %v2540 = vld [vmem:[%s3 + $0x42c] sm:$0xf]
    %v2541 = vld [vmem:[%s3 + $0x430] sm:$0xf]
    %v2542 = vld [vmem:[%s3 + $0x434] sm:$0xf]
    %v2543 = vld [vmem:[%s3 + $0x438] sm:$0xf]
    %v2544 = vld [vmem:[%s3 + $0x43c] sm:$0xf]
    %v2545 = vld [vmem:[%s3 + $0x440] sm:$0xf]
    %v2546 = vld [vmem:[%s3 + $0x444] sm:$0xf]
    %v2547 = vld [vmem:[%s3 + $0x448] sm:$0xf]
    %v2548 = vld [vmem:[%s3 + $0x44c] sm:$0xf]
    %v2549 = vld [vmem:[%s3 + $0x450] sm:$0xf]
    %v2550 = vld [vmem:[%s3 + $0x454] sm:$0xf]
    %v2551 = vld [vmem:[%s3 + $0x458] sm:$0xf]
    %v2552 = vld [vmem:[%s3 + $0x45c] sm:$0xf]
    %v2553 = vld [vmem:[%s3 + $0x460] sm:$0xf]
    %v2554 = vld [vmem:[%s3 + $0x464] sm:$0xf]
    %v2555 = vld [vmem:[%s3 + $0x468] sm:$0xf]
    %v2556 = vld [vmem:[%s3 + $0x46c] sm:$0xf]
    %v2557 = vld [vmem:[%s3 + $0x470] sm:$0xf]
    %v2558 = vld [vmem:[%s3 + $0x474] sm:$0xf]
    %v2559 = vld [vmem:[%s3 + $0x478] sm:$0xf]
    %v2560 = vld [vmem:[%s3 + $0x47c] sm:$0xf]
    %v2561 = vld [vmem:[%s3 + $0x480] sm:$0xf]
    %v2562 = vld [vmem:[%s3 + $0x484] sm:$0xf]
    %v2563 = vld [vmem:[%s3 + $0x488] sm:$0xf]
    %v2564 = vld [vmem:[%s3 + $0x48c] sm:$0xf]
    %v2565 = vld [vmem:[%s3 + $0x490] sm:$0xf]
    %v2566 = vld [vmem:[%s3 + $0x494] sm:$0xf]
    %v2567 = vld [vmem:[%s3 + $0x498] sm:$0xf]
    %v2568 = vld [vmem:[%s3 + $0x49c] sm:$0xf]
    %v2569 = vld [vmem:[%s3 + $0x4a0] sm:$0xf]
    %v2570 = vld [vmem:[%s3 + $0x4a4] sm:$0xf]
    %v2571 = vld [vmem:[%s3 + $0x4a8] sm:$0xf]
    %v2572 = vld [vmem:[%s3 + $0x4ac] sm:$0xf]
    %v2573 = vld [vmem:[%s3 + $0x4b0] sm:$0xf]
    %v2574 = vld [vmem:[%s3 + $0x4b4] sm:$0xf]
    %v2575 = vld [vmem:[%s3 + $0x4b8] sm:$0xf]
    %v2576 = vld [vmem:[%s3 + $0x4bc] sm:$0xf]
    %v2577 = vld [vmem:[%s3 + $0x4c0] sm:$0xf]
    %v2578 = vld [vmem:[%s3 + $0x4c4] sm:$0xf]
    %v2579 = vld [vmem:[%s3 + $0x4c8] sm:$0xf]
    %v2580 = vld [vmem:[%s3 + $0x4cc] sm:$0xf]
    %v2581 = vld [vmem:[%s3 + $0x4d0] sm:$0xf]
    %v2582 = vld [vmem:[%s3 + $0x4d4] sm:$0xf]
    %v2583 = vld [vmem:[%s3 + $0x4d8] sm:$0xf]
    %v2584 = vld [vmem:[%s3 + $0x4dc] sm:$0xf]
    %v2585 = vld [vmem:[%s3 + $0x4e0] sm:$0xf]
    %v2586 = vld [vmem:[%s3 + $0x4e4] sm:$0xf]
    %v2587 = vld [vmem:[%s3 + $0x4e8] sm:$0xf]
    %v2588 = vld [vmem:[%s3 + $0x4ec] sm:$0xf]
    %v2589 = vld [vmem:[%s3 + $0x4f0] sm:$0xf]
    %v2590 = vld [vmem:[%s3 + $0x4f4] sm:$0xf]
    %v2591 = vld [vmem:[%s3 + $0x4f8] sm:$0xf]
    %v2592 = vld [vmem:[%s3 + $0x4fc] sm:$0xf]
    %v2593 = vld [vmem:[%s3 + $0x500] sm:$0xf]
    %v2594 = vld [vmem:[%s3 + $0x504] sm:$0xf]
    %v2595 = vld [vmem:[%s3 + $0x508] sm:$0xf]
    %v2596 = vld [vmem:[%s3 + $0x50c] sm:$0xf]
    %v2597 = vld [vmem:[%s3 + $0x510] sm:$0xf]
    %v2598 = vld [vmem:[%s3 + $0x514] sm:$0xf]
    %v2599 = vld [vmem:[%s3 + $0x518] sm:$0xf]
    %v2600 = vld [vmem:[%s3 + $0x51c] sm:$0xf]
    %v2601 = vld [vmem:[%s3 + $0x520] sm:$0xf]
    %v2602 = vld [vmem:[%s3 + $0x524] sm:$0xf]
    %v2603 = vld [vmem:[%s3 + $0x528] sm:$0xf]
    %v2604 = vld [vmem:[%s3 + $0x52c] sm:$0xf]
    %v2605 = vld [vmem:[%s3 + $0x530] sm:$0xf]
    %v2606 = vld [vmem:[%s3 + $0x534] sm:$0xf]
    %v2607 = vld [vmem:[%s3 + $0x538] sm:$0xf]
    %v2608 = vld [vmem:[%s3 + $0x53c] sm:$0xf]
    %v2609 = vld [vmem:[%s3 + $0x540] sm:$0xf]
    %v2610 = vld [vmem:[%s3 + $0x544] sm:$0xf]
    %v2611 = vld [vmem:[%s3 + $0x548] sm:$0xf]
    %v2612 = vld [vmem:[%s3 + $0x54c] sm:$0xf]
    %v2613 = vld [vmem:[%s3 + $0x550] sm:$0xf]
    %v2614 = vld [vmem:[%s3 + $0x554] sm:$0xf]
    %v2615 = vld [vmem:[%s3 + $0x558] sm:$0xf]
    %v2616 = vld [vmem:[%s3 + $0x55c] sm:$0xf]
    %v2617 = vld [vmem:[%s3 + $0x560] sm:$0xf]
    %v2618 = vld [vmem:[%s3 + $0x564] sm:$0xf]
    %v2619 = vld [vmem:[%s3 + $0x568] sm:$0xf]
    %v2620 = vld [vmem:[%s3 + $0x56c] sm:$0xf]
    %v2621 = vld [vmem:[%s3 + $0x570] sm:$0xf]
    %v2622 = vld [vmem:[%s3 + $0x574] sm:$0xf]
    %v2623 = vld [vmem:[%s3 + $0x578] sm:$0xf]
    %v2624 = vld [vmem:[%s3 + $0x57c] sm:$0xf]
    %v2625 = vld [vmem:[%s3 + $0x580] sm:$0xf]
    %v2626 = vld [vmem:[%s3 + $0x584] sm:$0xf]
    %v2627 = vld [vmem:[%s3 + $0x588] sm:$0xf]
    %v2628 = vld [vmem:[%s3 + $0x58c] sm:$0xf]
    %v2629 = vld [vmem:[%s3 + $0x590] sm:$0xf]
    %v2630 = vld [vmem:[%s3 + $0x594] sm:$0xf]
    %v2631 = vld [vmem:[%s3 + $0x598] sm:$0xf]
    %v2632 = vld [vmem:[%s3 + $0x59c] sm:$0xf]
    %v2633 = vld [vmem:[%s3 + $0x5a0] sm:$0xf]
    %v2634 = vld [vmem:[%s3 + $0x5a4] sm:$0xf]
    %v2635 = vld [vmem:[%s3 + $0x5a8] sm:$0xf]
    %v2636 = vld [vmem:[%s3 + $0x5ac] sm:$0xf]
    %v2637 = vld [vmem:[%s3 + $0x5b0] sm:$0xf]
    %v2638 = vld [vmem:[%s3 + $0x5b4] sm:$0xf]
    %v2639 = vld [vmem:[%s3 + $0x5b8] sm:$0xf]
    %v2640 = vld [vmem:[%s3 + $0x5bc] sm:$0xf]
    %v2641 = vld [vmem:[%s3 + $0x5c0] sm:$0xf]
    %v2642 = vld [vmem:[%s3 + $0x5c4] sm:$0xf]
    %v2643 = vld [vmem:[%s3 + $0x5c8] sm:$0xf]
    %v2644 = vld [vmem:[%s3 + $0x5cc] sm:$0xf]
    %v2645 = vld [vmem:[%s3 + $0x5d0] sm:$0xf]
    %v2646 = vld [vmem:[%s3 + $0x5d4] sm:$0xf]
    %v2647 = vld [vmem:[%s3 + $0x5d8] sm:$0xf]
    %v2648 = vld [vmem:[%s3 + $0x5dc] sm:$0xf]
    %v2649 = vld [vmem:[%s3 + $0x5e0] sm:$0xf]
    %v2650 = vld [vmem:[%s3 + $0x5e4] sm:$0xf]
    %v2651 = vld [vmem:[%s3 + $0x5e8] sm:$0xf]
    %v2652 = vld [vmem:[%s3 + $0x5ec] sm:$0xf]
    %v2653 = vld [vmem:[%s3 + $0x5f0] sm:$0xf]
    %v2654 = vld [vmem:[%s3 + $0x5f4] sm:$0xf]
    %v2655 = vld [vmem:[%s3 + $0x5f8] sm:$0xf]
    %v2656 = vld [vmem:[%s3 + $0x5fc] sm:$0xf]
    %v2657 = vld [vmem:[%s3 + $0x600] sm:$0xf]
    %v2658 = vld [vmem:[%s3 + $0x604] sm:$0xf]
    %v2659 = vld [vmem:[%s3 + $0x608] sm:$0xf]
    %v2660 = vld [vmem:[%s3 + $0x60c] sm:$0xf]
    %v2661 = vld [vmem:[%s3 + $0x610] sm:$0xf]
    %v2662 = vld [vmem:[%s3 + $0x614] sm:$0xf]
    %v2663 = vld [vmem:[%s3 + $0x618] sm:$0xf]
    %v2664 = vld [vmem:[%s3 + $0x61c] sm:$0xf]
    %v2665 = vld [vmem:[%s3 + $0x620] sm:$0xf]
    %v2666 = vld [vmem:[%s3 + $0x624] sm:$0xf]
    %v2667 = vld [vmem:[%s3 + $0x628] sm:$0xf]
    %v2668 = vld [vmem:[%s3 + $0x62c] sm:$0xf]
    %v2669 = vld [vmem:[%s3 + $0x630] sm:$0xf]
    %v2670 = vld [vmem:[%s3 + $0x634] sm:$0xf]
    %v2671 = vld [vmem:[%s3 + $0x638] sm:$0xf]
    %v2672 = vld [vmem:[%s3 + $0x63c] sm:$0xf]
    %v3073 = vunpack.c.l.b16 %v2273
    %v3074 = vunpack.c.l.b16 %v2274
    %v3075 = vunpack.c.l.b16 %v2275
    %v3076 = vunpack.c.l.b16 %v2276
    %v3077 = vunpack.c.l.b16 %v2277
    %v3078 = vunpack.c.l.b16 %v2278
    %v3079 = vunpack.c.l.b16 %v2279
    %v3080 = vunpack.c.l.b16 %v2280
    %v3081 = vunpack.c.l.b16 %v2281
    %v3082 = vunpack.c.l.b16 %v2282
    %v3083 = vunpack.c.l.b16 %v2283
    %v3084 = vunpack.c.l.b16 %v2284
    %v3085 = vunpack.c.l.b16 %v2285
    %v3086 = vunpack.c.l.b16 %v2286
    %v3087 = vunpack.c.l.b16 %v2287
    %v3088 = vunpack.c.l.b16 %v2288
    %v3089 = vunpack.c.l.b16 %v2289
    %v3090 = vunpack.c.l.b16 %v2290
    %v3091 = vunpack.c.l.b16 %v2291
    %v3092 = vunpack.c.l.b16 %v2292
    %v3093 = vunpack.c.l.b16 %v2293
    %v3094 = vunpack.c.l.b16 %v2294
    %v3095 = vunpack.c.l.b16 %v2295
    %v3096 = vunpack.c.l.b16 %v2296
    %v3097 = vunpack.c.l.b16 %v2297
    %v3098 = vunpack.c.l.b16 %v2298
    %v3099 = vunpack.c.l.b16 %v2299
    %v3100 = vunpack.c.l.b16 %v2300
    %v3101 = vunpack.c.l.b16 %v2301
    %v3102 = vunpack.c.l.b16 %v2302
    %v3103 = vunpack.c.l.b16 %v2303
    %v3104 = vunpack.c.l.b16 %v2304
    %v3105 = vunpack.c.l.b16 %v2305
    %v3106 = vunpack.c.l.b16 %v2306
    %v3107 = vunpack.c.l.b16 %v2307
    %v3108 = vunpack.c.l.b16 %v2308
    %v3109 = vunpack.c.l.b16 %v2309
    %v3110 = vunpack.c.l.b16 %v2310
    %v3111 = vunpack.c.l.b16 %v2311
    %v3112 = vunpack.c.l.b16 %v2312
    %v3113 = vunpack.c.l.b16 %v2313
    %v3114 = vunpack.c.l.b16 %v2314
    %v3115 = vunpack.c.l.b16 %v2315
    %v3116 = vunpack.c.l.b16 %v2316
    %v3117 = vunpack.c.l.b16 %v2317
    %v3118 = vunpack.c.l.b16 %v2318
    %v3119 = vunpack.c.l.b16 %v2319
    %v3120 = vunpack.c.l.b16 %v2320
    %v3121 = vunpack.c.l.b16 %v2321
    %v3122 = vunpack.c.l.b16 %v2322
    %v3123 = vunpack.c.l.b16 %v2323
    %v3124 = vunpack.c.l.b16 %v2324
    %v3125 = vunpack.c.l.b16 %v2325
    %v3126 = vunpack.c.l.b16 %v2326
    %v3127 = vunpack.c.l.b16 %v2327
    %v3128 = vunpack.c.l.b16 %v2328
    %v3129 = vunpack.c.l.b16 %v2329
    %v3130 = vunpack.c.l.b16 %v2330
    %v3131 = vunpack.c.l.b16 %v2331
    %v3132 = vunpack.c.l.b16 %v2332
    %v3133 = vunpack.c.l.b16 %v2333
    %v3134 = vunpack.c.l.b16 %v2334
    %v3135 = vunpack.c.l.b16 %v2335
    %v3136 = vunpack.c.l.b16 %v2336
    %v3137 = vunpack.c.l.b16 %v2337
    %v3138 = vunpack.c.l.b16 %v2338
    %v3139 = vunpack.c.l.b16 %v2339
    %v3140 = vunpack.c.l.b16 %v2340
    %v3141 = vunpack.c.l.b16 %v2341
    %v3142 = vunpack.c.l.b16 %v2342
    %v3143 = vunpack.c.l.b16 %v2343
    %v3144 = vunpack.c.l.b16 %v2344
    %v3145 = vunpack.c.l.b16 %v2345
    %v3146 = vunpack.c.l.b16 %v2346
    %v3147 = vunpack.c.l.b16 %v2347
    %v3148 = vunpack.c.l.b16 %v2348
    %v3149 = vunpack.c.l.b16 %v2349
    %v3150 = vunpack.c.l.b16 %v2350
    %v3151 = vunpack.c.l.b16 %v2351
    %v3152 = vunpack.c.l.b16 %v2352
    %v3153 = vunpack.c.l.b16 %v2353
    %v3154 = vunpack.c.l.b16 %v2354
    %v3155 = vunpack.c.l.b16 %v2355
    %v3156 = vunpack.c.l.b16 %v2356
    %v3157 = vunpack.c.l.b16 %v2357
    %v3158 = vunpack.c.l.b16 %v2358
    %v3159 = vunpack.c.l.b16 %v2359
    %v3160 = vunpack.c.l.b16 %v2360
    %v3161 = vunpack.c.l.b16 %v2361
    %v3162 = vunpack.c.l.b16 %v2362
    %v3163 = vunpack.c.l.b16 %v2363
    %v3164 = vunpack.c.l.b16 %v2364
    %v3165 = vunpack.c.l.b16 %v2365
    %v3166 = vunpack.c.l.b16 %v2366
    %v3167 = vunpack.c.l.b16 %v2367
    %v3168 = vunpack.c.l.b16 %v2368
    %v3169 = vunpack.c.l.b16 %v2369
    %v3170 = vunpack.c.l.b16 %v2370
    %v3171 = vunpack.c.l.b16 %v2371
    %v3172 = vunpack.c.l.b16 %v2372
    %v3173 = vunpack.c.l.b16 %v2373
    %v3174 = vunpack.c.l.b16 %v2374
    %v3175 = vunpack.c.l.b16 %v2375
    %v3176 = vunpack.c.l.b16 %v2376
    %v3177 = vunpack.c.l.b16 %v2377
    %v3178 = vunpack.c.l.b16 %v2378
    %v3179 = vunpack.c.l.b16 %v2379
    %v3180 = vunpack.c.l.b16 %v2380
    %v3181 = vunpack.c.l.b16 %v2381
    %v3182 = vunpack.c.l.b16 %v2382
    %v3183 = vunpack.c.l.b16 %v2383
    %v3184 = vunpack.c.l.b16 %v2384
    %v3185 = vunpack.c.l.b16 %v2385
    %v3186 = vunpack.c.l.b16 %v2386
    %v3187 = vunpack.c.l.b16 %v2387
    %v3188 = vunpack.c.l.b16 %v2388
    %v3189 = vunpack.c.l.b16 %v2389
    %v3190 = vunpack.c.l.b16 %v2390
    %v3191 = vunpack.c.l.b16 %v2391
    %v3192 = vunpack.c.l.b16 %v2392
    %v3193 = vunpack.c.l.b16 %v2393
    %v3194 = vunpack.c.l.b16 %v2394
    %v3195 = vunpack.c.l.b16 %v2395
    %v3196 = vunpack.c.l.b16 %v2396
    %v3197 = vunpack.c.l.b16 %v2397
    %v3198 = vunpack.c.l.b16 %v2398
    %v3199 = vunpack.c.l.b16 %v2399
    %v3200 = vunpack.c.l.b16 %v2400
    %v3201 = vunpack.c.l.b16 %v2401
    %v3202 = vunpack.c.l.b16 %v2402
    %v3203 = vunpack.c.l.b16 %v2403
    %v3204 = vunpack.c.l.b16 %v2404
    %v3205 = vunpack.c.l.b16 %v2405
    %v3206 = vunpack.c.l.b16 %v2406
    %v3207 = vunpack.c.l.b16 %v2407
    %v3208 = vunpack.c.l.b16 %v2408
    %v3209 = vunpack.c.l.b16 %v2409
    %v3210 = vunpack.c.l.b16 %v2410
    %v3211 = vunpack.c.l.b16 %v2411
    %v3212 = vunpack.c.l.b16 %v2412
    %v3213 = vunpack.c.l.b16 %v2413
    %v3214 = vunpack.c.l.b16 %v2414
    %v3215 = vunpack.c.l.b16 %v2415
    %v3216 = vunpack.c.l.b16 %v2416
    %v3217 = vunpack.c.l.b16 %v2417
    %v3218 = vunpack.c.l.b16 %v2418
    %v3219 = vunpack.c.l.b16 %v2419
    %v3220 = vunpack.c.l.b16 %v2420
    %v3221 = vunpack.c.l.b16 %v2421
    %v3222 = vunpack.c.l.b16 %v2422
    %v3223 = vunpack.c.l.b16 %v2423
    %v3224 = vunpack.c.l.b16 %v2424
    %v3225 = vunpack.c.l.b16 %v2425
    %v3226 = vunpack.c.l.b16 %v2426
    %v3227 = vunpack.c.l.b16 %v2427
    %v3228 = vunpack.c.l.b16 %v2428
    %v3229 = vunpack.c.l.b16 %v2429
    %v3230 = vunpack.c.l.b16 %v2430
    %v3231 = vunpack.c.l.b16 %v2431
    %v3232 = vunpack.c.l.b16 %v2432
    %v3233 = vunpack.c.l.b16 %v2433
    %v3234 = vunpack.c.l.b16 %v2434
    %v3235 = vunpack.c.l.b16 %v2435
    %v3236 = vunpack.c.l.b16 %v2436
    %v3237 = vunpack.c.l.b16 %v2437
    %v3238 = vunpack.c.l.b16 %v2438
    %v3239 = vunpack.c.l.b16 %v2439
    %v3240 = vunpack.c.l.b16 %v2440
    %v3241 = vunpack.c.l.b16 %v2441
    %v3242 = vunpack.c.l.b16 %v2442
    %v3243 = vunpack.c.l.b16 %v2443
    %v3244 = vunpack.c.l.b16 %v2444
    %v3245 = vunpack.c.l.b16 %v2445
    %v3246 = vunpack.c.l.b16 %v2446
    %v3247 = vunpack.c.l.b16 %v2447
    %v3248 = vunpack.c.l.b16 %v2448
    %v3249 = vunpack.c.l.b16 %v2449
    %v3250 = vunpack.c.l.b16 %v2450
    %v3251 = vunpack.c.l.b16 %v2451
    %v3252 = vunpack.c.l.b16 %v2452
    %v3253 = vunpack.c.l.b16 %v2453
    %v3254 = vunpack.c.l.b16 %v2454
    %v3255 = vunpack.c.l.b16 %v2455
    %v3256 = vunpack.c.l.b16 %v2456
    %v3257 = vunpack.c.l.b16 %v2457
    %v3258 = vunpack.c.l.b16 %v2458
    %v3259 = vunpack.c.l.b16 %v2459
    %v3260 = vunpack.c.l.b16 %v2460
    %v3261 = vunpack.c.l.b16 %v2461
    %v3262 = vunpack.c.l.b16 %v2462
    %v3263 = vunpack.c.l.b16 %v2463
    %v3264 = vunpack.c.l.b16 %v2464
    %v3265 = vunpack.c.l.b16 %v2465
    %v3266 = vunpack.c.l.b16 %v2466
    %v3267 = vunpack.c.l.b16 %v2467
    %v3268 = vunpack.c.l.b16 %v2468
    %v3269 = vunpack.c.l.b16 %v2469
    %v3270 = vunpack.c.l.b16 %v2470
    %v3271 = vunpack.c.l.b16 %v2471
    %v3272 = vunpack.c.l.b16 %v2472
    %v3273 = vunpack.c.l.b16 %v2473
    %v3274 = vunpack.c.l.b16 %v2474
    %v3275 = vunpack.c.l.b16 %v2475
    %v3276 = vunpack.c.l.b16 %v2476
    %v3277 = vunpack.c.l.b16 %v2477
    %v3278 = vunpack.c.l.b16 %v2478
    %v3279 = vunpack.c.l.b16 %v2479
    %v3280 = vunpack.c.l.b16 %v2480
    %v3281 = vunpack.c.l.b16 %v2481
    %v3282 = vunpack.c.l.b16 %v2482
    %v3283 = vunpack.c.l.b16 %v2483
    %v3284 = vunpack.c.l.b16 %v2484
    %v3285 = vunpack.c.l.b16 %v2485
    %v3286 = vunpack.c.l.b16 %v2486
    %v3287 = vunpack.c.l.b16 %v2487
    %v3288 = vunpack.c.l.b16 %v2488
    %v3289 = vunpack.c.l.b16 %v2489
    %v3290 = vunpack.c.l.b16 %v2490
    %v3291 = vunpack.c.l.b16 %v2491
    %v3292 = vunpack.c.l.b16 %v2492
    %v3293 = vunpack.c.l.b16 %v2493
    %v3294 = vunpack.c.l.b16 %v2494
    %v3295 = vunpack.c.l.b16 %v2495
    %v3296 = vunpack.c.l.b16 %v2496
    %v3297 = vunpack.c.l.b16 %v2497
    %v3298 = vunpack.c.l.b16 %v2498
    %v3299 = vunpack.c.l.b16 %v2499
    %v3300 = vunpack.c.l.b16 %v2500
    %v3301 = vunpack.c.l.b16 %v2501
    %v3302 = vunpack.c.l.b16 %v2502
    %v3303 = vunpack.c.l.b16 %v2503
    %v3304 = vunpack.c.l.b16 %v2504
    %v3305 = vunpack.c.l.b16 %v2505
    %v3306 = vunpack.c.l.b16 %v2506
    %v3307 = vunpack.c.l.b16 %v2507
    %v3308 = vunpack.c.l.b16 %v2508
    %v3309 = vunpack.c.l.b16 %v2509
    %v3310 = vunpack.c.l.b16 %v2510
    %v3311 = vunpack.c.l.b16 %v2511
    %v3312 = vunpack.c.l.b16 %v2512
    %v3313 = vunpack.c.l.b16 %v2513
    %v3314 = vunpack.c.l.b16 %v2514
    %v3315 = vunpack.c.l.b16 %v2515
    %v3316 = vunpack.c.l.b16 %v2516
    %v3317 = vunpack.c.l.b16 %v2517
    %v3318 = vunpack.c.l.b16 %v2518
    %v3319 = vunpack.c.l.b16 %v2519
    %v3320 = vunpack.c.l.b16 %v2520
    %v3321 = vunpack.c.l.b16 %v2521
    %v3322 = vunpack.c.l.b16 %v2522
    %v3323 = vunpack.c.l.b16 %v2523
    %v3324 = vunpack.c.l.b16 %v2524
    %v3325 = vunpack.c.l.b16 %v2525
    %v3326 = vunpack.c.l.b16 %v2526
    %v3327 = vunpack.c.l.b16 %v2527
    %v3328 = vunpack.c.l.b16 %v2528
    %v3329 = vunpack.c.l.b16 %v2529
    %v3330 = vunpack.c.l.b16 %v2530
    %v3331 = vunpack.c.l.b16 %v2531
    %v3332 = vunpack.c.l.b16 %v2532
    %v3333 = vunpack.c.l.b16 %v2533
    %v3334 = vunpack.c.l.b16 %v2534
    %v3335 = vunpack.c.l.b16 %v2535
    %v3336 = vunpack.c.l.b16 %v2536
    %v3337 = vunpack.c.l.b16 %v2537
    %v3338 = vunpack.c.l.b16 %v2538
    %v3339 = vunpack.c.l.b16 %v2539
    %v3340 = vunpack.c.l.b16 %v2540
    %v3341 = vunpack.c.l.b16 %v2541
    %v3342 = vunpack.c.l.b16 %v2542
    %v3343 = vunpack.c.l.b16 %v2543
    %v3344 = vunpack.c.l.b16 %v2544
    %v3345 = vunpack.c.l.b16 %v2545
    %v3346 = vunpack.c.l.b16 %v2546
    %v3347 = vunpack.c.l.b16 %v2547
    %v3348 = vunpack.c.l.b16 %v2548
    %v3349 = vunpack.c.l.b16 %v2549
    %v3350 = vunpack.c.l.b16 %v2550
    %v3351 = vunpack.c.l.b16 %v2551
    %v3352 = vunpack.c.l.b16 %v2552
    %v3353 = vunpack.c.l.b16 %v2553
    %v3354 = vunpack.c.l.b16 %v2554
    %v3355 = vunpack.c.l.b16 %v2555
    %v3356 = vunpack.c.l.b16 %v2556
    %v3357 = vunpack.c.l.b16 %v2557
    %v3358 = vunpack.c.l.b16 %v2558
    %v3359 = vunpack.c.l.b16 %v2559
    %v3360 = vunpack.c.l.b16 %v2560
    %v3361 = vunpack.c.l.b16 %v2561
    %v3362 = vunpack.c.l.b16 %v2562
    %v3363 = vunpack.c.l.b16 %v2563
    %v3364 = vunpack.c.l.b16 %v2564
    %v3365 = vunpack.c.l.b16 %v2565
    %v3366 = vunpack.c.l.b16 %v2566
    %v3367 = vunpack.c.l.b16 %v2567
    %v3368 = vunpack.c.l.b16 %v2568
    %v3369 = vunpack.c.l.b16 %v2569
    %v3370 = vunpack.c.l.b16 %v2570
    %v3371 = vunpack.c.l.b16 %v2571
    %v3372 = vunpack.c.l.b16 %v2572
    %v3373 = vunpack.c.l.b16 %v2573
    %v3374 = vunpack.c.l.b16 %v2574
    %v3375 = vunpack.c.l.b16 %v2575
    %v3376 = vunpack.c.l.b16 %v2576
    %v3377 = vunpack.c.l.b16 %v2577
    %v3378 = vunpack.c.l.b16 %v2578
    %v3379 = vunpack.c.l.b16 %v2579
    %v3380 = vunpack.c.l.b16 %v2580
    %v3381 = vunpack.c.l.b16 %v2581
    %v3382 = vunpack.c.l.b16 %v2582
    %v3383 = vunpack.c.l.b16 %v2583
    %v3384 = vunpack.c.l.b16 %v2584
    %v3385 = vunpack.c.l.b16 %v2585
    %v3386 = vunpack.c.l.b16 %v2586
    %v3387 = vunpack.c.l.b16 %v2587
    %v3388 = vunpack.c.l.b16 %v2588
    %v3389 = vunpack.c.l.b16 %v2589
    %v3390 = vunpack.c.l.b16 %v2590
    %v3391 = vunpack.c.l.b16 %v2591
    %v3392 = vunpack.c.l.b16 %v2592
    %v3393 = vunpack.c.l.b16 %v2593
    %v3394 = vunpack.c.l.b16 %v2594
    %v3395 = vunpack.c.l.b16 %v2595
    %v3396 = vunpack.c.l.b16 %v2596
    %v3397 = vunpack.c.l.b16 %v2597
    %v3398 = vunpack.c.l.b16 %v2598
    %v3399 = vunpack.c.l.b16 %v2599
    %v3400 = vunpack.c.l.b16 %v2600
    %v3401 = vunpack.c.l.b16 %v2601
    %v3402 = vunpack.c.l.b16 %v2602
    %v3403 = vunpack.c.l.b16 %v2603
    %v3404 = vunpack.c.l.b16 %v2604
    %v3405 = vunpack.c.l.b16 %v2605
    %v3406 = vunpack.c.l.b16 %v2606
    %v3407 = vunpack.c.l.b16 %v2607
    %v3408 = vunpack.c.l.b16 %v2608
    %v3409 = vunpack.c.l.b16 %v2609
    %v3410 = vunpack.c.l.b16 %v2610
    %v3411 = vunpack.c.l.b16 %v2611
    %v3412 = vunpack.c.l.b16 %v2612
    %v3413 = vunpack.c.l.b16 %v2613
    %v3414 = vunpack.c.l.b16 %v2614
    %v3415 = vunpack.c.l.b16 %v2615
    %v3416 = vunpack.c.l.b16 %v2616
    %v3417 = vunpack.c.l.b16 %v2617
    %v3418 = vunpack.c.l.b16 %v2618
    %v3419 = vunpack.c.l.b16 %v2619
    %v3420 = vunpack.c.l.b16 %v2620
    %v3421 = vunpack.c.l.b16 %v2621
    %v3422 = vunpack.c.l.b16 %v2622
    %v3423 = vunpack.c.l.b16 %v2623
    %v3424 = vunpack.c.l.b16 %v2624
    %v3425 = vunpack.c.l.b16 %v2625
    %v3426 = vunpack.c.l.b16 %v2626
    %v3427 = vunpack.c.l.b16 %v2627
    %v3428 = vunpack.c.l.b16 %v2628
    %v3429 = vunpack.c.l.b16 %v2629
    %v3430 = vunpack.c.l.b16 %v2630
    %v3431 = vunpack.c.l.b16 %v2631
    %v3432 = vunpack.c.l.b16 %v2632
    %v3433 = vunpack.c.l.b16 %v2633
    %v3434 = vunpack.c.l.b16 %v2634
    %v3435 = vunpack.c.l.b16 %v2635
    %v3436 = vunpack.c.l.b16 %v2636
    %v3437 = vunpack.c.l.b16 %v2637
    %v3438 = vunpack.c.l.b16 %v2638
    %v3439 = vunpack.c.l.b16 %v2639
    %v3440 = vunpack.c.l.b16 %v2640
    %v3441 = vunpack.c.l.b16 %v2641
    %v3442 = vunpack.c.l.b16 %v2642
    %v3443 = vunpack.c.l.b16 %v2643
    %v3444 = vunpack.c.l.b16 %v2644
    %v3445 = vunpack.c.l.b16 %v2645
    %v3446 = vunpack.c.l.b16 %v2646
    %v3447 = vunpack.c.l.b16 %v2647
    %v3448 = vunpack.c.l.b16 %v2648
    %v3449 = vunpack.c.l.b16 %v2649
    %v3450 = vunpack.c.l.b16 %v2650
    %v3451 = vunpack.c.l.b16 %v2651
    %v3452 = vunpack.c.l.b16 %v2652
    %v3453 = vunpack.c.l.b16 %v2653
    %v3454 = vunpack.c.l.b16 %v2654
    %v3455 = vunpack.c.l.b16 %v2655
    %v3456 = vunpack.c.l.b16 %v2656
    %v3457 = vunpack.c.l.b16 %v2657
    %v3458 = vunpack.c.l.b16 %v2658
    %v3459 = vunpack.c.l.b16 %v2659
    %v3460 = vunpack.c.l.b16 %v2660
    %v3461 = vunpack.c.l.b16 %v2661
    %v3462 = vunpack.c.l.b16 %v2662
    %v3463 = vunpack.c.l.b16 %v2663
    %v3464 = vunpack.c.l.b16 %v2664
    %v3465 = vunpack.c.l.b16 %v2665
    %v3466 = vunpack.c.l.b16 %v2666
    %v3467 = vunpack.c.l.b16 %v2667
    %v3468 = vunpack.c.l.b16 %v2668
    %v3469 = vunpack.c.l.b16 %v2669
    %v3470 = vunpack.c.l.b16 %v2670
    %v3471 = vunpack.c.l.b16 %v2671
    %v3472 = vunpack.c.l.b16 %v2672
    %v3473 = vpack.c.b16 %v3074, %v3073
    %v3474 = vpack.c.b16 %v3076, %v3075
    %v3475 = vpack.c.b16 %v3078, %v3077
    %v3476 = vpack.c.b16 %v3080, %v3079
    %v3477 = vpack.c.b16 %v3082, %v3081
    %v3478 = vpack.c.b16 %v3084, %v3083
    %v3479 = vpack.c.b16 %v3086, %v3085
    %v3480 = vpack.c.b16 %v3088, %v3087
    %v3481 = vpack.c.b16 %v3090, %v3089
    %v3482 = vpack.c.b16 %v3092, %v3091
    %v3483 = vpack.c.b16 %v3094, %v3093
    %v3484 = vpack.c.b16 %v3096, %v3095
    %v3485 = vpack.c.b16 %v3098, %v3097
    %v3486 = vpack.c.b16 %v3100, %v3099
    %v3487 = vpack.c.b16 %v3102, %v3101
    %v3488 = vpack.c.b16 %v3104, %v3103
    %v3489 = vpack.c.b16 %v3106, %v3105
    %v3490 = vpack.c.b16 %v3108, %v3107
    %v3491 = vpack.c.b16 %v3110, %v3109
    %v3492 = vpack.c.b16 %v3112, %v3111
    %v3493 = vpack.c.b16 %v3114, %v3113
    %v3494 = vpack.c.b16 %v3116, %v3115
    %v3495 = vpack.c.b16 %v3118, %v3117
    %v3496 = vpack.c.b16 %v3120, %v3119
    %v3497 = vpack.c.b16 %v3122, %v3121
    %v3498 = vpack.c.b16 %v3124, %v3123
    %v3499 = vpack.c.b16 %v3126, %v3125
    %v3500 = vpack.c.b16 %v3128, %v3127
    %v3501 = vpack.c.b16 %v3130, %v3129
    %v3502 = vpack.c.b16 %v3132, %v3131
    %v3503 = vpack.c.b16 %v3134, %v3133
    %v3504 = vpack.c.b16 %v3136, %v3135
    %v3505 = vpack.c.b16 %v3138, %v3137
    %v3506 = vpack.c.b16 %v3140, %v3139
    %v3507 = vpack.c.b16 %v3142, %v3141
    %v3508 = vpack.c.b16 %v3144, %v3143
    %v3509 = vpack.c.b16 %v3146, %v3145
    %v3510 = vpack.c.b16 %v3148, %v3147
    %v3511 = vpack.c.b16 %v3150, %v3149
    %v3512 = vpack.c.b16 %v3152, %v3151
    %v3513 = vpack.c.b16 %v3154, %v3153
    %v3514 = vpack.c.b16 %v3156, %v3155
    %v3515 = vpack.c.b16 %v3158, %v3157
    %v3516 = vpack.c.b16 %v3160, %v3159
    %v3517 = vpack.c.b16 %v3162, %v3161
    %v3518 = vpack.c.b16 %v3164, %v3163
    %v3519 = vpack.c.b16 %v3166, %v3165
    %v3520 = vpack.c.b16 %v3168, %v3167
    %v3521 = vpack.c.b16 %v3170, %v3169
    %v3522 = vpack.c.b16 %v3172, %v3171
    %v3523 = vpack.c.b16 %v3174, %v3173
    %v3524 = vpack.c.b16 %v3176, %v3175
    %v3525 = vpack.c.b16 %v3178, %v3177
    %v3526 = vpack.c.b16 %v3180, %v3179
    %v3527 = vpack.c.b16 %v3182, %v3181
    %v3528 = vpack.c.b16 %v3184, %v3183
    %v3529 = vpack.c.b16 %v3186, %v3185
    %v3530 = vpack.c.b16 %v3188, %v3187
    %v3531 = vpack.c.b16 %v3190, %v3189
    %v3532 = vpack.c.b16 %v3192, %v3191
    %v3533 = vpack.c.b16 %v3194, %v3193
    %v3534 = vpack.c.b16 %v3196, %v3195
    %v3535 = vpack.c.b16 %v3198, %v3197
    %v3536 = vpack.c.b16 %v3200, %v3199
    %v3537 = vpack.c.b16 %v3202, %v3201
    %v3538 = vpack.c.b16 %v3204, %v3203
    %v3539 = vpack.c.b16 %v3206, %v3205
    %v3540 = vpack.c.b16 %v3208, %v3207
    %v3541 = vpack.c.b16 %v3210, %v3209
    %v3542 = vpack.c.b16 %v3212, %v3211
    %v3543 = vpack.c.b16 %v3214, %v3213
    %v3544 = vpack.c.b16 %v3216, %v3215
    %v3545 = vpack.c.b16 %v3218, %v3217
    %v3546 = vpack.c.b16 %v3220, %v3219
    %v3547 = vpack.c.b16 %v3222, %v3221
    %v3548 = vpack.c.b16 %v3224, %v3223
    %v3549 = vpack.c.b16 %v3226, %v3225
    %v3550 = vpack.c.b16 %v3228, %v3227
    %v3551 = vpack.c.b16 %v3230, %v3229
    %v3552 = vpack.c.b16 %v3232, %v3231
    %v3553 = vpack.c.b16 %v3234, %v3233
    %v3554 = vpack.c.b16 %v3236, %v3235
    %v3555 = vpack.c.b16 %v3238, %v3237
    %v3556 = vpack.c.b16 %v3240, %v3239
    %v3557 = vpack.c.b16 %v3242, %v3241
    %v3558 = vpack.c.b16 %v3244, %v3243
    %v3559 = vpack.c.b16 %v3246, %v3245
    %v3560 = vpack.c.b16 %v3248, %v3247
    %v3561 = vpack.c.b16 %v3250, %v3249
    %v3562 = vpack.c.b16 %v3252, %v3251
    %v3563 = vpack.c.b16 %v3254, %v3253
    %v3564 = vpack.c.b16 %v3256, %v3255
    %v3565 = vpack.c.b16 %v3258, %v3257
    %v3566 = vpack.c.b16 %v3260, %v3259
    %v3567 = vpack.c.b16 %v3262, %v3261
    %v3568 = vpack.c.b16 %v3264, %v3263
    %v3569 = vpack.c.b16 %v3266, %v3265
    %v3570 = vpack.c.b16 %v3268, %v3267
    %v3571 = vpack.c.b16 %v3270, %v3269
    %v3572 = vpack.c.b16 %v3272, %v3271
    %v3573 = vpack.c.b16 %v3274, %v3273
    %v3574 = vpack.c.b16 %v3276, %v3275
    %v3575 = vpack.c.b16 %v3278, %v3277
    %v3576 = vpack.c.b16 %v3280, %v3279
    %v3577 = vpack.c.b16 %v3282, %v3281
    %v3578 = vpack.c.b16 %v3284, %v3283
    %v3579 = vpack.c.b16 %v3286, %v3285
    %v3580 = vpack.c.b16 %v3288, %v3287
    %v3581 = vpack.c.b16 %v3290, %v3289
    %v3582 = vpack.c.b16 %v3292, %v3291
    %v3583 = vpack.c.b16 %v3294, %v3293
    %v3584 = vpack.c.b16 %v3296, %v3295
    %v3585 = vpack.c.b16 %v3298, %v3297
    %v3586 = vpack.c.b16 %v3300, %v3299
    %v3587 = vpack.c.b16 %v3302, %v3301
    %v3588 = vpack.c.b16 %v3304, %v3303
    %v3589 = vpack.c.b16 %v3306, %v3305
    %v3590 = vpack.c.b16 %v3308, %v3307
    %v3591 = vpack.c.b16 %v3310, %v3309
    %v3592 = vpack.c.b16 %v3312, %v3311
    %v3593 = vpack.c.b16 %v3314, %v3313
    %v3594 = vpack.c.b16 %v3316, %v3315
    %v3595 = vpack.c.b16 %v3318, %v3317
    %v3596 = vpack.c.b16 %v3320, %v3319
    %v3597 = vpack.c.b16 %v3322, %v3321
    %v3598 = vpack.c.b16 %v3324, %v3323
    %v3599 = vpack.c.b16 %v3326, %v3325
    %v3600 = vpack.c.b16 %v3328, %v3327
    %v3601 = vpack.c.b16 %v3330, %v3329
    %v3602 = vpack.c.b16 %v3332, %v3331
    %v3603 = vpack.c.b16 %v3334, %v3333
    %v3604 = vpack.c.b16 %v3336, %v3335
    %v3605 = vpack.c.b16 %v3338, %v3337
    %v3606 = vpack.c.b16 %v3340, %v3339
    %v3607 = vpack.c.b16 %v3342, %v3341
    %v3608 = vpack.c.b16 %v3344, %v3343
    %v3609 = vpack.c.b16 %v3346, %v3345
    %v3610 = vpack.c.b16 %v3348, %v3347
    %v3611 = vpack.c.b16 %v3350, %v3349
    %v3612 = vpack.c.b16 %v3352, %v3351
    %v3613 = vpack.c.b16 %v3354, %v3353
    %v3614 = vpack.c.b16 %v3356, %v3355
    %v3615 = vpack.c.b16 %v3358, %v3357
    %v3616 = vpack.c.b16 %v3360, %v3359
    %v3617 = vpack.c.b16 %v3362, %v3361
    %v3618 = vpack.c.b16 %v3364, %v3363
    %v3619 = vpack.c.b16 %v3366, %v3365
    %v3620 = vpack.c.b16 %v3368, %v3367
    %v3621 = vpack.c.b16 %v3370, %v3369
    %v3622 = vpack.c.b16 %v3372, %v3371
    %v3623 = vpack.c.b16 %v3374, %v3373
    %v3624 = vpack.c.b16 %v3376, %v3375
    %v3625 = vpack.c.b16 %v3378, %v3377
    %v3626 = vpack.c.b16 %v3380, %v3379
    %v3627 = vpack.c.b16 %v3382, %v3381
    %v3628 = vpack.c.b16 %v3384, %v3383
    %v3629 = vpack.c.b16 %v3386, %v3385
    %v3630 = vpack.c.b16 %v3388, %v3387
    %v3631 = vpack.c.b16 %v3390, %v3389
    %v3632 = vpack.c.b16 %v3392, %v3391
    %v3633 = vpack.c.b16 %v3394, %v3393
    %v3634 = vpack.c.b16 %v3396, %v3395
    %v3635 = vpack.c.b16 %v3398, %v3397
    %v3636 = vpack.c.b16 %v3400, %v3399
    %v3637 = vpack.c.b16 %v3402, %v3401
    %v3638 = vpack.c.b16 %v3404, %v3403
    %v3639 = vpack.c.b16 %v3406, %v3405
    %v3640 = vpack.c.b16 %v3408, %v3407
    %v3641 = vpack.c.b16 %v3410, %v3409
    %v3642 = vpack.c.b16 %v3412, %v3411
    %v3643 = vpack.c.b16 %v3414, %v3413
    %v3644 = vpack.c.b16 %v3416, %v3415
    %v3645 = vpack.c.b16 %v3418, %v3417
    %v3646 = vpack.c.b16 %v3420, %v3419
    %v3647 = vpack.c.b16 %v3422, %v3421
    %v3648 = vpack.c.b16 %v3424, %v3423
    %v3649 = vpack.c.b16 %v3426, %v3425
    %v3650 = vpack.c.b16 %v3428, %v3427
    %v3651 = vpack.c.b16 %v3430, %v3429
    %v3652 = vpack.c.b16 %v3432, %v3431
    %v3653 = vpack.c.b16 %v3434, %v3433
    %v3654 = vpack.c.b16 %v3436, %v3435
    %v3655 = vpack.c.b16 %v3438, %v3437
    %v3656 = vpack.c.b16 %v3440, %v3439
    %v3657 = vpack.c.b16 %v3442, %v3441
    %v3658 = vpack.c.b16 %v3444, %v3443
    %v3659 = vpack.c.b16 %v3446, %v3445
    %v3660 = vpack.c.b16 %v3448, %v3447
    %v3661 = vpack.c.b16 %v3450, %v3449
    %v3662 = vpack.c.b16 %v3452, %v3451
    %v3663 = vpack.c.b16 %v3454, %v3453
    %v3664 = vpack.c.b16 %v3456, %v3455
    %v3665 = vpack.c.b16 %v3458, %v3457
    %v3666 = vpack.c.b16 %v3460, %v3459
    %v3667 = vpack.c.b16 %v3462, %v3461
    %v3668 = vpack.c.b16 %v3464, %v3463
    %v3669 = vpack.c.b16 %v3466, %v3465
    %v3670 = vpack.c.b16 %v3468, %v3467
    %v3671 = vpack.c.b16 %v3470, %v3469
    %v3672 = vpack.c.b16 %v3472, %v3471
    %3873 = vmatprep.subr.bf16.mxu0 0
    %3874 = vmatpush1.bf16.msra.mxu0 %v3473
    %3875 = vmatprep.subr.bf16.mxu0 0
    %3876 = vmatpush1.bf16.msra.mxu0 %v3474
    %3877 = vmatprep.subr.bf16.mxu0 0
    %3878 = vmatpush1.bf16.msra.mxu0 %v3475
    %3879 = vmatprep.subr.bf16.mxu0 0
    %3880 = vmatpush1.bf16.msra.mxu0 %v3476
    %3881 = vmatprep.subr.bf16.mxu0 0
    %3882 = vmatpush1.bf16.msra.mxu0 %v3477
    %3883 = vmatprep.subr.bf16.mxu0 0
    %3884 = vmatpush1.bf16.msra.mxu0 %v3478
    %3885 = vmatprep.subr.bf16.mxu0 0
    %3886 = vmatpush1.bf16.msra.mxu0 %v3479
    %3887 = vmatprep.subr.bf16.mxu0 0
    %3888 = vmatpush1.bf16.msra.mxu0 %v3480
    %3889 = vmatprep.subr.bf16.mxu0 0
    %3890 = vmatpush1.bf16.msra.mxu0 %v3481
    %3891 = vmatprep.subr.bf16.mxu0 0
    %3892 = vmatpush1.bf16.msra.mxu0 %v3482
    %3893 = vmatprep.subr.bf16.mxu0 0
    %3894 = vmatpush1.bf16.msra.mxu0 %v3483
    %3895 = vmatprep.subr.bf16.mxu0 0
    %3896 = vmatpush1.bf16.msra.mxu0 %v3484
    %3897 = vmatprep.subr.bf16.mxu0 0
    %3898 = vmatpush1.bf16.msra.mxu0 %v3485
    %3899 = vmatprep.subr.bf16.mxu0 0
    %3900 = vmatpush1.bf16.msra.mxu0 %v3486
    %3901 = vmatprep.subr.bf16.mxu0 0
    %3902 = vmatpush1.bf16.msra.mxu0 %v3487
    %3903 = vmatprep.subr.bf16.mxu0 0
    %3904 = vmatpush1.bf16.msra.mxu0 %v3488
    %3905 = vmatprep.mubr.bf16.mxu0 %v2071
    %3906 = vmatmul.mubr.bf16.gmra.mrb[0].mxu0 %v2070
    %v3907 = vpop.f32.mrb[0].mxu0
    %v3908 = vadd.f32 0.0, %v3907
    %v3909 = vpop.f32.mrb[0].mxu0
    %v3910 = vpop.f32.mrb[0].mxu0
    %v3911 = vadd.f32 0.0, %v3910
    %v3912 = vpop.f32.mrb[0].mxu0
    %3913 = vmatprep.mubr.bf16.mxu0 %v2096
    %3914 = vmatmul.mubr.bf16.gmra.mrb[0].mxu0 %v2095
    %v3915 = vpop.f32.mrb[0].mxu0
    %v3916 = vadd.f32 0.0, %v3915
    %v3917 = vpop.f32.mrb[0].mxu0
    %v3918 = vpop.f32.mrb[0].mxu0
    %v3919 = vadd.f32 0.0, %v3918
    %v3920 = vpop.f32.mrb[0].mxu0
    %3921 = vmatprep.mubr.bf16.mxu0 %v2117
    %3922 = vmatmul.mubr.bf16.gmra.mrb[0].mxu0 %v2079
    %v3923 = vpop.f32.mrb[0].mxu0
    %v3924 = vadd.f32 0.0, %v3923
    %v3925 = vpop.f32.mrb[0].mxu0
    %v3926 = vpop.f32.mrb[0].mxu0
    %v3927 = vadd.f32 0.0, %v3926
    %v3928 = vpop.f32.mrb[0].mxu0
    %3929 = vmatprep.mubr.bf16.mxu0 %v2081
    %3930 = vmatmul.mubr.bf16.gmra.mrb[0].mxu0 %v2080
    %v3931 = vpop.f32.mrb[0].mxu0
    %v3932 = vadd.f32 0.0, %v3931
    %v3933 = vpop.f32.mrb[0].mxu0
    %v3934 = vpop.f32.mrb[0].mxu0
    %v3935 = vadd.f32 0.0, %v3934
    %v3936 = vpop.f32.mrb[0].mxu0
    %3937 = vmatprep.mubr.bf16.mxu0 %v2104
    %3938 = vmatmul.mubr.bf16.gmra.mrb[0].mxu0 %v2103
    %v3939 = vpop.f32.mrb[0].mxu0
    %v3940 = vadd.f32 0.0, %v3939
    %v3941 = vpop.f32.mrb[0].mxu0
    %v3942 = vpop.f32.mrb[0].mxu0
    %v3943 = vadd.f32 0.0, %v3942
    %v3944 = vpop.f32.mrb[0].mxu0
    %3945 = vmatprep.mubr.bf16.mxu0 %v2124
    %3946 = vmatmul.mubr.bf16.gmra.mrb[0].mxu0 %v2123
    %v3947 = vpop.f32.mrb[0].mxu0
    %v3948 = vadd.f32 0.0, %v3947
    %v3949 = vpop.f32.mrb[0].mxu0
    %v3950 = vpop.f32.mrb[0].mxu0
    %v3951 = vadd.f32 0.0, %v3950
    %v3952 = vpop.f32.mrb[0].mxu0
    %3953 = vmatprep.mubr.bf16.mxu0 %v2091
    %3954 = vmatmul.mubr.bf16.gmra.mrb[0].mxu0 %v2138
    %v3955 = vpop.f32.mrb[0].mxu0
    %v3956 = vadd.f32 0.0, %v3955
    %v3957 = vpop.f32.mrb[0].mxu0
    %v3958 = vpop.f32.mrb[0].mxu0
    %v3959 = vadd.f32 0.0, %v3958
    %v3960 = vpop.f32.mrb[0].mxu0
    %3961 = vmatprep.mubr.bf16.mxu0 %v2113
    %3962 = vmatmul.mubr.bf16.gmra.mrb[0].mxu0 %v2152
    %v3963 = vpop.f32.mrb[0].mxu0
    %v3964 = vadd.f32 0.0, %v3963
    %v3965 = vpop.f32.mrb[0].mxu0
    %v3966 = vpop.f32.mrb[0].mxu0
    %v3967 = vadd.f32 0.0, %v3966
    %v3968 = vpop.f32.mrb[0].mxu0
    %3969 = vmatprep.mubr.bf16.mxu0 %v2132
    %3970 = vmatmul.mubr.bf16.gmra.mrb[0].mxu0 %v2166
    %v3971 = vpop.f32.mrb[0].mxu0
    %v3972 = vadd.f32 0.0, %v3971
    %v3973 = vpop.f32.mrb[0].mxu0
    %v3974 = vpop.f32.mrb[0].mxu0
    %v3975 = vadd.f32 0.0, %v3974
    %v3976 = vpop.f32.mrb[0].mxu0
    %3977 = vmatprep.mubr.bf16.mxu0 %v2146
    %3978 = vmatmul.mubr.bf16.gmra.mrb[0].mxu0 %v2180
    %v3979 = vpop.f32.mrb[0].mxu0
    %v3980 = vadd.f32 0.0, %v3979
    %v3981 = vpop.f32.mrb[0].mxu0
    %v3982 = vpop.f32.mrb[0].mxu0
    %v3983 = vadd.f32 0.0, %v3982
    %v3984 = vpop.f32.mrb[0].mxu0
    %3985 = vmatprep.mubr.bf16.mxu0 %v2160
    %3986 = vmatmul.mubr.bf16.gmra.mrb[0].mxu0 %v2194
    %v3987 = vpop.f32.mrb[0].mxu0
    %v3988 = vpop.f32.mrb[0].mxu0
    %v3989 = vpop.f32.mrb[0].mxu0
    %v3990 = vadd.f32 0.0, %v3989
    %v3991 = vpop.f32.mrb[0].mxu0
    %3992 = vmatprep.mubr.bf16.mxu0 %v2249
    %3993 = vmatmul.mubr.bf16.gmra.mrb[0].mxu0 %v2248
    %v3994 = vpop.f32.mrb[0].mxu0
    %v3995 = vadd.f32 0.0, %v3994
    %v3996 = vpop.f32.mrb[0].mxu0
    %v3997 = vpop.f32.mrb[0].mxu0
    %v3998 = vpop.f32.mrb[0].mxu0
    %3999 = vdwg.mxu0
    %4000 = vmatprep.subr.bf16.mxu0 0
    %4001 = vmatpush1.bf16.msra.mxu0 %v3489
    %4002 = vmatprep.subr.bf16.mxu0 0
    %4003 = vmatpush1.bf16.msra.mxu0 %v3490
    %4004 = vmatprep.subr.bf16.mxu0 0
    %4005 = vmatpush1.bf16.msra.mxu0 %v3491
    %4006 = vmatprep.subr.bf16.mxu0 0
    %4007 = vmatpush1.bf16.msra.mxu0 %v3492
    %4008 = vmatprep.subr.bf16.mxu0 0
    %4009 = vmatpush1.bf16.msra.mxu0 %v3493
    %4010 = vmatprep.subr.bf16.mxu0 0
    %4011 = vmatpush1.bf16.msra.mxu0 %v3494
    %4012 = vmatprep.subr.bf16.mxu0 0
    %4013 = vmatpush1.bf16.msra.mxu0 %v3495
    %4014 = vmatprep.subr.bf16.mxu0 0
    %4015 = vmatpush1.bf16.msra.mxu0 %v3496
    %4016 = vmatprep.subr.bf16.mxu0 0
    %4017 = vmatpush1.bf16.msra.mxu0 %v3497
    %4018 = vmatprep.subr.bf16.mxu0 0
    %4019 = vmatpush1.bf16.msra.mxu0 %v3498
    %4020 = vmatprep.subr.bf16.mxu0 0
    %4021 = vmatpush1.bf16.msra.mxu0 %v3499
    %4022 = vmatprep.subr.bf16.mxu0 0
    %4023 = vmatpush1.bf16.msra.mxu0 %v3500
    %4024 = vmatprep.subr.bf16.mxu0 0
    %4025 = vmatpush1.bf16.msra.mxu0 %v3501
    %4026 = vmatprep.subr.bf16.mxu0 0
    %4027 = vmatpush1.bf16.msra.mxu0 %v3502
    %4028 = vmatprep.subr.bf16.mxu0 0
    %4029 = vmatpush1.bf16.msra.mxu0 %v3503
    %4030 = vmatprep.subr.bf16.mxu0 0
    %4031 = vmatpush1.bf16.msra.mxu0 %v3504
    %4032 = vmatprep.mubr.bf16.mxu0 %v2073
    %4033 = vmatmul.mubr.bf16.gmra.mrb[0].mxu0 %v2072
    %v4034 = vpop.f32.mrb[0].mxu0
    %v4035 = vadd.f32 %v3908, %v4034
    %v4036 = vpop.f32.mrb[0].mxu0
    %v4037 = vpop.f32.mrb[0].mxu0
    %v4038 = vadd.f32 %v3911, %v4037
    %v4039 = vpop.f32.mrb[0].mxu0
    %4040 = vmatprep.mubr.bf16.mxu0 %v2098
    %4041 = vmatmul.mubr.bf16.gmra.mrb[0].mxu0 %v2097
    %v4042 = vpop.f32.mrb[0].mxu0
    %v4043 = vadd.f32 %v3916, %v4042
    %v4044 = vpop.f32.mrb[0].mxu0
    %v4045 = vpop.f32.mrb[0].mxu0
    %v4046 = vadd.f32 %v3919, %v4045
    %v4047 = vpop.f32.mrb[0].mxu0
    %4048 = vmatprep.mubr.bf16.mxu0 %v2119
    %4049 = vmatmul.mubr.bf16.gmra.mrb[0].mxu0 %v2118
    %v4050 = vpop.f32.mrb[0].mxu0
    %v4051 = vadd.f32 %v3924, %v4050
    %v4052 = vpop.f32.mrb[0].mxu0
    %v4053 = vpop.f32.mrb[0].mxu0
    %v4054 = vadd.f32 %v3927, %v4053
    %v4055 = vpop.f32.mrb[0].mxu0
    %4056 = vmatprep.mubr.bf16.mxu0 %v2083
    %4057 = vmatmul.mubr.bf16.gmra.mrb[0].mxu0 %v2082
    %v4058 = vpop.f32.mrb[0].mxu0
    %v4059 = vadd.f32 %v3932, %v4058
    %v4060 = vpop.f32.mrb[0].mxu0
    %v4061 = vpop.f32.mrb[0].mxu0
    %v4062 = vadd.f32 %v3935, %v4061
    %v4063 = vpop.f32.mrb[0].mxu0
    %4064 = vmatprep.mubr.bf16.mxu0 %v2106
    %4065 = vmatmul.mubr.bf16.gmra.mrb[0].mxu0 %v2105
    %v4066 = vpop.f32.mrb[0].mxu0
    %v4067 = vadd.f32 %v3940, %v4066
    %v4068 = vpop.f32.mrb[0].mxu0
    %v4069 = vpop.f32.mrb[0].mxu0
    %v4070 = vadd.f32 %v3943, %v4069
    %v4071 = vpop.f32.mrb[0].mxu0
    %4072 = vmatprep.mubr.bf16.mxu0 %v2126
    %4073 = vmatmul.mubr.bf16.gmra.mrb[0].mxu0 %v2125
    %v4074 = vpop.f32.mrb[0].mxu0
    %v4075 = vadd.f32 %v3948, %v4074
    %v4076 = vpop.f32.mrb[0].mxu0
    %v4077 = vpop.f32.mrb[0].mxu0
    %v4078 = vadd.f32 %v3951, %v4077
    %v4079 = vpop.f32.mrb[0].mxu0
    %4080 = vmatprep.mubr.bf16.mxu0 %v2140
    %4081 = vmatmul.mubr.bf16.gmra.mrb[0].mxu0 %v2139
    %v4082 = vpop.f32.mrb[0].mxu0
    %v4083 = vadd.f32 %v3956, %v4082
    %v4084 = vpop.f32.mrb[0].mxu0
    %v4085 = vpop.f32.mrb[0].mxu0
    %v4086 = vadd.f32 %v3959, %v4085
    %v4087 = vpop.f32.mrb[0].mxu0
    %4088 = vmatprep.mubr.bf16.mxu0 %v2154
    %4089 = vmatmul.mubr.bf16.gmra.mrb[0].mxu0 %v2153
    %v4090 = vpop.f32.mrb[0].mxu0
    %v4091 = vadd.f32 %v3964, %v4090
    %v4092 = vpop.f32.mrb[0].mxu0
    %v4093 = vpop.f32.mrb[0].mxu0
    %v4094 = vadd.f32 %v3967, %v4093
    %v4095 = vpop.f32.mrb[0].mxu0
    %4096 = vmatprep.mubr.bf16.mxu0 %v2168
    %4097 = vmatmul.mubr.bf16.gmra.mrb[0].mxu0 %v2167
    %v4098 = vpop.f32.mrb[0].mxu0
    %v4099 = vadd.f32 %v3972, %v4098
    %v4100 = vpop.f32.mrb[0].mxu0
    %v4101 = vpop.f32.mrb[0].mxu0
    %v4102 = vadd.f32 %v3975, %v4101
    %v4103 = vpop.f32.mrb[0].mxu0
    %4104 = vmatprep.mubr.bf16.mxu0 %v2182
    %4105 = vmatmul.mubr.bf16.gmra.mrb[0].mxu0 %v2181
    %v4106 = vpop.f32.mrb[0].mxu0
    %v4107 = vadd.f32 %v3980, %v4106
    %v4108 = vpop.f32.mrb[0].mxu0
    %v4109 = vpop.f32.mrb[0].mxu0
    %v4110 = vadd.f32 %v3983, %v4109
    %v4111 = vpop.f32.mrb[0].mxu0
    %4112 = vmatprep.mubr.bf16.mxu0 %v2196
    %4113 = vmatmul.mubr.bf16.gmra.mrb[0].mxu0 %v2195
    %v4114 = vpop.f32.mrb[0].mxu0
    %v4115 = vpop.f32.mrb[0].mxu0
    %v4116 = vpop.f32.mrb[0].mxu0
    %v4117 = vadd.f32 %v3990, %v4116
    %v4118 = vpop.f32.mrb[0].mxu0
    %4119 = vmatprep.mubr.bf16.mxu0 %v2251
    %4120 = vmatmul.mubr.bf16.gmra.mrb[0].mxu0 %v2250
    %v4121 = vpop.f32.mrb[0].mxu0
    %v4122 = vadd.f32 %v3995, %v4121
    %v4123 = vpop.f32.mrb[0].mxu0
    %v4124 = vpop.f32.mrb[0].mxu0
    %v4125 = vpop.f32.mrb[0].mxu0
    %4126 = vdwg.mxu0
    %4127 = vmatprep.subr.bf16.mxu0 0
    %4128 = vmatpush1.bf16.msra.mxu0 %v3505
    %4129 = vmatprep.subr.bf16.mxu0 0
    %4130 = vmatpush1.bf16.msra.mxu0 %v3506
    %4131 = vmatprep.subr.bf16.mxu0 0
    %4132 = vmatpush1.bf16.msra.mxu0 %v3507
    %4133 = vmatprep.subr.bf16.mxu0 0
    %4134 = vmatpush1.bf16.msra.mxu0 %v3508
    %4135 = vmatprep.subr.bf16.mxu0 0
    %4136 = vmatpush1.bf16.msra.mxu0 %v3509
    %4137 = vmatprep.subr.bf16.mxu0 0
    %4138 = vmatpush1.bf16.msra.mxu0 %v3510
    %4139 = vmatprep.subr.bf16.mxu0 0
    %4140 = vmatpush1.bf16.msra.mxu0 %v3511
    %4141 = vmatprep.subr.bf16.mxu0 0
    %4142 = vmatpush1.bf16.msra.mxu0 %v3512
    %4143 = vmatprep.subr.bf16.mxu0 0
    %4144 = vmatpush1.bf16.msra.mxu0 %v3513
    %4145 = vmatprep.subr.bf16.mxu0 0
    %4146 = vmatpush1.bf16.msra.mxu0 %v3514
    %4147 = vmatprep.subr.bf16.mxu0 0
    %4148 = vmatpush1.bf16.msra.mxu0 %v3515
    %4149 = vmatprep.subr.bf16.mxu0 0
    %4150 = vmatpush1.bf16.msra.mxu0 %v3516
    %4151 = vmatprep.subr.bf16.mxu0 0
    %4152 = vmatpush1.bf16.msra.mxu0 %v3517
    %4153 = vmatprep.subr.bf16.mxu0 0
    %4154 = vmatpush1.bf16.msra.mxu0 %v3518
    %4155 = vmatprep.subr.bf16.mxu0 0
    %4156 = vmatpush1.bf16.msra.mxu0 %v3519
    %4157 = vmatprep.subr.bf16.mxu0 0
    %4158 = vmatpush1.bf16.msra.mxu0 %v3520
    %4159 = vmatprep.mubr.bf16.mxu0 %v2075
    %4160 = vmatmul.mubr.bf16.gmra.mrb[0].mxu0 %v2074
    %v4161 = vpop.f32.mrb[0].mxu0
    %v4162 = vadd.f32 %v4035, %v4161
    %v4163 = vpop.f32.mrb[0].mxu0
    %v4164 = vpop.f32.mrb[0].mxu0
    %v4165 = vadd.f32 %v4038, %v4164
    %v4166 = vpop.f32.mrb[0].mxu0
    %4167 = vmatprep.mubr.bf16.mxu0 %v2099
    %4168 = vmatmul.mubr.bf16.gmra.mrb[0].mxu0 %v2075
    %v4169 = vpop.f32.mrb[0].mxu0
    %v4170 = vadd.f32 %v4043, %v4169
    %v4171 = vpop.f32.mrb[0].mxu0
    %v4172 = vpop.f32.mrb[0].mxu0
    %v4173 = vadd.f32 %v4046, %v4172
    %v4174 = vpop.f32.mrb[0].mxu0
    %4175 = vmatprep.mubr.bf16.mxu0 %v2084
    %4176 = vmatmul.mubr.bf16.gmra.mrb[0].mxu0 %v2099
    %v4177 = vpop.f32.mrb[0].mxu0
    %v4178 = vadd.f32 %v4051, %v4177
    %v4179 = vpop.f32.mrb[0].mxu0
    %v4180 = vpop.f32.mrb[0].mxu0
    %v4181 = vadd.f32 %v4054, %v4180
    %v4182 = vpop.f32.mrb[0].mxu0
    %4183 = vmatprep.mubr.bf16.mxu0 %v2085
    %4184 = vmatmul.mubr.bf16.gmra.mrb[0].mxu0 %v2084
    %v4185 = vpop.f32.mrb[0].mxu0
    %v4186 = vadd.f32 %v4059, %v4185
    %v4187 = vpop.f32.mrb[0].mxu0
    %v4188 = vpop.f32.mrb[0].mxu0
    %v4189 = vadd.f32 %v4062, %v4188
    %v4190 = vpop.f32.mrb[0].mxu0
    %4191 = vmatprep.mubr.bf16.mxu0 %v2107
    %4192 = vmatmul.mubr.bf16.gmra.mrb[0].mxu0 %v2085
    %v4193 = vpop.f32.mrb[0].mxu0
    %v4194 = vadd.f32 %v4067, %v4193
    %v4195 = vpop.f32.mrb[0].mxu0
    %v4196 = vpop.f32.mrb[0].mxu0
    %v4197 = vadd.f32 %v4070, %v4196
    %v4198 = vpop.f32.mrb[0].mxu0
    %4199 = vmatprep.mubr.bf16.mxu0 %v2127
    %4200 = vmatmul.mubr.bf16.gmra.mrb[0].mxu0 %v2107
    %v4201 = vpop.f32.mrb[0].mxu0
    %v4202 = vadd.f32 %v4075, %v4201
    %v4203 = vpop.f32.mrb[0].mxu0
    %v4204 = vpop.f32.mrb[0].mxu0
    %v4205 = vadd.f32 %v4078, %v4204
    %v4206 = vpop.f32.mrb[0].mxu0
    %4207 = vmatprep.mubr.bf16.mxu0 %v2141
    %4208 = vmatmul.mubr.bf16.gmra.mrb[0].mxu0 %v2127
    %v4209 = vpop.f32.mrb[0].mxu0
    %v4210 = vadd.f32 %v4083, %v4209
    %v4211 = vpop.f32.mrb[0].mxu0
    %v4212 = vpop.f32.mrb[0].mxu0
    %v4213 = vadd.f32 %v4086, %v4212
    %v4214 = vpop.f32.mrb[0].mxu0
    %4215 = vmatprep.mubr.bf16.mxu0 %v2155
    %4216 = vmatmul.mubr.bf16.gmra.mrb[0].mxu0 %v2141
    %v4217 = vpop.f32.mrb[0].mxu0
    %v4218 = vadd.f32 %v4091, %v4217
    %v4219 = vpop.f32.mrb[0].mxu0
    %v4220 = vpop.f32.mrb[0].mxu0
    %v4221 = vadd.f32 %v4094, %v4220
    %v4222 = vpop.f32.mrb[0].mxu0
    %4223 = vmatprep.mubr.bf16.mxu0 %v2169
    %4224 = vmatmul.mubr.bf16.gmra.mrb[0].mxu0 %v2155
    %v4225 = vpop.f32.mrb[0].mxu0
    %v4226 = vadd.f32 %v4099, %v4225
    %v4227 = vpop.f32.mrb[0].mxu0
    %v4228 = vpop.f32.mrb[0].mxu0
    %v4229 = vadd.f32 %v4102, %v4228
    %v4230 = vpop.f32.mrb[0].mxu0
    %4231 = vmatprep.mubr.bf16.mxu0 %v2183
    %4232 = vmatmul.mubr.bf16.gmra.mrb[0].mxu0 %v2169
    %v4233 = vpop.f32.mrb[0].mxu0
    %v4234 = vadd.f32 %v4107, %v4233
    %v4235 = vpop.f32.mrb[0].mxu0
    %v4236 = vpop.f32.mrb[0].mxu0
    %v4237 = vadd.f32 %v4110, %v4236
    %v4238 = vpop.f32.mrb[0].mxu0
    %4239 = vmatprep.mubr.bf16.mxu0 %v2197
    %4240 = vmatmul.mubr.bf16.gmra.mrb[0].mxu0 %v2183
    %v4241 = vpop.f32.mrb[0].mxu0
    %v4242 = vpop.f32.mrb[0].mxu0
    %v4243 = vpop.f32.mrb[0].mxu0
    %v4244 = vadd.f32 %v4117, %v4243
    %v4245 = vpop.f32.mrb[0].mxu0
    %4246 = vmatprep.mubr.bf16.mxu0 %v2253
    %4247 = vmatmul.mubr.bf16.gmra.mrb[0].mxu0 %v2252
    %v4248 = vpop.f32.mrb[0].mxu0
    %v4249 = vadd.f32 %v4122, %v4248
    %v4250 = vpop.f32.mrb[0].mxu0
    %v4251 = vpop.f32.mrb[0].mxu0
    %v4252 = vpop.f32.mrb[0].mxu0
    %4253 = vdwg.mxu0
    %4254 = vmatprep.subr.bf16.mxu0 0
    %4255 = vmatpush1.bf16.msra.mxu0 %v3521
    %4256 = vmatprep.subr.bf16.mxu0 0
    %4257 = vmatpush1.bf16.msra.mxu0 %v3522
    %4258 = vmatprep.subr.bf16.mxu0 0
    %4259 = vmatpush1.bf16.msra.mxu0 %v3523
    %4260 = vmatprep.subr.bf16.mxu0 0
    %4261 = vmatpush1.bf16.msra.mxu0 %v3524
    %4262 = vmatprep.subr.bf16.mxu0 0
    %4263 = vmatpush1.bf16.msra.mxu0 %v3525
    %4264 = vmatprep.subr.bf16.mxu0 0
    %4265 = vmatpush1.bf16.msra.mxu0 %v3526
    %4266 = vmatprep.subr.bf16.mxu0 0
    %4267 = vmatpush1.bf16.msra.mxu0 %v3527
    %4268 = vmatprep.subr.bf16.mxu0 0
    %4269 = vmatpush1.bf16.msra.mxu0 %v3528
    %4270 = vmatprep.subr.bf16.mxu0 0
    %4271 = vmatpush1.bf16.msra.mxu0 %v3529
    %4272 = vmatprep.subr.bf16.mxu0 0
    %4273 = vmatpush1.bf16.msra.mxu0 %v3530
    %4274 = vmatprep.subr.bf16.mxu0 0
    %4275 = vmatpush1.bf16.msra.mxu0 %v3531
    %4276 = vmatprep.subr.bf16.mxu0 0
    %4277 = vmatpush1.bf16.msra.mxu0 %v3532
    %4278 = vmatprep.subr.bf16.mxu0 0
    %4279 = vmatpush1.bf16.msra.mxu0 %v3533
    %4280 = vmatprep.subr.bf16.mxu0 0
    %4281 = vmatpush1.bf16.msra.mxu0 %v3534
    %4282 = vmatprep.subr.bf16.mxu0 0
    %4283 = vmatpush1.bf16.msra.mxu0 %v3535
    %4284 = vmatprep.subr.bf16.mxu0 0
    %4285 = vmatpush1.bf16.msra.mxu0 %v3536
    %4286 = vmatprep.mubr.bf16.mxu0 %v2077
    %4287 = vmatmul.mubr.bf16.gmra.mrb[0].mxu0 %v2076
    %v4288 = vpop.f32.mrb[0].mxu0
    %v4289 = vadd.f32 %v4162, %v4288
    %v4290 = vpop.f32.mrb[0].mxu0
    %v4291 = vpop.f32.mrb[0].mxu0
    %v4292 = vadd.f32 %v4165, %v4291
    %v4293 = vpop.f32.mrb[0].mxu0
    %4294 = vmatprep.mubr.bf16.mxu0 %v2101
    %4295 = vmatmul.mubr.bf16.gmra.mrb[0].mxu0 %v2100
    %v4296 = vpop.f32.mrb[0].mxu0
    %v4297 = vadd.f32 %v4170, %v4296
    %v4298 = vpop.f32.mrb[0].mxu0
    %v4299 = vpop.f32.mrb[0].mxu0
    %v4300 = vadd.f32 %v4173, %v4299
    %v4301 = vpop.f32.mrb[0].mxu0
    %4302 = vmatprep.mubr.bf16.mxu0 %v2121
    %4303 = vmatmul.mubr.bf16.gmra.mrb[0].mxu0 %v2120
    %v4304 = vpop.f32.mrb[0].mxu0
    %v4305 = vadd.f32 %v4178, %v4304
    %v4306 = vpop.f32.mrb[0].mxu0
    %v4307 = vpop.f32.mrb[0].mxu0
    %v4308 = vadd.f32 %v4181, %v4307
    %v4309 = vpop.f32.mrb[0].mxu0
    %4310 = vmatprep.mubr.bf16.mxu0 %v2136
    %4311 = vmatmul.mubr.bf16.gmra.mrb[0].mxu0 %v2086
    %v4312 = vpop.f32.mrb[0].mxu0
    %v4313 = vadd.f32 %v4186, %v4312
    %v4314 = vpop.f32.mrb[0].mxu0
    %v4315 = vpop.f32.mrb[0].mxu0
    %v4316 = vadd.f32 %v4189, %v4315
    %v4317 = vpop.f32.mrb[0].mxu0
    %4318 = vmatprep.mubr.bf16.mxu0 %v2150
    %4319 = vmatmul.mubr.bf16.gmra.mrb[0].mxu0 %v2108
    %v4320 = vpop.f32.mrb[0].mxu0
    %v4321 = vadd.f32 %v4194, %v4320
    %v4322 = vpop.f32.mrb[0].mxu0
    %v4323 = vpop.f32.mrb[0].mxu0
    %v4324 = vadd.f32 %v4197, %v4323
    %v4325 = vpop.f32.mrb[0].mxu0
    %4326 = vmatprep.mubr.bf16.mxu0 %v2164
    %4327 = vmatmul.mubr.bf16.gmra.mrb[0].mxu0 %v2128
    %v4328 = vpop.f32.mrb[0].mxu0
    %v4329 = vadd.f32 %v4202, %v4328
    %v4330 = vpop.f32.mrb[0].mxu0
    %v4331 = vpop.f32.mrb[0].mxu0
    %v4332 = vadd.f32 %v4205, %v4331
    %v4333 = vpop.f32.mrb[0].mxu0
    %4334 = vmatprep.mubr.bf16.mxu0 %v2178
    %4335 = vmatmul.mubr.bf16.gmra.mrb[0].mxu0 %v2142
    %v4336 = vpop.f32.mrb[0].mxu0
    %v4337 = vadd.f32 %v4210, %v4336
    %v4338 = vpop.f32.mrb[0].mxu0
    %v4339 = vpop.f32.mrb[0].mxu0
    %v4340 = vadd.f32 %v4213, %v4339
    %v4341 = vpop.f32.mrb[0].mxu0
    %4342 = vmatprep.mubr.bf16.mxu0 %v2192
    %4343 = vmatmul.mubr.bf16.gmra.mrb[0].mxu0 %v2156
    %v4344 = vpop.f32.mrb[0].mxu0
    %v4345 = vadd.f32 %v4218, %v4344
    %v4346 = vpop.f32.mrb[0].mxu0
    %v4347 = vpop.f32.mrb[0].mxu0
    %v4348 = vadd.f32 %v4221, %v4347
    %v4349 = vpop.f32.mrb[0].mxu0
    %4350 = vmatprep.mubr.bf16.mxu0 %v2206
    %4351 = vmatmul.mubr.bf16.gmra.mrb[0].mxu0 %v2170
    %v4352 = vpop.f32.mrb[0].mxu0
    %v4353 = vadd.f32 %v4226, %v4352
    %v4354 = vpop.f32.mrb[0].mxu0
    %v4355 = vpop.f32.mrb[0].mxu0
    %v4356 = vadd.f32 %v4229, %v4355
    %v4357 = vpop.f32.mrb[0].mxu0
    %4358 = vmatprep.mubr.bf16.mxu0 %v2220
    %4359 = vmatmul.mubr.bf16.gmra.mrb[0].mxu0 %v2184
    %v4360 = vpop.f32.mrb[0].mxu0
    %v4361 = vadd.f32 %v4234, %v4360
    %v4362 = vpop.f32.mrb[0].mxu0
    %v4363 = vpop.f32.mrb[0].mxu0
    %v4364 = vadd.f32 %v4237, %v4363
    %v4365 = vpop.f32.mrb[0].mxu0
    %4366 = vmatprep.mubr.bf16.mxu0 %v2234
    %4367 = vmatmul.mubr.bf16.gmra.mrb[0].mxu0 %v2198
    %v4368 = vpop.f32.mrb[0].mxu0
    %v4369 = vpop.f32.mrb[0].mxu0
    %v4370 = vpop.f32.mrb[0].mxu0
    %v4371 = vadd.f32 %v4244, %v4370
    %v4372 = vpop.f32.mrb[0].mxu0
    %4373 = vmatprep.mubr.bf16.mxu0 %v2255
    %4374 = vmatmul.mubr.bf16.gmra.mrb[0].mxu0 %v2254
    %v4375 = vpop.f32.mrb[0].mxu0
    %v4376 = vadd.f32 %v4249, %v4375
    %v4377 = vpop.f32.mrb[0].mxu0
    %v4378 = vpop.f32.mrb[0].mxu0
    %v4379 = vpop.f32.mrb[0].mxu0
    %4380 = vdwg.mxu0
    %4381 = vmatprep.subr.bf16.mxu0 0
    %4382 = vmatpush1.bf16.msra.mxu0 %v3537
    %4383 = vmatprep.subr.bf16.mxu0 0
    %4384 = vmatpush1.bf16.msra.mxu0 %v3538
    %4385 = vmatprep.subr.bf16.mxu0 0
    %4386 = vmatpush1.bf16.msra.mxu0 %v3539
    %4387 = vmatprep.subr.bf16.mxu0 0
    %4388 = vmatpush1.bf16.msra.mxu0 %v3540
    %4389 = vmatprep.subr.bf16.mxu0 0
    %4390 = vmatpush1.bf16.msra.mxu0 %v3541
    %4391 = vmatprep.subr.bf16.mxu0 0
    %4392 = vmatpush1.bf16.msra.mxu0 %v3542
    %4393 = vmatprep.subr.bf16.mxu0 0
    %4394 = vmatpush1.bf16.msra.mxu0 %v3543
    %4395 = vmatprep.subr.bf16.mxu0 0
    %4396 = vmatpush1.bf16.msra.mxu0 %v3544
    %4397 = vmatprep.subr.bf16.mxu0 0
    %4398 = vmatpush1.bf16.msra.mxu0 %v3545
    %4399 = vmatprep.subr.bf16.mxu0 0
    %4400 = vmatpush1.bf16.msra.mxu0 %v3546
    %4401 = vmatprep.subr.bf16.mxu0 0
    %4402 = vmatpush1.bf16.msra.mxu0 %v3547
    %4403 = vmatprep.subr.bf16.mxu0 0
    %4404 = vmatpush1.bf16.msra.mxu0 %v3548
    %4405 = vmatprep.subr.bf16.mxu0 0
    %4406 = vmatpush1.bf16.msra.mxu0 %v3549
    %4407 = vmatprep.subr.bf16.mxu0 0
    %4408 = vmatpush1.bf16.msra.mxu0 %v3550
    %4409 = vmatprep.subr.bf16.mxu0 0
    %4410 = vmatpush1.bf16.msra.mxu0 %v3551
    %4411 = vmatprep.subr.bf16.mxu0 0
    %4412 = vmatpush1.bf16.msra.mxu0 %v3552
    %4413 = vmatprep.mubr.bf16.mxu0 %v2079
    %4414 = vmatmul.mubr.bf16.gmra.mrb[0].mxu0 %v2078
    %v4415 = vpop.f32.mrb[0].mxu0
    %v4416 = vadd.f32 %v4289, %v4415
    %v4417 = vpop.f32.mrb[0].mxu0
    %v4418 = vpop.f32.mrb[0].mxu0
    %v4419 = vadd.f32 %v4292, %v4418
    %v4420 = vpop.f32.mrb[0].mxu0
    %4421 = vmatprep.mubr.bf16.mxu0 %v2080
    %4422 = vmatmul.mubr.bf16.gmra.mrb[0].mxu0 %v2102
    %v4423 = vpop.f32.mrb[0].mxu0
    %v4424 = vadd.f32 %v4297, %v4423
    %v4425 = vpop.f32.mrb[0].mxu0
    %v4426 = vpop.f32.mrb[0].mxu0
    %v4427 = vadd.f32 %v4300, %v4426
    %v4428 = vpop.f32.mrb[0].mxu0
    %4429 = vmatprep.mubr.bf16.mxu0 %v2103
    %4430 = vmatmul.mubr.bf16.gmra.mrb[0].mxu0 %v2122
    %v4431 = vpop.f32.mrb[0].mxu0
    %v4432 = vadd.f32 %v4305, %v4431
    %v4433 = vpop.f32.mrb[0].mxu0
    %v4434 = vpop.f32.mrb[0].mxu0
    %v4435 = vadd.f32 %v4308, %v4434
    %v4436 = vpop.f32.mrb[0].mxu0
    %4437 = vmatprep.mubr.bf16.mxu0 %v2123
    %4438 = vmatmul.mubr.bf16.gmra.mrb[0].mxu0 %v2137
    %v4439 = vpop.f32.mrb[0].mxu0
    %v4440 = vadd.f32 %v4313, %v4439
    %v4441 = vpop.f32.mrb[0].mxu0
    %v4442 = vpop.f32.mrb[0].mxu0
    %v4443 = vadd.f32 %v4316, %v4442
    %v4444 = vpop.f32.mrb[0].mxu0
    %4445 = vmatprep.mubr.bf16.mxu0 %v2138
    %4446 = vmatmul.mubr.bf16.gmra.mrb[0].mxu0 %v2151
    %v4447 = vpop.f32.mrb[0].mxu0
    %v4448 = vadd.f32 %v4321, %v4447
    %v4449 = vpop.f32.mrb[0].mxu0
    %v4450 = vpop.f32.mrb[0].mxu0
    %v4451 = vadd.f32 %v4324, %v4450
    %v4452 = vpop.f32.mrb[0].mxu0
    %4453 = vmatprep.mubr.bf16.mxu0 %v2152
    %4454 = vmatmul.mubr.bf16.gmra.mrb[0].mxu0 %v2165
    %v4455 = vpop.f32.mrb[0].mxu0
    %v4456 = vadd.f32 %v4329, %v4455
    %v4457 = vpop.f32.mrb[0].mxu0
    %v4458 = vpop.f32.mrb[0].mxu0
    %v4459 = vadd.f32 %v4332, %v4458
    %v4460 = vpop.f32.mrb[0].mxu0
    %4461 = vmatprep.mubr.bf16.mxu0 %v2166
    %4462 = vmatmul.mubr.bf16.gmra.mrb[0].mxu0 %v2179
    %v4463 = vpop.f32.mrb[0].mxu0
    %v4464 = vadd.f32 %v4337, %v4463
    %v4465 = vpop.f32.mrb[0].mxu0
    %v4466 = vpop.f32.mrb[0].mxu0
    %v4467 = vadd.f32 %v4340, %v4466
    %v4468 = vpop.f32.mrb[0].mxu0
    %4469 = vmatprep.mubr.bf16.mxu0 %v2180
    %4470 = vmatmul.mubr.bf16.gmra.mrb[0].mxu0 %v2193
    %v4471 = vpop.f32.mrb[0].mxu0
    %v4472 = vadd.f32 %v4345, %v4471
    %v4473 = vpop.f32.mrb[0].mxu0
    %v4474 = vpop.f32.mrb[0].mxu0
    %v4475 = vadd.f32 %v4348, %v4474
    %v4476 = vpop.f32.mrb[0].mxu0
    %4477 = vmatprep.mubr.bf16.mxu0 %v2194
    %4478 = vmatmul.mubr.bf16.gmra.mrb[0].mxu0 %v2207
    %v4479 = vpop.f32.mrb[0].mxu0
    %v4480 = vadd.f32 %v4353, %v4479
    %v4481 = vpop.f32.mrb[0].mxu0
    %v4482 = vpop.f32.mrb[0].mxu0
    %v4483 = vadd.f32 %v4356, %v4482
    %v4484 = vpop.f32.mrb[0].mxu0
    %4485 = vmatprep.mubr.bf16.mxu0 %v2208
    %4486 = vmatmul.mubr.bf16.gmra.mrb[0].mxu0 %v2221
    %v4487 = vpop.f32.mrb[0].mxu0
    %v4488 = vadd.f32 %v4361, %v4487
    %v4489 = vpop.f32.mrb[0].mxu0
    %v4490 = vpop.f32.mrb[0].mxu0
    %v4491 = vadd.f32 %v4364, %v4490
    %v4492 = vpop.f32.mrb[0].mxu0
    %4493 = vmatprep.mubr.bf16.mxu0 %v2222
    %4494 = vmatmul.mubr.bf16.gmra.mrb[0].mxu0 %v2235
    %v4495 = vpop.f32.mrb[0].mxu0
    %v4496 = vpop.f32.mrb[0].mxu0
    %v4497 = vpop.f32.mrb[0].mxu0
    %v4498 = vadd.f32 %v4371, %v4497
    %v4499 = vpop.f32.mrb[0].mxu0
    %4500 = vmatprep.mubr.bf16.mxu0 %v2257
    %4501 = vmatmul.mubr.bf16.gmra.mrb[0].mxu0 %v2256
    %v4502 = vpop.f32.mrb[0].mxu0
    %v4503 = vadd.f32 %v4376, %v4502
    %v4504 = vpop.f32.mrb[0].mxu0
    %v4505 = vpop.f32.mrb[0].mxu0
    %v4506 = vpop.f32.mrb[0].mxu0
    %4507 = vdwg.mxu0
    %4508 = vmatprep.subr.bf16.mxu0 0
    %4509 = vmatpush1.bf16.msra.mxu0 %v3553
    %4510 = vmatprep.subr.bf16.mxu0 0
    %4511 = vmatpush1.bf16.msra.mxu0 %v3554
    %4512 = vmatprep.subr.bf16.mxu0 0
    %4513 = vmatpush1.bf16.msra.mxu0 %v3555
    %4514 = vmatprep.subr.bf16.mxu0 0
    %4515 = vmatpush1.bf16.msra.mxu0 %v3556
    %4516 = vmatprep.subr.bf16.mxu0 0
    %4517 = vmatpush1.bf16.msra.mxu0 %v3557
    %4518 = vmatprep.subr.bf16.mxu0 0
    %4519 = vmatpush1.bf16.msra.mxu0 %v3558
    %4520 = vmatprep.subr.bf16.mxu0 0
    %4521 = vmatpush1.bf16.msra.mxu0 %v3559
    %4522 = vmatprep.subr.bf16.mxu0 0
    %4523 = vmatpush1.bf16.msra.mxu0 %v3560
    %4524 = vmatprep.subr.bf16.mxu0 0
    %4525 = vmatpush1.bf16.msra.mxu0 %v3561
    %4526 = vmatprep.subr.bf16.mxu0 0
    %4527 = vmatpush1.bf16.msra.mxu0 %v3562
    %4528 = vmatprep.subr.bf16.mxu0 0
    %4529 = vmatpush1.bf16.msra.mxu0 %v3563
    %4530 = vmatprep.subr.bf16.mxu0 0
    %4531 = vmatpush1.bf16.msra.mxu0 %v3564
    %4532 = vmatprep.subr.bf16.mxu0 0
    %4533 = vmatpush1.bf16.msra.mxu0 %v3565
    %4534 = vmatprep.subr.bf16.mxu0 0
    %4535 = vmatpush1.bf16.msra.mxu0 %v3566
    %4536 = vmatprep.subr.bf16.mxu0 0
    %4537 = vmatpush1.bf16.msra.mxu0 %v3567
    %4538 = vmatprep.subr.bf16.mxu0 0
    %4539 = vmatpush1.bf16.msra.mxu0 %v3568
    %4540 = vmatprep.mubr.bf16.mxu0 %v2081
    %4541 = vmatmul.mubr.bf16.gmra.mrb[0].mxu0 %v2080
    %v4542 = vpop.f32.mrb[0].mxu0
    %v4543 = vadd.f32 %v4416, %v4542
    %v4544 = vpop.f32.mrb[0].mxu0
    %v4545 = vpop.f32.mrb[0].mxu0
    %v4546 = vadd.f32 %v4419, %v4545
    %v4547 = vpop.f32.mrb[0].mxu0
    %4548 = vmatprep.mubr.bf16.mxu0 %v2104
    %4549 = vmatmul.mubr.bf16.gmra.mrb[0].mxu0 %v2103
    %v4550 = vpop.f32.mrb[0].mxu0
    %v4551 = vadd.f32 %v4424, %v4550
    %v4552 = vpop.f32.mrb[0].mxu0
    %v4553 = vpop.f32.mrb[0].mxu0
    %v4554 = vadd.f32 %v4427, %v4553
    %v4555 = vpop.f32.mrb[0].mxu0
    %4556 = vmatprep.mubr.bf16.mxu0 %v2124
    %4557 = vmatmul.mubr.bf16.gmra.mrb[0].mxu0 %v2123
    %v4558 = vpop.f32.mrb[0].mxu0
    %v4559 = vadd.f32 %v4432, %v4558
    %v4560 = vpop.f32.mrb[0].mxu0
    %v4561 = vpop.f32.mrb[0].mxu0
    %v4562 = vadd.f32 %v4435, %v4561
    %v4563 = vpop.f32.mrb[0].mxu0
    %4564 = vmatprep.mubr.bf16.mxu0 %v2091
    %4565 = vmatmul.mubr.bf16.gmra.mrb[0].mxu0 %v2138
    %v4566 = vpop.f32.mrb[0].mxu0
    %v4567 = vadd.f32 %v4440, %v4566
    %v4568 = vpop.f32.mrb[0].mxu0
    %v4569 = vpop.f32.mrb[0].mxu0
    %v4570 = vadd.f32 %v4443, %v4569
    %v4571 = vpop.f32.mrb[0].mxu0
    %4572 = vmatprep.mubr.bf16.mxu0 %v2113
    %4573 = vmatmul.mubr.bf16.gmra.mrb[0].mxu0 %v2152
    %v4574 = vpop.f32.mrb[0].mxu0
    %v4575 = vadd.f32 %v4448, %v4574
    %v4576 = vpop.f32.mrb[0].mxu0
    %v4577 = vpop.f32.mrb[0].mxu0
    %v4578 = vadd.f32 %v4451, %v4577
    %v4579 = vpop.f32.mrb[0].mxu0
    %4580 = vmatprep.mubr.bf16.mxu0 %v2132
    %4581 = vmatmul.mubr.bf16.gmra.mrb[0].mxu0 %v2166
    %v4582 = vpop.f32.mrb[0].mxu0
    %v4583 = vadd.f32 %v4456, %v4582
    %v4584 = vpop.f32.mrb[0].mxu0
    %v4585 = vpop.f32.mrb[0].mxu0
    %v4586 = vadd.f32 %v4459, %v4585
    %v4587 = vpop.f32.mrb[0].mxu0
    %4588 = vmatprep.mubr.bf16.mxu0 %v2146
    %4589 = vmatmul.mubr.bf16.gmra.mrb[0].mxu0 %v2180
    %v4590 = vpop.f32.mrb[0].mxu0
    %v4591 = vadd.f32 %v4464, %v4590
    %v4592 = vpop.f32.mrb[0].mxu0
    %v4593 = vpop.f32.mrb[0].mxu0
    %v4594 = vadd.f32 %v4467, %v4593
    %v4595 = vpop.f32.mrb[0].mxu0
    %4596 = vmatprep.mubr.bf16.mxu0 %v2160
    %4597 = vmatmul.mubr.bf16.gmra.mrb[0].mxu0 %v2194
    %v4598 = vpop.f32.mrb[0].mxu0
    %v4599 = vadd.f32 %v4472, %v4598
    %v4600 = vpop.f32.mrb[0].mxu0
    %v4601 = vpop.f32.mrb[0].mxu0
    %v4602 = vadd.f32 %v4475, %v4601
    %v4603 = vpop.f32.mrb[0].mxu0
    %4604 = vmatprep.mubr.bf16.mxu0 %v2174
    %4605 = vmatmul.mubr.bf16.gmra.mrb[0].mxu0 %v2208
    %v4606 = vpop.f32.mrb[0].mxu0
    %v4607 = vadd.f32 %v4480, %v4606
    %v4608 = vpop.f32.mrb[0].mxu0
    %v4609 = vpop.f32.mrb[0].mxu0
    %v4610 = vadd.f32 %v4483, %v4609
    %v4611 = vpop.f32.mrb[0].mxu0
    %4612 = vmatprep.mubr.bf16.mxu0 %v2188
    %4613 = vmatmul.mubr.bf16.gmra.mrb[0].mxu0 %v2222
    %v4614 = vpop.f32.mrb[0].mxu0
    %v4615 = vadd.f32 %v4488, %v4614
    %v4616 = vpop.f32.mrb[0].mxu0
    %v4617 = vpop.f32.mrb[0].mxu0
    %v4618 = vadd.f32 %v4491, %v4617
    %v4619 = vpop.f32.mrb[0].mxu0
    %4620 = vmatprep.mubr.bf16.mxu0 %v2202
    %4621 = vmatmul.mubr.bf16.gmra.mrb[0].mxu0 %v2236
    %v4622 = vpop.f32.mrb[0].mxu0
    %v4623 = vpop.f32.mrb[0].mxu0
    %v4624 = vpop.f32.mrb[0].mxu0
    %v4625 = vadd.f32 %v4498, %v4624
    %v4626 = vpop.f32.mrb[0].mxu0
    %4627 = vmatprep.mubr.bf16.mxu0 %v2259
    %4628 = vmatmul.mubr.bf16.gmra.mrb[0].mxu0 %v2258
    %v4629 = vpop.f32.mrb[0].mxu0
    %v4630 = vadd.f32 %v4503, %v4629
    %v4631 = vpop.f32.mrb[0].mxu0
    %v4632 = vpop.f32.mrb[0].mxu0
    %v4633 = vpop.f32.mrb[0].mxu0
    %4634 = vdwg.mxu0
    %4635 = vmatprep.subr.bf16.mxu0 0
    %4636 = vmatpush1.bf16.msra.mxu0 %v3569
    %4637 = vmatprep.subr.bf16.mxu0 0
    %4638 = vmatpush1.bf16.msra.mxu0 %v3570
    %4639 = vmatprep.subr.bf16.mxu0 0
    %4640 = vmatpush1.bf16.msra.mxu0 %v3571
    %4641 = vmatprep.subr.bf16.mxu0 0
    %4642 = vmatpush1.bf16.msra.mxu0 %v3572
    %4643 = vmatprep.subr.bf16.mxu0 0
    %4644 = vmatpush1.bf16.msra.mxu0 %v3573
    %4645 = vmatprep.subr.bf16.mxu0 0
    %4646 = vmatpush1.bf16.msra.mxu0 %v3574
    %4647 = vmatprep.subr.bf16.mxu0 0
    %4648 = vmatpush1.bf16.msra.mxu0 %v3575
    %4649 = vmatprep.subr.bf16.mxu0 0
    %4650 = vmatpush1.bf16.msra.mxu0 %v3576
    %4651 = vmatprep.subr.bf16.mxu0 0
    %4652 = vmatpush1.bf16.msra.mxu0 %v3577
    %4653 = vmatprep.subr.bf16.mxu0 0
    %4654 = vmatpush1.bf16.msra.mxu0 %v3578
    %4655 = vmatprep.subr.bf16.mxu0 0
    %4656 = vmatpush1.bf16.msra.mxu0 %v3579
    %4657 = vmatprep.subr.bf16.mxu0 0
    %4658 = vmatpush1.bf16.msra.mxu0 %v3580
    %4659 = vmatprep.subr.bf16.mxu0 0
    %4660 = vmatpush1.bf16.msra.mxu0 %v3581
    %4661 = vmatprep.subr.bf16.mxu0 0
    %4662 = vmatpush1.bf16.msra.mxu0 %v3582
    %4663 = vmatprep.subr.bf16.mxu0 0
    %4664 = vmatpush1.bf16.msra.mxu0 %v3583
    %4665 = vmatprep.subr.bf16.mxu0 0
    %4666 = vmatpush1.bf16.msra.mxu0 %v3584
    %4667 = vmatprep.mubr.bf16.mxu0 %v2083
    %4668 = vmatmul.mubr.bf16.gmra.mrb[0].mxu0 %v2082
    %v4669 = vpop.f32.mrb[0].mxu0
    %v4670 = vadd.f32 %v4543, %v4669
    %v4671 = vpop.f32.mrb[0].mxu0
    %v4672 = vpop.f32.mrb[0].mxu0
    %v4673 = vadd.f32 %v4546, %v4672
    %v4674 = vpop.f32.mrb[0].mxu0
    %4675 = vmatprep.mubr.bf16.mxu0 %v2106
    %4676 = vmatmul.mubr.bf16.gmra.mrb[0].mxu0 %v2105
    %v4677 = vpop.f32.mrb[0].mxu0
    %v4678 = vadd.f32 %v4551, %v4677
    %v4679 = vpop.f32.mrb[0].mxu0
    %v4680 = vpop.f32.mrb[0].mxu0
    %v4681 = vadd.f32 %v4554, %v4680
    %v4682 = vpop.f32.mrb[0].mxu0
    %4683 = vmatprep.mubr.bf16.mxu0 %v2126
    %4684 = vmatmul.mubr.bf16.gmra.mrb[0].mxu0 %v2125
    %v4685 = vpop.f32.mrb[0].mxu0
    %v4686 = vadd.f32 %v4559, %v4685
    %v4687 = vpop.f32.mrb[0].mxu0
    %v4688 = vpop.f32.mrb[0].mxu0
    %v4689 = vadd.f32 %v4562, %v4688
    %v4690 = vpop.f32.mrb[0].mxu0
    %4691 = vmatprep.mubr.bf16.mxu0 %v2140
    %4692 = vmatmul.mubr.bf16.gmra.mrb[0].mxu0 %v2139
    %v4693 = vpop.f32.mrb[0].mxu0
    %v4694 = vadd.f32 %v4567, %v4693
    %v4695 = vpop.f32.mrb[0].mxu0
    %v4696 = vpop.f32.mrb[0].mxu0
    %v4697 = vadd.f32 %v4570, %v4696
    %v4698 = vpop.f32.mrb[0].mxu0
    %4699 = vmatprep.mubr.bf16.mxu0 %v2154
    %4700 = vmatmul.mubr.bf16.gmra.mrb[0].mxu0 %v2153
    %v4701 = vpop.f32.mrb[0].mxu0
    %v4702 = vadd.f32 %v4575, %v4701
    %v4703 = vpop.f32.mrb[0].mxu0
    %v4704 = vpop.f32.mrb[0].mxu0
    %v4705 = vadd.f32 %v4578, %v4704
    %v4706 = vpop.f32.mrb[0].mxu0
    %4707 = vmatprep.mubr.bf16.mxu0 %v2168
    %4708 = vmatmul.mubr.bf16.gmra.mrb[0].mxu0 %v2167
    %v4709 = vpop.f32.mrb[0].mxu0
    %v4710 = vadd.f32 %v4583, %v4709
    %v4711 = vpop.f32.mrb[0].mxu0
    %v4712 = vpop.f32.mrb[0].mxu0
    %v4713 = vadd.f32 %v4586, %v4712
    %v4714 = vpop.f32.mrb[0].mxu0
    %4715 = vmatprep.mubr.bf16.mxu0 %v2182
    %4716 = vmatmul.mubr.bf16.gmra.mrb[0].mxu0 %v2181
    %v4717 = vpop.f32.mrb[0].mxu0
    %v4718 = vadd.f32 %v4591, %v4717
    %v4719 = vpop.f32.mrb[0].mxu0
    %v4720 = vpop.f32.mrb[0].mxu0
    %v4721 = vadd.f32 %v4594, %v4720
    %v4722 = vpop.f32.mrb[0].mxu0
    %4723 = vmatprep.mubr.bf16.mxu0 %v2196
    %4724 = vmatmul.mubr.bf16.gmra.mrb[0].mxu0 %v2195
    %v4725 = vpop.f32.mrb[0].mxu0
    %v4726 = vadd.f32 %v4599, %v4725
    %v4727 = vpop.f32.mrb[0].mxu0
    %v4728 = vpop.f32.mrb[0].mxu0
    %v4729 = vadd.f32 %v4602, %v4728
    %v4730 = vpop.f32.mrb[0].mxu0
    %4731 = vmatprep.mubr.bf16.mxu0 %v2210
    %4732 = vmatmul.mubr.bf16.gmra.mrb[0].mxu0 %v2209
    %v4733 = vpop.f32.mrb[0].mxu0
    %v4734 = vadd.f32 %v4607, %v4733
    %v4735 = vpop.f32.mrb[0].mxu0
    %v4736 = vpop.f32.mrb[0].mxu0
    %v4737 = vadd.f32 %v4610, %v4736
    %v4738 = vpop.f32.mrb[0].mxu0
    %4739 = vmatprep.mubr.bf16.mxu0 %v2224
    %4740 = vmatmul.mubr.bf16.gmra.mrb[0].mxu0 %v2223
    %v4741 = vpop.f32.mrb[0].mxu0
    %v4742 = vadd.f32 %v4615, %v4741
    %v4743 = vpop.f32.mrb[0].mxu0
    %v4744 = vpop.f32.mrb[0].mxu0
    %v4745 = vadd.f32 %v4618, %v4744
    %v4746 = vpop.f32.mrb[0].mxu0
    %4747 = vmatprep.mubr.bf16.mxu0 %v2238
    %4748 = vmatmul.mubr.bf16.gmra.mrb[0].mxu0 %v2237
    %v4749 = vpop.f32.mrb[0].mxu0
    %v4750 = vpop.f32.mrb[0].mxu0
    %v4751 = vpop.f32.mrb[0].mxu0
    %v4752 = vadd.f32 %v4625, %v4751
    %v4753 = vpop.f32.mrb[0].mxu0
    %4754 = vmatprep.mubr.bf16.mxu0 %v2261
    %4755 = vmatmul.mubr.bf16.gmra.mrb[0].mxu0 %v2260
    %v4756 = vpop.f32.mrb[0].mxu0
    %v4757 = vadd.f32 %v4630, %v4756
    %v4758 = vpop.f32.mrb[0].mxu0
    %v4759 = vpop.f32.mrb[0].mxu0
    %v4760 = vpop.f32.mrb[0].mxu0
    %4761 = vdwg.mxu0
    %4762 = vmatprep.subr.bf16.mxu0 0
    %4763 = vmatpush1.bf16.msra.mxu0 %v3585
    %4764 = vmatprep.subr.bf16.mxu0 0
    %4765 = vmatpush1.bf16.msra.mxu0 %v3586
    %4766 = vmatprep.subr.bf16.mxu0 0
    %4767 = vmatpush1.bf16.msra.mxu0 %v3587
    %4768 = vmatprep.subr.bf16.mxu0 0
    %4769 = vmatpush1.bf16.msra.mxu0 %v3588
    %4770 = vmatprep.subr.bf16.mxu0 0
    %4771 = vmatpush1.bf16.msra.mxu0 %v3589
    %4772 = vmatprep.subr.bf16.mxu0 0
    %4773 = vmatpush1.bf16.msra.mxu0 %v3590
    %4774 = vmatprep.subr.bf16.mxu0 0
    %4775 = vmatpush1.bf16.msra.mxu0 %v3591
    %4776 = vmatprep.subr.bf16.mxu0 0
    %4777 = vmatpush1.bf16.msra.mxu0 %v3592
    %4778 = vmatprep.subr.bf16.mxu0 0
    %4779 = vmatpush1.bf16.msra.mxu0 %v3593
    %4780 = vmatprep.subr.bf16.mxu0 0
    %4781 = vmatpush1.bf16.msra.mxu0 %v3594
    %4782 = vmatprep.subr.bf16.mxu0 0
    %4783 = vmatpush1.bf16.msra.mxu0 %v3595
    %4784 = vmatprep.subr.bf16.mxu0 0
    %4785 = vmatpush1.bf16.msra.mxu0 %v3596
    %4786 = vmatprep.subr.bf16.mxu0 0
    %4787 = vmatpush1.bf16.msra.mxu0 %v3597
    %4788 = vmatprep.subr.bf16.mxu0 0
    %4789 = vmatpush1.bf16.msra.mxu0 %v3598
    %4790 = vmatprep.subr.bf16.mxu0 0
    %4791 = vmatpush1.bf16.msra.mxu0 %v3599
    %4792 = vmatprep.subr.bf16.mxu0 0
    %4793 = vmatpush1.bf16.msra.mxu0 %v3600
    %4794 = vmatprep.mubr.bf16.mxu0 %v2085
    %4795 = vmatmul.mubr.bf16.gmra.mrb[0].mxu0 %v2084
    %v4796 = vpop.f32.mrb[0].mxu0
    %v4797 = vadd.f32 %v4670, %v4796
    %v4798 = vpop.f32.mrb[0].mxu0
    %v4799 = vpop.f32.mrb[0].mxu0
    %v4800 = vadd.f32 %v4673, %v4799
    %v4801 = vpop.f32.mrb[0].mxu0
    %4802 = vmatprep.mubr.bf16.mxu0 %v2107
    %4803 = vmatmul.mubr.bf16.gmra.mrb[0].mxu0 %v2085
    %v4804 = vpop.f32.mrb[0].mxu0
    %v4805 = vadd.f32 %v4678, %v4804
    %v4806 = vpop.f32.mrb[0].mxu0
    %v4807 = vpop.f32.mrb[0].mxu0
    %v4808 = vadd.f32 %v4681, %v4807
    %v4809 = vpop.f32.mrb[0].mxu0
    %4810 = vmatprep.mubr.bf16.mxu0 %v2127
    %4811 = vmatmul.mubr.bf16.gmra.mrb[0].mxu0 %v2107
    %v4812 = vpop.f32.mrb[0].mxu0
    %v4813 = vadd.f32 %v4686, %v4812
    %v4814 = vpop.f32.mrb[0].mxu0
    %v4815 = vpop.f32.mrb[0].mxu0
    %v4816 = vadd.f32 %v4689, %v4815
    %v4817 = vpop.f32.mrb[0].mxu0
    %4818 = vmatprep.mubr.bf16.mxu0 %v2141
    %4819 = vmatmul.mubr.bf16.gmra.mrb[0].mxu0 %v2127
    %v4820 = vpop.f32.mrb[0].mxu0
    %v4821 = vadd.f32 %v4694, %v4820
    %v4822 = vpop.f32.mrb[0].mxu0
    %v4823 = vpop.f32.mrb[0].mxu0
    %v4824 = vadd.f32 %v4697, %v4823
    %v4825 = vpop.f32.mrb[0].mxu0
    %4826 = vmatprep.mubr.bf16.mxu0 %v2155
    %4827 = vmatmul.mubr.bf16.gmra.mrb[0].mxu0 %v2141
    %v4828 = vpop.f32.mrb[0].mxu0
    %v4829 = vadd.f32 %v4702, %v4828
    %v4830 = vpop.f32.mrb[0].mxu0
    %v4831 = vpop.f32.mrb[0].mxu0
    %v4832 = vadd.f32 %v4705, %v4831
    %v4833 = vpop.f32.mrb[0].mxu0
    %4834 = vmatprep.mubr.bf16.mxu0 %v2169
    %4835 = vmatmul.mubr.bf16.gmra.mrb[0].mxu0 %v2155
    %v4836 = vpop.f32.mrb[0].mxu0
    %v4837 = vadd.f32 %v4710, %v4836
    %v4838 = vpop.f32.mrb[0].mxu0
    %v4839 = vpop.f32.mrb[0].mxu0
    %v4840 = vadd.f32 %v4713, %v4839
    %v4841 = vpop.f32.mrb[0].mxu0
    %4842 = vmatprep.mubr.bf16.mxu0 %v2183
    %4843 = vmatmul.mubr.bf16.gmra.mrb[0].mxu0 %v2169
    %v4844 = vpop.f32.mrb[0].mxu0
    %v4845 = vadd.f32 %v4718, %v4844
    %v4846 = vpop.f32.mrb[0].mxu0
    %v4847 = vpop.f32.mrb[0].mxu0
    %v4848 = vadd.f32 %v4721, %v4847
    %v4849 = vpop.f32.mrb[0].mxu0
    %4850 = vmatprep.mubr.bf16.mxu0 %v2197
    %4851 = vmatmul.mubr.bf16.gmra.mrb[0].mxu0 %v2183
    %v4852 = vpop.f32.mrb[0].mxu0
    %v4853 = vadd.f32 %v4726, %v4852
    %v4854 = vpop.f32.mrb[0].mxu0
    %v4855 = vpop.f32.mrb[0].mxu0
    %v4856 = vadd.f32 %v4729, %v4855
    %v4857 = vpop.f32.mrb[0].mxu0
    %4858 = vmatprep.mubr.bf16.mxu0 %v2211
    %4859 = vmatmul.mubr.bf16.gmra.mrb[0].mxu0 %v2197
    %v4860 = vpop.f32.mrb[0].mxu0
    %v4861 = vadd.f32 %v4734, %v4860
    %v4862 = vpop.f32.mrb[0].mxu0
    %v4863 = vpop.f32.mrb[0].mxu0
    %v4864 = vadd.f32 %v4737, %v4863
    %v4865 = vpop.f32.mrb[0].mxu0
    %4866 = vmatprep.mubr.bf16.mxu0 %v2225
    %4867 = vmatmul.mubr.bf16.gmra.mrb[0].mxu0 %v2211
    %v4868 = vpop.f32.mrb[0].mxu0
    %v4869 = vadd.f32 %v4742, %v4868
    %v4870 = vpop.f32.mrb[0].mxu0
    %v4871 = vpop.f32.mrb[0].mxu0
    %v4872 = vadd.f32 %v4745, %v4871
    %v4873 = vpop.f32.mrb[0].mxu0
    %4874 = vmatprep.mubr.bf16.mxu0 %v2239
    %4875 = vmatmul.mubr.bf16.gmra.mrb[0].mxu0 %v2225
    %v4876 = vpop.f32.mrb[0].mxu0
    %v4877 = vpop.f32.mrb[0].mxu0
    %v4878 = vpop.f32.mrb[0].mxu0
    %v4879 = vadd.f32 %v4752, %v4878
    %v4880 = vpop.f32.mrb[0].mxu0
    %4881 = vmatprep.mubr.bf16.mxu0 %v2263
    %4882 = vmatmul.mubr.bf16.gmra.mrb[0].mxu0 %v2262
    %v4883 = vpop.f32.mrb[0].mxu0
    %v4884 = vadd.f32 %v4757, %v4883
    %v4885 = vpop.f32.mrb[0].mxu0
    %v4886 = vpop.f32.mrb[0].mxu0
    %v4887 = vpop.f32.mrb[0].mxu0
    %4888 = vdwg.mxu0
    %4889 = vmatprep.subr.bf16.mxu0 0
    %4890 = vmatpush1.bf16.msra.mxu0 %v3601
    %4891 = vmatprep.subr.bf16.mxu0 0
    %4892 = vmatpush1.bf16.msra.mxu0 %v3602
    %4893 = vmatprep.subr.bf16.mxu0 0
    %4894 = vmatpush1.bf16.msra.mxu0 %v3603
    %4895 = vmatprep.subr.bf16.mxu0 0
    %4896 = vmatpush1.bf16.msra.mxu0 %v3604
    %4897 = vmatprep.subr.bf16.mxu0 0
    %4898 = vmatpush1.bf16.msra.mxu0 %v3605
    %4899 = vmatprep.subr.bf16.mxu0 0
    %4900 = vmatpush1.bf16.msra.mxu0 %v3606
    %4901 = vmatprep.subr.bf16.mxu0 0
    %4902 = vmatpush1.bf16.msra.mxu0 %v3607
    %4903 = vmatprep.subr.bf16.mxu0 0
    %4904 = vmatpush1.bf16.msra.mxu0 %v3608
    %4905 = vmatprep.subr.bf16.mxu0 0
    %4906 = vmatpush1.bf16.msra.mxu0 %v3609
    %4907 = vmatprep.subr.bf16.mxu0 0
    %4908 = vmatpush1.bf16.msra.mxu0 %v3610
    %4909 = vmatprep.subr.bf16.mxu0 0
    %4910 = vmatpush1.bf16.msra.mxu0 %v3611
    %4911 = vmatprep.subr.bf16.mxu0 0
    %4912 = vmatpush1.bf16.msra.mxu0 %v3612
    %4913 = vmatprep.subr.bf16.mxu0 0
    %4914 = vmatpush1.bf16.msra.mxu0 %v3613
    %4915 = vmatprep.subr.bf16.mxu0 0
    %4916 = vmatpush1.bf16.msra.mxu0 %v3614
    %4917 = vmatprep.subr.bf16.mxu0 0
    %4918 = vmatpush1.bf16.msra.mxu0 %v3615
    %4919 = vmatprep.subr.bf16.mxu0 0
    %4920 = vmatpush1.bf16.msra.mxu0 %v3616
    %4921 = vmatprep.mubr.bf16.mxu0 %v2087
    %4922 = vmatmul.mubr.bf16.gmra.mrb[0].mxu0 %v2086
    %v4923 = vpop.f32.mrb[0].mxu0
    %v4924 = vadd.f32 %v4797, %v4923
    %v4925 = vpop.f32.mrb[0].mxu0
    %v4926 = vpop.f32.mrb[0].mxu0
    %v4927 = vadd.f32 %v4800, %v4926
    %v4928 = vpop.f32.mrb[0].mxu0
    %4929 = vmatprep.mubr.bf16.mxu0 %v2109
    %4930 = vmatmul.mubr.bf16.gmra.mrb[0].mxu0 %v2108
    %v4931 = vpop.f32.mrb[0].mxu0
    %v4932 = vadd.f32 %v4805, %v4931
    %v4933 = vpop.f32.mrb[0].mxu0
    %v4934 = vpop.f32.mrb[0].mxu0
    %v4935 = vadd.f32 %v4808, %v4934
    %v4936 = vpop.f32.mrb[0].mxu0
    %4937 = vmatprep.mubr.bf16.mxu0 %v2129
    %4938 = vmatmul.mubr.bf16.gmra.mrb[0].mxu0 %v2128
    %v4939 = vpop.f32.mrb[0].mxu0
    %v4940 = vadd.f32 %v4813, %v4939
    %v4941 = vpop.f32.mrb[0].mxu0
    %v4942 = vpop.f32.mrb[0].mxu0
    %v4943 = vadd.f32 %v4816, %v4942
    %v4944 = vpop.f32.mrb[0].mxu0
    %4945 = vmatprep.mubr.bf16.mxu0 %v2143
    %4946 = vmatmul.mubr.bf16.gmra.mrb[0].mxu0 %v2142
    %v4947 = vpop.f32.mrb[0].mxu0
    %v4948 = vadd.f32 %v4821, %v4947
    %v4949 = vpop.f32.mrb[0].mxu0
    %v4950 = vpop.f32.mrb[0].mxu0
    %v4951 = vadd.f32 %v4824, %v4950
    %v4952 = vpop.f32.mrb[0].mxu0
    %4953 = vmatprep.mubr.bf16.mxu0 %v2157
    %4954 = vmatmul.mubr.bf16.gmra.mrb[0].mxu0 %v2156
    %v4955 = vpop.f32.mrb[0].mxu0
    %v4956 = vadd.f32 %v4829, %v4955
    %v4957 = vpop.f32.mrb[0].mxu0
    %v4958 = vpop.f32.mrb[0].mxu0
    %v4959 = vadd.f32 %v4832, %v4958
    %v4960 = vpop.f32.mrb[0].mxu0
    %4961 = vmatprep.mubr.bf16.mxu0 %v2171
    %4962 = vmatmul.mubr.bf16.gmra.mrb[0].mxu0 %v2170
    %v4963 = vpop.f32.mrb[0].mxu0
    %v4964 = vadd.f32 %v4837, %v4963
    %v4965 = vpop.f32.mrb[0].mxu0
    %v4966 = vpop.f32.mrb[0].mxu0
    %v4967 = vadd.f32 %v4840, %v4966
    %v4968 = vpop.f32.mrb[0].mxu0
    %4969 = vmatprep.mubr.bf16.mxu0 %v2185
    %4970 = vmatmul.mubr.bf16.gmra.mrb[0].mxu0 %v2184
    %v4971 = vpop.f32.mrb[0].mxu0
    %v4972 = vadd.f32 %v4845, %v4971
    %v4973 = vpop.f32.mrb[0].mxu0
    %v4974 = vpop.f32.mrb[0].mxu0
    %v4975 = vadd.f32 %v4848, %v4974
    %v4976 = vpop.f32.mrb[0].mxu0
    %4977 = vmatprep.mubr.bf16.mxu0 %v2199
    %4978 = vmatmul.mubr.bf16.gmra.mrb[0].mxu0 %v2198
    %v4979 = vpop.f32.mrb[0].mxu0
    %v4980 = vadd.f32 %v4853, %v4979
    %v4981 = vpop.f32.mrb[0].mxu0
    %v4982 = vpop.f32.mrb[0].mxu0
    %v4983 = vadd.f32 %v4856, %v4982
    %v4984 = vpop.f32.mrb[0].mxu0
    %4985 = vmatprep.mubr.bf16.mxu0 %v2213
    %4986 = vmatmul.mubr.bf16.gmra.mrb[0].mxu0 %v2212
    %v4987 = vpop.f32.mrb[0].mxu0
    %v4988 = vadd.f32 %v4861, %v4987
    %v4989 = vpop.f32.mrb[0].mxu0
    %v4990 = vpop.f32.mrb[0].mxu0
    %v4991 = vadd.f32 %v4864, %v4990
    %v4992 = vpop.f32.mrb[0].mxu0
    %4993 = vmatprep.mubr.bf16.mxu0 %v2227
    %4994 = vmatmul.mubr.bf16.gmra.mrb[0].mxu0 %v2226
    %v4995 = vpop.f32.mrb[0].mxu0
    %v4996 = vadd.f32 %v4869, %v4995
    %v4997 = vpop.f32.mrb[0].mxu0
    %v4998 = vpop.f32.mrb[0].mxu0
    %v4999 = vadd.f32 %v4872, %v4998
    %v5000 = vpop.f32.mrb[0].mxu0
    %5001 = vmatprep.mubr.bf16.mxu0 %v2241
    %5002 = vmatmul.mubr.bf16.gmra.mrb[0].mxu0 %v2240
    %v5003 = vpop.f32.mrb[0].mxu0
    %v5004 = vpop.f32.mrb[0].mxu0
    %v5005 = vpop.f32.mrb[0].mxu0
    %v5006 = vadd.f32 %v4879, %v5005
    %v5007 = vpop.f32.mrb[0].mxu0
    %5008 = vmatprep.mubr.bf16.mxu0 %v2265
    %5009 = vmatmul.mubr.bf16.gmra.mrb[0].mxu0 %v2264
    %v5010 = vpop.f32.mrb[0].mxu0
    %v5011 = vadd.f32 %v4884, %v5010
    %v5012 = vpop.f32.mrb[0].mxu0
    %v5013 = vpop.f32.mrb[0].mxu0
    %v5014 = vpop.f32.mrb[0].mxu0
    %5015 = vdwg.mxu0
    %5016 = vmatprep.subr.bf16.mxu0 0
    %5017 = vmatpush1.bf16.msra.mxu0 %v3617
    %5018 = vmatprep.subr.bf16.mxu0 0
    %5019 = vmatpush1.bf16.msra.mxu0 %v3618
    %5020 = vmatprep.subr.bf16.mxu0 0
    %5021 = vmatpush1.bf16.msra.mxu0 %v3619
    %5022 = vmatprep.subr.bf16.mxu0 0
    %5023 = vmatpush1.bf16.msra.mxu0 %v3620
    %5024 = vmatprep.subr.bf16.mxu0 0
    %5025 = vmatpush1.bf16.msra.mxu0 %v3621
    %5026 = vmatprep.subr.bf16.mxu0 0
    %5027 = vmatpush1.bf16.msra.mxu0 %v3622
    %5028 = vmatprep.subr.bf16.mxu0 0
    %5029 = vmatpush1.bf16.msra.mxu0 %v3623
    %5030 = vmatprep.subr.bf16.mxu0 0
    %5031 = vmatpush1.bf16.msra.mxu0 %v3624
    %5032 = vmatprep.subr.bf16.mxu0 0
    %5033 = vmatpush1.bf16.msra.mxu0 %v3625
    %5034 = vmatprep.subr.bf16.mxu0 0
    %5035 = vmatpush1.bf16.msra.mxu0 %v3626
    %5036 = vmatprep.subr.bf16.mxu0 0
    %5037 = vmatpush1.bf16.msra.mxu0 %v3627
    %5038 = vmatprep.subr.bf16.mxu0 0
    %5039 = vmatpush1.bf16.msra.mxu0 %v3628
    %5040 = vmatprep.subr.bf16.mxu0 0
    %5041 = vmatpush1.bf16.msra.mxu0 %v3629
    %5042 = vmatprep.subr.bf16.mxu0 0
    %5043 = vmatpush1.bf16.msra.mxu0 %v3630
    %5044 = vmatprep.subr.bf16.mxu0 0
    %5045 = vmatpush1.bf16.msra.mxu0 %v3631
    %5046 = vmatprep.subr.bf16.mxu0 0
    %5047 = vmatpush1.bf16.msra.mxu0 %v3632
    %5048 = vmatprep.mubr.bf16.mxu0 %v2089
    %5049 = vmatmul.mubr.bf16.gmra.mrb[0].mxu0 %v2088
    %v5050 = vpop.f32.mrb[0].mxu0
    %v5051 = vadd.f32 %v4924, %v5050
    %v5052 = vpop.f32.mrb[0].mxu0
    %v5053 = vpop.f32.mrb[0].mxu0
    %v5054 = vadd.f32 %v4927, %v5053
    %v5055 = vpop.f32.mrb[0].mxu0
    %5056 = vmatprep.mubr.bf16.mxu0 %v2111
    %5057 = vmatmul.mubr.bf16.gmra.mrb[0].mxu0 %v2110
    %v5058 = vpop.f32.mrb[0].mxu0
    %v5059 = vadd.f32 %v4932, %v5058
    %v5060 = vpop.f32.mrb[0].mxu0
    %v5061 = vpop.f32.mrb[0].mxu0
    %v5062 = vadd.f32 %v4935, %v5061
    %v5063 = vpop.f32.mrb[0].mxu0
    %5064 = vmatprep.mubr.bf16.mxu0 %v2112
    %5065 = vmatmul.mubr.bf16.gmra.mrb[0].mxu0 %v2130
    %v5066 = vpop.f32.mrb[0].mxu0
    %v5067 = vadd.f32 %v4940, %v5066
    %v5068 = vpop.f32.mrb[0].mxu0
    %v5069 = vpop.f32.mrb[0].mxu0
    %v5070 = vadd.f32 %v4943, %v5069
    %v5071 = vpop.f32.mrb[0].mxu0
    %5072 = vmatprep.mubr.bf16.mxu0 %v2131
    %5073 = vmatmul.mubr.bf16.gmra.mrb[0].mxu0 %v2144
    %v5074 = vpop.f32.mrb[0].mxu0
    %v5075 = vadd.f32 %v4948, %v5074
    %v5076 = vpop.f32.mrb[0].mxu0
    %v5077 = vpop.f32.mrb[0].mxu0
    %v5078 = vadd.f32 %v4951, %v5077
    %v5079 = vpop.f32.mrb[0].mxu0
    %5080 = vmatprep.mubr.bf16.mxu0 %v2145
    %5081 = vmatmul.mubr.bf16.gmra.mrb[0].mxu0 %v2158
    %v5082 = vpop.f32.mrb[0].mxu0
    %v5083 = vadd.f32 %v4956, %v5082
    %v5084 = vpop.f32.mrb[0].mxu0
    %v5085 = vpop.f32.mrb[0].mxu0
    %v5086 = vadd.f32 %v4959, %v5085
    %v5087 = vpop.f32.mrb[0].mxu0
    %5088 = vmatprep.mubr.bf16.mxu0 %v2159
    %5089 = vmatmul.mubr.bf16.gmra.mrb[0].mxu0 %v2172
    %v5090 = vpop.f32.mrb[0].mxu0
    %v5091 = vadd.f32 %v4964, %v5090
    %v5092 = vpop.f32.mrb[0].mxu0
    %v5093 = vpop.f32.mrb[0].mxu0
    %v5094 = vadd.f32 %v4967, %v5093
    %v5095 = vpop.f32.mrb[0].mxu0
    %5096 = vmatprep.mubr.bf16.mxu0 %v2173
    %5097 = vmatmul.mubr.bf16.gmra.mrb[0].mxu0 %v2186
    %v5098 = vpop.f32.mrb[0].mxu0
    %v5099 = vadd.f32 %v4972, %v5098
    %v5100 = vpop.f32.mrb[0].mxu0
    %v5101 = vpop.f32.mrb[0].mxu0
    %v5102 = vadd.f32 %v4975, %v5101
    %v5103 = vpop.f32.mrb[0].mxu0
    %5104 = vmatprep.mubr.bf16.mxu0 %v2187
    %5105 = vmatmul.mubr.bf16.gmra.mrb[0].mxu0 %v2200
    %v5106 = vpop.f32.mrb[0].mxu0
    %v5107 = vadd.f32 %v4980, %v5106
    %v5108 = vpop.f32.mrb[0].mxu0
    %v5109 = vpop.f32.mrb[0].mxu0
    %v5110 = vadd.f32 %v4983, %v5109
    %v5111 = vpop.f32.mrb[0].mxu0
    %5112 = vmatprep.mubr.bf16.mxu0 %v2201
    %5113 = vmatmul.mubr.bf16.gmra.mrb[0].mxu0 %v2214
    %v5114 = vpop.f32.mrb[0].mxu0
    %v5115 = vadd.f32 %v4988, %v5114
    %v5116 = vpop.f32.mrb[0].mxu0
    %v5117 = vpop.f32.mrb[0].mxu0
    %v5118 = vadd.f32 %v4991, %v5117
    %v5119 = vpop.f32.mrb[0].mxu0
    %5120 = vmatprep.mubr.bf16.mxu0 %v2215
    %5121 = vmatmul.mubr.bf16.gmra.mrb[0].mxu0 %v2228
    %v5122 = vpop.f32.mrb[0].mxu0
    %v5123 = vadd.f32 %v4996, %v5122
    %v5124 = vpop.f32.mrb[0].mxu0
    %v5125 = vpop.f32.mrb[0].mxu0
    %v5126 = vadd.f32 %v4999, %v5125
    %v5127 = vpop.f32.mrb[0].mxu0
    %5128 = vmatprep.mubr.bf16.mxu0 %v2229
    %5129 = vmatmul.mubr.bf16.gmra.mrb[0].mxu0 %v2242
    %v5130 = vpop.f32.mrb[0].mxu0
    %v5131 = vpop.f32.mrb[0].mxu0
    %v5132 = vpop.f32.mrb[0].mxu0
    %v5133 = vadd.f32 %v5006, %v5132
    %v5134 = vpop.f32.mrb[0].mxu0
    %5135 = vmatprep.mubr.bf16.mxu0 %v2267
    %5136 = vmatmul.mubr.bf16.gmra.mrb[0].mxu0 %v2266
    %v5137 = vpop.f32.mrb[0].mxu0
    %v5138 = vadd.f32 %v5011, %v5137
    %v5139 = vpop.f32.mrb[0].mxu0
    %v5140 = vpop.f32.mrb[0].mxu0
    %v5141 = vpop.f32.mrb[0].mxu0
    %5142 = vdwg.mxu0
    %5143 = vmatprep.subr.bf16.mxu0 0
    %5144 = vmatpush1.bf16.msra.mxu0 %v3633
    %5145 = vmatprep.subr.bf16.mxu0 0
    %5146 = vmatpush1.bf16.msra.mxu0 %v3634
    %5147 = vmatprep.subr.bf16.mxu0 0
    %5148 = vmatpush1.bf16.msra.mxu0 %v3635
    %5149 = vmatprep.subr.bf16.mxu0 0
    %5150 = vmatpush1.bf16.msra.mxu0 %v3636
    %5151 = vmatprep.subr.bf16.mxu0 0
    %5152 = vmatpush1.bf16.msra.mxu0 %v3637
    %5153 = vmatprep.subr.bf16.mxu0 0
    %5154 = vmatpush1.bf16.msra.mxu0 %v3638
    %5155 = vmatprep.subr.bf16.mxu0 0
    %5156 = vmatpush1.bf16.msra.mxu0 %v3639
    %5157 = vmatprep.subr.bf16.mxu0 0
    %5158 = vmatpush1.bf16.msra.mxu0 %v3640
    %5159 = vmatprep.subr.bf16.mxu0 0
    %5160 = vmatpush1.bf16.msra.mxu0 %v3641
    %5161 = vmatprep.subr.bf16.mxu0 0
    %5162 = vmatpush1.bf16.msra.mxu0 %v3642
    %5163 = vmatprep.subr.bf16.mxu0 0
    %5164 = vmatpush1.bf16.msra.mxu0 %v3643
    %5165 = vmatprep.subr.bf16.mxu0 0
    %5166 = vmatpush1.bf16.msra.mxu0 %v3644
    %5167 = vmatprep.subr.bf16.mxu0 0
    %5168 = vmatpush1.bf16.msra.mxu0 %v3645
    %5169 = vmatprep.subr.bf16.mxu0 0
    %5170 = vmatpush1.bf16.msra.mxu0 %v3646
    %5171 = vmatprep.subr.bf16.mxu0 0
    %5172 = vmatpush1.bf16.msra.mxu0 %v3647
    %5173 = vmatprep.subr.bf16.mxu0 0
    %5174 = vmatpush1.bf16.msra.mxu0 %v3648
    %5175 = vmatprep.mubr.bf16.mxu0 %v2091
    %5176 = vmatmul.mubr.bf16.gmra.mrb[0].mxu0 %v2090
    %v5177 = vpop.f32.mrb[0].mxu0
    %v5178 = vadd.f32 %v5051, %v5177
    %v5179 = vpop.f32.mrb[0].mxu0
    %v5180 = vpop.f32.mrb[0].mxu0
    %v5181 = vadd.f32 %v5054, %v5180
    %v5182 = vpop.f32.mrb[0].mxu0
    %5183 = vmatprep.mubr.bf16.mxu0 %v2113
    %5184 = vmatmul.mubr.bf16.gmra.mrb[0].mxu0 %v2112
    %v5185 = vpop.f32.mrb[0].mxu0
    %v5186 = vadd.f32 %v5059, %v5185
    %v5187 = vpop.f32.mrb[0].mxu0
    %v5188 = vpop.f32.mrb[0].mxu0
    %v5189 = vadd.f32 %v5062, %v5188
    %v5190 = vpop.f32.mrb[0].mxu0
    %5191 = vmatprep.mubr.bf16.mxu0 %v2132
    %5192 = vmatmul.mubr.bf16.gmra.mrb[0].mxu0 %v2131
    %v5193 = vpop.f32.mrb[0].mxu0
    %v5194 = vadd.f32 %v5067, %v5193
    %v5195 = vpop.f32.mrb[0].mxu0
    %v5196 = vpop.f32.mrb[0].mxu0
    %v5197 = vadd.f32 %v5070, %v5196
    %v5198 = vpop.f32.mrb[0].mxu0
    %5199 = vmatprep.mubr.bf16.mxu0 %v2146
    %5200 = vmatmul.mubr.bf16.gmra.mrb[0].mxu0 %v2145
    %v5201 = vpop.f32.mrb[0].mxu0
    %v5202 = vadd.f32 %v5075, %v5201
    %v5203 = vpop.f32.mrb[0].mxu0
    %v5204 = vpop.f32.mrb[0].mxu0
    %v5205 = vadd.f32 %v5078, %v5204
    %v5206 = vpop.f32.mrb[0].mxu0
    %5207 = vmatprep.mubr.bf16.mxu0 %v2160
    %5208 = vmatmul.mubr.bf16.gmra.mrb[0].mxu0 %v2159
    %v5209 = vpop.f32.mrb[0].mxu0
    %v5210 = vadd.f32 %v5083, %v5209
    %v5211 = vpop.f32.mrb[0].mxu0
    %v5212 = vpop.f32.mrb[0].mxu0
    %v5213 = vadd.f32 %v5086, %v5212
    %v5214 = vpop.f32.mrb[0].mxu0
    %5215 = vmatprep.mubr.bf16.mxu0 %v2174
    %5216 = vmatmul.mubr.bf16.gmra.mrb[0].mxu0 %v2173
    %v5217 = vpop.f32.mrb[0].mxu0
    %v5218 = vadd.f32 %v5091, %v5217
    %v5219 = vpop.f32.mrb[0].mxu0
    %v5220 = vpop.f32.mrb[0].mxu0
    %v5221 = vadd.f32 %v5094, %v5220
    %v5222 = vpop.f32.mrb[0].mxu0
    %5223 = vmatprep.mubr.bf16.mxu0 %v2188
    %5224 = vmatmul.mubr.bf16.gmra.mrb[0].mxu0 %v2187
    %v5225 = vpop.f32.mrb[0].mxu0
    %v5226 = vadd.f32 %v5099, %v5225
    %v5227 = vpop.f32.mrb[0].mxu0
    %v5228 = vpop.f32.mrb[0].mxu0
    %v5229 = vadd.f32 %v5102, %v5228
    %v5230 = vpop.f32.mrb[0].mxu0
    %5231 = vmatprep.mubr.bf16.mxu0 %v2202
    %5232 = vmatmul.mubr.bf16.gmra.mrb[0].mxu0 %v2201
    %v5233 = vpop.f32.mrb[0].mxu0
    %v5234 = vadd.f32 %v5107, %v5233
    %v5235 = vpop.f32.mrb[0].mxu0
    %v5236 = vpop.f32.mrb[0].mxu0
    %v5237 = vadd.f32 %v5110, %v5236
    %v5238 = vpop.f32.mrb[0].mxu0
    %5239 = vmatprep.mubr.bf16.mxu0 %v2216
    %5240 = vmatmul.mubr.bf16.gmra.mrb[0].mxu0 %v2215
    %v5241 = vpop.f32.mrb[0].mxu0
    %v5242 = vadd.f32 %v5115, %v5241
    %v5243 = vpop.f32.mrb[0].mxu0
    %v5244 = vpop.f32.mrb[0].mxu0
    %v5245 = vadd.f32 %v5118, %v5244
    %v5246 = vpop.f32.mrb[0].mxu0
    %5247 = vmatprep.mubr.bf16.mxu0 %v2230
    %5248 = vmatmul.mubr.bf16.gmra.mrb[0].mxu0 %v2229
    %v5249 = vpop.f32.mrb[0].mxu0
    %v5250 = vadd.f32 %v5123, %v5249
    %v5251 = vpop.f32.mrb[0].mxu0
    %v5252 = vpop.f32.mrb[0].mxu0
    %v5253 = vadd.f32 %v5126, %v5252
    %v5254 = vpop.f32.mrb[0].mxu0
    %5255 = vmatprep.mubr.bf16.mxu0 %v2244
    %5256 = vmatmul.mubr.bf16.gmra.mrb[0].mxu0 %v2243
    %v5257 = vpop.f32.mrb[0].mxu0
    %v5258 = vpop.f32.mrb[0].mxu0
    %v5259 = vpop.f32.mrb[0].mxu0
    %v5260 = vadd.f32 %v5133, %v5259
    %v5261 = vpop.f32.mrb[0].mxu0
    %5262 = vmatprep.mubr.bf16.mxu0 %v2269
    %5263 = vmatmul.mubr.bf16.gmra.mrb[0].mxu0 %v2268
    %v5264 = vpop.f32.mrb[0].mxu0
    %v5265 = vadd.f32 %v5138, %v5264
    %v5266 = vpop.f32.mrb[0].mxu0
    %v5267 = vpop.f32.mrb[0].mxu0
    %v5268 = vpop.f32.mrb[0].mxu0
    %5269 = vdwg.mxu0
    %5270 = vmatprep.subr.bf16.mxu0 0
    %5271 = vmatpush1.bf16.msra.mxu0 %v3649
    %5272 = vmatprep.subr.bf16.mxu0 0
    %5273 = vmatpush1.bf16.msra.mxu0 %v3650
    %5274 = vmatprep.subr.bf16.mxu0 0
    %5275 = vmatpush1.bf16.msra.mxu0 %v3651
    %5276 = vmatprep.subr.bf16.mxu0 0
    %5277 = vmatpush1.bf16.msra.mxu0 %v3652
    %5278 = vmatprep.subr.bf16.mxu0 0
    %5279 = vmatpush1.bf16.msra.mxu0 %v3653
    %5280 = vmatprep.subr.bf16.mxu0 0
    %5281 = vmatpush1.bf16.msra.mxu0 %v3654
    %5282 = vmatprep.subr.bf16.mxu0 0
    %5283 = vmatpush1.bf16.msra.mxu0 %v3655
    %5284 = vmatprep.subr.bf16.mxu0 0
    %5285 = vmatpush1.bf16.msra.mxu0 %v3656
    %5286 = vmatprep.subr.bf16.mxu0 0
    %5287 = vmatpush1.bf16.msra.mxu0 %v3657
    %5288 = vmatprep.subr.bf16.mxu0 0
    %5289 = vmatpush1.bf16.msra.mxu0 %v3658
    %5290 = vmatprep.subr.bf16.mxu0 0
    %5291 = vmatpush1.bf16.msra.mxu0 %v3659
    %5292 = vmatprep.subr.bf16.mxu0 0
    %5293 = vmatpush1.bf16.msra.mxu0 %v3660
    %5294 = vmatprep.subr.bf16.mxu0 0
    %5295 = vmatpush1.bf16.msra.mxu0 %v3661
    %5296 = vmatprep.subr.bf16.mxu0 0
    %5297 = vmatpush1.bf16.msra.mxu0 %v3662
    %5298 = vmatprep.subr.bf16.mxu0 0
    %5299 = vmatpush1.bf16.msra.mxu0 %v3663
    %5300 = vmatprep.subr.bf16.mxu0 0
    %5301 = vmatpush1.bf16.msra.mxu0 %v3664
    %5302 = vmatprep.mubr.bf16.mxu0 %v2093
    %5303 = vmatmul.mubr.bf16.gmra.mrb[0].mxu0 %v2092
    %v5304 = vpop.f32.mrb[0].mxu0
    %v5305 = vadd.f32 %v5178, %v5304
    %v5306 = vpop.f32.mrb[0].mxu0
    %v5307 = vpop.f32.mrb[0].mxu0
    %v5308 = vadd.f32 %v5181, %v5307
    %v5309 = vpop.f32.mrb[0].mxu0
    %5310 = vmatprep.mubr.bf16.mxu0 %v2115
    %5311 = vmatmul.mubr.bf16.gmra.mrb[0].mxu0 %v2114
    %v5312 = vpop.f32.mrb[0].mxu0
    %v5313 = vadd.f32 %v5186, %v5312
    %v5314 = vpop.f32.mrb[0].mxu0
    %v5315 = vpop.f32.mrb[0].mxu0
    %v5316 = vadd.f32 %v5189, %v5315
    %v5317 = vpop.f32.mrb[0].mxu0
    %5318 = vmatprep.mubr.bf16.mxu0 %v2134
    %5319 = vmatmul.mubr.bf16.gmra.mrb[0].mxu0 %v2133
    %v5320 = vpop.f32.mrb[0].mxu0
    %v5321 = vadd.f32 %v5194, %v5320
    %v5322 = vpop.f32.mrb[0].mxu0
    %v5323 = vpop.f32.mrb[0].mxu0
    %v5324 = vadd.f32 %v5197, %v5323
    %v5325 = vpop.f32.mrb[0].mxu0
    %5326 = vmatprep.mubr.bf16.mxu0 %v2148
    %5327 = vmatmul.mubr.bf16.gmra.mrb[0].mxu0 %v2147
    %v5328 = vpop.f32.mrb[0].mxu0
    %v5329 = vadd.f32 %v5202, %v5328
    %v5330 = vpop.f32.mrb[0].mxu0
    %v5331 = vpop.f32.mrb[0].mxu0
    %v5332 = vadd.f32 %v5205, %v5331
    %v5333 = vpop.f32.mrb[0].mxu0
    %5334 = vmatprep.mubr.bf16.mxu0 %v2162
    %5335 = vmatmul.mubr.bf16.gmra.mrb[0].mxu0 %v2161
    %v5336 = vpop.f32.mrb[0].mxu0
    %v5337 = vadd.f32 %v5210, %v5336
    %v5338 = vpop.f32.mrb[0].mxu0
    %v5339 = vpop.f32.mrb[0].mxu0
    %v5340 = vadd.f32 %v5213, %v5339
    %v5341 = vpop.f32.mrb[0].mxu0
    %5342 = vmatprep.mubr.bf16.mxu0 %v2176
    %5343 = vmatmul.mubr.bf16.gmra.mrb[0].mxu0 %v2175
    %v5344 = vpop.f32.mrb[0].mxu0
    %v5345 = vadd.f32 %v5218, %v5344
    %v5346 = vpop.f32.mrb[0].mxu0
    %v5347 = vpop.f32.mrb[0].mxu0
    %v5348 = vadd.f32 %v5221, %v5347
    %v5349 = vpop.f32.mrb[0].mxu0
    %5350 = vmatprep.mubr.bf16.mxu0 %v2190
    %5351 = vmatmul.mubr.bf16.gmra.mrb[0].mxu0 %v2189
    %v5352 = vpop.f32.mrb[0].mxu0
    %v5353 = vadd.f32 %v5226, %v5352
    %v5354 = vpop.f32.mrb[0].mxu0
    %v5355 = vpop.f32.mrb[0].mxu0
    %v5356 = vadd.f32 %v5229, %v5355
    %v5357 = vpop.f32.mrb[0].mxu0
    %5358 = vmatprep.mubr.bf16.mxu0 %v2204
    %5359 = vmatmul.mubr.bf16.gmra.mrb[0].mxu0 %v2203
    %v5360 = vpop.f32.mrb[0].mxu0
    %v5361 = vadd.f32 %v5234, %v5360
    %v5362 = vpop.f32.mrb[0].mxu0
    %v5363 = vpop.f32.mrb[0].mxu0
    %v5364 = vadd.f32 %v5237, %v5363
    %v5365 = vpop.f32.mrb[0].mxu0
    %5366 = vmatprep.mubr.bf16.mxu0 %v2218
    %5367 = vmatmul.mubr.bf16.gmra.mrb[0].mxu0 %v2217
    %v5368 = vpop.f32.mrb[0].mxu0
    %v5369 = vadd.f32 %v5242, %v5368
    %v5370 = vpop.f32.mrb[0].mxu0
    %v5371 = vpop.f32.mrb[0].mxu0
    %v5372 = vadd.f32 %v5245, %v5371
    %v5373 = vpop.f32.mrb[0].mxu0
    %5374 = vmatprep.mubr.bf16.mxu0 %v2232
    %5375 = vmatmul.mubr.bf16.gmra.mrb[0].mxu0 %v2231
    %v5376 = vpop.f32.mrb[0].mxu0
    %v5377 = vadd.f32 %v5250, %v5376
    %v5378 = vpop.f32.mrb[0].mxu0
    %v5379 = vpop.f32.mrb[0].mxu0
    %v5380 = vadd.f32 %v5253, %v5379
    %v5381 = vpop.f32.mrb[0].mxu0
    %5382 = vmatprep.mubr.bf16.mxu0 %v2246
    %5383 = vmatmul.mubr.bf16.gmra.mrb[0].mxu0 %v2245
    %v5384 = vpop.f32.mrb[0].mxu0
    %v5385 = vpop.f32.mrb[0].mxu0
    %v5386 = vpop.f32.mrb[0].mxu0
    %v5387 = vadd.f32 %v5260, %v5386
    %v5388 = vpop.f32.mrb[0].mxu0
    %5389 = vmatprep.mubr.bf16.mxu0 %v2271
    %5390 = vmatmul.mubr.bf16.gmra.mrb[0].mxu0 %v2270
    %v5391 = vpop.f32.mrb[0].mxu0
    %v5392 = vadd.f32 %v5265, %v5391
    %v5393 = vpop.f32.mrb[0].mxu0
    %v5394 = vpop.f32.mrb[0].mxu0
    %v5395 = vpop.f32.mrb[0].mxu0
    %5396 = vdwg.mxu0
    %5397 = vmatprep.subr.bf16.mxu0 0
    %5398 = vmatpush1.bf16.msra.mxu0 %v3665
    %5399 = vmatprep.subr.bf16.mxu0 0
    %5400 = vmatpush1.bf16.msra.mxu0 %v3666
    %5401 = vmatprep.subr.bf16.mxu0 0
    %5402 = vmatpush1.bf16.msra.mxu0 %v3667
    %5403 = vmatprep.subr.bf16.mxu0 0
    %5404 = vmatpush1.bf16.msra.mxu0 %v3668
    %5405 = vmatprep.subr.bf16.mxu0 0
    %5406 = vmatpush1.bf16.msra.mxu0 %v3669
    %5407 = vmatprep.subr.bf16.mxu0 0
    %5408 = vmatpush1.bf16.msra.mxu0 %v3670
    %5409 = vmatprep.subr.bf16.mxu0 0
    %5410 = vmatpush1.bf16.msra.mxu0 %v3671
    %5411 = vmatprep.subr.bf16.mxu0 0
    %5412 = vmatpush1.bf16.msra.mxu0 %v3672
    %5413 = vmatprep.subr.bf16.mxu0 0
    %5414 = vmatpush1.bf16.msra.mxu0 0
    %5415 = vmatprep.subr.bf16.mxu0 0
    %5416 = vmatpush1.bf16.msra.mxu0 0
    %5417 = vmatprep.subr.bf16.mxu0 0
    %5418 = vmatpush1.bf16.msra.mxu0 0
    %5419 = vmatprep.subr.bf16.mxu0 0
    %5420 = vmatpush1.bf16.msra.mxu0 0
    %5421 = vmatprep.subr.bf16.mxu0 0
    %5422 = vmatpush1.bf16.msra.mxu0 0
    %5423 = vmatprep.subr.bf16.mxu0 0
    %5424 = vmatpush1.bf16.msra.mxu0 0
    %5425 = vmatprep.subr.bf16.mxu0 0
    %5426 = vmatpush1.bf16.msra.mxu0 0
    %5427 = vmatprep.subr.bf16.mxu0 0
    %5428 = vmatpush1.bf16.msra.mxu0 0
    %5429 = vmatprep.mubr.bf16.mxu0 0
    %5430 = vmatmul.mubr.bf16.gmra.mrb[0].mxu0 %v2094
    %v5431 = vpop.f32.mrb[0].mxu0
    %v5432 = vadd.f32 %v5305, %v5431
    %v5433 = vpop.f32.mrb[0].mxu0
    %v5434 = vpop.f32.mrb[0].mxu0
    %v5435 = vadd.f32 %v5308, %v5434
    %v5436 = vpop.f32.mrb[0].mxu0
    %5437 = vmatprep.mubr.bf16.mxu0 0
    %5438 = vmatmul.mubr.bf16.gmra.mrb[0].mxu0 %v2116
    %v5439 = vpop.f32.mrb[0].mxu0
    %v5440 = vadd.f32 %v5313, %v5439
    %v5441 = vpop.f32.mrb[0].mxu0
    %v5442 = vpop.f32.mrb[0].mxu0
    %v5443 = vadd.f32 %v5316, %v5442
    %v5444 = vpop.f32.mrb[0].mxu0
    %5445 = vmatprep.mubr.bf16.mxu0 0
    %5446 = vmatmul.mubr.bf16.gmra.mrb[0].mxu0 %v2135
    %v5447 = vpop.f32.mrb[0].mxu0
    %v5448 = vadd.f32 %v5321, %v5447
    %v5449 = vpop.f32.mrb[0].mxu0
    %v5450 = vpop.f32.mrb[0].mxu0
    %v5451 = vadd.f32 %v5324, %v5450
    %v5452 = vpop.f32.mrb[0].mxu0
    %5453 = vmatprep.mubr.bf16.mxu0 0
    %5454 = vmatmul.mubr.bf16.gmra.mrb[0].mxu0 %v2149
    %v5455 = vpop.f32.mrb[0].mxu0
    %v5456 = vadd.f32 %v5329, %v5455
    %v5457 = vpop.f32.mrb[0].mxu0
    %v5458 = vpop.f32.mrb[0].mxu0
    %v5459 = vadd.f32 %v5332, %v5458
    %v5460 = vpop.f32.mrb[0].mxu0
    %5461 = vmatprep.mubr.bf16.mxu0 0
    %5462 = vmatmul.mubr.bf16.gmra.mrb[0].mxu0 %v2163
    %v5463 = vpop.f32.mrb[0].mxu0
    %v5464 = vadd.f32 %v5337, %v5463
    %v5465 = vpop.f32.mrb[0].mxu0
    %v5466 = vpop.f32.mrb[0].mxu0
    %v5467 = vadd.f32 %v5340, %v5466
    %v5468 = vpop.f32.mrb[0].mxu0
    %5469 = vmatprep.mubr.bf16.mxu0 0
    %5470 = vmatmul.mubr.bf16.gmra.mrb[0].mxu0 %v2177
    %v5471 = vpop.f32.mrb[0].mxu0
    %v5472 = vadd.f32 %v5345, %v5471
    %v5473 = vpop.f32.mrb[0].mxu0
    %v5474 = vpop.f32.mrb[0].mxu0
    %v5475 = vadd.f32 %v5348, %v5474
    %v5476 = vpop.f32.mrb[0].mxu0
    %5477 = vmatprep.mubr.bf16.mxu0 0
    %5478 = vmatmul.mubr.bf16.gmra.mrb[0].mxu0 %v2191
    %v5479 = vpop.f32.mrb[0].mxu0
    %v5480 = vadd.f32 %v5353, %v5479
    %v5481 = vpop.f32.mrb[0].mxu0
    %v5482 = vpop.f32.mrb[0].mxu0
    %v5483 = vadd.f32 %v5356, %v5482
    %v5484 = vpop.f32.mrb[0].mxu0
    %5485 = vmatprep.mubr.bf16.mxu0 0
    %5486 = vmatmul.mubr.bf16.gmra.mrb[0].mxu0 %v2205
    %v5487 = vpop.f32.mrb[0].mxu0
    %v5488 = vadd.f32 %v5361, %v5487
    %v5489 = vpop.f32.mrb[0].mxu0
    %v5490 = vpop.f32.mrb[0].mxu0
    %v5491 = vadd.f32 %v5364, %v5490
    %v5492 = vpop.f32.mrb[0].mxu0
    %5493 = vmatprep.mubr.bf16.mxu0 0
    %5494 = vmatmul.mubr.bf16.gmra.mrb[0].mxu0 %v2219
    %v5495 = vpop.f32.mrb[0].mxu0
    %v5496 = vadd.f32 %v5369, %v5495
    %v5497 = vpop.f32.mrb[0].mxu0
    %v5498 = vpop.f32.mrb[0].mxu0
    %v5499 = vadd.f32 %v5372, %v5498
    %v5500 = vpop.f32.mrb[0].mxu0
    %5501 = vmatprep.mubr.bf16.mxu0 0
    %5502 = vmatmul.mubr.bf16.gmra.mrb[0].mxu0 %v2233
    %v5503 = vpop.f32.mrb[0].mxu0
    %v5504 = vadd.f32 %v5377, %v5503
    %v5505 = vpop.f32.mrb[0].mxu0
    %v5506 = vpop.f32.mrb[0].mxu0
    %v5507 = vadd.f32 %v5380, %v5506
    %v5508 = vpop.f32.mrb[0].mxu0
    %5509 = vmatprep.mubr.bf16.mxu0 0
    %5510 = vmatmul.mubr.bf16.gmra.mrb[0].mxu0 %v2247
    %v5511 = vpop.f32.mrb[0].mxu0
    %v5512 = vpop.f32.mrb[0].mxu0
    %v5513 = vpop.f32.mrb[0].mxu0
    %v5514 = vadd.f32 %v5387, %v5513
    %v5515 = vpop.f32.mrb[0].mxu0
    %5516 = vmatprep.mubr.bf16.mxu0 0
    %5517 = vmatmul.mubr.bf16.gmra.mrb[0].mxu0 %v2272
    %v5518 = vpop.f32.mrb[0].mxu0
    %v5519 = vadd.f32 %v5392, %v5518
    %v5520 = vpop.f32.mrb[0].mxu0
    %v5521 = vpop.f32.mrb[0].mxu0
    %v5522 = vpop.f32.mrb[0].mxu0
    %5523 = vdwg.mxu0
    %v5535 = vrot.slane %v5432, 2
    %v5536 = vrot.slane %v5435, 2
    %v5537 = vsel %vm1494, %v5535, %v5536
    %v5538 = vrot.slane %v5440, 2
    %v5539 = vsel %vm1494, %v5536, %v5538
    %v5540 = vrot.slane %v5456, 2
    %v5541 = vrot.slane %v5459, 2
    %v5542 = vsel %vm1494, %v5540, %v5541
    %v5543 = vrot.slane %v5464, 2
    %v5544 = vsel %vm1494, %v5541, %v5543
    %v5545 = vrot.slane %v5480, 2
    %v5546 = vrot.slane %v5483, 2
    %v5547 = vsel %vm1494, %v5545, %v5546
    %v5548 = vrot.slane %v5488, 2
    %v5549 = vsel %vm1494, %v5546, %v5548
    %v5550 = vrot.slane %v5504, 2
    %v5551 = vrot.slane %v5507, 2
    %v5552 = vsel %vm1494, %v5550, %v5551
    %v5561 = vmax.f32 %v5432, %v5537
    %v5562 = vmax.f32 %v5435, %v5539
    %v5563 = vmax.f32 %v5456, %v5542
    %v5564 = vmax.f32 %v5459, %v5544
    %v5565 = vmax.f32 %v5480, %v5547
    %v5566 = vmax.f32 %v5483, %v5549
    %v5567 = vmax.f32 %v5504, %v5552
    %v5568 = vmax.f32 %v5507, %v5551
    %v5580 = vrot.slane %v5443, 2
    %v5581 = vrot.slane %v5448, 2
    %v5582 = vsel %vm1494, %v5580, %v5581
    %v5583 = vrot.slane %v5451, 2
    %v5584 = vsel %vm1494, %v5581, %v5583
    %v5585 = vrot.slane %v5467, 2
    %v5586 = vrot.slane %v5472, 2
    %v5587 = vsel %vm1494, %v5585, %v5586
    %v5588 = vrot.slane %v5475, 2
    %v5589 = vsel %vm1494, %v5586, %v5588
    %v5590 = vrot.slane %v5491, 2
    %v5591 = vrot.slane %v5496, 2
    %v5592 = vsel %vm1494, %v5590, %v5591
    %v5593 = vrot.slane %v5499, 2
    %v5594 = vsel %vm1494, %v5591, %v5593
    %v5595 = vrot.slane %v5514, 2
    %v5596 = vrot.slane %v5519, 2
    %v5597 = vsel %vm1494, %v5595, %v5596
    %v5606 = vmax.f32 %v5443, %v5582
    %v5607 = vmax.f32 %v5448, %v5584
    %v5608 = vmax.f32 %v5467, %v5587
    %v5609 = vmax.f32 %v5472, %v5589
    %v5610 = vmax.f32 %v5491, %v5592
    %v5611 = vmax.f32 %v5496, %v5594
    %v5612 = vmax.f32 %v5514, %v5597
    %v5613 = vmax.f32 %v5519, %v5596
    %v5614 = vmax.f32 %v5561, %v5606
    %v5615 = vmax.f32 %v5562, %v5607
    %v5616 = vmax.f32 %v5563, %v5608
    %v5617 = vmax.f32 %v5564, %v5609
    %v5618 = vmax.f32 %v5565, %v5610
    %v5619 = vmax.f32 %v5566, %v5611
    %v5620 = vmax.f32 %v5567, %v5612
    %v5621 = vmax.f32 %v5568, %v5613
    %v5622 = vld [vmem:[%s4] sm:$0x1]
    %v5624 = vlaneseq
    %v5625 = vshrl.u32 %v5624, 7
    %v5626 = vsub.s32 0, %v5625
    %v5627 = vrot.slane %v5622, %v5626
    %v5629 = vadd.f32 %v5614, %v5627
    %v5630 = vadd.f32 %v5615, %v5627
    %v5631 = vadd.f32 %v5616, %v5627
    %v5632 = vadd.f32 %v5617, %v5627
    %v5633 = vadd.f32 %v5618, %v5627
    %v5634 = vadd.f32 %v5619, %v5627
    %v5635 = vadd.f32 %v5620, %v5627
    %v5636 = vadd.f32 %v5621, %v5627
    %v5637 = vmax.f32 %v5629, 0.0
    %v5638 = vmax.f32 %v5630, 0.0
    %v5639 = vmax.f32 %v5631, 0.0
    %v5640 = vmax.f32 %v5632, 0.0
    %v5641 = vmax.f32 %v5633, 0.0
    %v5642 = vmax.f32 %v5634, 0.0
    %v5643 = vmax.f32 %v5635, 0.0
    %v5644 = vmax.f32 %v5636, 0.0
    %v5646 = vrot.slane %v5637, 4
    %v5649 = vrot.slane %v5638, 4
    %v5652 = vrot.slane %v5639, 4
    %v5655 = vrot.slane %v5640, 4
    %v5658 = vrot.slane %v5641, 4
    %v5661 = vrot.slane %v5642, 4
    %v5664 = vrot.slane %v5643, 4
    %v5667 = vrot.slane %v5644, 4
    %v5669 = vpack.c.bf16 %v5637, %v5637
    %v5670 = vpack.c.bf16 %v5646, %v5646
    %v5671 = vpack.c.bf16 %v5638, %v5638
    %v5672 = vpack.c.bf16 %v5649, %v5649
    %v5673 = vpack.c.bf16 %v5639, %v5639
    %v5674 = vpack.c.bf16 %v5652, %v5652
    %v5675 = vpack.c.bf16 %v5640, %v5640
    %v5676 = vpack.c.bf16 %v5655, %v5655
    %v5677 = vpack.c.bf16 %v5641, %v5641
    %v5678 = vpack.c.bf16 %v5658, %v5658
    %v5679 = vpack.c.bf16 %v5642, %v5642
    %v5680 = vpack.c.bf16 %v5661, %v5661
    %v5681 = vpack.c.bf16 %v5643, %v5643
    %v5682 = vpack.c.bf16 %v5664, %v5664
    %v5683 = vpack.c.bf16 %v5644, %v5644
    %v5684 = vpack.c.bf16 %v5667, %v5667
    %v5685 = vld [vmem:[%s5] sm:$0xff]
    %v5686 = vld [vmem:[%s5 + $0x8] sm:$0xff]
    %v5687 = vld [vmem:[%s5 + $0x10] sm:$0xff]
    %v5688 = vld [vmem:[%s5 + $0x18] sm:$0xff]
    %v5689 = vld [vmem:[%s5 + $0x20] sm:$0xff]
    %v5690 = vld [vmem:[%s5 + $0x28] sm:$0xff]
    %v5691 = vld [vmem:[%s5 + $0x30] sm:$0xff]
    %v5692 = vld [vmem:[%s5 + $0x38] sm:$0xff]
    %v5693 = vld [vmem:[%s5 + $0x40] sm:$0xff]
    %v5694 = vld [vmem:[%s5 + $0x48] sm:$0xff]
    %v5695 = vld [vmem:[%s5 + $0x50] sm:$0xff]
    %v5696 = vld [vmem:[%s5 + $0x58] sm:$0xff]
    %v5697 = vld [vmem:[%s5 + $0x60] sm:$0xff]
    %v5698 = vld [vmem:[%s5 + $0x68] sm:$0xff]
    %v5699 = vld [vmem:[%s5 + $0x70] sm:$0xff]
    %v5700 = vld [vmem:[%s5 + $0x78] sm:$0xff]
    %v5701 = vld [vmem:[%s5 + $0x80] sm:$0xff]
    %v5702 = vld [vmem:[%s5 + $0x88] sm:$0xff]
    %v5703 = vld [vmem:[%s5 + $0x90] sm:$0xff]
    %v5704 = vld [vmem:[%s5 + $0x98] sm:$0xff]
    %v5705 = vld [vmem:[%s5 + $0xa0] sm:$0xff]
    %v5706 = vld [vmem:[%s5 + $0xa8] sm:$0xff]
    %v5707 = vld [vmem:[%s5 + $0xb0] sm:$0xff]
    %v5708 = vld [vmem:[%s5 + $0xb8] sm:$0xff]
    %v5709 = vld [vmem:[%s5 + $0xc0] sm:$0xff]
    %v5710 = vld [vmem:[%s5 + $0xc8] sm:$0xff]
    %v5711 = vld [vmem:[%s5 + $0xd0] sm:$0xff]
    %v5712 = vld [vmem:[%s5 + $0xd8] sm:$0xff]
    %v5713 = vld [vmem:[%s5 + $0xe0] sm:$0xff]
    %v5714 = vld [vmem:[%s5 + $0xe8] sm:$0xff]
    %v5715 = vld [vmem:[%s5 + $0xf0] sm:$0xff]
    %v5716 = vld [vmem:[%s5 + $0xf8] sm:$0xff]
    %v5717 = vld [vmem:[%s5 + $0x100] sm:$0xff]
    %v5718 = vld [vmem:[%s5 + $0x108] sm:$0xff]
    %v5719 = vld [vmem:[%s5 + $0x110] sm:$0xff]
    %v5720 = vld [vmem:[%s5 + $0x118] sm:$0xff]
    %v5721 = vld [vmem:[%s5 + $0x120] sm:$0xff]
    %v5722 = vld [vmem:[%s5 + $0x128] sm:$0xff]
    %v5723 = vld [vmem:[%s5 + $0x130] sm:$0xff]
    %v5724 = vld [vmem:[%s5 + $0x138] sm:$0xff]
    %v5725 = vld [vmem:[%s5 + $0x140] sm:$0xff]
    %v5726 = vld [vmem:[%s5 + $0x148] sm:$0xff]
    %v5727 = vld [vmem:[%s5 + $0x150] sm:$0xff]
    %v5728 = vld [vmem:[%s5 + $0x158] sm:$0xff]
    %v5729 = vld [vmem:[%s5 + $0x160] sm:$0xff]
    %v5730 = vld [vmem:[%s5 + $0x168] sm:$0xff]
    %v5731 = vld [vmem:[%s5 + $0x170] sm:$0xff]
    %v5732 = vld [vmem:[%s5 + $0x178] sm:$0xff]
    %v5733 = vld [vmem:[%s5 + $0x180] sm:$0xff]
    %v5734 = vld [vmem:[%s5 + $0x188] sm:$0xff]
    %v5735 = vld [vmem:[%s5 + $0x190] sm:$0xff]
    %v5736 = vld [vmem:[%s5 + $0x198] sm:$0xff]
    %v5737 = vld [vmem:[%s5 + $0x1a0] sm:$0xff]
    %v5738 = vld [vmem:[%s5 + $0x1a8] sm:$0xff]
    %v5739 = vld [vmem:[%s5 + $0x1b0] sm:$0xff]
    %v5740 = vld [vmem:[%s5 + $0x1b8] sm:$0xff]
    %v5741 = vld [vmem:[%s5 + $0x1c0] sm:$0xff]
    %v5742 = vld [vmem:[%s5 + $0x1c8] sm:$0xff]
    %v5743 = vld [vmem:[%s5 + $0x1d0] sm:$0xff]
    %v5744 = vld [vmem:[%s5 + $0x1d8] sm:$0xff]
    %v5745 = vld [vmem:[%s5 + $0x1e0] sm:$0xff]
    %v5746 = vld [vmem:[%s5 + $0x1e8] sm:$0xff]
    %v5747 = vld [vmem:[%s5 + $0x1f0] sm:$0xff]
    %v5748 = vld [vmem:[%s5 + $0x1f8] sm:$0xff]
    %v5749 = vld [vmem:[%s5 + $0x200] sm:$0xff]
    %v5750 = vld [vmem:[%s5 + $0x208] sm:$0xff]
    %v5751 = vld [vmem:[%s5 + $0x210] sm:$0xff]
    %v5752 = vld [vmem:[%s5 + $0x218] sm:$0xff]
    %v5753 = vld [vmem:[%s5 + $0x220] sm:$0xff]
    %v5754 = vld [vmem:[%s5 + $0x228] sm:$0xff]
    %v5755 = vld [vmem:[%s5 + $0x230] sm:$0xff]
    %v5756 = vld [vmem:[%s5 + $0x238] sm:$0xff]
    %v5757 = vld [vmem:[%s5 + $0x240] sm:$0xff]
    %v5758 = vld [vmem:[%s5 + $0x248] sm:$0xff]
    %v5759 = vld [vmem:[%s5 + $0x250] sm:$0xff]
    %v5760 = vld [vmem:[%s5 + $0x258] sm:$0xff]
    %v5761 = vld [vmem:[%s5 + $0x260] sm:$0xff]
    %v5762 = vld [vmem:[%s5 + $0x268] sm:$0xff]
    %v5763 = vld [vmem:[%s5 + $0x270] sm:$0xff]
    %v5764 = vld [vmem:[%s5 + $0x278] sm:$0xff]
    %v5765 = vld [vmem:[%s5 + $0x280] sm:$0xff]
    %v5766 = vld [vmem:[%s5 + $0x288] sm:$0xff]
    %v5767 = vld [vmem:[%s5 + $0x290] sm:$0xff]
    %v5768 = vld [vmem:[%s5 + $0x298] sm:$0xff]
    %v5769 = vld [vmem:[%s5 + $0x2a0] sm:$0xff]
    %v5770 = vld [vmem:[%s5 + $0x2a8] sm:$0xff]
    %v5771 = vld [vmem:[%s5 + $0x2b0] sm:$0xff]
    %v5772 = vld [vmem:[%s5 + $0x2b8] sm:$0xff]
    %v5773 = vld [vmem:[%s5 + $0x2c0] sm:$0xff]
    %v5774 = vld [vmem:[%s5 + $0x2c8] sm:$0xff]
    %v5775 = vld [vmem:[%s5 + $0x2d0] sm:$0xff]
    %v5776 = vld [vmem:[%s5 + $0x2d8] sm:$0xff]
    %v5777 = vld [vmem:[%s5 + $0x2e0] sm:$0xff]
    %v5778 = vld [vmem:[%s5 + $0x2e8] sm:$0xff]
    %v5779 = vld [vmem:[%s5 + $0x2f0] sm:$0xff]
    %v5780 = vld [vmem:[%s5 + $0x2f8] sm:$0xff]
    %v5781 = vld [vmem:[%s5 + $0x300] sm:$0xff]
    %v5782 = vld [vmem:[%s5 + $0x308] sm:$0xff]
    %v5783 = vld [vmem:[%s5 + $0x310] sm:$0xff]
    %v5784 = vld [vmem:[%s5 + $0x318] sm:$0xff]
    %v5785 = vld [vmem:[%s5 + $0x320] sm:$0xff]
    %v5786 = vld [vmem:[%s5 + $0x328] sm:$0xff]
    %v5787 = vld [vmem:[%s5 + $0x330] sm:$0xff]
    %v5788 = vld [vmem:[%s5 + $0x338] sm:$0xff]
    %v5789 = vld [vmem:[%s5 + $0x340] sm:$0xff]
    %v5790 = vld [vmem:[%s5 + $0x348] sm:$0xff]
    %v5791 = vld [vmem:[%s5 + $0x350] sm:$0xff]
    %v5792 = vld [vmem:[%s5 + $0x358] sm:$0xff]
    %v5793 = vld [vmem:[%s5 + $0x360] sm:$0xff]
    %v5794 = vld [vmem:[%s5 + $0x368] sm:$0xff]
    %v5795 = vld [vmem:[%s5 + $0x370] sm:$0xff]
    %v5796 = vld [vmem:[%s5 + $0x378] sm:$0xff]
    %v5797 = vld [vmem:[%s5 + $0x380] sm:$0xff]
    %v5798 = vld [vmem:[%s5 + $0x388] sm:$0xff]
    %v5799 = vld [vmem:[%s5 + $0x390] sm:$0xff]
    %v5800 = vld [vmem:[%s5 + $0x398] sm:$0xff]
    %v5801 = vld [vmem:[%s5 + $0x3a0] sm:$0xff]
    %v5802 = vld [vmem:[%s5 + $0x3a8] sm:$0xff]
    %v5803 = vld [vmem:[%s5 + $0x3b0] sm:$0xff]
    %v5804 = vld [vmem:[%s5 + $0x3b8] sm:$0xff]
    %v5805 = vld [vmem:[%s5 + $0x3c0] sm:$0xff]
    %v5806 = vld [vmem:[%s5 + $0x3c8] sm:$0xff]
    %v5807 = vld [vmem:[%s5 + $0x3d0] sm:$0xff]
    %v5808 = vld [vmem:[%s5 + $0x3d8] sm:$0xff]
    %v5809 = vld [vmem:[%s5 + $0x3e0] sm:$0xff]
    %v5810 = vld [vmem:[%s5 + $0x3e8] sm:$0xff]
    %v5811 = vld [vmem:[%s5 + $0x3f0] sm:$0xff]
    %v5812 = vld [vmem:[%s5 + $0x3f8] sm:$0xff]
    %v5813 = vld [vmem:[%s5 + $0x400] sm:$0xff]
    %v5814 = vld [vmem:[%s5 + $0x408] sm:$0xff]
    %v5815 = vld [vmem:[%s5 + $0x410] sm:$0xff]
    %v5816 = vld [vmem:[%s5 + $0x418] sm:$0xff]
    %v5817 = vld [vmem:[%s5 + $0x420] sm:$0xff]
    %v5818 = vld [vmem:[%s5 + $0x428] sm:$0xff]
    %v5819 = vld [vmem:[%s5 + $0x430] sm:$0xff]
    %v5820 = vld [vmem:[%s5 + $0x438] sm:$0xff]
    %v5821 = vld [vmem:[%s5 + $0x440] sm:$0xff]
    %v5822 = vld [vmem:[%s5 + $0x448] sm:$0xff]
    %v5823 = vld [vmem:[%s5 + $0x450] sm:$0xff]
    %v5824 = vld [vmem:[%s5 + $0x458] sm:$0xff]
    %v5825 = vld [vmem:[%s5 + $0x460] sm:$0xff]
    %v5826 = vld [vmem:[%s5 + $0x468] sm:$0xff]
    %v5827 = vld [vmem:[%s5 + $0x470] sm:$0xff]
    %v5828 = vld [vmem:[%s5 + $0x478] sm:$0xff]
    %v5829 = vld [vmem:[%s5 + $0x480] sm:$0xff]
    %v5830 = vld [vmem:[%s5 + $0x488] sm:$0xff]
    %v5831 = vld [vmem:[%s5 + $0x490] sm:$0xff]
    %v5832 = vld [vmem:[%s5 + $0x498] sm:$0xff]
    %v5833 = vld [vmem:[%s5 + $0x4a0] sm:$0xff]
    %v5834 = vld [vmem:[%s5 + $0x4a8] sm:$0xff]
    %v5835 = vld [vmem:[%s5 + $0x4b0] sm:$0xff]
    %v5836 = vld [vmem:[%s5 + $0x4b8] sm:$0xff]
    %v5837 = vld [vmem:[%s5 + $0x4c0] sm:$0xff]
    %v5838 = vld [vmem:[%s5 + $0x4c8] sm:$0xff]
    %v5839 = vld [vmem:[%s5 + $0x4d0] sm:$0xff]
    %v5840 = vld [vmem:[%s5 + $0x4d8] sm:$0xff]
    %v5841 = vld [vmem:[%s5 + $0x4e0] sm:$0xff]
    %v5842 = vld [vmem:[%s5 + $0x4e8] sm:$0xff]
    %v5843 = vld [vmem:[%s5 + $0x4f0] sm:$0xff]
    %v5844 = vld [vmem:[%s5 + $0x4f8] sm:$0xff]
    %v5845 = vld [vmem:[%s5 + $0x500] sm:$0xff]
    %v5846 = vld [vmem:[%s5 + $0x508] sm:$0xff]
    %v5847 = vld [vmem:[%s5 + $0x510] sm:$0xff]
    %v5848 = vld [vmem:[%s5 + $0x518] sm:$0xff]
    %v5849 = vld [vmem:[%s5 + $0x520] sm:$0xff]
    %v5850 = vld [vmem:[%s5 + $0x528] sm:$0xff]
    %v5851 = vld [vmem:[%s5 + $0x530] sm:$0xff]
    %v5852 = vld [vmem:[%s5 + $0x538] sm:$0xff]
    %v5853 = vld [vmem:[%s5 + $0x540] sm:$0xff]
    %v5854 = vld [vmem:[%s5 + $0x548] sm:$0xff]
    %v5855 = vld [vmem:[%s5 + $0x550] sm:$0xff]
    %v5856 = vld [vmem:[%s5 + $0x558] sm:$0xff]
    %v5857 = vld [vmem:[%s5 + $0x560] sm:$0xff]
    %v5858 = vld [vmem:[%s5 + $0x568] sm:$0xff]
    %v5859 = vld [vmem:[%s5 + $0x570] sm:$0xff]
    %v5860 = vld [vmem:[%s5 + $0x578] sm:$0xff]
    %v5861 = vld [vmem:[%s5 + $0x580] sm:$0xff]
    %v5862 = vld [vmem:[%s5 + $0x588] sm:$0xff]
    %v5863 = vld [vmem:[%s5 + $0x590] sm:$0xff]
    %v5864 = vld [vmem:[%s5 + $0x598] sm:$0xff]
    %v5865 = vld [vmem:[%s5 + $0x5a0] sm:$0xff]
    %v5866 = vld [vmem:[%s5 + $0x5a8] sm:$0xff]
    %v5867 = vld [vmem:[%s5 + $0x5b0] sm:$0xff]
    %v5868 = vld [vmem:[%s5 + $0x5b8] sm:$0xff]
    %v5869 = vld [vmem:[%s5 + $0x5c0] sm:$0xff]
    %v5870 = vld [vmem:[%s5 + $0x5c8] sm:$0xff]
    %v5871 = vld [vmem:[%s5 + $0x5d0] sm:$0xff]
    %v5872 = vld [vmem:[%s5 + $0x5d8] sm:$0xff]
    %v5873 = vld [vmem:[%s5 + $0x5e0] sm:$0xff]
    %v5874 = vld [vmem:[%s5 + $0x5e8] sm:$0xff]
    %v5875 = vld [vmem:[%s5 + $0x5f0] sm:$0xff]
    %v5876 = vld [vmem:[%s5 + $0x5f8] sm:$0xff]
    %v5877 = vld [vmem:[%s5 + $0x600] sm:$0xff]
    %v5878 = vld [vmem:[%s5 + $0x608] sm:$0xff]
    %v5879 = vld [vmem:[%s5 + $0x610] sm:$0xff]
    %v5880 = vld [vmem:[%s5 + $0x618] sm:$0xff]
    %v5881 = vld [vmem:[%s5 + $0x620] sm:$0xff]
    %v5882 = vld [vmem:[%s5 + $0x628] sm:$0xff]
    %v5883 = vld [vmem:[%s5 + $0x630] sm:$0xff]
    %v5884 = vld [vmem:[%s5 + $0x638] sm:$0xff]
    %v5885 = vld [vmem:[%s5 + $0x640] sm:$0xff]
    %v5886 = vld [vmem:[%s5 + $0x648] sm:$0xff]
    %v5887 = vld [vmem:[%s5 + $0x650] sm:$0xff]
    %v5888 = vld [vmem:[%s5 + $0x658] sm:$0xff]
    %v5889 = vld [vmem:[%s5 + $0x660] sm:$0xff]
    %v5890 = vld [vmem:[%s5 + $0x668] sm:$0xff]
    %v5891 = vld [vmem:[%s5 + $0x670] sm:$0xff]
    %v5892 = vld [vmem:[%s5 + $0x678] sm:$0xff]
    %v5893 = vld [vmem:[%s5 + $0x680] sm:$0xff]
    %v5894 = vld [vmem:[%s5 + $0x688] sm:$0xff]
    %v5895 = vld [vmem:[%s5 + $0x690] sm:$0xff]
    %v5896 = vld [vmem:[%s5 + $0x698] sm:$0xff]
    %v5897 = vld [vmem:[%s5 + $0x6a0] sm:$0xff]
    %v5898 = vld [vmem:[%s5 + $0x6a8] sm:$0xff]
    %v5899 = vld [vmem:[%s5 + $0x6b0] sm:$0xff]
    %v5900 = vld [vmem:[%s5 + $0x6b8] sm:$0xff]
    %v5901 = vld [vmem:[%s5 + $0x6c0] sm:$0xff]
    %v5902 = vld [vmem:[%s5 + $0x6c8] sm:$0xff]
    %v5903 = vld [vmem:[%s5 + $0x6d0] sm:$0xff]
    %v5904 = vld [vmem:[%s5 + $0x6d8] sm:$0xff]
    %v5905 = vld [vmem:[%s5 + $0x6e0] sm:$0xff]
    %v5906 = vld [vmem:[%s5 + $0x6e8] sm:$0xff]
    %v5907 = vld [vmem:[%s5 + $0x6f0] sm:$0xff]
    %v5908 = vld [vmem:[%s5 + $0x6f8] sm:$0xff]
    %v5909 = vld [vmem:[%s5 + $0x700] sm:$0xff]
    %v5910 = vld [vmem:[%s5 + $0x708] sm:$0xff]
    %v5911 = vld [vmem:[%s5 + $0x710] sm:$0xff]
    %v5912 = vld [vmem:[%s5 + $0x718] sm:$0xff]
    %v5913 = vld [vmem:[%s5 + $0x720] sm:$0xff]
    %v5914 = vld [vmem:[%s5 + $0x728] sm:$0xff]
    %v5915 = vld [vmem:[%s5 + $0x730] sm:$0xff]
    %v5916 = vld [vmem:[%s5 + $0x738] sm:$0xff]
    %v5917 = vld [vmem:[%s5 + $0x740] sm:$0xff]
    %v5918 = vld [vmem:[%s5 + $0x748] sm:$0xff]
    %v5919 = vld [vmem:[%s5 + $0x750] sm:$0xff]
    %v5920 = vld [vmem:[%s5 + $0x758] sm:$0xff]
    %v5921 = vld [vmem:[%s5 + $0x760] sm:$0xff]
    %v5922 = vld [vmem:[%s5 + $0x768] sm:$0xff]
    %v5923 = vld [vmem:[%s5 + $0x770] sm:$0xff]
    %v5924 = vld [vmem:[%s5 + $0x778] sm:$0xff]
    %v5925 = vld [vmem:[%s5 + $0x780] sm:$0xff]
    %v5926 = vld [vmem:[%s5 + $0x788] sm:$0xff]
    %v5927 = vld [vmem:[%s5 + $0x790] sm:$0xff]
    %v5928 = vld [vmem:[%s5 + $0x798] sm:$0xff]
    %v5929 = vld [vmem:[%s5 + $0x7a0] sm:$0xff]
    %v5930 = vld [vmem:[%s5 + $0x7a8] sm:$0xff]
    %v5931 = vld [vmem:[%s5 + $0x7b0] sm:$0xff]
    %v5932 = vld [vmem:[%s5 + $0x7b8] sm:$0xff]
    %v5933 = vld [vmem:[%s5 + $0x7c0] sm:$0xff]
    %v5934 = vld [vmem:[%s5 + $0x7c8] sm:$0xff]
    %v5935 = vld [vmem:[%s5 + $0x7d0] sm:$0xff]
    %v5936 = vld [vmem:[%s5 + $0x7d8] sm:$0xff]
    %v5937 = vld [vmem:[%s5 + $0x7e0] sm:$0xff]
    %v5938 = vld [vmem:[%s5 + $0x7e8] sm:$0xff]
    %v5939 = vld [vmem:[%s5 + $0x7f0] sm:$0xff]
    %v5940 = vld [vmem:[%s5 + $0x7f8] sm:$0xff]
    %v5941 = vld [vmem:[%s5 + $0x800] sm:$0xff]
    %v5942 = vld [vmem:[%s5 + $0x808] sm:$0xff]
    %v5943 = vld [vmem:[%s5 + $0x810] sm:$0xff]
    %v5944 = vld [vmem:[%s5 + $0x818] sm:$0xff]
    %v5945 = vld [vmem:[%s5 + $0x820] sm:$0xff]
    %v5946 = vld [vmem:[%s5 + $0x828] sm:$0xff]
    %v5947 = vld [vmem:[%s5 + $0x830] sm:$0xff]
    %v5948 = vld [vmem:[%s5 + $0x838] sm:$0xff]
    %v5949 = vld [vmem:[%s5 + $0x840] sm:$0xff]
    %v5950 = vld [vmem:[%s5 + $0x848] sm:$0xff]
    %v5951 = vld [vmem:[%s5 + $0x850] sm:$0xff]
    %v5952 = vld [vmem:[%s5 + $0x858] sm:$0xff]
    %v5953 = vld [vmem:[%s5 + $0x860] sm:$0xff]
    %v5954 = vld [vmem:[%s5 + $0x868] sm:$0xff]
    %v5955 = vld [vmem:[%s5 + $0x870] sm:$0xff]
    %v5956 = vld [vmem:[%s5 + $0x878] sm:$0xff]
    %v5957 = vld [vmem:[%s5 + $0x880] sm:$0xff]
    %v5958 = vld [vmem:[%s5 + $0x888] sm:$0xff]
    %v5959 = vld [vmem:[%s5 + $0x890] sm:$0xff]
    %v5960 = vld [vmem:[%s5 + $0x898] sm:$0xff]
    %v5961 = vld [vmem:[%s5 + $0x8a0] sm:$0xff]
    %v5962 = vld [vmem:[%s5 + $0x8a8] sm:$0xff]
    %v5963 = vld [vmem:[%s5 + $0x8b0] sm:$0xff]
    %v5964 = vld [vmem:[%s5 + $0x8b8] sm:$0xff]
    %v5965 = vld [vmem:[%s5 + $0x8c0] sm:$0xff]
    %v5966 = vld [vmem:[%s5 + $0x8c8] sm:$0xff]
    %v5967 = vld [vmem:[%s5 + $0x8d0] sm:$0xff]
    %v5968 = vld [vmem:[%s5 + $0x8d8] sm:$0xff]
    %v5969 = vld [vmem:[%s5 + $0x8e0] sm:$0xff]
    %v5970 = vld [vmem:[%s5 + $0x8e8] sm:$0xff]
    %v5971 = vld [vmem:[%s5 + $0x8f0] sm:$0xff]
    %v5972 = vld [vmem:[%s5 + $0x8f8] sm:$0xff]
    %v5973 = vld [vmem:[%s5 + $0x900] sm:$0xff]
    %v5974 = vld [vmem:[%s5 + $0x908] sm:$0xff]
    %v5975 = vld [vmem:[%s5 + $0x910] sm:$0xff]
    %v5976 = vld [vmem:[%s5 + $0x918] sm:$0xff]
    %v5977 = vld [vmem:[%s5 + $0x920] sm:$0xff]
    %v5978 = vld [vmem:[%s5 + $0x928] sm:$0xff]
    %v5979 = vld [vmem:[%s5 + $0x930] sm:$0xff]
    %v5980 = vld [vmem:[%s5 + $0x938] sm:$0xff]
    %v5981 = vld [vmem:[%s5 + $0x940] sm:$0xff]
    %v5982 = vld [vmem:[%s5 + $0x948] sm:$0xff]
    %v5983 = vld [vmem:[%s5 + $0x950] sm:$0xff]
    %v5984 = vld [vmem:[%s5 + $0x958] sm:$0xff]
    %v5985 = vld [vmem:[%s5 + $0x960] sm:$0xff]
    %v5986 = vld [vmem:[%s5 + $0x968] sm:$0xff]
    %v5987 = vld [vmem:[%s5 + $0x970] sm:$0xff]
    %v5988 = vld [vmem:[%s5 + $0x978] sm:$0xff]
    %v5989 = vld [vmem:[%s5 + $0x980] sm:$0xff]
    %v5990 = vld [vmem:[%s5 + $0x988] sm:$0xff]
    %v5991 = vld [vmem:[%s5 + $0x990] sm:$0xff]
    %v5992 = vld [vmem:[%s5 + $0x998] sm:$0xff]
    %v5993 = vld [vmem:[%s5 + $0x9a0] sm:$0xff]
    %v5994 = vld [vmem:[%s5 + $0x9a8] sm:$0xff]
    %v5995 = vld [vmem:[%s5 + $0x9b0] sm:$0xff]
    %v5996 = vld [vmem:[%s5 + $0x9b8] sm:$0xff]
    %v5997 = vld [vmem:[%s5 + $0x9c0] sm:$0xff]
    %v5998 = vld [vmem:[%s5 + $0x9c8] sm:$0xff]
    %v5999 = vld [vmem:[%s5 + $0x9d0] sm:$0xff]
    %v6000 = vld [vmem:[%s5 + $0x9d8] sm:$0xff]
    %v6001 = vld [vmem:[%s5 + $0x9e0] sm:$0xff]
    %v6002 = vld [vmem:[%s5 + $0x9e8] sm:$0xff]
    %v6003 = vld [vmem:[%s5 + $0x9f0] sm:$0xff]
    %v6004 = vld [vmem:[%s5 + $0x9f8] sm:$0xff]
    %v6005 = vld [vmem:[%s5 + $0xa00] sm:$0xff]
    %v6006 = vld [vmem:[%s5 + $0xa08] sm:$0xff]
    %v6007 = vld [vmem:[%s5 + $0xa10] sm:$0xff]
    %v6008 = vld [vmem:[%s5 + $0xa18] sm:$0xff]
    %v6009 = vld [vmem:[%s5 + $0xa20] sm:$0xff]
    %v6010 = vld [vmem:[%s5 + $0xa28] sm:$0xff]
    %v6011 = vld [vmem:[%s5 + $0xa30] sm:$0xff]
    %v6012 = vld [vmem:[%s5 + $0xa38] sm:$0xff]
    %v6013 = vld [vmem:[%s5 + $0xa40] sm:$0xff]
    %v6014 = vld [vmem:[%s5 + $0xa48] sm:$0xff]
    %v6015 = vld [vmem:[%s5 + $0xa50] sm:$0xff]
    %v6016 = vld [vmem:[%s5 + $0xa58] sm:$0xff]
    %v6017 = vld [vmem:[%s5 + $0xa60] sm:$0xff]
    %v6018 = vld [vmem:[%s5 + $0xa68] sm:$0xff]
    %v6019 = vld [vmem:[%s5 + $0xa70] sm:$0xff]
    %v6020 = vld [vmem:[%s5 + $0xa78] sm:$0xff]
    %v6021 = vld [vmem:[%s5 + $0xa80] sm:$0xff]
    %v6022 = vld [vmem:[%s5 + $0xa88] sm:$0xff]
    %v6023 = vld [vmem:[%s5 + $0xa90] sm:$0xff]
    %v6024 = vld [vmem:[%s5 + $0xa98] sm:$0xff]
    %v6025 = vld [vmem:[%s5 + $0xaa0] sm:$0xff]
    %v6026 = vld [vmem:[%s5 + $0xaa8] sm:$0xff]
    %v6027 = vld [vmem:[%s5 + $0xab0] sm:$0xff]
    %v6028 = vld [vmem:[%s5 + $0xab8] sm:$0xff]
    %v6029 = vld [vmem:[%s5 + $0xac0] sm:$0xff]
    %v6030 = vld [vmem:[%s5 + $0xac8] sm:$0xff]
    %v6031 = vld [vmem:[%s5 + $0xad0] sm:$0xff]
    %v6032 = vld [vmem:[%s5 + $0xad8] sm:$0xff]
    %v6033 = vld [vmem:[%s5 + $0xae0] sm:$0xff]
    %v6034 = vld [vmem:[%s5 + $0xae8] sm:$0xff]
    %v6035 = vld [vmem:[%s5 + $0xaf0] sm:$0xff]
    %v6036 = vld [vmem:[%s5 + $0xaf8] sm:$0xff]
    %v6037 = vld [vmem:[%s5 + $0xb00] sm:$0xff]
    %v6038 = vld [vmem:[%s5 + $0xb08] sm:$0xff]
    %v6039 = vld [vmem:[%s5 + $0xb10] sm:$0xff]
    %v6040 = vld [vmem:[%s5 + $0xb18] sm:$0xff]
    %v6041 = vld [vmem:[%s5 + $0xb20] sm:$0xff]
    %v6042 = vld [vmem:[%s5 + $0xb28] sm:$0xff]
    %v6043 = vld [vmem:[%s5 + $0xb30] sm:$0xff]
    %v6044 = vld [vmem:[%s5 + $0xb38] sm:$0xff]
    %v6045 = vld [vmem:[%s5 + $0xb40] sm:$0xff]
    %v6046 = vld [vmem:[%s5 + $0xb48] sm:$0xff]
    %v6047 = vld [vmem:[%s5 + $0xb50] sm:$0xff]
    %v6048 = vld [vmem:[%s5 + $0xb58] sm:$0xff]
    %v6049 = vld [vmem:[%s5 + $0xb60] sm:$0xff]
    %v6050 = vld [vmem:[%s5 + $0xb68] sm:$0xff]
    %v6051 = vld [vmem:[%s5 + $0xb70] sm:$0xff]
    %v6052 = vld [vmem:[%s5 + $0xb78] sm:$0xff]
    %v6053 = vld [vmem:[%s5 + $0xb80] sm:$0xff]
    %v6054 = vld [vmem:[%s5 + $0xb88] sm:$0xff]
    %v6055 = vld [vmem:[%s5 + $0xb90] sm:$0xff]
    %v6056 = vld [vmem:[%s5 + $0xb98] sm:$0xff]
    %v6057 = vld [vmem:[%s5 + $0xba0] sm:$0xff]
    %v6058 = vld [vmem:[%s5 + $0xba8] sm:$0xff]
    %v6059 = vld [vmem:[%s5 + $0xbb0] sm:$0xff]
    %v6060 = vld [vmem:[%s5 + $0xbb8] sm:$0xff]
    %v6061 = vld [vmem:[%s5 + $0xbc0] sm:$0xff]
    %v6062 = vld [vmem:[%s5 + $0xbc8] sm:$0xff]
    %v6063 = vld [vmem:[%s5 + $0xbd0] sm:$0xff]
    %v6064 = vld [vmem:[%s5 + $0xbd8] sm:$0xff]
    %v6065 = vld [vmem:[%s5 + $0xbe0] sm:$0xff]
    %v6066 = vld [vmem:[%s5 + $0xbe8] sm:$0xff]
    %v6067 = vld [vmem:[%s5 + $0xbf0] sm:$0xff]
    %v6068 = vld [vmem:[%s5 + $0xbf8] sm:$0xff]
    %v6069 = vld [vmem:[%s5 + $0xc00] sm:$0xff]
    %v6070 = vld [vmem:[%s5 + $0xc08] sm:$0xff]
    %v6071 = vld [vmem:[%s5 + $0xc10] sm:$0xff]
    %v6072 = vld [vmem:[%s5 + $0xc18] sm:$0xff]
    %v6073 = vld [vmem:[%s5 + $0xc20] sm:$0xff]
    %v6074 = vld [vmem:[%s5 + $0xc28] sm:$0xff]
    %v6075 = vld [vmem:[%s5 + $0xc30] sm:$0xff]
    %v6076 = vld [vmem:[%s5 + $0xc38] sm:$0xff]
    %v6077 = vld [vmem:[%s5 + $0xc40] sm:$0xff]
    %v6078 = vld [vmem:[%s5 + $0xc48] sm:$0xff]
    %v6079 = vld [vmem:[%s5 + $0xc50] sm:$0xff]
    %v6080 = vld [vmem:[%s5 + $0xc58] sm:$0xff]
    %v6081 = vld [vmem:[%s5 + $0xc60] sm:$0xff]
    %v6082 = vld [vmem:[%s5 + $0xc68] sm:$0xff]
    %v6083 = vld [vmem:[%s5 + $0xc70] sm:$0xff]
    %v6084 = vld [vmem:[%s5 + $0xc78] sm:$0xff]
    %v6085 = vld [vmem:[%s5 + $0xc80] sm:$0xff]
    %v6086 = vld [vmem:[%s5 + $0xc88] sm:$0xff]
    %v6087 = vld [vmem:[%s5 + $0xc90] sm:$0xff]
    %v6088 = vld [vmem:[%s5 + $0xc98] sm:$0xff]
    %v6089 = vld [vmem:[%s5 + $0xca0] sm:$0xff]
    %v6090 = vld [vmem:[%s5 + $0xca8] sm:$0xff]
    %v6091 = vld [vmem:[%s5 + $0xcb0] sm:$0xff]
    %v6092 = vld [vmem:[%s5 + $0xcb8] sm:$0xff]
    %v6093 = vld [vmem:[%s5 + $0xcc0] sm:$0xff]
    %v6094 = vld [vmem:[%s5 + $0xcc8] sm:$0xff]
    %v6095 = vld [vmem:[%s5 + $0xcd0] sm:$0xff]
    %v6096 = vld [vmem:[%s5 + $0xcd8] sm:$0xff]
    %v6097 = vld [vmem:[%s5 + $0xce0] sm:$0xff]
    %v6098 = vld [vmem:[%s5 + $0xce8] sm:$0xff]
    %v6099 = vld [vmem:[%s5 + $0xcf0] sm:$0xff]
    %v6100 = vld [vmem:[%s5 + $0xcf8] sm:$0xff]
    %v6101 = vld [vmem:[%s5 + $0xd00] sm:$0xff]
    %v6102 = vld [vmem:[%s5 + $0xd08] sm:$0xff]
    %v6103 = vld [vmem:[%s5 + $0xd10] sm:$0xff]
    %v6104 = vld [vmem:[%s5 + $0xd18] sm:$0xff]
    %v6105 = vld [vmem:[%s5 + $0xd20] sm:$0xff]
    %v6106 = vld [vmem:[%s5 + $0xd28] sm:$0xff]
    %v6107 = vld [vmem:[%s5 + $0xd30] sm:$0xff]
    %v6108 = vld [vmem:[%s5 + $0xd38] sm:$0xff]
    %v6109 = vld [vmem:[%s5 + $0xd40] sm:$0xff]
    %v6110 = vld [vmem:[%s5 + $0xd48] sm:$0xff]
    %v6111 = vld [vmem:[%s5 + $0xd50] sm:$0xff]
    %v6112 = vld [vmem:[%s5 + $0xd58] sm:$0xff]
    %v6113 = vld [vmem:[%s5 + $0xd60] sm:$0xff]
    %v6114 = vld [vmem:[%s5 + $0xd68] sm:$0xff]
    %v6115 = vld [vmem:[%s5 + $0xd70] sm:$0xff]
    %v6116 = vld [vmem:[%s5 + $0xd78] sm:$0xff]
    %v6117 = vld [vmem:[%s5 + $0xd80] sm:$0xff]
    %v6118 = vld [vmem:[%s5 + $0xd88] sm:$0xff]
    %v6119 = vld [vmem:[%s5 + $0xd90] sm:$0xff]
    %v6120 = vld [vmem:[%s5 + $0xd98] sm:$0xff]
    %v6121 = vld [vmem:[%s5 + $0xda0] sm:$0xff]
    %v6122 = vld [vmem:[%s5 + $0xda8] sm:$0xff]
    %v6123 = vld [vmem:[%s5 + $0xdb0] sm:$0xff]
    %v6124 = vld [vmem:[%s5 + $0xdb8] sm:$0xff]
    %v6125 = vld [vmem:[%s5 + $0xdc0] sm:$0xff]
    %v6126 = vld [vmem:[%s5 + $0xdc8] sm:$0xff]
    %v6127 = vld [vmem:[%s5 + $0xdd0] sm:$0xff]
    %v6128 = vld [vmem:[%s5 + $0xdd8] sm:$0xff]
    %v6129 = vld [vmem:[%s5 + $0xde0] sm:$0xff]
    %v6130 = vld [vmem:[%s5 + $0xde8] sm:$0xff]
    %v6131 = vld [vmem:[%s5 + $0xdf0] sm:$0xff]
    %v6132 = vld [vmem:[%s5 + $0xdf8] sm:$0xff]
    %v6133 = vld [vmem:[%s5 + $0xe00] sm:$0xff]
    %v6134 = vld [vmem:[%s5 + $0xe08] sm:$0xff]
    %v6135 = vld [vmem:[%s5 + $0xe10] sm:$0xff]
    %v6136 = vld [vmem:[%s5 + $0xe18] sm:$0xff]
    %v6137 = vld [vmem:[%s5 + $0xe20] sm:$0xff]
    %v6138 = vld [vmem:[%s5 + $0xe28] sm:$0xff]
    %v6139 = vld [vmem:[%s5 + $0xe30] sm:$0xff]
    %v6140 = vld [vmem:[%s5 + $0xe38] sm:$0xff]
    %v6141 = vld [vmem:[%s5 + $0xe40] sm:$0xff]
    %v6142 = vld [vmem:[%s5 + $0xe48] sm:$0xff]
    %v6143 = vld [vmem:[%s5 + $0xe50] sm:$0xff]
    %v6144 = vld [vmem:[%s5 + $0xe58] sm:$0xff]
    %v6145 = vld [vmem:[%s5 + $0xe60] sm:$0xff]
    %v6146 = vld [vmem:[%s5 + $0xe68] sm:$0xff]
    %v6147 = vld [vmem:[%s5 + $0xe70] sm:$0xff]
    %v6148 = vld [vmem:[%s5 + $0xe78] sm:$0xff]
    %v6149 = vld [vmem:[%s5 + $0xe80] sm:$0xff]
    %v6150 = vld [vmem:[%s5 + $0xe88] sm:$0xff]
    %v6151 = vld [vmem:[%s5 + $0xe90] sm:$0xff]
    %v6152 = vld [vmem:[%s5 + $0xe98] sm:$0xff]
    %v6153 = vld [vmem:[%s5 + $0xea0] sm:$0xff]
    %v6154 = vld [vmem:[%s5 + $0xea8] sm:$0xff]
    %v6155 = vld [vmem:[%s5 + $0xeb0] sm:$0xff]
    %v6156 = vld [vmem:[%s5 + $0xeb8] sm:$0xff]
    %v6157 = vld [vmem:[%s5 + $0xec0] sm:$0xff]
    %v6158 = vld [vmem:[%s5 + $0xec8] sm:$0xff]
    %v6159 = vld [vmem:[%s5 + $0xed0] sm:$0xff]
    %v6160 = vld [vmem:[%s5 + $0xed8] sm:$0xff]
    %v6161 = vld [vmem:[%s5 + $0xee0] sm:$0xff]
    %v6162 = vld [vmem:[%s5 + $0xee8] sm:$0xff]
    %v6163 = vld [vmem:[%s5 + $0xef0] sm:$0xff]
    %v6164 = vld [vmem:[%s5 + $0xef8] sm:$0xff]
    %v6165 = vld [vmem:[%s5 + $0xf00] sm:$0xff]
    %v6166 = vld [vmem:[%s5 + $0xf08] sm:$0xff]
    %v6167 = vld [vmem:[%s5 + $0xf10] sm:$0xff]
    %v6168 = vld [vmem:[%s5 + $0xf18] sm:$0xff]
    %v6169 = vld [vmem:[%s5 + $0xf20] sm:$0xff]
    %v6170 = vld [vmem:[%s5 + $0xf28] sm:$0xff]
    %v6171 = vld [vmem:[%s5 + $0xf30] sm:$0xff]
    %v6172 = vld [vmem:[%s5 + $0xf38] sm:$0xff]
    %v6173 = vld [vmem:[%s5 + $0xf40] sm:$0xff]
    %v6174 = vld [vmem:[%s5 + $0xf48] sm:$0xff]
    %v6175 = vld [vmem:[%s5 + $0xf50] sm:$0xff]
    %v6176 = vld [vmem:[%s5 + $0xf58] sm:$0xff]
    %v6177 = vld [vmem:[%s5 + $0xf60] sm:$0xff]
    %v6178 = vld [vmem:[%s5 + $0xf68] sm:$0xff]
    %v6179 = vld [vmem:[%s5 + $0xf70] sm:$0xff]
    %v6180 = vld [vmem:[%s5 + $0xf78] sm:$0xff]
    %v6181 = vld [vmem:[%s5 + $0xf80] sm:$0xff]
    %v6182 = vld [vmem:[%s5 + $0xf88] sm:$0xff]
    %v6183 = vld [vmem:[%s5 + $0xf90] sm:$0xff]
    %v6184 = vld [vmem:[%s5 + $0xf98] sm:$0xff]
    %v6185 = vld [vmem:[%s5 + $0xfa0] sm:$0xff]
    %v6186 = vld [vmem:[%s5 + $0xfa8] sm:$0xff]
    %v6187 = vld [vmem:[%s5 + $0xfb0] sm:$0xff]
    %v6188 = vld [vmem:[%s5 + $0xfb8] sm:$0xff]
    %v6189 = vld [vmem:[%s5 + $0xfc0] sm:$0xff]
    %v6190 = vld [vmem:[%s5 + $0xfc8] sm:$0xff]
    %v6191 = vld [vmem:[%s5 + $0xfd0] sm:$0xff]
    %v6192 = vld [vmem:[%s5 + $0xfd8] sm:$0xff]
    %v6193 = vld [vmem:[%s5 + $0xfe0] sm:$0xff]
    %v6194 = vld [vmem:[%s5 + $0xfe8] sm:$0xff]
    %v6195 = vld [vmem:[%s5 + $0xff0] sm:$0xff]
    %v6196 = vld [vmem:[%s5 + $0xff8] sm:$0xff]
    %v6197 = vld [vmem:[%s6] sm:$0xf]
    %v6199 = vlaneseq
    %v6200 = vshrl.u32 %v6199, 7
    %v6201 = vsub.s32 0, %v6200
    %v6202 = vrot.slane %v6197, %v6201
    %v6203 = vlaneseq
    %v6204 = vshrl.u32 %v6203, 7
    %v6205 = vsub.s32 1, %v6204
    %v6206 = vrot.slane %v6197, %v6205
    %v6207 = vlaneseq
    %v6208 = vshrl.u32 %v6207, 7
    %v6209 = vsub.s32 2, %v6208
    %v6210 = vrot.slane %v6197, %v6209
    %v6211 = vlaneseq
    %v6212 = vshrl.u32 %v6211, 7
    %v6213 = vsub.s32 3, %v6212
    %v6214 = vrot.slane %v6197, %v6213
    %v6731 = vunpack.c.l.b16 %v5685
    %v6732 = vunpack.c.h.b16 %v5685
    %v6733 = vunpack.c.l.b16 %v5686
    %v6734 = vunpack.c.h.b16 %v5686
    %v6735 = vunpack.c.l.b16 %v5687
    %v6736 = vunpack.c.h.b16 %v5687
    %v6737 = vunpack.c.l.b16 %v5688
    %v6738 = vunpack.c.h.b16 %v5688
    %v6739 = vunpack.c.l.b16 %v5689
    %v6740 = vunpack.c.h.b16 %v5689
    %v6741 = vunpack.c.l.b16 %v5690
    %v6742 = vunpack.c.h.b16 %v5690
    %v6743 = vunpack.c.l.b16 %v5691
    %v6744 = vunpack.c.h.b16 %v5691
    %v6745 = vunpack.c.l.b16 %v5692
    %v6746 = vunpack.c.h.b16 %v5692
    %v6747 = vunpack.c.l.b16 %v5693
    %v6748 = vunpack.c.h.b16 %v5693
    %v6749 = vunpack.c.l.b16 %v5694
    %v6750 = vunpack.c.h.b16 %v5694
    %v6751 = vunpack.c.l.b16 %v5695
    %v6752 = vunpack.c.h.b16 %v5695
    %v6753 = vunpack.c.l.b16 %v5696
    %v6754 = vunpack.c.h.b16 %v5696
    %v6755 = vunpack.c.l.b16 %v5697
    %v6756 = vunpack.c.h.b16 %v5697
    %v6757 = vunpack.c.l.b16 %v5698
    %v6758 = vunpack.c.h.b16 %v5698
    %v6759 = vunpack.c.l.b16 %v5699
    %v6760 = vunpack.c.h.b16 %v5699
    %v6761 = vunpack.c.l.b16 %v5700
    %v6762 = vunpack.c.h.b16 %v5700
    %v6763 = vunpack.c.l.b16 %v5701
    %v6764 = vunpack.c.h.b16 %v5701
    %v6765 = vunpack.c.l.b16 %v5702
    %v6766 = vunpack.c.h.b16 %v5702
    %v6767 = vunpack.c.l.b16 %v5703
    %v6768 = vunpack.c.h.b16 %v5703
    %v6769 = vunpack.c.l.b16 %v5704
    %v6770 = vunpack.c.h.b16 %v5704
    %v6771 = vunpack.c.l.b16 %v5705
    %v6772 = vunpack.c.h.b16 %v5705
    %v6773 = vunpack.c.l.b16 %v5706
    %v6774 = vunpack.c.h.b16 %v5706
    %v6775 = vunpack.c.l.b16 %v5707
    %v6776 = vunpack.c.h.b16 %v5707
    %v6777 = vunpack.c.l.b16 %v5708
    %v6778 = vunpack.c.h.b16 %v5708
    %v6779 = vunpack.c.l.b16 %v5709
    %v6780 = vunpack.c.h.b16 %v5709
    %v6781 = vunpack.c.l.b16 %v5710
    %v6782 = vunpack.c.h.b16 %v5710
    %v6783 = vunpack.c.l.b16 %v5711
    %v6784 = vunpack.c.h.b16 %v5711
    %v6785 = vunpack.c.l.b16 %v5712
    %v6786 = vunpack.c.h.b16 %v5712
    %v6787 = vunpack.c.l.b16 %v5713
    %v6788 = vunpack.c.h.b16 %v5713
    %v6789 = vunpack.c.l.b16 %v5714
    %v6790 = vunpack.c.h.b16 %v5714
    %v6791 = vunpack.c.l.b16 %v5715
    %v6792 = vunpack.c.h.b16 %v5715
    %v6793 = vunpack.c.l.b16 %v5716
    %v6794 = vunpack.c.h.b16 %v5716
    %v6795 = vunpack.c.l.b16 %v5717
    %v6796 = vunpack.c.h.b16 %v5717
    %v6797 = vunpack.c.l.b16 %v5718
    %v6798 = vunpack.c.h.b16 %v5718
    %v6799 = vunpack.c.l.b16 %v5719
    %v6800 = vunpack.c.h.b16 %v5719
    %v6801 = vunpack.c.l.b16 %v5720
    %v6802 = vunpack.c.h.b16 %v5720
    %v6803 = vunpack.c.l.b16 %v5721
    %v6804 = vunpack.c.h.b16 %v5721
    %v6805 = vunpack.c.l.b16 %v5722
    %v6806 = vunpack.c.h.b16 %v5722
    %v6807 = vunpack.c.l.b16 %v5723
    %v6808 = vunpack.c.h.b16 %v5723
    %v6809 = vunpack.c.l.b16 %v5724
    %v6810 = vunpack.c.h.b16 %v5724
    %v6811 = vunpack.c.l.b16 %v5725
    %v6812 = vunpack.c.h.b16 %v5725
    %v6813 = vunpack.c.l.b16 %v5726
    %v6814 = vunpack.c.h.b16 %v5726
    %v6815 = vunpack.c.l.b16 %v5727
    %v6816 = vunpack.c.h.b16 %v5727
    %v6817 = vunpack.c.l.b16 %v5728
    %v6818 = vunpack.c.h.b16 %v5728
    %v6819 = vunpack.c.l.b16 %v5729
    %v6820 = vunpack.c.h.b16 %v5729
    %v6821 = vunpack.c.l.b16 %v5730
    %v6822 = vunpack.c.h.b16 %v5730
    %v6823 = vunpack.c.l.b16 %v5731
    %v6824 = vunpack.c.h.b16 %v5731
    %v6825 = vunpack.c.l.b16 %v5732
    %v6826 = vunpack.c.h.b16 %v5732
    %v6827 = vunpack.c.l.b16 %v5733
    %v6828 = vunpack.c.h.b16 %v5733
    %v6829 = vunpack.c.l.b16 %v5734
    %v6830 = vunpack.c.h.b16 %v5734
    %v6831 = vunpack.c.l.b16 %v5735
    %v6832 = vunpack.c.h.b16 %v5735
    %v6833 = vunpack.c.l.b16 %v5736
    %v6834 = vunpack.c.h.b16 %v5736
    %v6835 = vunpack.c.l.b16 %v5737
    %v6836 = vunpack.c.h.b16 %v5737
    %v6837 = vunpack.c.l.b16 %v5738
    %v6838 = vunpack.c.h.b16 %v5738
    %v6839 = vunpack.c.l.b16 %v5739
    %v6840 = vunpack.c.h.b16 %v5739
    %v6841 = vunpack.c.l.b16 %v5740
    %v6842 = vunpack.c.h.b16 %v5740
    %v6843 = vunpack.c.l.b16 %v5741
    %v6844 = vunpack.c.h.b16 %v5741
    %v6845 = vunpack.c.l.b16 %v5742
    %v6846 = vunpack.c.h.b16 %v5742
    %v6847 = vunpack.c.l.b16 %v5743
    %v6848 = vunpack.c.h.b16 %v5743
    %v6849 = vunpack.c.l.b16 %v5744
    %v6850 = vunpack.c.h.b16 %v5744
    %v6851 = vunpack.c.l.b16 %v5745
    %v6852 = vunpack.c.h.b16 %v5745
    %v6853 = vunpack.c.l.b16 %v5746
    %v6854 = vunpack.c.h.b16 %v5746
    %v6855 = vunpack.c.l.b16 %v5747
    %v6856 = vunpack.c.h.b16 %v5747
    %v6857 = vunpack.c.l.b16 %v5748
    %v6858 = vunpack.c.h.b16 %v5748
    %v6859 = vunpack.c.l.b16 %v5749
    %v6860 = vunpack.c.h.b16 %v5749
    %v6861 = vunpack.c.l.b16 %v5750
    %v6862 = vunpack.c.h.b16 %v5750
    %v6863 = vunpack.c.l.b16 %v5751
    %v6864 = vunpack.c.h.b16 %v5751
    %v6865 = vunpack.c.l.b16 %v5752
    %v6866 = vunpack.c.h.b16 %v5752
    %v6867 = vunpack.c.l.b16 %v5753
    %v6868 = vunpack.c.h.b16 %v5753
    %v6869 = vunpack.c.l.b16 %v5754
    %v6870 = vunpack.c.h.b16 %v5754
    %v6871 = vunpack.c.l.b16 %v5755
    %v6872 = vunpack.c.h.b16 %v5755
    %v6873 = vunpack.c.l.b16 %v5756
    %v6874 = vunpack.c.h.b16 %v5756
    %v6875 = vunpack.c.l.b16 %v5757
    %v6876 = vunpack.c.h.b16 %v5757
    %v6877 = vunpack.c.l.b16 %v5758
    %v6878 = vunpack.c.h.b16 %v5758
    %v6879 = vunpack.c.l.b16 %v5759
    %v6880 = vunpack.c.h.b16 %v5759
    %v6881 = vunpack.c.l.b16 %v5760
    %v6882 = vunpack.c.h.b16 %v5760
    %v6883 = vunpack.c.l.b16 %v5761
    %v6884 = vunpack.c.h.b16 %v5761
    %v6885 = vunpack.c.l.b16 %v5762
    %v6886 = vunpack.c.h.b16 %v5762
    %v6887 = vunpack.c.l.b16 %v5763
    %v6888 = vunpack.c.h.b16 %v5763
    %v6889 = vunpack.c.l.b16 %v5764
    %v6890 = vunpack.c.h.b16 %v5764
    %v6891 = vunpack.c.l.b16 %v5765
    %v6892 = vunpack.c.h.b16 %v5765
    %v6893 = vunpack.c.l.b16 %v5766
    %v6894 = vunpack.c.h.b16 %v5766
    %v6895 = vunpack.c.l.b16 %v5767
    %v6896 = vunpack.c.h.b16 %v5767
    %v6897 = vunpack.c.l.b16 %v5768
    %v6898 = vunpack.c.h.b16 %v5768
    %v6899 = vunpack.c.l.b16 %v5769
    %v6900 = vunpack.c.h.b16 %v5769
    %v6901 = vunpack.c.l.b16 %v5770
    %v6902 = vunpack.c.h.b16 %v5770
    %v6903 = vunpack.c.l.b16 %v5771
    %v6904 = vunpack.c.h.b16 %v5771
    %v6905 = vunpack.c.l.b16 %v5772
    %v6906 = vunpack.c.h.b16 %v5772
    %v6907 = vunpack.c.l.b16 %v5773
    %v6908 = vunpack.c.h.b16 %v5773
    %v6909 = vunpack.c.l.b16 %v5774
    %v6910 = vunpack.c.h.b16 %v5774
    %v6911 = vunpack.c.l.b16 %v5775
    %v6912 = vunpack.c.h.b16 %v5775
    %v6913 = vunpack.c.l.b16 %v5776
    %v6914 = vunpack.c.h.b16 %v5776
    %v6915 = vunpack.c.l.b16 %v5777
    %v6916 = vunpack.c.h.b16 %v5777
    %v6917 = vunpack.c.l.b16 %v5778
    %v6918 = vunpack.c.h.b16 %v5778
    %v6919 = vunpack.c.l.b16 %v5779
    %v6920 = vunpack.c.h.b16 %v5779
    %v6921 = vunpack.c.l.b16 %v5780
    %v6922 = vunpack.c.h.b16 %v5780
    %v6923 = vunpack.c.l.b16 %v5781
    %v6924 = vunpack.c.h.b16 %v5781
    %v6925 = vunpack.c.l.b16 %v5782
    %v6926 = vunpack.c.h.b16 %v5782
    %v6927 = vunpack.c.l.b16 %v5783
    %v6928 = vunpack.c.h.b16 %v5783
    %v6929 = vunpack.c.l.b16 %v5784
    %v6930 = vunpack.c.h.b16 %v5784
    %v6931 = vunpack.c.l.b16 %v5785
    %v6932 = vunpack.c.h.b16 %v5785
    %v6933 = vunpack.c.l.b16 %v5786
    %v6934 = vunpack.c.h.b16 %v5786
    %v6935 = vunpack.c.l.b16 %v5787
    %v6936 = vunpack.c.h.b16 %v5787
    %v6937 = vunpack.c.l.b16 %v5788
    %v6938 = vunpack.c.h.b16 %v5788
    %v6939 = vunpack.c.l.b16 %v5789
    %v6940 = vunpack.c.h.b16 %v5789
    %v6941 = vunpack.c.l.b16 %v5790
    %v6942 = vunpack.c.h.b16 %v5790
    %v6943 = vunpack.c.l.b16 %v5791
    %v6944 = vunpack.c.h.b16 %v5791
    %v6945 = vunpack.c.l.b16 %v5792
    %v6946 = vunpack.c.h.b16 %v5792
    %v6947 = vunpack.c.l.b16 %v5793
    %v6948 = vunpack.c.h.b16 %v5793
    %v6949 = vunpack.c.l.b16 %v5794
    %v6950 = vunpack.c.h.b16 %v5794
    %v6951 = vunpack.c.l.b16 %v5795
    %v6952 = vunpack.c.h.b16 %v5795
    %v6953 = vunpack.c.l.b16 %v5796
    %v6954 = vunpack.c.h.b16 %v5796
    %v6955 = vunpack.c.l.b16 %v5797
    %v6956 = vunpack.c.h.b16 %v5797
    %v6957 = vunpack.c.l.b16 %v5798
    %v6958 = vunpack.c.h.b16 %v5798
    %v6959 = vunpack.c.l.b16 %v5799
    %v6960 = vunpack.c.h.b16 %v5799
    %v6961 = vunpack.c.l.b16 %v5800
    %v6962 = vunpack.c.h.b16 %v5800
    %v6963 = vunpack.c.l.b16 %v5801
    %v6964 = vunpack.c.h.b16 %v5801
    %v6965 = vunpack.c.l.b16 %v5802
    %v6966 = vunpack.c.h.b16 %v5802
    %v6967 = vunpack.c.l.b16 %v5803
    %v6968 = vunpack.c.h.b16 %v5803
    %v6969 = vunpack.c.l.b16 %v5804
    %v6970 = vunpack.c.h.b16 %v5804
    %v6971 = vunpack.c.l.b16 %v5805
    %v6972 = vunpack.c.h.b16 %v5805
    %v6973 = vunpack.c.l.b16 %v5806
    %v6974 = vunpack.c.h.b16 %v5806
    %v6975 = vunpack.c.l.b16 %v5807
    %v6976 = vunpack.c.h.b16 %v5807
    %v6977 = vunpack.c.l.b16 %v5808
    %v6978 = vunpack.c.h.b16 %v5808
    %v6979 = vunpack.c.l.b16 %v5809
    %v6980 = vunpack.c.h.b16 %v5809
    %v6981 = vunpack.c.l.b16 %v5810
    %v6982 = vunpack.c.h.b16 %v5810
    %v6983 = vunpack.c.l.b16 %v5811
    %v6984 = vunpack.c.h.b16 %v5811
    %v6985 = vunpack.c.l.b16 %v5812
    %v6986 = vunpack.c.h.b16 %v5812
    %v6987 = vunpack.c.l.b16 %v5813
    %v6988 = vunpack.c.h.b16 %v5813
    %v6989 = vunpack.c.l.b16 %v5814
    %v6990 = vunpack.c.h.b16 %v5814
    %v6991 = vunpack.c.l.b16 %v5815
    %v6992 = vunpack.c.h.b16 %v5815
    %v6993 = vunpack.c.l.b16 %v5816
    %v6994 = vunpack.c.h.b16 %v5816
    %v6995 = vunpack.c.l.b16 %v5817
    %v6996 = vunpack.c.h.b16 %v5817
    %v6997 = vunpack.c.l.b16 %v5818
    %v6998 = vunpack.c.h.b16 %v5818
    %v6999 = vunpack.c.l.b16 %v5819
    %v7000 = vunpack.c.h.b16 %v5819
    %v7001 = vunpack.c.l.b16 %v5820
    %v7002 = vunpack.c.h.b16 %v5820
    %v7003 = vunpack.c.l.b16 %v5821
    %v7004 = vunpack.c.h.b16 %v5821
    %v7005 = vunpack.c.l.b16 %v5822
    %v7006 = vunpack.c.h.b16 %v5822
    %v7007 = vunpack.c.l.b16 %v5823
    %v7008 = vunpack.c.h.b16 %v5823
    %v7009 = vunpack.c.l.b16 %v5824
    %v7010 = vunpack.c.h.b16 %v5824
    %v7011 = vunpack.c.l.b16 %v5825
    %v7012 = vunpack.c.h.b16 %v5825
    %v7013 = vunpack.c.l.b16 %v5826
    %v7014 = vunpack.c.h.b16 %v5826
    %v7015 = vunpack.c.l.b16 %v5827
    %v7016 = vunpack.c.h.b16 %v5827
    %v7017 = vunpack.c.l.b16 %v5828
    %v7018 = vunpack.c.h.b16 %v5828
    %v7019 = vunpack.c.l.b16 %v5829
    %v7020 = vunpack.c.h.b16 %v5829
    %v7021 = vunpack.c.l.b16 %v5830
    %v7022 = vunpack.c.h.b16 %v5830
    %v7023 = vunpack.c.l.b16 %v5831
    %v7024 = vunpack.c.h.b16 %v5831
    %v7025 = vunpack.c.l.b16 %v5832
    %v7026 = vunpack.c.h.b16 %v5832
    %v7027 = vunpack.c.l.b16 %v5833
    %v7028 = vunpack.c.h.b16 %v5833
    %v7029 = vunpack.c.l.b16 %v5834
    %v7030 = vunpack.c.h.b16 %v5834
    %v7031 = vunpack.c.l.b16 %v5835
    %v7032 = vunpack.c.h.b16 %v5835
    %v7033 = vunpack.c.l.b16 %v5836
    %v7034 = vunpack.c.h.b16 %v5836
    %v7035 = vunpack.c.l.b16 %v5837
    %v7036 = vunpack.c.h.b16 %v5837
    %v7037 = vunpack.c.l.b16 %v5838
    %v7038 = vunpack.c.h.b16 %v5838
    %v7039 = vunpack.c.l.b16 %v5839
    %v7040 = vunpack.c.h.b16 %v5839
    %v7041 = vunpack.c.l.b16 %v5840
    %v7042 = vunpack.c.h.b16 %v5840
    %v7043 = vunpack.c.l.b16 %v5841
    %v7044 = vunpack.c.h.b16 %v5841
    %v7045 = vunpack.c.l.b16 %v5842
    %v7046 = vunpack.c.h.b16 %v5842
    %v7047 = vunpack.c.l.b16 %v5843
    %v7048 = vunpack.c.h.b16 %v5843
    %v7049 = vunpack.c.l.b16 %v5844
    %v7050 = vunpack.c.h.b16 %v5844
    %v7051 = vunpack.c.l.b16 %v5845
    %v7052 = vunpack.c.h.b16 %v5845
    %v7053 = vunpack.c.l.b16 %v5846
    %v7054 = vunpack.c.h.b16 %v5846
    %v7055 = vunpack.c.l.b16 %v5847
    %v7056 = vunpack.c.h.b16 %v5847
    %v7057 = vunpack.c.l.b16 %v5848
    %v7058 = vunpack.c.h.b16 %v5848
    %v7059 = vunpack.c.l.b16 %v5849
    %v7060 = vunpack.c.h.b16 %v5849
    %v7061 = vunpack.c.l.b16 %v5850
    %v7062 = vunpack.c.h.b16 %v5850
    %v7063 = vunpack.c.l.b16 %v5851
    %v7064 = vunpack.c.h.b16 %v5851
    %v7065 = vunpack.c.l.b16 %v5852
    %v7066 = vunpack.c.h.b16 %v5852
    %v7067 = vunpack.c.l.b16 %v5853
    %v7068 = vunpack.c.h.b16 %v5853
    %v7069 = vunpack.c.l.b16 %v5854
    %v7070 = vunpack.c.h.b16 %v5854
    %v7071 = vunpack.c.l.b16 %v5855
    %v7072 = vunpack.c.h.b16 %v5855
    %v7073 = vunpack.c.l.b16 %v5856
    %v7074 = vunpack.c.h.b16 %v5856
    %v7075 = vunpack.c.l.b16 %v5857
    %v7076 = vunpack.c.h.b16 %v5857
    %v7077 = vunpack.c.l.b16 %v5858
    %v7078 = vunpack.c.h.b16 %v5858
    %v7079 = vunpack.c.l.b16 %v5859
    %v7080 = vunpack.c.h.b16 %v5859
    %v7081 = vunpack.c.l.b16 %v5860
    %v7082 = vunpack.c.h.b16 %v5860
    %v7083 = vunpack.c.l.b16 %v5861
    %v7084 = vunpack.c.h.b16 %v5861
    %v7085 = vunpack.c.l.b16 %v5862
    %v7086 = vunpack.c.h.b16 %v5862
    %v7087 = vunpack.c.l.b16 %v5863
    %v7088 = vunpack.c.h.b16 %v5863
    %v7089 = vunpack.c.l.b16 %v5864
    %v7090 = vunpack.c.h.b16 %v5864
    %v7091 = vunpack.c.l.b16 %v5865
    %v7092 = vunpack.c.h.b16 %v5865
    %v7093 = vunpack.c.l.b16 %v5866
    %v7094 = vunpack.c.h.b16 %v5866
    %v7095 = vunpack.c.l.b16 %v5867
    %v7096 = vunpack.c.h.b16 %v5867
    %v7097 = vunpack.c.l.b16 %v5868
    %v7098 = vunpack.c.h.b16 %v5868
    %v7099 = vunpack.c.l.b16 %v5869
    %v7100 = vunpack.c.h.b16 %v5869
    %v7101 = vunpack.c.l.b16 %v5870
    %v7102 = vunpack.c.h.b16 %v5870
    %v7103 = vunpack.c.l.b16 %v5871
    %v7104 = vunpack.c.h.b16 %v5871
    %v7105 = vunpack.c.l.b16 %v5872
    %v7106 = vunpack.c.h.b16 %v5872
    %v7107 = vunpack.c.l.b16 %v5873
    %v7108 = vunpack.c.h.b16 %v5873
    %v7109 = vunpack.c.l.b16 %v5874
    %v7110 = vunpack.c.h.b16 %v5874
    %v7111 = vunpack.c.l.b16 %v5875
    %v7112 = vunpack.c.h.b16 %v5875
    %v7113 = vunpack.c.l.b16 %v5876
    %v7114 = vunpack.c.h.b16 %v5876
    %v7115 = vunpack.c.l.b16 %v5877
    %v7116 = vunpack.c.h.b16 %v5877
    %v7117 = vunpack.c.l.b16 %v5878
    %v7118 = vunpack.c.h.b16 %v5878
    %v7119 = vunpack.c.l.b16 %v5879
    %v7120 = vunpack.c.h.b16 %v5879
    %v7121 = vunpack.c.l.b16 %v5880
    %v7122 = vunpack.c.h.b16 %v5880
    %v7123 = vunpack.c.l.b16 %v5881
    %v7124 = vunpack.c.h.b16 %v5881
    %v7125 = vunpack.c.l.b16 %v5882
    %v7126 = vunpack.c.h.b16 %v5882
    %v7127 = vunpack.c.l.b16 %v5883
    %v7128 = vunpack.c.h.b16 %v5883
    %v7129 = vunpack.c.l.b16 %v5884
    %v7130 = vunpack.c.h.b16 %v5884
    %v7131 = vunpack.c.l.b16 %v5885
    %v7132 = vunpack.c.h.b16 %v5885
    %v7133 = vunpack.c.l.b16 %v5886
    %v7134 = vunpack.c.h.b16 %v5886
    %v7135 = vunpack.c.l.b16 %v5887
    %v7136 = vunpack.c.h.b16 %v5887
    %v7137 = vunpack.c.l.b16 %v5888
    %v7138 = vunpack.c.h.b16 %v5888
    %v7139 = vunpack.c.l.b16 %v5889
    %v7140 = vunpack.c.h.b16 %v5889
    %v7141 = vunpack.c.l.b16 %v5890
    %v7142 = vunpack.c.h.b16 %v5890
    %v7143 = vunpack.c.l.b16 %v5891
    %v7144 = vunpack.c.h.b16 %v5891
    %v7145 = vunpack.c.l.b16 %v5892
    %v7146 = vunpack.c.h.b16 %v5892
    %v7147 = vunpack.c.l.b16 %v5893
    %v7148 = vunpack.c.h.b16 %v5893
    %v7149 = vunpack.c.l.b16 %v5894
    %v7150 = vunpack.c.h.b16 %v5894
    %v7151 = vunpack.c.l.b16 %v5895
    %v7152 = vunpack.c.h.b16 %v5895
    %v7153 = vunpack.c.l.b16 %v5896
    %v7154 = vunpack.c.h.b16 %v5896
    %v7155 = vunpack.c.l.b16 %v5897
    %v7156 = vunpack.c.h.b16 %v5897
    %v7157 = vunpack.c.l.b16 %v5898
    %v7158 = vunpack.c.h.b16 %v5898
    %v7159 = vunpack.c.l.b16 %v5899
    %v7160 = vunpack.c.h.b16 %v5899
    %v7161 = vunpack.c.l.b16 %v5900
    %v7162 = vunpack.c.h.b16 %v5900
    %v7163 = vunpack.c.l.b16 %v5901
    %v7164 = vunpack.c.h.b16 %v5901
    %v7165 = vunpack.c.l.b16 %v5902
    %v7166 = vunpack.c.h.b16 %v5902
    %v7167 = vunpack.c.l.b16 %v5903
    %v7168 = vunpack.c.h.b16 %v5903
    %v7169 = vunpack.c.l.b16 %v5904
    %v7170 = vunpack.c.h.b16 %v5904
    %v7171 = vunpack.c.l.b16 %v5905
    %v7172 = vunpack.c.h.b16 %v5905
    %v7173 = vunpack.c.l.b16 %v5906
    %v7174 = vunpack.c.h.b16 %v5906
    %v7175 = vunpack.c.l.b16 %v5907
    %v7176 = vunpack.c.h.b16 %v5907
    %v7177 = vunpack.c.l.b16 %v5908
    %v7178 = vunpack.c.h.b16 %v5908
    %v7179 = vunpack.c.l.b16 %v5909
    %v7180 = vunpack.c.h.b16 %v5909
    %v7181 = vunpack.c.l.b16 %v5910
    %v7182 = vunpack.c.h.b16 %v5910
    %v7183 = vunpack.c.l.b16 %v5911
    %v7184 = vunpack.c.h.b16 %v5911
    %v7185 = vunpack.c.l.b16 %v5912
    %v7186 = vunpack.c.h.b16 %v5912
    %v7187 = vunpack.c.l.b16 %v5913
    %v7188 = vunpack.c.h.b16 %v5913
    %v7189 = vunpack.c.l.b16 %v5914
    %v7190 = vunpack.c.h.b16 %v5914
    %v7191 = vunpack.c.l.b16 %v5915
    %v7192 = vunpack.c.h.b16 %v5915
    %v7193 = vunpack.c.l.b16 %v5916
    %v7194 = vunpack.c.h.b16 %v5916
    %v7195 = vunpack.c.l.b16 %v5917
    %v7196 = vunpack.c.h.b16 %v5917
    %v7197 = vunpack.c.l.b16 %v5918
    %v7198 = vunpack.c.h.b16 %v5918
    %v7199 = vunpack.c.l.b16 %v5919
    %v7200 = vunpack.c.h.b16 %v5919
    %v7201 = vunpack.c.l.b16 %v5920
    %v7202 = vunpack.c.h.b16 %v5920
    %v7203 = vunpack.c.l.b16 %v5921
    %v7204 = vunpack.c.h.b16 %v5921
    %v7205 = vunpack.c.l.b16 %v5922
    %v7206 = vunpack.c.h.b16 %v5922
    %v7207 = vunpack.c.l.b16 %v5923
    %v7208 = vunpack.c.h.b16 %v5923
    %v7209 = vunpack.c.l.b16 %v5924
    %v7210 = vunpack.c.h.b16 %v5924
    %v7211 = vunpack.c.l.b16 %v5925
    %v7212 = vunpack.c.h.b16 %v5925
    %v7213 = vunpack.c.l.b16 %v5926
    %v7214 = vunpack.c.h.b16 %v5926
    %v7215 = vunpack.c.l.b16 %v5927
    %v7216 = vunpack.c.h.b16 %v5927
    %v7217 = vunpack.c.l.b16 %v5928
    %v7218 = vunpack.c.h.b16 %v5928
    %v7219 = vunpack.c.l.b16 %v5929
    %v7220 = vunpack.c.h.b16 %v5929
    %v7221 = vunpack.c.l.b16 %v5930
    %v7222 = vunpack.c.h.b16 %v5930
    %v7223 = vunpack.c.l.b16 %v5931
    %v7224 = vunpack.c.h.b16 %v5931
    %v7225 = vunpack.c.l.b16 %v5932
    %v7226 = vunpack.c.h.b16 %v5932
    %v7227 = vunpack.c.l.b16 %v5933
    %v7228 = vunpack.c.h.b16 %v5933
    %v7229 = vunpack.c.l.b16 %v5934
    %v7230 = vunpack.c.h.b16 %v5934
    %v7231 = vunpack.c.l.b16 %v5935
    %v7232 = vunpack.c.h.b16 %v5935
    %v7233 = vunpack.c.l.b16 %v5936
    %v7234 = vunpack.c.h.b16 %v5936
    %v7235 = vunpack.c.l.b16 %v5937
    %v7236 = vunpack.c.h.b16 %v5937
    %v7237 = vunpack.c.l.b16 %v5938
    %v7238 = vunpack.c.h.b16 %v5938
    %v7239 = vunpack.c.l.b16 %v5939
    %v7240 = vunpack.c.h.b16 %v5939
    %v7241 = vunpack.c.l.b16 %v5940
    %v7242 = vunpack.c.h.b16 %v5940
    %v7243 = vunpack.c.l.b16 %v5941
    %v7244 = vunpack.c.h.b16 %v5941
    %v7245 = vunpack.c.l.b16 %v5942
    %v7246 = vunpack.c.h.b16 %v5942
    %v7247 = vunpack.c.l.b16 %v5943
    %v7248 = vunpack.c.h.b16 %v5943
    %v7249 = vunpack.c.l.b16 %v5944
    %v7250 = vunpack.c.h.b16 %v5944
    %v7251 = vunpack.c.l.b16 %v5945
    %v7252 = vunpack.c.h.b16 %v5945
    %v7253 = vunpack.c.l.b16 %v5946
    %v7254 = vunpack.c.h.b16 %v5946
    %v7255 = vunpack.c.l.b16 %v5947
    %v7256 = vunpack.c.h.b16 %v5947
    %v7257 = vunpack.c.l.b16 %v5948
    %v7258 = vunpack.c.h.b16 %v5948
    %v7259 = vunpack.c.l.b16 %v5949
    %v7260 = vunpack.c.h.b16 %v5949
    %v7261 = vunpack.c.l.b16 %v5950
    %v7262 = vunpack.c.h.b16 %v5950
    %v7263 = vunpack.c.l.b16 %v5951
    %v7264 = vunpack.c.h.b16 %v5951
    %v7265 = vunpack.c.l.b16 %v5952
    %v7266 = vunpack.c.h.b16 %v5952
    %v7267 = vunpack.c.l.b16 %v5953
    %v7268 = vunpack.c.h.b16 %v5953
    %v7269 = vunpack.c.l.b16 %v5954
    %v7270 = vunpack.c.h.b16 %v5954
    %v7271 = vunpack.c.l.b16 %v5955
    %v7272 = vunpack.c.h.b16 %v5955
    %v7273 = vunpack.c.l.b16 %v5956
    %v7274 = vunpack.c.h.b16 %v5956
    %v7275 = vunpack.c.l.b16 %v5957
    %v7276 = vunpack.c.h.b16 %v5957
    %v7277 = vunpack.c.l.b16 %v5958
    %v7278 = vunpack.c.h.b16 %v5958
    %v7279 = vunpack.c.l.b16 %v5959
    %v7280 = vunpack.c.h.b16 %v5959
    %v7281 = vunpack.c.l.b16 %v5960
    %v7282 = vunpack.c.h.b16 %v5960
    %v7283 = vunpack.c.l.b16 %v5961
    %v7284 = vunpack.c.h.b16 %v5961
    %v7285 = vunpack.c.l.b16 %v5962
    %v7286 = vunpack.c.h.b16 %v5962
    %v7287 = vunpack.c.l.b16 %v5963
    %v7288 = vunpack.c.h.b16 %v5963
    %v7289 = vunpack.c.l.b16 %v5964
    %v7290 = vunpack.c.h.b16 %v5964
    %v7291 = vunpack.c.l.b16 %v5965
    %v7292 = vunpack.c.h.b16 %v5965
    %v7293 = vunpack.c.l.b16 %v5966
    %v7294 = vunpack.c.h.b16 %v5966
    %v7295 = vunpack.c.l.b16 %v5967
    %v7296 = vunpack.c.h.b16 %v5967
    %v7297 = vunpack.c.l.b16 %v5968
    %v7298 = vunpack.c.h.b16 %v5968
    %v7299 = vunpack.c.l.b16 %v5969
    %v7300 = vunpack.c.h.b16 %v5969
    %v7301 = vunpack.c.l.b16 %v5970
    %v7302 = vunpack.c.h.b16 %v5970
    %v7303 = vunpack.c.l.b16 %v5971
    %v7304 = vunpack.c.h.b16 %v5971
    %v7305 = vunpack.c.l.b16 %v5972
    %v7306 = vunpack.c.h.b16 %v5972
    %v7307 = vunpack.c.l.b16 %v5973
    %v7308 = vunpack.c.h.b16 %v5973
    %v7309 = vunpack.c.l.b16 %v5974
    %v7310 = vunpack.c.h.b16 %v5974
    %v7311 = vunpack.c.l.b16 %v5975
    %v7312 = vunpack.c.h.b16 %v5975
    %v7313 = vunpack.c.l.b16 %v5976
    %v7314 = vunpack.c.h.b16 %v5976
    %v7315 = vunpack.c.l.b16 %v5977
    %v7316 = vunpack.c.h.b16 %v5977
    %v7317 = vunpack.c.l.b16 %v5978
    %v7318 = vunpack.c.h.b16 %v5978
    %v7319 = vunpack.c.l.b16 %v5979
    %v7320 = vunpack.c.h.b16 %v5979
    %v7321 = vunpack.c.l.b16 %v5980
    %v7322 = vunpack.c.h.b16 %v5980
    %v7323 = vunpack.c.l.b16 %v5981
    %v7324 = vunpack.c.h.b16 %v5981
    %v7325 = vunpack.c.l.b16 %v5982
    %v7326 = vunpack.c.h.b16 %v5982
    %v7327 = vunpack.c.l.b16 %v5983
    %v7328 = vunpack.c.h.b16 %v5983
    %v7329 = vunpack.c.l.b16 %v5984
    %v7330 = vunpack.c.h.b16 %v5984
    %v7331 = vunpack.c.l.b16 %v5985
    %v7332 = vunpack.c.h.b16 %v5985
    %v7333 = vunpack.c.l.b16 %v5986
    %v7334 = vunpack.c.h.b16 %v5986
    %v7335 = vunpack.c.l.b16 %v5987
    %v7336 = vunpack.c.h.b16 %v5987
    %v7337 = vunpack.c.l.b16 %v5988
    %v7338 = vunpack.c.h.b16 %v5988
    %v7339 = vunpack.c.l.b16 %v5989
    %v7340 = vunpack.c.h.b16 %v5989
    %v7341 = vunpack.c.l.b16 %v5990
    %v7342 = vunpack.c.h.b16 %v5990
    %v7343 = vunpack.c.l.b16 %v5991
    %v7344 = vunpack.c.h.b16 %v5991
    %v7345 = vunpack.c.l.b16 %v5992
    %v7346 = vunpack.c.h.b16 %v5992
    %v7347 = vunpack.c.l.b16 %v5993
    %v7348 = vunpack.c.h.b16 %v5993
    %v7349 = vunpack.c.l.b16 %v5994
    %v7350 = vunpack.c.h.b16 %v5994
    %v7351 = vunpack.c.l.b16 %v5995
    %v7352 = vunpack.c.h.b16 %v5995
    %v7353 = vunpack.c.l.b16 %v5996
    %v7354 = vunpack.c.h.b16 %v5996
    %v7355 = vunpack.c.l.b16 %v5997
    %v7356 = vunpack.c.h.b16 %v5997
    %v7357 = vunpack.c.l.b16 %v5998
    %v7358 = vunpack.c.h.b16 %v5998
    %v7359 = vunpack.c.l.b16 %v5999
    %v7360 = vunpack.c.h.b16 %v5999
    %v7361 = vunpack.c.l.b16 %v6000
    %v7362 = vunpack.c.h.b16 %v6000
    %v7363 = vunpack.c.l.b16 %v6001
    %v7364 = vunpack.c.h.b16 %v6001
    %v7365 = vunpack.c.l.b16 %v6002
    %v7366 = vunpack.c.h.b16 %v6002
    %v7367 = vunpack.c.l.b16 %v6003
    %v7368 = vunpack.c.h.b16 %v6003
    %v7369 = vunpack.c.l.b16 %v6004
    %v7370 = vunpack.c.h.b16 %v6004
    %v7371 = vunpack.c.l.b16 %v6005
    %v7372 = vunpack.c.h.b16 %v6005
    %v7373 = vunpack.c.l.b16 %v6006
    %v7374 = vunpack.c.h.b16 %v6006
    %v7375 = vunpack.c.l.b16 %v6007
    %v7376 = vunpack.c.h.b16 %v6007
    %v7377 = vunpack.c.l.b16 %v6008
    %v7378 = vunpack.c.h.b16 %v6008
    %v7379 = vunpack.c.l.b16 %v6009
    %v7380 = vunpack.c.h.b16 %v6009
    %v7381 = vunpack.c.l.b16 %v6010
    %v7382 = vunpack.c.h.b16 %v6010
    %v7383 = vunpack.c.l.b16 %v6011
    %v7384 = vunpack.c.h.b16 %v6011
    %v7385 = vunpack.c.l.b16 %v6012
    %v7386 = vunpack.c.h.b16 %v6012
    %v7387 = vunpack.c.l.b16 %v6013
    %v7388 = vunpack.c.h.b16 %v6013
    %v7389 = vunpack.c.l.b16 %v6014
    %v7390 = vunpack.c.h.b16 %v6014
    %v7391 = vunpack.c.l.b16 %v6015
    %v7392 = vunpack.c.h.b16 %v6015
    %v7393 = vunpack.c.l.b16 %v6016
    %v7394 = vunpack.c.h.b16 %v6016
    %v7395 = vunpack.c.l.b16 %v6017
    %v7396 = vunpack.c.h.b16 %v6017
    %v7397 = vunpack.c.l.b16 %v6018
    %v7398 = vunpack.c.h.b16 %v6018
    %v7399 = vunpack.c.l.b16 %v6019
    %v7400 = vunpack.c.h.b16 %v6019
    %v7401 = vunpack.c.l.b16 %v6020
    %v7402 = vunpack.c.h.b16 %v6020
    %v7403 = vunpack.c.l.b16 %v6021
    %v7404 = vunpack.c.h.b16 %v6021
    %v7405 = vunpack.c.l.b16 %v6022
    %v7406 = vunpack.c.h.b16 %v6022
    %v7407 = vunpack.c.l.b16 %v6023
    %v7408 = vunpack.c.h.b16 %v6023
    %v7409 = vunpack.c.l.b16 %v6024
    %v7410 = vunpack.c.h.b16 %v6024
    %v7411 = vunpack.c.l.b16 %v6025
    %v7412 = vunpack.c.h.b16 %v6025
    %v7413 = vunpack.c.l.b16 %v6026
    %v7414 = vunpack.c.h.b16 %v6026
    %v7415 = vunpack.c.l.b16 %v6027
    %v7416 = vunpack.c.h.b16 %v6027
    %v7417 = vunpack.c.l.b16 %v6028
    %v7418 = vunpack.c.h.b16 %v6028
    %v7419 = vunpack.c.l.b16 %v6029
    %v7420 = vunpack.c.h.b16 %v6029
    %v7421 = vunpack.c.l.b16 %v6030
    %v7422 = vunpack.c.h.b16 %v6030
    %v7423 = vunpack.c.l.b16 %v6031
    %v7424 = vunpack.c.h.b16 %v6031
    %v7425 = vunpack.c.l.b16 %v6032
    %v7426 = vunpack.c.h.b16 %v6032
    %v7427 = vunpack.c.l.b16 %v6033
    %v7428 = vunpack.c.h.b16 %v6033
    %v7429 = vunpack.c.l.b16 %v6034
    %v7430 = vunpack.c.h.b16 %v6034
    %v7431 = vunpack.c.l.b16 %v6035
    %v7432 = vunpack.c.h.b16 %v6035
    %v7433 = vunpack.c.l.b16 %v6036
    %v7434 = vunpack.c.h.b16 %v6036
    %v7435 = vunpack.c.l.b16 %v6037
    %v7436 = vunpack.c.h.b16 %v6037
    %v7437 = vunpack.c.l.b16 %v6038
    %v7438 = vunpack.c.h.b16 %v6038
    %v7439 = vunpack.c.l.b16 %v6039
    %v7440 = vunpack.c.h.b16 %v6039
    %v7441 = vunpack.c.l.b16 %v6040
    %v7442 = vunpack.c.h.b16 %v6040
    %v7443 = vunpack.c.l.b16 %v6041
    %v7444 = vunpack.c.h.b16 %v6041
    %v7445 = vunpack.c.l.b16 %v6042
    %v7446 = vunpack.c.h.b16 %v6042
    %v7447 = vunpack.c.l.b16 %v6043
    %v7448 = vunpack.c.h.b16 %v6043
    %v7449 = vunpack.c.l.b16 %v6044
    %v7450 = vunpack.c.h.b16 %v6044
    %v7451 = vunpack.c.l.b16 %v6045
    %v7452 = vunpack.c.h.b16 %v6045
    %v7453 = vunpack.c.l.b16 %v6046
    %v7454 = vunpack.c.h.b16 %v6046
    %v7455 = vunpack.c.l.b16 %v6047
    %v7456 = vunpack.c.h.b16 %v6047
    %v7457 = vunpack.c.l.b16 %v6048
    %v7458 = vunpack.c.h.b16 %v6048
    %v7459 = vunpack.c.l.b16 %v6049
    %v7460 = vunpack.c.h.b16 %v6049
    %v7461 = vunpack.c.l.b16 %v6050
    %v7462 = vunpack.c.h.b16 %v6050
    %v7463 = vunpack.c.l.b16 %v6051
    %v7464 = vunpack.c.h.b16 %v6051
    %v7465 = vunpack.c.l.b16 %v6052
    %v7466 = vunpack.c.h.b16 %v6052
    %v7467 = vunpack.c.l.b16 %v6053
    %v7468 = vunpack.c.h.b16 %v6053
    %v7469 = vunpack.c.l.b16 %v6054
    %v7470 = vunpack.c.h.b16 %v6054
    %v7471 = vunpack.c.l.b16 %v6055
    %v7472 = vunpack.c.h.b16 %v6055
    %v7473 = vunpack.c.l.b16 %v6056
    %v7474 = vunpack.c.h.b16 %v6056
    %v7475 = vunpack.c.l.b16 %v6057
    %v7476 = vunpack.c.h.b16 %v6057
    %v7477 = vunpack.c.l.b16 %v6058
    %v7478 = vunpack.c.h.b16 %v6058
    %v7479 = vunpack.c.l.b16 %v6059
    %v7480 = vunpack.c.h.b16 %v6059
    %v7481 = vunpack.c.l.b16 %v6060
    %v7482 = vunpack.c.h.b16 %v6060
    %v7483 = vunpack.c.l.b16 %v6061
    %v7484 = vunpack.c.h.b16 %v6061
    %v7485 = vunpack.c.l.b16 %v6062
    %v7486 = vunpack.c.h.b16 %v6062
    %v7487 = vunpack.c.l.b16 %v6063
    %v7488 = vunpack.c.h.b16 %v6063
    %v7489 = vunpack.c.l.b16 %v6064
    %v7490 = vunpack.c.h.b16 %v6064
    %v7491 = vunpack.c.l.b16 %v6065
    %v7492 = vunpack.c.h.b16 %v6065
    %v7493 = vunpack.c.l.b16 %v6066
    %v7494 = vunpack.c.h.b16 %v6066
    %v7495 = vunpack.c.l.b16 %v6067
    %v7496 = vunpack.c.h.b16 %v6067
    %v7497 = vunpack.c.l.b16 %v6068
    %v7498 = vunpack.c.h.b16 %v6068
    %v7499 = vunpack.c.l.b16 %v6069
    %v7500 = vunpack.c.h.b16 %v6069
    %v7501 = vunpack.c.l.b16 %v6070
    %v7502 = vunpack.c.h.b16 %v6070
    %v7503 = vunpack.c.l.b16 %v6071
    %v7504 = vunpack.c.h.b16 %v6071
    %v7505 = vunpack.c.l.b16 %v6072
    %v7506 = vunpack.c.h.b16 %v6072
    %v7507 = vunpack.c.l.b16 %v6073
    %v7508 = vunpack.c.h.b16 %v6073
    %v7509 = vunpack.c.l.b16 %v6074
    %v7510 = vunpack.c.h.b16 %v6074
    %v7511 = vunpack.c.l.b16 %v6075
    %v7512 = vunpack.c.h.b16 %v6075
    %v7513 = vunpack.c.l.b16 %v6076
    %v7514 = vunpack.c.h.b16 %v6076
    %v7515 = vunpack.c.l.b16 %v6077
    %v7516 = vunpack.c.h.b16 %v6077
    %v7517 = vunpack.c.l.b16 %v6078
    %v7518 = vunpack.c.h.b16 %v6078
    %v7519 = vunpack.c.l.b16 %v6079
    %v7520 = vunpack.c.h.b16 %v6079
    %v7521 = vunpack.c.l.b16 %v6080
    %v7522 = vunpack.c.h.b16 %v6080
    %v7523 = vunpack.c.l.b16 %v6081
    %v7524 = vunpack.c.h.b16 %v6081
    %v7525 = vunpack.c.l.b16 %v6082
    %v7526 = vunpack.c.h.b16 %v6082
    %v7527 = vunpack.c.l.b16 %v6083
    %v7528 = vunpack.c.h.b16 %v6083
    %v7529 = vunpack.c.l.b16 %v6084
    %v7530 = vunpack.c.h.b16 %v6084
    %v7531 = vunpack.c.l.b16 %v6085
    %v7532 = vunpack.c.h.b16 %v6085
    %v7533 = vunpack.c.l.b16 %v6086
    %v7534 = vunpack.c.h.b16 %v6086
    %v7535 = vunpack.c.l.b16 %v6087
    %v7536 = vunpack.c.h.b16 %v6087
    %v7537 = vunpack.c.l.b16 %v6088
    %v7538 = vunpack.c.h.b16 %v6088
    %v7539 = vunpack.c.l.b16 %v6089
    %v7540 = vunpack.c.h.b16 %v6089
    %v7541 = vunpack.c.l.b16 %v6090
    %v7542 = vunpack.c.h.b16 %v6090
    %v7543 = vunpack.c.l.b16 %v6091
    %v7544 = vunpack.c.h.b16 %v6091
    %v7545 = vunpack.c.l.b16 %v6092
    %v7546 = vunpack.c.h.b16 %v6092
    %v7547 = vunpack.c.l.b16 %v6093
    %v7548 = vunpack.c.h.b16 %v6093
    %v7549 = vunpack.c.l.b16 %v6094
    %v7550 = vunpack.c.h.b16 %v6094
    %v7551 = vunpack.c.l.b16 %v6095
    %v7552 = vunpack.c.h.b16 %v6095
    %v7553 = vunpack.c.l.b16 %v6096
    %v7554 = vunpack.c.h.b16 %v6096
    %v7555 = vunpack.c.l.b16 %v6097
    %v7556 = vunpack.c.h.b16 %v6097
    %v7557 = vunpack.c.l.b16 %v6098
    %v7558 = vunpack.c.h.b16 %v6098
    %v7559 = vunpack.c.l.b16 %v6099
    %v7560 = vunpack.c.h.b16 %v6099
    %v7561 = vunpack.c.l.b16 %v6100
    %v7562 = vunpack.c.h.b16 %v6100
    %v7563 = vunpack.c.l.b16 %v6101
    %v7564 = vunpack.c.h.b16 %v6101
    %v7565 = vunpack.c.l.b16 %v6102
    %v7566 = vunpack.c.h.b16 %v6102
    %v7567 = vunpack.c.l.b16 %v6103
    %v7568 = vunpack.c.h.b16 %v6103
    %v7569 = vunpack.c.l.b16 %v6104
    %v7570 = vunpack.c.h.b16 %v6104
    %v7571 = vunpack.c.l.b16 %v6105
    %v7572 = vunpack.c.h.b16 %v6105
    %v7573 = vunpack.c.l.b16 %v6106
    %v7574 = vunpack.c.h.b16 %v6106
    %v7575 = vunpack.c.l.b16 %v6107
    %v7576 = vunpack.c.h.b16 %v6107
    %v7577 = vunpack.c.l.b16 %v6108
    %v7578 = vunpack.c.h.b16 %v6108
    %v7579 = vunpack.c.l.b16 %v6109
    %v7580 = vunpack.c.h.b16 %v6109
    %v7581 = vunpack.c.l.b16 %v6110
    %v7582 = vunpack.c.h.b16 %v6110
    %v7583 = vunpack.c.l.b16 %v6111
    %v7584 = vunpack.c.h.b16 %v6111
    %v7585 = vunpack.c.l.b16 %v6112
    %v7586 = vunpack.c.h.b16 %v6112
    %v7587 = vunpack.c.l.b16 %v6113
    %v7588 = vunpack.c.h.b16 %v6113
    %v7589 = vunpack.c.l.b16 %v6114
    %v7590 = vunpack.c.h.b16 %v6114
    %v7591 = vunpack.c.l.b16 %v6115
    %v7592 = vunpack.c.h.b16 %v6115
    %v7593 = vunpack.c.l.b16 %v6116
    %v7594 = vunpack.c.h.b16 %v6116
    %v7595 = vunpack.c.l.b16 %v6117
    %v7596 = vunpack.c.h.b16 %v6117
    %v7597 = vunpack.c.l.b16 %v6118
    %v7598 = vunpack.c.h.b16 %v6118
    %v7599 = vunpack.c.l.b16 %v6119
    %v7600 = vunpack.c.h.b16 %v6119
    %v7601 = vunpack.c.l.b16 %v6120
    %v7602 = vunpack.c.h.b16 %v6120
    %v7603 = vunpack.c.l.b16 %v6121
    %v7604 = vunpack.c.h.b16 %v6121
    %v7605 = vunpack.c.l.b16 %v6122
    %v7606 = vunpack.c.h.b16 %v6122
    %v7607 = vunpack.c.l.b16 %v6123
    %v7608 = vunpack.c.h.b16 %v6123
    %v7609 = vunpack.c.l.b16 %v6124
    %v7610 = vunpack.c.h.b16 %v6124
    %v7611 = vunpack.c.l.b16 %v6125
    %v7612 = vunpack.c.h.b16 %v6125
    %v7613 = vunpack.c.l.b16 %v6126
    %v7614 = vunpack.c.h.b16 %v6126
    %v7615 = vunpack.c.l.b16 %v6127
    %v7616 = vunpack.c.h.b16 %v6127
    %v7617 = vunpack.c.l.b16 %v6128
    %v7618 = vunpack.c.h.b16 %v6128
    %v7619 = vunpack.c.l.b16 %v6129
    %v7620 = vunpack.c.h.b16 %v6129
    %v7621 = vunpack.c.l.b16 %v6130
    %v7622 = vunpack.c.h.b16 %v6130
    %v7623 = vunpack.c.l.b16 %v6131
    %v7624 = vunpack.c.h.b16 %v6131
    %v7625 = vunpack.c.l.b16 %v6132
    %v7626 = vunpack.c.h.b16 %v6132
    %v7627 = vunpack.c.l.b16 %v6133
    %v7628 = vunpack.c.h.b16 %v6133
    %v7629 = vunpack.c.l.b16 %v6134
    %v7630 = vunpack.c.h.b16 %v6134
    %v7631 = vunpack.c.l.b16 %v6135
    %v7632 = vunpack.c.h.b16 %v6135
    %v7633 = vunpack.c.l.b16 %v6136
    %v7634 = vunpack.c.h.b16 %v6136
    %v7635 = vunpack.c.l.b16 %v6137
    %v7636 = vunpack.c.h.b16 %v6137
    %v7637 = vunpack.c.l.b16 %v6138
    %v7638 = vunpack.c.h.b16 %v6138
    %v7639 = vunpack.c.l.b16 %v6139
    %v7640 = vunpack.c.h.b16 %v6139
    %v7641 = vunpack.c.l.b16 %v6140
    %v7642 = vunpack.c.h.b16 %v6140
    %v7643 = vunpack.c.l.b16 %v6141
    %v7644 = vunpack.c.h.b16 %v6141
    %v7645 = vunpack.c.l.b16 %v6142
    %v7646 = vunpack.c.h.b16 %v6142
    %v7647 = vunpack.c.l.b16 %v6143
    %v7648 = vunpack.c.h.b16 %v6143
    %v7649 = vunpack.c.l.b16 %v6144
    %v7650 = vunpack.c.h.b16 %v6144
    %v7651 = vunpack.c.l.b16 %v6145
    %v7652 = vunpack.c.h.b16 %v6145
    %v7653 = vunpack.c.l.b16 %v6146
    %v7654 = vunpack.c.h.b16 %v6146
    %v7655 = vunpack.c.l.b16 %v6147
    %v7656 = vunpack.c.h.b16 %v6147
    %v7657 = vunpack.c.l.b16 %v6148
    %v7658 = vunpack.c.h.b16 %v6148
    %v7659 = vunpack.c.l.b16 %v6149
    %v7660 = vunpack.c.h.b16 %v6149
    %v7661 = vunpack.c.l.b16 %v6150
    %v7662 = vunpack.c.h.b16 %v6150
    %v7663 = vunpack.c.l.b16 %v6151
    %v7664 = vunpack.c.h.b16 %v6151
    %v7665 = vunpack.c.l.b16 %v6152
    %v7666 = vunpack.c.h.b16 %v6152
    %v7667 = vunpack.c.l.b16 %v6153
    %v7668 = vunpack.c.h.b16 %v6153
    %v7669 = vunpack.c.l.b16 %v6154
    %v7670 = vunpack.c.h.b16 %v6154
    %v7671 = vunpack.c.l.b16 %v6155
    %v7672 = vunpack.c.h.b16 %v6155
    %v7673 = vunpack.c.l.b16 %v6156
    %v7674 = vunpack.c.h.b16 %v6156
    %v7675 = vunpack.c.l.b16 %v6157
    %v7676 = vunpack.c.h.b16 %v6157
    %v7677 = vunpack.c.l.b16 %v6158
    %v7678 = vunpack.c.h.b16 %v6158
    %v7679 = vunpack.c.l.b16 %v6159
    %v7680 = vunpack.c.h.b16 %v6159
    %v7681 = vunpack.c.l.b16 %v6160
    %v7682 = vunpack.c.h.b16 %v6160
    %v7683 = vunpack.c.l.b16 %v6161
    %v7684 = vunpack.c.h.b16 %v6161
    %v7685 = vunpack.c.l.b16 %v6162
    %v7686 = vunpack.c.h.b16 %v6162
    %v7687 = vunpack.c.l.b16 %v6163
    %v7688 = vunpack.c.h.b16 %v6163
    %v7689 = vunpack.c.l.b16 %v6164
    %v7690 = vunpack.c.h.b16 %v6164
    %v7691 = vunpack.c.l.b16 %v6165
    %v7692 = vunpack.c.h.b16 %v6165
    %v7693 = vunpack.c.l.b16 %v6166
    %v7694 = vunpack.c.h.b16 %v6166
    %v7695 = vunpack.c.l.b16 %v6167
    %v7696 = vunpack.c.h.b16 %v6167
    %v7697 = vunpack.c.l.b16 %v6168
    %v7698 = vunpack.c.h.b16 %v6168
    %v7699 = vunpack.c.l.b16 %v6169
    %v7700 = vunpack.c.h.b16 %v6169
    %v7701 = vunpack.c.l.b16 %v6170
    %v7702 = vunpack.c.h.b16 %v6170
    %v7703 = vunpack.c.l.b16 %v6171
    %v7704 = vunpack.c.h.b16 %v6171
    %v7705 = vunpack.c.l.b16 %v6172
    %v7706 = vunpack.c.h.b16 %v6172
    %v7707 = vunpack.c.l.b16 %v6173
    %v7708 = vunpack.c.h.b16 %v6173
    %v7709 = vunpack.c.l.b16 %v6174
    %v7710 = vunpack.c.h.b16 %v6174
    %v7711 = vunpack.c.l.b16 %v6175
    %v7712 = vunpack.c.h.b16 %v6175
    %v7713 = vunpack.c.l.b16 %v6176
    %v7714 = vunpack.c.h.b16 %v6176
    %v7715 = vunpack.c.l.b16 %v6177
    %v7716 = vunpack.c.h.b16 %v6177
    %v7717 = vunpack.c.l.b16 %v6178
    %v7718 = vunpack.c.h.b16 %v6178
    %v7719 = vunpack.c.l.b16 %v6179
    %v7720 = vunpack.c.h.b16 %v6179
    %v7721 = vunpack.c.l.b16 %v6180
    %v7722 = vunpack.c.h.b16 %v6180
    %v7723 = vunpack.c.l.b16 %v6181
    %v7724 = vunpack.c.h.b16 %v6181
    %v7725 = vunpack.c.l.b16 %v6182
    %v7726 = vunpack.c.h.b16 %v6182
    %v7727 = vunpack.c.l.b16 %v6183
    %v7728 = vunpack.c.h.b16 %v6183
    %v7729 = vunpack.c.l.b16 %v6184
    %v7730 = vunpack.c.h.b16 %v6184
    %v7731 = vunpack.c.l.b16 %v6185
    %v7732 = vunpack.c.h.b16 %v6185
    %v7733 = vunpack.c.l.b16 %v6186
    %v7734 = vunpack.c.h.b16 %v6186
    %v7735 = vunpack.c.l.b16 %v6187
    %v7736 = vunpack.c.h.b16 %v6187
    %v7737 = vunpack.c.l.b16 %v6188
    %v7738 = vunpack.c.h.b16 %v6188
    %v7739 = vunpack.c.l.b16 %v6189
    %v7740 = vunpack.c.h.b16 %v6189
    %v7741 = vunpack.c.l.b16 %v6190
    %v7742 = vunpack.c.h.b16 %v6190
    %v7743 = vunpack.c.l.b16 %v6191
    %v7744 = vunpack.c.h.b16 %v6191
    %v7745 = vunpack.c.l.b16 %v6192
    %v7746 = vunpack.c.h.b16 %v6192
    %v7747 = vunpack.c.l.b16 %v6193
    %v7748 = vunpack.c.h.b16 %v6193
    %v7749 = vunpack.c.l.b16 %v6194
    %v7750 = vunpack.c.h.b16 %v6194
    %v7751 = vunpack.c.l.b16 %v6195
    %v7752 = vunpack.c.h.b16 %v6195
    %v7753 = vunpack.c.l.b16 %v6196
    %v7754 = vunpack.c.h.b16 %v6196
    %v7755 = vpack.c.b16 %v6735, %v6731
    %v7756 = vpack.c.b16 %v6736, %v6732
    %v7757 = vpack.c.b16 %v6737, %v6733
    %v7758 = vpack.c.b16 %v6738, %v6734
    %v7759 = vpack.c.b16 %v6743, %v6739
    %v7760 = vpack.c.b16 %v6744, %v6740
    %v7761 = vpack.c.b16 %v6745, %v6741
    %v7762 = vpack.c.b16 %v6746, %v6742
    %v7763 = vpack.c.b16 %v6751, %v6747
    %v7764 = vpack.c.b16 %v6752, %v6748
    %v7765 = vpack.c.b16 %v6753, %v6749
    %v7766 = vpack.c.b16 %v6754, %v6750
    %v7767 = vpack.c.b16 %v6759, %v6755
    %v7768 = vpack.c.b16 %v6760, %v6756
    %v7769 = vpack.c.b16 %v6761, %v6757
    %v7770 = vpack.c.b16 %v6762, %v6758
    %v7771 = vpack.c.b16 %v6767, %v6763
    %v7772 = vpack.c.b16 %v6768, %v6764
    %v7773 = vpack.c.b16 %v6769, %v6765
    %v7774 = vpack.c.b16 %v6770, %v6766
    %v7775 = vpack.c.b16 %v6775, %v6771
    %v7776 = vpack.c.b16 %v6776, %v6772
    %v7777 = vpack.c.b16 %v6777, %v6773
    %v7778 = vpack.c.b16 %v6778, %v6774
    %v7779 = vpack.c.b16 %v6783, %v6779
    %v7780 = vpack.c.b16 %v6784, %v6780
    %v7781 = vpack.c.b16 %v6785, %v6781
    %v7782 = vpack.c.b16 %v6786, %v6782
    %v7783 = vpack.c.b16 %v6791, %v6787
    %v7784 = vpack.c.b16 %v6792, %v6788
    %v7785 = vpack.c.b16 %v6793, %v6789
    %v7786 = vpack.c.b16 %v6794, %v6790
    %v7787 = vpack.c.b16 %v6799, %v6795
    %v7788 = vpack.c.b16 %v6800, %v6796
    %v7789 = vpack.c.b16 %v6801, %v6797
    %v7790 = vpack.c.b16 %v6802, %v6798
    %v7791 = vpack.c.b16 %v6807, %v6803
    %v7792 = vpack.c.b16 %v6808, %v6804
    %v7793 = vpack.c.b16 %v6809, %v6805
    %v7794 = vpack.c.b16 %v6810, %v6806
    %v7795 = vpack.c.b16 %v6815, %v6811
    %v7796 = vpack.c.b16 %v6816, %v6812
    %v7797 = vpack.c.b16 %v6817, %v6813
    %v7798 = vpack.c.b16 %v6818, %v6814
    %v7799 = vpack.c.b16 %v6823, %v6819
    %v7800 = vpack.c.b16 %v6824, %v6820
    %v7801 = vpack.c.b16 %v6825, %v6821
    %v7802 = vpack.c.b16 %v6826, %v6822
    %v7803 = vpack.c.b16 %v6831, %v6827
    %v7804 = vpack.c.b16 %v6832, %v6828
    %v7805 = vpack.c.b16 %v6833, %v6829
    %v7806 = vpack.c.b16 %v6834, %v6830
    %v7807 = vpack.c.b16 %v6839, %v6835
    %v7808 = vpack.c.b16 %v6840, %v6836
    %v7809 = vpack.c.b16 %v6841, %v6837
    %v7810 = vpack.c.b16 %v6842, %v6838
    %v7811 = vpack.c.b16 %v6847, %v6843
    %v7812 = vpack.c.b16 %v6848, %v6844
    %v7813 = vpack.c.b16 %v6849, %v6845
    %v7814 = vpack.c.b16 %v6850, %v6846
    %v7815 = vpack.c.b16 %v6855, %v6851
    %v7816 = vpack.c.b16 %v6856, %v6852
    %v7817 = vpack.c.b16 %v6857, %v6853
    %v7818 = vpack.c.b16 %v6858, %v6854
    %v7819 = vpack.c.b16 %v6863, %v6859
    %v7820 = vpack.c.b16 %v6864, %v6860
    %v7821 = vpack.c.b16 %v6865, %v6861
    %v7822 = vpack.c.b16 %v6866, %v6862
    %v7823 = vpack.c.b16 %v6871, %v6867
    %v7824 = vpack.c.b16 %v6872, %v6868
    %v7825 = vpack.c.b16 %v6873, %v6869
    %v7826 = vpack.c.b16 %v6874, %v6870
    %v7827 = vpack.c.b16 %v6879, %v6875
    %v7828 = vpack.c.b16 %v6880, %v6876
    %v7829 = vpack.c.b16 %v6881, %v6877
    %v7830 = vpack.c.b16 %v6882, %v6878
    %v7831 = vpack.c.b16 %v6887, %v6883
    %v7832 = vpack.c.b16 %v6888, %v6884
    %v7833 = vpack.c.b16 %v6889, %v6885
    %v7834 = vpack.c.b16 %v6890, %v6886
    %v7835 = vpack.c.b16 %v6895, %v6891
    %v7836 = vpack.c.b16 %v6896, %v6892
    %v7837 = vpack.c.b16 %v6897, %v6893
    %v7838 = vpack.c.b16 %v6898, %v6894
    %v7839 = vpack.c.b16 %v6903, %v6899
    %v7840 = vpack.c.b16 %v6904, %v6900
    %v7841 = vpack.c.b16 %v6905, %v6901
    %v7842 = vpack.c.b16 %v6906, %v6902
    %v7843 = vpack.c.b16 %v6911, %v6907
    %v7844 = vpack.c.b16 %v6912, %v6908
    %v7845 = vpack.c.b16 %v6913, %v6909
    %v7846 = vpack.c.b16 %v6914, %v6910
    %v7847 = vpack.c.b16 %v6919, %v6915
    %v7848 = vpack.c.b16 %v6920, %v6916
    %v7849 = vpack.c.b16 %v6921, %v6917
    %v7850 = vpack.c.b16 %v6922, %v6918
    %v7851 = vpack.c.b16 %v6927, %v6923
    %v7852 = vpack.c.b16 %v6928, %v6924
    %v7853 = vpack.c.b16 %v6929, %v6925
    %v7854 = vpack.c.b16 %v6930, %v6926
    %v7855 = vpack.c.b16 %v6935, %v6931
    %v7856 = vpack.c.b16 %v6936, %v6932
    %v7857 = vpack.c.b16 %v6937, %v6933
    %v7858 = vpack.c.b16 %v6938, %v6934
    %v7859 = vpack.c.b16 %v6943, %v6939
    %v7860 = vpack.c.b16 %v6944, %v6940
    %v7861 = vpack.c.b16 %v6945, %v6941
    %v7862 = vpack.c.b16 %v6946, %v6942
    %v7863 = vpack.c.b16 %v6951, %v6947
    %v7864 = vpack.c.b16 %v6952, %v6948
    %v7865 = vpack.c.b16 %v6953, %v6949
    %v7866 = vpack.c.b16 %v6954, %v6950
    %v7867 = vpack.c.b16 %v6959, %v6955
    %v7868 = vpack.c.b16 %v6960, %v6956
    %v7869 = vpack.c.b16 %v6961, %v6957
    %v7870 = vpack.c.b16 %v6962, %v6958
    %v7871 = vpack.c.b16 %v6967, %v6963
    %v7872 = vpack.c.b16 %v6968, %v6964
    %v7873 = vpack.c.b16 %v6969, %v6965
    %v7874 = vpack.c.b16 %v6970, %v6966
    %v7875 = vpack.c.b16 %v6975, %v6971
    %v7876 = vpack.c.b16 %v6976, %v6972
    %v7877 = vpack.c.b16 %v6977, %v6973
    %v7878 = vpack.c.b16 %v6978, %v6974
    %v7879 = vpack.c.b16 %v6983, %v6979
    %v7880 = vpack.c.b16 %v6984, %v6980
    %v7881 = vpack.c.b16 %v6985, %v6981
    %v7882 = vpack.c.b16 %v6986, %v6982
    %v7883 = vpack.c.b16 %v6991, %v6987
    %v7884 = vpack.c.b16 %v6992, %v6988
    %v7885 = vpack.c.b16 %v6993, %v6989
    %v7886 = vpack.c.b16 %v6994, %v6990
    %v7887 = vpack.c.b16 %v6999, %v6995
    %v7888 = vpack.c.b16 %v7000, %v6996
    %v7889 = vpack.c.b16 %v7001, %v6997
    %v7890 = vpack.c.b16 %v7002, %v6998
    %v7891 = vpack.c.b16 %v7007, %v7003
    %v7892 = vpack.c.b16 %v7008, %v7004
    %v7893 = vpack.c.b16 %v7009, %v7005
    %v7894 = vpack.c.b16 %v7010, %v7006
    %v7895 = vpack.c.b16 %v7015, %v7011
    %v7896 = vpack.c.b16 %v7016, %v7012
    %v7897 = vpack.c.b16 %v7017, %v7013
    %v7898 = vpack.c.b16 %v7018, %v7014
    %v7899 = vpack.c.b16 %v7023, %v7019
    %v7900 = vpack.c.b16 %v7024, %v7020
    %v7901 = vpack.c.b16 %v7025, %v7021
    %v7902 = vpack.c.b16 %v7026, %v7022
    %v7903 = vpack.c.b16 %v7031, %v7027
    %v7904 = vpack.c.b16 %v7032, %v7028
    %v7905 = vpack.c.b16 %v7033, %v7029
    %v7906 = vpack.c.b16 %v7034, %v7030
    %v7907 = vpack.c.b16 %v7039, %v7035
    %v7908 = vpack.c.b16 %v7040, %v7036
    %v7909 = vpack.c.b16 %v7041, %v7037
    %v7910 = vpack.c.b16 %v7042, %v7038
    %v7911 = vpack.c.b16 %v7047, %v7043
    %v7912 = vpack.c.b16 %v7048, %v7044
    %v7913 = vpack.c.b16 %v7049, %v7045
    %v7914 = vpack.c.b16 %v7050, %v7046
    %v7915 = vpack.c.b16 %v7055, %v7051
    %v7916 = vpack.c.b16 %v7056, %v7052
    %v7917 = vpack.c.b16 %v7057, %v7053
    %v7918 = vpack.c.b16 %v7058, %v7054
    %v7919 = vpack.c.b16 %v7063, %v7059
    %v7920 = vpack.c.b16 %v7064, %v7060
    %v7921 = vpack.c.b16 %v7065, %v7061
    %v7922 = vpack.c.b16 %v7066, %v7062
    %v7923 = vpack.c.b16 %v7071, %v7067
    %v7924 = vpack.c.b16 %v7072, %v7068
    %v7925 = vpack.c.b16 %v7073, %v7069
    %v7926 = vpack.c.b16 %v7074, %v7070
    %v7927 = vpack.c.b16 %v7079, %v7075
    %v7928 = vpack.c.b16 %v7080, %v7076
    %v7929 = vpack.c.b16 %v7081, %v7077
    %v7930 = vpack.c.b16 %v7082, %v7078
    %v7931 = vpack.c.b16 %v7087, %v7083
    %v7932 = vpack.c.b16 %v7088, %v7084
    %v7933 = vpack.c.b16 %v7089, %v7085
    %v7934 = vpack.c.b16 %v7090, %v7086
    %v7935 = vpack.c.b16 %v7095, %v7091
    %v7936 = vpack.c.b16 %v7096, %v7092
    %v7937 = vpack.c.b16 %v7097, %v7093
    %v7938 = vpack.c.b16 %v7098, %v7094
    %v7939 = vpack.c.b16 %v7103, %v7099
    %v7940 = vpack.c.b16 %v7104, %v7100
    %v7941 = vpack.c.b16 %v7105, %v7101
    %v7942 = vpack.c.b16 %v7106, %v7102
    %v7943 = vpack.c.b16 %v7111, %v7107
    %v7944 = vpack.c.b16 %v7112, %v7108
    %v7945 = vpack.c.b16 %v7113, %v7109
    %v7946 = vpack.c.b16 %v7114, %v7110
    %v7947 = vpack.c.b16 %v7119, %v7115
    %v7948 = vpack.c.b16 %v7120, %v7116
    %v7949 = vpack.c.b16 %v7121, %v7117
    %v7950 = vpack.c.b16 %v7122, %v7118
    %v7951 = vpack.c.b16 %v7127, %v7123
    %v7952 = vpack.c.b16 %v7128, %v7124
    %v7953 = vpack.c.b16 %v7129, %v7125
    %v7954 = vpack.c.b16 %v7130, %v7126
    %v7955 = vpack.c.b16 %v7135, %v7131
    %v7956 = vpack.c.b16 %v7136, %v7132
    %v7957 = vpack.c.b16 %v7137, %v7133
    %v7958 = vpack.c.b16 %v7138, %v7134
    %v7959 = vpack.c.b16 %v7143, %v7139
    %v7960 = vpack.c.b16 %v7144, %v7140
    %v7961 = vpack.c.b16 %v7145, %v7141
    %v7962 = vpack.c.b16 %v7146, %v7142
    %v7963 = vpack.c.b16 %v7151, %v7147
    %v7964 = vpack.c.b16 %v7152, %v7148
    %v7965 = vpack.c.b16 %v7153, %v7149
    %v7966 = vpack.c.b16 %v7154, %v7150
    %v7967 = vpack.c.b16 %v7159, %v7155
    %v7968 = vpack.c.b16 %v7160, %v7156
    %v7969 = vpack.c.b16 %v7161, %v7157
    %v7970 = vpack.c.b16 %v7162, %v7158
    %v7971 = vpack.c.b16 %v7167, %v7163
    %v7972 = vpack.c.b16 %v7168, %v7164
    %v7973 = vpack.c.b16 %v7169, %v7165
    %v7974 = vpack.c.b16 %v7170, %v7166
    %v7975 = vpack.c.b16 %v7175, %v7171
    %v7976 = vpack.c.b16 %v7176, %v7172
    %v7977 = vpack.c.b16 %v7177, %v7173
    %v7978 = vpack.c.b16 %v7178, %v7174
    %v7979 = vpack.c.b16 %v7183, %v7179
    %v7980 = vpack.c.b16 %v7184, %v7180
    %v7981 = vpack.c.b16 %v7185, %v7181
    %v7982 = vpack.c.b16 %v7186, %v7182
    %v7983 = vpack.c.b16 %v7191, %v7187
    %v7984 = vpack.c.b16 %v7192, %v7188
    %v7985 = vpack.c.b16 %v7193, %v7189
    %v7986 = vpack.c.b16 %v7194, %v7190
    %v7987 = vpack.c.b16 %v7199, %v7195
    %v7988 = vpack.c.b16 %v7200, %v7196
    %v7989 = vpack.c.b16 %v7201, %v7197
    %v7990 = vpack.c.b16 %v7202, %v7198
    %v7991 = vpack.c.b16 %v7207, %v7203
    %v7992 = vpack.c.b16 %v7208, %v7204
    %v7993 = vpack.c.b16 %v7209, %v7205
    %v7994 = vpack.c.b16 %v7210, %v7206
    %v7995 = vpack.c.b16 %v7215, %v7211
    %v7996 = vpack.c.b16 %v7216, %v7212
    %v7997 = vpack.c.b16 %v7217, %v7213
    %v7998 = vpack.c.b16 %v7218, %v7214
    %v7999 = vpack.c.b16 %v7223, %v7219
    %v8000 = vpack.c.b16 %v7224, %v7220
    %v8001 = vpack.c.b16 %v7225, %v7221
    %v8002 = vpack.c.b16 %v7226, %v7222
    %v8003 = vpack.c.b16 %v7231, %v7227
    %v8004 = vpack.c.b16 %v7232, %v7228
    %v8005 = vpack.c.b16 %v7233, %v7229
    %v8006 = vpack.c.b16 %v7234, %v7230
    %v8007 = vpack.c.b16 %v7239, %v7235
    %v8008 = vpack.c.b16 %v7240, %v7236
    %v8009 = vpack.c.b16 %v7241, %v7237
    %v8010 = vpack.c.b16 %v7242, %v7238
    %v8011 = vpack.c.b16 %v7247, %v7243
    %v8012 = vpack.c.b16 %v7248, %v7244
    %v8013 = vpack.c.b16 %v7249, %v7245
    %v8014 = vpack.c.b16 %v7250, %v7246
    %v8015 = vpack.c.b16 %v7255, %v7251
    %v8016 = vpack.c.b16 %v7256, %v7252
    %v8017 = vpack.c.b16 %v7257, %v7253
    %v8018 = vpack.c.b16 %v7258, %v7254
    %v8019 = vpack.c.b16 %v7263, %v7259
    %v8020 = vpack.c.b16 %v7264, %v7260
    %v8021 = vpack.c.b16 %v7265, %v7261
    %v8022 = vpack.c.b16 %v7266, %v7262
    %v8023 = vpack.c.b16 %v7271, %v7267
    %v8024 = vpack.c.b16 %v7272, %v7268
    %v8025 = vpack.c.b16 %v7273, %v7269
    %v8026 = vpack.c.b16 %v7274, %v7270
    %v8027 = vpack.c.b16 %v7279, %v7275
    %v8028 = vpack.c.b16 %v7280, %v7276
    %v8029 = vpack.c.b16 %v7281, %v7277
    %v8030 = vpack.c.b16 %v7282, %v7278
    %v8031 = vpack.c.b16 %v7287, %v7283
    %v8032 = vpack.c.b16 %v7288, %v7284
    %v8033 = vpack.c.b16 %v7289, %v7285
    %v8034 = vpack.c.b16 %v7290, %v7286
    %v8035 = vpack.c.b16 %v7295, %v7291
    %v8036 = vpack.c.b16 %v7296, %v7292
    %v8037 = vpack.c.b16 %v7297, %v7293
    %v8038 = vpack.c.b16 %v7298, %v7294
    %v8039 = vpack.c.b16 %v7303, %v7299
    %v8040 = vpack.c.b16 %v7304, %v7300
    %v8041 = vpack.c.b16 %v7305, %v7301
    %v8042 = vpack.c.b16 %v7306, %v7302
    %v8043 = vpack.c.b16 %v7311, %v7307
    %v8044 = vpack.c.b16 %v7312, %v7308
    %v8045 = vpack.c.b16 %v7313, %v7309
    %v8046 = vpack.c.b16 %v7314, %v7310
    %v8047 = vpack.c.b16 %v7319, %v7315
    %v8048 = vpack.c.b16 %v7320, %v7316
    %v8049 = vpack.c.b16 %v7321, %v7317
    %v8050 = vpack.c.b16 %v7322, %v7318
    %v8051 = vpack.c.b16 %v7327, %v7323
    %v8052 = vpack.c.b16 %v7328, %v7324
    %v8053 = vpack.c.b16 %v7329, %v7325
    %v8054 = vpack.c.b16 %v7330, %v7326
    %v8055 = vpack.c.b16 %v7335, %v7331
    %v8056 = vpack.c.b16 %v7336, %v7332
    %v8057 = vpack.c.b16 %v7337, %v7333
    %v8058 = vpack.c.b16 %v7338, %v7334
    %v8059 = vpack.c.b16 %v7343, %v7339
    %v8060 = vpack.c.b16 %v7344, %v7340
    %v8061 = vpack.c.b16 %v7345, %v7341
    %v8062 = vpack.c.b16 %v7346, %v7342
    %v8063 = vpack.c.b16 %v7351, %v7347
    %v8064 = vpack.c.b16 %v7352, %v7348
    %v8065 = vpack.c.b16 %v7353, %v7349
    %v8066 = vpack.c.b16 %v7354, %v7350
    %v8067 = vpack.c.b16 %v7359, %v7355
    %v8068 = vpack.c.b16 %v7360, %v7356
    %v8069 = vpack.c.b16 %v7361, %v7357
    %v8070 = vpack.c.b16 %v7362, %v7358
    %v8071 = vpack.c.b16 %v7367, %v7363
    %v8072 = vpack.c.b16 %v7368, %v7364
    %v8073 = vpack.c.b16 %v7369, %v7365
    %v8074 = vpack.c.b16 %v7370, %v7366
    %v8075 = vpack.c.b16 %v7375, %v7371
    %v8076 = vpack.c.b16 %v7376, %v7372
    %v8077 = vpack.c.b16 %v7377, %v7373
    %v8078 = vpack.c.b16 %v7378, %v7374
    %v8079 = vpack.c.b16 %v7383, %v7379
    %v8080 = vpack.c.b16 %v7384, %v7380
    %v8081 = vpack.c.b16 %v7385, %v7381
    %v8082 = vpack.c.b16 %v7386, %v7382
    %v8083 = vpack.c.b16 %v7391, %v7387
    %v8084 = vpack.c.b16 %v7392, %v7388
    %v8085 = vpack.c.b16 %v7393, %v7389
    %v8086 = vpack.c.b16 %v7394, %v7390
    %v8087 = vpack.c.b16 %v7399, %v7395
    %v8088 = vpack.c.b16 %v7400, %v7396
    %v8089 = vpack.c.b16 %v7401, %v7397
    %v8090 = vpack.c.b16 %v7402, %v7398
    %v8091 = vpack.c.b16 %v7407, %v7403
    %v8092 = vpack.c.b16 %v7408, %v7404
    %v8093 = vpack.c.b16 %v7409, %v7405
    %v8094 = vpack.c.b16 %v7410, %v7406
    %v8095 = vpack.c.b16 %v7415, %v7411
    %v8096 = vpack.c.b16 %v7416, %v7412
    %v8097 = vpack.c.b16 %v7417, %v7413
    %v8098 = vpack.c.b16 %v7418, %v7414
    %v8099 = vpack.c.b16 %v7423, %v7419
    %v8100 = vpack.c.b16 %v7424, %v7420
    %v8101 = vpack.c.b16 %v7425, %v7421
    %v8102 = vpack.c.b16 %v7426, %v7422
    %v8103 = vpack.c.b16 %v7431, %v7427
    %v8104 = vpack.c.b16 %v7432, %v7428
    %v8105 = vpack.c.b16 %v7433, %v7429
    %v8106 = vpack.c.b16 %v7434, %v7430
    %v8107 = vpack.c.b16 %v7439, %v7435
    %v8108 = vpack.c.b16 %v7440, %v7436
    %v8109 = vpack.c.b16 %v7441, %v7437
    %v8110 = vpack.c.b16 %v7442, %v7438
    %v8111 = vpack.c.b16 %v7447, %v7443
    %v8112 = vpack.c.b16 %v7448, %v7444
    %v8113 = vpack.c.b16 %v7449, %v7445
    %v8114 = vpack.c.b16 %v7450, %v7446
    %v8115 = vpack.c.b16 %v7455, %v7451
    %v8116 = vpack.c.b16 %v7456, %v7452
    %v8117 = vpack.c.b16 %v7457, %v7453
    %v8118 = vpack.c.b16 %v7458, %v7454
    %v8119 = vpack.c.b16 %v7463, %v7459
    %v8120 = vpack.c.b16 %v7464, %v7460
    %v8121 = vpack.c.b16 %v7465, %v7461
    %v8122 = vpack.c.b16 %v7466, %v7462
    %v8123 = vpack.c.b16 %v7471, %v7467
    %v8124 = vpack.c.b16 %v7472, %v7468
    %v8125 = vpack.c.b16 %v7473, %v7469
    %v8126 = vpack.c.b16 %v7474, %v7470
    %v8127 = vpack.c.b16 %v7479, %v7475
    %v8128 = vpack.c.b16 %v7480, %v7476
    %v8129 = vpack.c.b16 %v7481, %v7477
    %v8130 = vpack.c.b16 %v7482, %v7478
    %v8131 = vpack.c.b16 %v7487, %v7483
    %v8132 = vpack.c.b16 %v7488, %v7484
    %v8133 = vpack.c.b16 %v7489, %v7485
    %v8134 = vpack.c.b16 %v7490, %v7486
    %v8135 = vpack.c.b16 %v7495, %v7491
    %v8136 = vpack.c.b16 %v7496, %v7492
    %v8137 = vpack.c.b16 %v7497, %v7493
    %v8138 = vpack.c.b16 %v7498, %v7494
    %v8139 = vpack.c.b16 %v7503, %v7499
    %v8140 = vpack.c.b16 %v7504, %v7500
    %v8141 = vpack.c.b16 %v7505, %v7501
    %v8142 = vpack.c.b16 %v7506, %v7502
    %v8143 = vpack.c.b16 %v7511, %v7507
    %v8144 = vpack.c.b16 %v7512, %v7508
    %v8145 = vpack.c.b16 %v7513, %v7509
    %v8146 = vpack.c.b16 %v7514, %v7510
    %v8147 = vpack.c.b16 %v7519, %v7515
    %v8148 = vpack.c.b16 %v7520, %v7516
    %v8149 = vpack.c.b16 %v7521, %v7517
    %v8150 = vpack.c.b16 %v7522, %v7518
    %v8151 = vpack.c.b16 %v7527, %v7523
    %v8152 = vpack.c.b16 %v7528, %v7524
    %v8153 = vpack.c.b16 %v7529, %v7525
    %v8154 = vpack.c.b16 %v7530, %v7526
    %v8155 = vpack.c.b16 %v7535, %v7531
    %v8156 = vpack.c.b16 %v7536, %v7532
    %v8157 = vpack.c.b16 %v7537, %v7533
    %v8158 = vpack.c.b16 %v7538, %v7534
    %v8159 = vpack.c.b16 %v7543, %v7539
    %v8160 = vpack.c.b16 %v7544, %v7540
    %v8161 = vpack.c.b16 %v7545, %v7541
    %v8162 = vpack.c.b16 %v7546, %v7542
    %v8163 = vpack.c.b16 %v7551, %v7547
    %v8164 = vpack.c.b16 %v7552, %v7548
    %v8165 = vpack.c.b16 %v7553, %v7549
    %v8166 = vpack.c.b16 %v7554, %v7550
    %v8167 = vpack.c.b16 %v7559, %v7555
    %v8168 = vpack.c.b16 %v7560, %v7556
    %v8169 = vpack.c.b16 %v7561, %v7557
    %v8170 = vpack.c.b16 %v7562, %v7558
    %v8171 = vpack.c.b16 %v7567, %v7563
    %v8172 = vpack.c.b16 %v7568, %v7564
    %v8173 = vpack.c.b16 %v7569, %v7565
    %v8174 = vpack.c.b16 %v7570, %v7566
    %v8175 = vpack.c.b16 %v7575, %v7571
    %v8176 = vpack.c.b16 %v7576, %v7572
    %v8177 = vpack.c.b16 %v7577, %v7573
    %v8178 = vpack.c.b16 %v7578, %v7574
    %v8179 = vpack.c.b16 %v7583, %v7579
    %v8180 = vpack.c.b16 %v7584, %v7580
    %v8181 = vpack.c.b16 %v7585, %v7581
    %v8182 = vpack.c.b16 %v7586, %v7582
    %v8183 = vpack.c.b16 %v7591, %v7587
    %v8184 = vpack.c.b16 %v7592, %v7588
    %v8185 = vpack.c.b16 %v7593, %v7589
    %v8186 = vpack.c.b16 %v7594, %v7590
    %v8187 = vpack.c.b16 %v7599, %v7595
    %v8188 = vpack.c.b16 %v7600, %v7596
    %v8189 = vpack.c.b16 %v7601, %v7597
    %v8190 = vpack.c.b16 %v7602, %v7598
    %v8191 = vpack.c.b16 %v7607, %v7603
    %v8192 = vpack.c.b16 %v7608, %v7604
    %v8193 = vpack.c.b16 %v7609, %v7605
    %v8194 = vpack.c.b16 %v7610, %v7606
    %v8195 = vpack.c.b16 %v7615, %v7611
    %v8196 = vpack.c.b16 %v7616, %v7612
    %v8197 = vpack.c.b16 %v7617, %v7613
    %v8198 = vpack.c.b16 %v7618, %v7614
    %v8199 = vpack.c.b16 %v7623, %v7619
    %v8200 = vpack.c.b16 %v7624, %v7620
    %v8201 = vpack.c.b16 %v7625, %v7621
    %v8202 = vpack.c.b16 %v7626, %v7622
    %v8203 = vpack.c.b16 %v7631, %v7627
    %v8204 = vpack.c.b16 %v7632, %v7628
    %v8205 = vpack.c.b16 %v7633, %v7629
    %v8206 = vpack.c.b16 %v7634, %v7630
    %v8207 = vpack.c.b16 %v7639, %v7635
    %v8208 = vpack.c.b16 %v7640, %v7636
    %v8209 = vpack.c.b16 %v7641, %v7637
    %v8210 = vpack.c.b16 %v7642, %v7638
    %v8211 = vpack.c.b16 %v7647, %v7643
    %v8212 = vpack.c.b16 %v7648, %v7644
    %v8213 = vpack.c.b16 %v7649, %v7645
    %v8214 = vpack.c.b16 %v7650, %v7646
    %v8215 = vpack.c.b16 %v7655, %v7651
    %v8216 = vpack.c.b16 %v7656, %v7652
    %v8217 = vpack.c.b16 %v7657, %v7653
    %v8218 = vpack.c.b16 %v7658, %v7654
    %v8219 = vpack.c.b16 %v7663, %v7659
    %v8220 = vpack.c.b16 %v7664, %v7660
    %v8221 = vpack.c.b16 %v7665, %v7661
    %v8222 = vpack.c.b16 %v7666, %v7662
    %v8223 = vpack.c.b16 %v7671, %v7667
    %v8224 = vpack.c.b16 %v7672, %v7668
    %v8225 = vpack.c.b16 %v7673, %v7669
    %v8226 = vpack.c.b16 %v7674, %v7670
    %v8227 = vpack.c.b16 %v7679, %v7675
    %v8228 = vpack.c.b16 %v7680, %v7676
    %v8229 = vpack.c.b16 %v7681, %v7677
    %v8230 = vpack.c.b16 %v7682, %v7678
    %v8231 = vpack.c.b16 %v7687, %v7683
    %v8232 = vpack.c.b16 %v7688, %v7684
    %v8233 = vpack.c.b16 %v7689, %v7685
    %v8234 = vpack.c.b16 %v7690, %v7686
    %v8235 = vpack.c.b16 %v7695, %v7691
    %v8236 = vpack.c.b16 %v7696, %v7692
    %v8237 = vpack.c.b16 %v7697, %v7693
    %v8238 = vpack.c.b16 %v7698, %v7694
    %v8239 = vpack.c.b16 %v7703, %v7699
    %v8240 = vpack.c.b16 %v7704, %v7700
    %v8241 = vpack.c.b16 %v7705, %v7701
    %v8242 = vpack.c.b16 %v7706, %v7702
    %v8243 = vpack.c.b16 %v7711, %v7707
    %v8244 = vpack.c.b16 %v7712, %v7708
    %v8245 = vpack.c.b16 %v7713, %v7709
    %v8246 = vpack.c.b16 %v7714, %v7710
    %v8247 = vpack.c.b16 %v7719, %v7715
    %v8248 = vpack.c.b16 %v7720, %v7716
    %v8249 = vpack.c.b16 %v7721, %v7717
    %v8250 = vpack.c.b16 %v7722, %v7718
    %v8251 = vpack.c.b16 %v7727, %v7723
    %v8252 = vpack.c.b16 %v7728, %v7724
    %v8253 = vpack.c.b16 %v7729, %v7725
    %v8254 = vpack.c.b16 %v7730, %v7726
    %v8255 = vpack.c.b16 %v7735, %v7731
    %v8256 = vpack.c.b16 %v7736, %v7732
    %v8257 = vpack.c.b16 %v7737, %v7733
    %v8258 = vpack.c.b16 %v7738, %v7734
    %v8259 = vpack.c.b16 %v7743, %v7739
    %v8260 = vpack.c.b16 %v7744, %v7740
    %v8261 = vpack.c.b16 %v7745, %v7741
    %v8262 = vpack.c.b16 %v7746, %v7742
    %v8263 = vpack.c.b16 %v7751, %v7747
    %v8264 = vpack.c.b16 %v7752, %v7748
    %v8265 = vpack.c.b16 %v7753, %v7749
    %v8266 = vpack.c.b16 %v7754, %v7750
    %8779 = vmatprep.subr.bf16.mxu0 %v7756
    %8780 = vmatpush1.bf16.msra.mxu0 %v7755
    %8781 = vmatprep.subr.bf16.mxu0 %v7760
    %8782 = vmatpush1.bf16.msra.mxu0 %v7759
    %8783 = vmatprep.subr.bf16.mxu0 %v7764
    %8784 = vmatpush1.bf16.msra.mxu0 %v7763
    %8785 = vmatprep.subr.bf16.mxu0 %v7768
    %8786 = vmatpush1.bf16.msra.mxu0 %v7767
    %8787 = vmatprep.subr.bf16.mxu0 %v7772
    %8788 = vmatpush1.bf16.msra.mxu0 %v7771
    %8789 = vmatprep.subr.bf16.mxu0 %v7776
    %8790 = vmatpush1.bf16.msra.mxu0 %v7775
    %8791 = vmatprep.subr.bf16.mxu0 %v7780
    %8792 = vmatpush1.bf16.msra.mxu0 %v7779
    %8793 = vmatprep.subr.bf16.mxu0 %v7784
    %8794 = vmatpush1.bf16.msra.mxu0 %v7783
    %8795 = vmatprep.subr.bf16.mxu0 %v7788
    %8796 = vmatpush1.bf16.msra.mxu0 %v7787
    %8797 = vmatprep.subr.bf16.mxu0 %v7792
    %8798 = vmatpush1.bf16.msra.mxu0 %v7791
    %8799 = vmatprep.subr.bf16.mxu0 %v7796
    %8800 = vmatpush1.bf16.msra.mxu0 %v7795
    %8801 = vmatprep.subr.bf16.mxu0 %v7800
    %8802 = vmatpush1.bf16.msra.mxu0 %v7799
    %8803 = vmatprep.subr.bf16.mxu0 %v7804
    %8804 = vmatpush1.bf16.msra.mxu0 %v7803
    %8805 = vmatprep.subr.bf16.mxu0 %v7808
    %8806 = vmatpush1.bf16.msra.mxu0 %v7807
    %8807 = vmatprep.subr.bf16.mxu0 %v7812
    %8808 = vmatpush1.bf16.msra.mxu0 %v7811
    %8809 = vmatprep.subr.bf16.mxu0 %v7816
    %8810 = vmatpush1.bf16.msra.mxu0 %v7815
    %8811 = vmatprep.mubr.bf16.mxu0 %v5670
    %8812 = vmatmul.mubr.bf16.gmra.mrb[0].mxu0 %v5669
    %v8813 = vpop.f32.mrb[0].mxu0
    %v8814 = vadd.f32 %v6202, %v8813
    %v8815 = vpop.f32.mrb[0].mxu0
    %v8816 = vadd.f32 %v6206, %v8815
    %v8817 = vpop.f32.mrb[0].mxu0
    %v8818 = vpop.f32.mrb[0].mxu0
    %8819 = vdwg.mxu0
    %8820 = vmatprep.subr.bf16.mxu0 %v7820
    %8821 = vmatpush1.bf16.msra.mxu0 %v7819
    %8822 = vmatprep.subr.bf16.mxu0 %v7824
    %8823 = vmatpush1.bf16.msra.mxu0 %v7823
    %8824 = vmatprep.subr.bf16.mxu0 %v7828
    %8825 = vmatpush1.bf16.msra.mxu0 %v7827
    %8826 = vmatprep.subr.bf16.mxu0 %v7832
    %8827 = vmatpush1.bf16.msra.mxu0 %v7831
    %8828 = vmatprep.subr.bf16.mxu0 %v7836
    %8829 = vmatpush1.bf16.msra.mxu0 %v7835
    %8830 = vmatprep.subr.bf16.mxu0 %v7840
    %8831 = vmatpush1.bf16.msra.mxu0 %v7839
    %8832 = vmatprep.subr.bf16.mxu0 %v7844
    %8833 = vmatpush1.bf16.msra.mxu0 %v7843
    %8834 = vmatprep.subr.bf16.mxu0 %v7848
    %8835 = vmatpush1.bf16.msra.mxu0 %v7847
    %8836 = vmatprep.subr.bf16.mxu0 %v7852
    %8837 = vmatpush1.bf16.msra.mxu0 %v7851
    %8838 = vmatprep.subr.bf16.mxu0 %v7856
    %8839 = vmatpush1.bf16.msra.mxu0 %v7855
    %8840 = vmatprep.subr.bf16.mxu0 %v7860
    %8841 = vmatpush1.bf16.msra.mxu0 %v7859
    %8842 = vmatprep.subr.bf16.mxu0 %v7864
    %8843 = vmatpush1.bf16.msra.mxu0 %v7863
    %8844 = vmatprep.subr.bf16.mxu0 %v7868
    %8845 = vmatpush1.bf16.msra.mxu0 %v7867
    %8846 = vmatprep.subr.bf16.mxu0 %v7872
    %8847 = vmatpush1.bf16.msra.mxu0 %v7871
    %8848 = vmatprep.subr.bf16.mxu0 %v7876
    %8849 = vmatpush1.bf16.msra.mxu0 %v7875
    %8850 = vmatprep.subr.bf16.mxu0 %v7880
    %8851 = vmatpush1.bf16.msra.mxu0 %v7879
    %8852 = vmatprep.mubr.bf16.mxu0 %v5672
    %8853 = vmatmul.mubr.bf16.gmra.mrb[0].mxu0 %v5671
    %v8854 = vpop.f32.mrb[0].mxu0
    %v8855 = vadd.f32 %v8814, %v8854
    %v8856 = vpop.f32.mrb[0].mxu0
    %v8857 = vadd.f32 %v8816, %v8856
    %v8858 = vpop.f32.mrb[0].mxu0
    %v8859 = vpop.f32.mrb[0].mxu0
    %8860 = vdwg.mxu0
    %8861 = vmatprep.subr.bf16.mxu0 %v7884
    %8862 = vmatpush1.bf16.msra.mxu0 %v7883
    %8863 = vmatprep.subr.bf16.mxu0 %v7888
    %8864 = vmatpush1.bf16.msra.mxu0 %v7887
    %8865 = vmatprep.subr.bf16.mxu0 %v7892
    %8866 = vmatpush1.bf16.msra.mxu0 %v7891
    %8867 = vmatprep.subr.bf16.mxu0 %v7896
    %8868 = vmatpush1.bf16.msra.mxu0 %v7895
    %8869 = vmatprep.subr.bf16.mxu0 %v7900
    %8870 = vmatpush1.bf16.msra.mxu0 %v7899
    %8871 = vmatprep.subr.bf16.mxu0 %v7904
    %8872 = vmatpush1.bf16.msra.mxu0 %v7903
    %8873 = vmatprep.subr.bf16.mxu0 %v7908
    %8874 = vmatpush1.bf16.msra.mxu0 %v7907
    %8875 = vmatprep.subr.bf16.mxu0 %v7912
    %8876 = vmatpush1.bf16.msra.mxu0 %v7911
    %8877 = vmatprep.subr.bf16.mxu0 %v7916
    %8878 = vmatpush1.bf16.msra.mxu0 %v7915
    %8879 = vmatprep.subr.bf16.mxu0 %v7920
    %8880 = vmatpush1.bf16.msra.mxu0 %v7919
    %8881 = vmatprep.subr.bf16.mxu0 %v7924
    %8882 = vmatpush1.bf16.msra.mxu0 %v7923
    %8883 = vmatprep.subr.bf16.mxu0 %v7928
    %8884 = vmatpush1.bf16.msra.mxu0 %v7927
    %8885 = vmatprep.subr.bf16.mxu0 %v7932
    %8886 = vmatpush1.bf16.msra.mxu0 %v7931
    %8887 = vmatprep.subr.bf16.mxu0 %v7936
    %8888 = vmatpush1.bf16.msra.mxu0 %v7935
    %8889 = vmatprep.subr.bf16.mxu0 %v7940
    %8890 = vmatpush1.bf16.msra.mxu0 %v7939
    %8891 = vmatprep.subr.bf16.mxu0 %v7944
    %8892 = vmatpush1.bf16.msra.mxu0 %v7943
    %8893 = vmatprep.mubr.bf16.mxu0 %v5674
    %8894 = vmatmul.mubr.bf16.gmra.mrb[0].mxu0 %v5673
    %v8895 = vpop.f32.mrb[0].mxu0
    %v8896 = vadd.f32 %v8855, %v8895
    %v8897 = vpop.f32.mrb[0].mxu0
    %v8898 = vadd.f32 %v8857, %v8897
    %v8899 = vpop.f32.mrb[0].mxu0
    %v8900 = vpop.f32.mrb[0].mxu0
    %8901 = vdwg.mxu0
    %8902 = vmatprep.subr.bf16.mxu0 %v7948
    %8903 = vmatpush1.bf16.msra.mxu0 %v7947
    %8904 = vmatprep.subr.bf16.mxu0 %v7952
    %8905 = vmatpush1.bf16.msra.mxu0 %v7951
    %8906 = vmatprep.subr.bf16.mxu0 %v7956
    %8907 = vmatpush1.bf16.msra.mxu0 %v7955
    %8908 = vmatprep.subr.bf16.mxu0 %v7960
    %8909 = vmatpush1.bf16.msra.mxu0 %v7959
    %8910 = vmatprep.subr.bf16.mxu0 %v7964
    %8911 = vmatpush1.bf16.msra.mxu0 %v7963
    %8912 = vmatprep.subr.bf16.mxu0 %v7968
    %8913 = vmatpush1.bf16.msra.mxu0 %v7967
    %8914 = vmatprep.subr.bf16.mxu0 %v7972
    %8915 = vmatpush1.bf16.msra.mxu0 %v7971
    %8916 = vmatprep.subr.bf16.mxu0 %v7976
    %8917 = vmatpush1.bf16.msra.mxu0 %v7975
    %8918 = vmatprep.subr.bf16.mxu0 %v7980
    %8919 = vmatpush1.bf16.msra.mxu0 %v7979
    %8920 = vmatprep.subr.bf16.mxu0 %v7984
    %8921 = vmatpush1.bf16.msra.mxu0 %v7983
    %8922 = vmatprep.subr.bf16.mxu0 %v7988
    %8923 = vmatpush1.bf16.msra.mxu0 %v7987
    %8924 = vmatprep.subr.bf16.mxu0 %v7992
    %8925 = vmatpush1.bf16.msra.mxu0 %v7991
    %8926 = vmatprep.subr.bf16.mxu0 %v7996
    %8927 = vmatpush1.bf16.msra.mxu0 %v7995
    %8928 = vmatprep.subr.bf16.mxu0 %v8000
    %8929 = vmatpush1.bf16.msra.mxu0 %v7999
    %8930 = vmatprep.subr.bf16.mxu0 %v8004
    %8931 = vmatpush1.bf16.msra.mxu0 %v8003
    %8932 = vmatprep.subr.bf16.mxu0 %v8008
    %8933 = vmatpush1.bf16.msra.mxu0 %v8007
    %8934 = vmatprep.mubr.bf16.mxu0 %v5676
    %8935 = vmatmul.mubr.bf16.gmra.mrb[0].mxu0 %v5675
    %v8936 = vpop.f32.mrb[0].mxu0
    %v8937 = vadd.f32 %v8896, %v8936
    %v8938 = vpop.f32.mrb[0].mxu0
    %v8939 = vadd.f32 %v8898, %v8938
    %v8940 = vpop.f32.mrb[0].mxu0
    %v8941 = vpop.f32.mrb[0].mxu0
    %8942 = vdwg.mxu0
    %8943 = vmatprep.subr.bf16.mxu0 %v8012
    %8944 = vmatpush1.bf16.msra.mxu0 %v8011
    %8945 = vmatprep.subr.bf16.mxu0 %v8016
    %8946 = vmatpush1.bf16.msra.mxu0 %v8015
    %8947 = vmatprep.subr.bf16.mxu0 %v8020
    %8948 = vmatpush1.bf16.msra.mxu0 %v8019
    %8949 = vmatprep.subr.bf16.mxu0 %v8024
    %8950 = vmatpush1.bf16.msra.mxu0 %v8023
    %8951 = vmatprep.subr.bf16.mxu0 %v8028
    %8952 = vmatpush1.bf16.msra.mxu0 %v8027
    %8953 = vmatprep.subr.bf16.mxu0 %v8032
    %8954 = vmatpush1.bf16.msra.mxu0 %v8031
    %8955 = vmatprep.subr.bf16.mxu0 %v8036
    %8956 = vmatpush1.bf16.msra.mxu0 %v8035
    %8957 = vmatprep.subr.bf16.mxu0 %v8040
    %8958 = vmatpush1.bf16.msra.mxu0 %v8039
    %8959 = vmatprep.subr.bf16.mxu0 %v8044
    %8960 = vmatpush1.bf16.msra.mxu0 %v8043
    %8961 = vmatprep.subr.bf16.mxu0 %v8048
    %8962 = vmatpush1.bf16.msra.mxu0 %v8047
    %8963 = vmatprep.subr.bf16.mxu0 %v8052
    %8964 = vmatpush1.bf16.msra.mxu0 %v8051
    %8965 = vmatprep.subr.bf16.mxu0 %v8056
    %8966 = vmatpush1.bf16.msra.mxu0 %v8055
    %8967 = vmatprep.subr.bf16.mxu0 %v8060
    %8968 = vmatpush1.bf16.msra.mxu0 %v8059
    %8969 = vmatprep.subr.bf16.mxu0 %v8064
    %8970 = vmatpush1.bf16.msra.mxu0 %v8063
    %8971 = vmatprep.subr.bf16.mxu0 %v8068
    %8972 = vmatpush1.bf16.msra.mxu0 %v8067
    %8973 = vmatprep.subr.bf16.mxu0 %v8072
    %8974 = vmatpush1.bf16.msra.mxu0 %v8071
    %8975 = vmatprep.mubr.bf16.mxu0 %v5678
    %8976 = vmatmul.mubr.bf16.gmra.mrb[0].mxu0 %v5677
    %v8977 = vpop.f32.mrb[0].mxu0
    %v8978 = vadd.f32 %v8937, %v8977
    %v8979 = vpop.f32.mrb[0].mxu0
    %v8980 = vadd.f32 %v8939, %v8979
    %v8981 = vpop.f32.mrb[0].mxu0
    %v8982 = vpop.f32.mrb[0].mxu0
    %8983 = vdwg.mxu0
    %8984 = vmatprep.subr.bf16.mxu0 %v8076
    %8985 = vmatpush1.bf16.msra.mxu0 %v8075
    %8986 = vmatprep.subr.bf16.mxu0 %v8080
    %8987 = vmatpush1.bf16.msra.mxu0 %v8079
    %8988 = vmatprep.subr.bf16.mxu0 %v8084
    %8989 = vmatpush1.bf16.msra.mxu0 %v8083
    %8990 = vmatprep.subr.bf16.mxu0 %v8088
    %8991 = vmatpush1.bf16.msra.mxu0 %v8087
    %8992 = vmatprep.subr.bf16.mxu0 %v8092
    %8993 = vmatpush1.bf16.msra.mxu0 %v8091
    %8994 = vmatprep.subr.bf16.mxu0 %v8096
    %8995 = vmatpush1.bf16.msra.mxu0 %v8095
    %8996 = vmatprep.subr.bf16.mxu0 %v8100
    %8997 = vmatpush1.bf16.msra.mxu0 %v8099
    %8998 = vmatprep.subr.bf16.mxu0 %v8104
    %8999 = vmatpush1.bf16.msra.mxu0 %v8103
    %9000 = vmatprep.subr.bf16.mxu0 %v8108
    %9001 = vmatpush1.bf16.msra.mxu0 %v8107
    %9002 = vmatprep.subr.bf16.mxu0 %v8112
    %9003 = vmatpush1.bf16.msra.mxu0 %v8111
    %9004 = vmatprep.subr.bf16.mxu0 %v8116
    %9005 = vmatpush1.bf16.msra.mxu0 %v8115
    %9006 = vmatprep.subr.bf16.mxu0 %v8120
    %9007 = vmatpush1.bf16.msra.mxu0 %v8119
    %9008 = vmatprep.subr.bf16.mxu0 %v8124
    %9009 = vmatpush1.bf16.msra.mxu0 %v8123
    %9010 = vmatprep.subr.bf16.mxu0 %v8128
    %9011 = vmatpush1.bf16.msra.mxu0 %v8127
    %9012 = vmatprep.subr.bf16.mxu0 %v8132
    %9013 = vmatpush1.bf16.msra.mxu0 %v8131
    %9014 = vmatprep.subr.bf16.mxu0 %v8136
    %9015 = vmatpush1.bf16.msra.mxu0 %v8135
    %9016 = vmatprep.mubr.bf16.mxu0 %v5680
    %9017 = vmatmul.mubr.bf16.gmra.mrb[0].mxu0 %v5679
    %v9018 = vpop.f32.mrb[0].mxu0
    %v9019 = vadd.f32 %v8978, %v9018
    %v9020 = vpop.f32.mrb[0].mxu0
    %v9021 = vadd.f32 %v8980, %v9020
    %v9022 = vpop.f32.mrb[0].mxu0
    %v9023 = vpop.f32.mrb[0].mxu0
    %9024 = vdwg.mxu0
    %9025 = vmatprep.subr.bf16.mxu0 %v8140
    %9026 = vmatpush1.bf16.msra.mxu0 %v8139
    %9027 = vmatprep.subr.bf16.mxu0 %v8144
    %9028 = vmatpush1.bf16.msra.mxu0 %v8143
    %9029 = vmatprep.subr.bf16.mxu0 %v8148
    %9030 = vmatpush1.bf16.msra.mxu0 %v8147
    %9031 = vmatprep.subr.bf16.mxu0 %v8152
    %9032 = vmatpush1.bf16.msra.mxu0 %v8151
    %9033 = vmatprep.subr.bf16.mxu0 %v8156
    %9034 = vmatpush1.bf16.msra.mxu0 %v8155
    %9035 = vmatprep.subr.bf16.mxu0 %v8160
    %9036 = vmatpush1.bf16.msra.mxu0 %v8159
    %9037 = vmatprep.subr.bf16.mxu0 %v8164
    %9038 = vmatpush1.bf16.msra.mxu0 %v8163
    %9039 = vmatprep.subr.bf16.mxu0 %v8168
    %9040 = vmatpush1.bf16.msra.mxu0 %v8167
    %9041 = vmatprep.subr.bf16.mxu0 %v8172
    %9042 = vmatpush1.bf16.msra.mxu0 %v8171
    %9043 = vmatprep.subr.bf16.mxu0 %v8176
    %9044 = vmatpush1.bf16.msra.mxu0 %v8175
    %9045 = vmatprep.subr.bf16.mxu0 %v8180
    %9046 = vmatpush1.bf16.msra.mxu0 %v8179
    %9047 = vmatprep.subr.bf16.mxu0 %v8184
    %9048 = vmatpush1.bf16.msra.mxu0 %v8183
    %9049 = vmatprep.subr.bf16.mxu0 %v8188
    %9050 = vmatpush1.bf16.msra.mxu0 %v8187
    %9051 = vmatprep.subr.bf16.mxu0 %v8192
    %9052 = vmatpush1.bf16.msra.mxu0 %v8191
    %9053 = vmatprep.subr.bf16.mxu0 %v8196
    %9054 = vmatpush1.bf16.msra.mxu0 %v8195
    %9055 = vmatprep.subr.bf16.mxu0 %v8200
    %9056 = vmatpush1.bf16.msra.mxu0 %v8199
    %9057 = vmatprep.mubr.bf16.mxu0 %v5682
    %9058 = vmatmul.mubr.bf16.gmra.mrb[0].mxu0 %v5681
    %v9059 = vpop.f32.mrb[0].mxu0
    %v9060 = vadd.f32 %v9019, %v9059
    %v9061 = vpop.f32.mrb[0].mxu0
    %v9062 = vadd.f32 %v9021, %v9061
    %v9063 = vpop.f32.mrb[0].mxu0
    %v9064 = vpop.f32.mrb[0].mxu0
    %9065 = vdwg.mxu0
    %9066 = vmatprep.subr.bf16.mxu0 %v8204
    %9067 = vmatpush1.bf16.msra.mxu0 %v8203
    %9068 = vmatprep.subr.bf16.mxu0 %v8208
    %9069 = vmatpush1.bf16.msra.mxu0 %v8207
    %9070 = vmatprep.subr.bf16.mxu0 %v8212
    %9071 = vmatpush1.bf16.msra.mxu0 %v8211
    %9072 = vmatprep.subr.bf16.mxu0 %v8216
    %9073 = vmatpush1.bf16.msra.mxu0 %v8215
    %9074 = vmatprep.subr.bf16.mxu0 %v8220
    %9075 = vmatpush1.bf16.msra.mxu0 %v8219
    %9076 = vmatprep.subr.bf16.mxu0 %v8224
    %9077 = vmatpush1.bf16.msra.mxu0 %v8223
    %9078 = vmatprep.subr.bf16.mxu0 %v8228
    %9079 = vmatpush1.bf16.msra.mxu0 %v8227
    %9080 = vmatprep.subr.bf16.mxu0 %v8232
    %9081 = vmatpush1.bf16.msra.mxu0 %v8231
    %9082 = vmatprep.subr.bf16.mxu0 %v8236
    %9083 = vmatpush1.bf16.msra.mxu0 %v8235
    %9084 = vmatprep.subr.bf16.mxu0 %v8240
    %9085 = vmatpush1.bf16.msra.mxu0 %v8239
    %9086 = vmatprep.subr.bf16.mxu0 %v8244
    %9087 = vmatpush1.bf16.msra.mxu0 %v8243
    %9088 = vmatprep.subr.bf16.mxu0 %v8248
    %9089 = vmatpush1.bf16.msra.mxu0 %v8247
    %9090 = vmatprep.subr.bf16.mxu0 %v8252
    %9091 = vmatpush1.bf16.msra.mxu0 %v8251
    %9092 = vmatprep.subr.bf16.mxu0 %v8256
    %9093 = vmatpush1.bf16.msra.mxu0 %v8255
    %9094 = vmatprep.subr.bf16.mxu0 %v8260
    %9095 = vmatpush1.bf16.msra.mxu0 %v8259
    %9096 = vmatprep.subr.bf16.mxu0 %v8264
    %9097 = vmatpush1.bf16.msra.mxu0 %v8263
    %9098 = vmatprep.mubr.bf16.mxu0 %v5684
    %9099 = vmatmul.mubr.bf16.gmra.mrb[0].mxu0 %v5683
    %v9100 = vpop.f32.mrb[0].mxu0
    %v9101 = vadd.f32 %v9060, %v9100
    %v9102 = vpop.f32.mrb[0].mxu0
    %v9103 = vadd.f32 %v9062, %v9102
    %v9104 = vpop.f32.mrb[0].mxu0
    %v9105 = vpop.f32.mrb[0].mxu0
    %9106 = vdwg.mxu0
    %9107 = vmatprep.subr.bf16.mxu0 %v7758
    %9108 = vmatpush1.bf16.msra.mxu0 %v7757
    %9109 = vmatprep.subr.bf16.mxu0 %v7762
    %9110 = vmatpush1.bf16.msra.mxu0 %v7761
    %9111 = vmatprep.subr.bf16.mxu0 %v7766
    %9112 = vmatpush1.bf16.msra.mxu0 %v7765
    %9113 = vmatprep.subr.bf16.mxu0 %v7770
    %9114 = vmatpush1.bf16.msra.mxu0 %v7769
    %9115 = vmatprep.subr.bf16.mxu0 %v7774
    %9116 = vmatpush1.bf16.msra.mxu0 %v7773
    %9117 = vmatprep.subr.bf16.mxu0 %v7778
    %9118 = vmatpush1.bf16.msra.mxu0 %v7777
    %9119 = vmatprep.subr.bf16.mxu0 %v7782
    %9120 = vmatpush1.bf16.msra.mxu0 %v7781
    %9121 = vmatprep.subr.bf16.mxu0 %v7786
    %9122 = vmatpush1.bf16.msra.mxu0 %v7785
    %9123 = vmatprep.subr.bf16.mxu0 %v7790
    %9124 = vmatpush1.bf16.msra.mxu0 %v7789
    %9125 = vmatprep.subr.bf16.mxu0 %v7794
    %9126 = vmatpush1.bf16.msra.mxu0 %v7793
    %9127 = vmatprep.subr.bf16.mxu0 %v7798
    %9128 = vmatpush1.bf16.msra.mxu0 %v7797
    %9129 = vmatprep.subr.bf16.mxu0 %v7802
    %9130 = vmatpush1.bf16.msra.mxu0 %v7801
    %9131 = vmatprep.subr.bf16.mxu0 %v7806
    %9132 = vmatpush1.bf16.msra.mxu0 %v7805
    %9133 = vmatprep.subr.bf16.mxu0 %v7810
    %9134 = vmatpush1.bf16.msra.mxu0 %v7809
    %9135 = vmatprep.subr.bf16.mxu0 %v7814
    %9136 = vmatpush1.bf16.msra.mxu0 %v7813
    %9137 = vmatprep.subr.bf16.mxu0 %v7818
    %9138 = vmatpush1.bf16.msra.mxu0 %v7817
    %9139 = vmatprep.mubr.bf16.mxu0 %v5670
    %9140 = vmatmul.mubr.bf16.gmra.mrb[0].mxu0 %v5669
    %v9141 = vpop.f32.mrb[0].mxu0
    %v9142 = vadd.f32 %v6210, %v9141
    %v9143 = vpop.f32.mrb[0].mxu0
    %v9144 = vadd.f32 %v6214, %v9143
    %v9145 = vpop.f32.mrb[0].mxu0
    %v9146 = vpop.f32.mrb[0].mxu0
    %9147 = vdwg.mxu0
    %9148 = vmatprep.subr.bf16.mxu0 %v7822
    %9149 = vmatpush1.bf16.msra.mxu0 %v7821
    %9150 = vmatprep.subr.bf16.mxu0 %v7826
    %9151 = vmatpush1.bf16.msra.mxu0 %v7825
    %9152 = vmatprep.subr.bf16.mxu0 %v7830
    %9153 = vmatpush1.bf16.msra.mxu0 %v7829
    %9154 = vmatprep.subr.bf16.mxu0 %v7834
    %9155 = vmatpush1.bf16.msra.mxu0 %v7833
    %9156 = vmatprep.subr.bf16.mxu0 %v7838
    %9157 = vmatpush1.bf16.msra.mxu0 %v7837
    %9158 = vmatprep.subr.bf16.mxu0 %v7842
    %9159 = vmatpush1.bf16.msra.mxu0 %v7841
    %9160 = vmatprep.subr.bf16.mxu0 %v7846
    %9161 = vmatpush1.bf16.msra.mxu0 %v7845
    %9162 = vmatprep.subr.bf16.mxu0 %v7850
    %9163 = vmatpush1.bf16.msra.mxu0 %v7849
    %9164 = vmatprep.subr.bf16.mxu0 %v7854
    %9165 = vmatpush1.bf16.msra.mxu0 %v7853
    %9166 = vmatprep.subr.bf16.mxu0 %v7858
    %9167 = vmatpush1.bf16.msra.mxu0 %v7857
    %9168 = vmatprep.subr.bf16.mxu0 %v7862
    %9169 = vmatpush1.bf16.msra.mxu0 %v7861
    %9170 = vmatprep.subr.bf16.mxu0 %v7866
    %9171 = vmatpush1.bf16.msra.mxu0 %v7865
    %9172 = vmatprep.subr.bf16.mxu0 %v7870
    %9173 = vmatpush1.bf16.msra.mxu0 %v7869
    %9174 = vmatprep.subr.bf16.mxu0 %v7874
    %9175 = vmatpush1.bf16.msra.mxu0 %v7873
    %9176 = vmatprep.subr.bf16.mxu0 %v7878
    %9177 = vmatpush1.bf16.msra.mxu0 %v7877
    %9178 = vmatprep.subr.bf16.mxu0 %v7882
    %9179 = vmatpush1.bf16.msra.mxu0 %v7881
    %9180 = vmatprep.mubr.bf16.mxu0 %v5672
    %9181 = vmatmul.mubr.bf16.gmra.mrb[0].mxu0 %v5671
    %v9182 = vpop.f32.mrb[0].mxu0
    %v9183 = vadd.f32 %v9142, %v9182
    %v9184 = vpop.f32.mrb[0].mxu0
    %v9185 = vadd.f32 %v9144, %v9184
    %v9186 = vpop.f32.mrb[0].mxu0
    %v9187 = vpop.f32.mrb[0].mxu0
    %9188 = vdwg.mxu0
    %9189 = vmatprep.subr.bf16.mxu0 %v7886
    %9190 = vmatpush1.bf16.msra.mxu0 %v7885
    %9191 = vmatprep.subr.bf16.mxu0 %v7890
    %9192 = vmatpush1.bf16.msra.mxu0 %v7889
    %9193 = vmatprep.subr.bf16.mxu0 %v7894
    %9194 = vmatpush1.bf16.msra.mxu0 %v7893
    %9195 = vmatprep.subr.bf16.mxu0 %v7898
    %9196 = vmatpush1.bf16.msra.mxu0 %v7897
    %9197 = vmatprep.subr.bf16.mxu0 %v7902
    %9198 = vmatpush1.bf16.msra.mxu0 %v7901
    %9199 = vmatprep.subr.bf16.mxu0 %v7906
    %9200 = vmatpush1.bf16.msra.mxu0 %v7905
    %9201 = vmatprep.subr.bf16.mxu0 %v7910
    %9202 = vmatpush1.bf16.msra.mxu0 %v7909
    %9203 = vmatprep.subr.bf16.mxu0 %v7914
    %9204 = vmatpush1.bf16.msra.mxu0 %v7913
    %9205 = vmatprep.subr.bf16.mxu0 %v7918
    %9206 = vmatpush1.bf16.msra.mxu0 %v7917
    %9207 = vmatprep.subr.bf16.mxu0 %v7922
    %9208 = vmatpush1.bf16.msra.mxu0 %v7921
    %9209 = vmatprep.subr.bf16.mxu0 %v7926
    %9210 = vmatpush1.bf16.msra.mxu0 %v7925
    %9211 = vmatprep.subr.bf16.mxu0 %v7930
    %9212 = vmatpush1.bf16.msra.mxu0 %v7929
    %9213 = vmatprep.subr.bf16.mxu0 %v7934
    %9214 = vmatpush1.bf16.msra.mxu0 %v7933
    %9215 = vmatprep.subr.bf16.mxu0 %v7938
    %9216 = vmatpush1.bf16.msra.mxu0 %v7937
    %9217 = vmatprep.subr.bf16.mxu0 %v7942
    %9218 = vmatpush1.bf16.msra.mxu0 %v7941
    %9219 = vmatprep.subr.bf16.mxu0 %v7946
    %9220 = vmatpush1.bf16.msra.mxu0 %v7945
    %9221 = vmatprep.mubr.bf16.mxu0 %v5674
    %9222 = vmatmul.mubr.bf16.gmra.mrb[0].mxu0 %v5673
    %v9223 = vpop.f32.mrb[0].mxu0
    %v9224 = vadd.f32 %v9183, %v9223
    %v9225 = vpop.f32.mrb[0].mxu0
    %v9226 = vadd.f32 %v9185, %v9225
    %v9227 = vpop.f32.mrb[0].mxu0
    %v9228 = vpop.f32.mrb[0].mxu0
    %9229 = vdwg.mxu0
    %9230 = vmatprep.subr.bf16.mxu0 %v7950
    %9231 = vmatpush1.bf16.msra.mxu0 %v7949
    %9232 = vmatprep.subr.bf16.mxu0 %v7954
    %9233 = vmatpush1.bf16.msra.mxu0 %v7953
    %9234 = vmatprep.subr.bf16.mxu0 %v7958
    %9235 = vmatpush1.bf16.msra.mxu0 %v7957
    %9236 = vmatprep.subr.bf16.mxu0 %v7962
    %9237 = vmatpush1.bf16.msra.mxu0 %v7961
    %9238 = vmatprep.subr.bf16.mxu0 %v7966
    %9239 = vmatpush1.bf16.msra.mxu0 %v7965
    %9240 = vmatprep.subr.bf16.mxu0 %v7970
    %9241 = vmatpush1.bf16.msra.mxu0 %v7969
    %9242 = vmatprep.subr.bf16.mxu0 %v7974
    %9243 = vmatpush1.bf16.msra.mxu0 %v7973
    %9244 = vmatprep.subr.bf16.mxu0 %v7978
    %9245 = vmatpush1.bf16.msra.mxu0 %v7977
    %9246 = vmatprep.subr.bf16.mxu0 %v7982
    %9247 = vmatpush1.bf16.msra.mxu0 %v7981
    %9248 = vmatprep.subr.bf16.mxu0 %v7986
    %9249 = vmatpush1.bf16.msra.mxu0 %v7985
    %9250 = vmatprep.subr.bf16.mxu0 %v7990
    %9251 = vmatpush1.bf16.msra.mxu0 %v7989
    %9252 = vmatprep.subr.bf16.mxu0 %v7994
    %9253 = vmatpush1.bf16.msra.mxu0 %v7993
    %9254 = vmatprep.subr.bf16.mxu0 %v7998
    %9255 = vmatpush1.bf16.msra.mxu0 %v7997
    %9256 = vmatprep.subr.bf16.mxu0 %v8002
    %9257 = vmatpush1.bf16.msra.mxu0 %v8001
    %9258 = vmatprep.subr.bf16.mxu0 %v8006
    %9259 = vmatpush1.bf16.msra.mxu0 %v8005
    %9260 = vmatprep.subr.bf16.mxu0 %v8010
    %9261 = vmatpush1.bf16.msra.mxu0 %v8009
    %9262 = vmatprep.mubr.bf16.mxu0 %v5676
    %9263 = vmatmul.mubr.bf16.gmra.mrb[0].mxu0 %v5675
    %v9264 = vpop.f32.mrb[0].mxu0
    %v9265 = vadd.f32 %v9224, %v9264
    %v9266 = vpop.f32.mrb[0].mxu0
    %v9267 = vadd.f32 %v9226, %v9266
    %v9268 = vpop.f32.mrb[0].mxu0
    %v9269 = vpop.f32.mrb[0].mxu0
    %9270 = vdwg.mxu0
    %9271 = vmatprep.subr.bf16.mxu0 %v8014
    %9272 = vmatpush1.bf16.msra.mxu0 %v8013
    %9273 = vmatprep.subr.bf16.mxu0 %v8018
    %9274 = vmatpush1.bf16.msra.mxu0 %v8017
    %9275 = vmatprep.subr.bf16.mxu0 %v8022
    %9276 = vmatpush1.bf16.msra.mxu0 %v8021
    %9277 = vmatprep.subr.bf16.mxu0 %v8026
    %9278 = vmatpush1.bf16.msra.mxu0 %v8025
    %9279 = vmatprep.subr.bf16.mxu0 %v8030
    %9280 = vmatpush1.bf16.msra.mxu0 %v8029
    %9281 = vmatprep.subr.bf16.mxu0 %v8034
    %9282 = vmatpush1.bf16.msra.mxu0 %v8033
    %9283 = vmatprep.subr.bf16.mxu0 %v8038
    %9284 = vmatpush1.bf16.msra.mxu0 %v8037
    %9285 = vmatprep.subr.bf16.mxu0 %v8042
    %9286 = vmatpush1.bf16.msra.mxu0 %v8041
    %9287 = vmatprep.subr.bf16.mxu0 %v8046
    %9288 = vmatpush1.bf16.msra.mxu0 %v8045
    %9289 = vmatprep.subr.bf16.mxu0 %v8050
    %9290 = vmatpush1.bf16.msra.mxu0 %v8049
    %9291 = vmatprep.subr.bf16.mxu0 %v8054
    %9292 = vmatpush1.bf16.msra.mxu0 %v8053
    %9293 = vmatprep.subr.bf16.mxu0 %v8058
    %9294 = vmatpush1.bf16.msra.mxu0 %v8057
    %9295 = vmatprep.subr.bf16.mxu0 %v8062
    %9296 = vmatpush1.bf16.msra.mxu0 %v8061
    %9297 = vmatprep.subr.bf16.mxu0 %v8066
    %9298 = vmatpush1.bf16.msra.mxu0 %v8065
    %9299 = vmatprep.subr.bf16.mxu0 %v8070
    %9300 = vmatpush1.bf16.msra.mxu0 %v8069
    %9301 = vmatprep.subr.bf16.mxu0 %v8074
    %9302 = vmatpush1.bf16.msra.mxu0 %v8073
    %9303 = vmatprep.mubr.bf16.mxu0 %v5678
    %9304 = vmatmul.mubr.bf16.gmra.mrb[0].mxu0 %v5677
    %v9305 = vpop.f32.mrb[0].mxu0
    %v9306 = vadd.f32 %v9265, %v9305
    %v9307 = vpop.f32.mrb[0].mxu0
    %v9308 = vadd.f32 %v9267, %v9307
    %v9309 = vpop.f32.mrb[0].mxu0
    %v9310 = vpop.f32.mrb[0].mxu0
    %9311 = vdwg.mxu0
    %9312 = vmatprep.subr.bf16.mxu0 %v8078
    %9313 = vmatpush1.bf16.msra.mxu0 %v8077
    %9314 = vmatprep.subr.bf16.mxu0 %v8082
    %9315 = vmatpush1.bf16.msra.mxu0 %v8081
    %9316 = vmatprep.subr.bf16.mxu0 %v8086
    %9317 = vmatpush1.bf16.msra.mxu0 %v8085
    %9318 = vmatprep.subr.bf16.mxu0 %v8090
    %9319 = vmatpush1.bf16.msra.mxu0 %v8089
    %9320 = vmatprep.subr.bf16.mxu0 %v8094
    %9321 = vmatpush1.bf16.msra.mxu0 %v8093
    %9322 = vmatprep.subr.bf16.mxu0 %v8098
    %9323 = vmatpush1.bf16.msra.mxu0 %v8097
    %9324 = vmatprep.subr.bf16.mxu0 %v8102
    %9325 = vmatpush1.bf16.msra.mxu0 %v8101
    %9326 = vmatprep.subr.bf16.mxu0 %v8106
    %9327 = vmatpush1.bf16.msra.mxu0 %v8105
    %9328 = vmatprep.subr.bf16.mxu0 %v8110
    %9329 = vmatpush1.bf16.msra.mxu0 %v8109
    %9330 = vmatprep.subr.bf16.mxu0 %v8114
    %9331 = vmatpush1.bf16.msra.mxu0 %v8113
    %9332 = vmatprep.subr.bf16.mxu0 %v8118
    %9333 = vmatpush1.bf16.msra.mxu0 %v8117
    %9334 = vmatprep.subr.bf16.mxu0 %v8122
    %9335 = vmatpush1.bf16.msra.mxu0 %v8121
    %9336 = vmatprep.subr.bf16.mxu0 %v8126
    %9337 = vmatpush1.bf16.msra.mxu0 %v8125
    %9338 = vmatprep.subr.bf16.mxu0 %v8130
    %9339 = vmatpush1.bf16.msra.mxu0 %v8129
    %9340 = vmatprep.subr.bf16.mxu0 %v8134
    %9341 = vmatpush1.bf16.msra.mxu0 %v8133
    %9342 = vmatprep.subr.bf16.mxu0 %v8138
    %9343 = vmatpush1.bf16.msra.mxu0 %v8137
    %9344 = vmatprep.mubr.bf16.mxu0 %v5680
    %9345 = vmatmul.mubr.bf16.gmra.mrb[0].mxu0 %v5679
    %v9346 = vpop.f32.mrb[0].mxu0
    %v9347 = vadd.f32 %v9306, %v9346
    %v9348 = vpop.f32.mrb[0].mxu0
    %v9349 = vadd.f32 %v9308, %v9348
    %v9350 = vpop.f32.mrb[0].mxu0
    %v9351 = vpop.f32.mrb[0].mxu0
    %9352 = vdwg.mxu0
    %9353 = vmatprep.subr.bf16.mxu0 %v8142
    %9354 = vmatpush1.bf16.msra.mxu0 %v8141
    %9355 = vmatprep.subr.bf16.mxu0 %v8146
    %9356 = vmatpush1.bf16.msra.mxu0 %v8145
    %9357 = vmatprep.subr.bf16.mxu0 %v8150
    %9358 = vmatpush1.bf16.msra.mxu0 %v8149
    %9359 = vmatprep.subr.bf16.mxu0 %v8154
    %9360 = vmatpush1.bf16.msra.mxu0 %v8153
    %9361 = vmatprep.subr.bf16.mxu0 %v8158
    %9362 = vmatpush1.bf16.msra.mxu0 %v8157
    %9363 = vmatprep.subr.bf16.mxu0 %v8162
    %9364 = vmatpush1.bf16.msra.mxu0 %v8161
    %9365 = vmatprep.subr.bf16.mxu0 %v8166
    %9366 = vmatpush1.bf16.msra.mxu0 %v8165
    %9367 = vmatprep.subr.bf16.mxu0 %v8170
    %9368 = vmatpush1.bf16.msra.mxu0 %v8169
    %9369 = vmatprep.subr.bf16.mxu0 %v8174
    %9370 = vmatpush1.bf16.msra.mxu0 %v8173
    %9371 = vmatprep.subr.bf16.mxu0 %v8178
    %9372 = vmatpush1.bf16.msra.mxu0 %v8177
    %9373 = vmatprep.subr.bf16.mxu0 %v8182
    %9374 = vmatpush1.bf16.msra.mxu0 %v8181
    %9375 = vmatprep.subr.bf16.mxu0 %v8186
    %9376 = vmatpush1.bf16.msra.mxu0 %v8185
    %9377 = vmatprep.subr.bf16.mxu0 %v8190
    %9378 = vmatpush1.bf16.msra.mxu0 %v8189
    %9379 = vmatprep.subr.bf16.mxu0 %v8194
    %9380 = vmatpush1.bf16.msra.mxu0 %v8193
    %9381 = vmatprep.subr.bf16.mxu0 %v8198
    %9382 = vmatpush1.bf16.msra.mxu0 %v8197
    %9383 = vmatprep.subr.bf16.mxu0 %v8202
    %9384 = vmatpush1.bf16.msra.mxu0 %v8201
    %9385 = vmatprep.mubr.bf16.mxu0 %v5682
    %9386 = vmatmul.mubr.bf16.gmra.mrb[0].mxu0 %v5681
    %v9387 = vpop.f32.mrb[0].mxu0
    %v9388 = vadd.f32 %v9347, %v9387
    %v9389 = vpop.f32.mrb[0].mxu0
    %v9390 = vadd.f32 %v9349, %v9389
    %v9391 = vpop.f32.mrb[0].mxu0
    %v9392 = vpop.f32.mrb[0].mxu0
    %9393 = vdwg.mxu0
    %9394 = vmatprep.subr.bf16.mxu0 %v8206
    %9395 = vmatpush1.bf16.msra.mxu0 %v8205
    %9396 = vmatprep.subr.bf16.mxu0 %v8210
    %9397 = vmatpush1.bf16.msra.mxu0 %v8209
    %9398 = vmatprep.subr.bf16.mxu0 %v8214
    %9399 = vmatpush1.bf16.msra.mxu0 %v8213
    %9400 = vmatprep.subr.bf16.mxu0 %v8218
    %9401 = vmatpush1.bf16.msra.mxu0 %v8217
    %9402 = vmatprep.subr.bf16.mxu0 %v8222
    %9403 = vmatpush1.bf16.msra.mxu0 %v8221
    %9404 = vmatprep.subr.bf16.mxu0 %v8226
    %9405 = vmatpush1.bf16.msra.mxu0 %v8225
    %9406 = vmatprep.subr.bf16.mxu0 %v8230
    %9407 = vmatpush1.bf16.msra.mxu0 %v8229
    %9408 = vmatprep.subr.bf16.mxu0 %v8234
    %9409 = vmatpush1.bf16.msra.mxu0 %v8233
    %9410 = vmatprep.subr.bf16.mxu0 %v8238
    %9411 = vmatpush1.bf16.msra.mxu0 %v8237
    %9412 = vmatprep.subr.bf16.mxu0 %v8242
    %9413 = vmatpush1.bf16.msra.mxu0 %v8241
    %9414 = vmatprep.subr.bf16.mxu0 %v8246
    %9415 = vmatpush1.bf16.msra.mxu0 %v8245
    %9416 = vmatprep.subr.bf16.mxu0 %v8250
    %9417 = vmatpush1.bf16.msra.mxu0 %v8249
    %9418 = vmatprep.subr.bf16.mxu0 %v8254
    %9419 = vmatpush1.bf16.msra.mxu0 %v8253
    %9420 = vmatprep.subr.bf16.mxu0 %v8258
    %9421 = vmatpush1.bf16.msra.mxu0 %v8257
    %9422 = vmatprep.subr.bf16.mxu0 %v8262
    %9423 = vmatpush1.bf16.msra.mxu0 %v8261
    %9424 = vmatprep.subr.bf16.mxu0 %v8266
    %9425 = vmatpush1.bf16.msra.mxu0 %v8265
    %9426 = vmatprep.mubr.bf16.mxu0 %v5684
    %9427 = vmatmul.mubr.bf16.gmra.mrb[0].mxu0 %v5683
    %v9428 = vpop.f32.mrb[0].mxu0
    %v9429 = vadd.f32 %v9388, %v9428
    %v9430 = vpop.f32.mrb[0].mxu0
    %v9431 = vadd.f32 %v9390, %v9430
    %v9432 = vpop.f32.mrb[0].mxu0
    %v9433 = vpop.f32.mrb[0].mxu0
    %9434 = vdwg.mxu0
    %v9435 = vmax.f32 %v9101, 0.0
    %v9436 = vmax.f32 %v9103, 0.0
    %v9437 = vmax.f32 %v9429, 0.0
    %v9438 = vmax.f32 %v9431, 0.0
    %v9439 = vpack.c.bf16 %v9435, %v9435
    %v9440 = vpack.c.bf16 %v9436, %v9436
    %v9441 = vpack.c.bf16 %v9437, %v9437
    %v9442 = vpack.c.bf16 %v9438, %v9438
    %v9443 = vld [vmem:[%s7] sm:$0xf]
    %v9444 = vld [vmem:[%s7 + $0x4] sm:$0xf]
    %v9445 = vld [vmem:[%s7 + $0x8] sm:$0xf]
    %v9446 = vld [vmem:[%s7 + $0xc] sm:$0xf]
    %v9447 = vld [vmem:[%s7 + $0x10] sm:$0xf]
    %v9448 = vld [vmem:[%s7 + $0x14] sm:$0xf]
    %v9449 = vld [vmem:[%s7 + $0x18] sm:$0xf]
    %v9450 = vld [vmem:[%s7 + $0x1c] sm:$0xf]
    %v9451 = vld [vmem:[%s7 + $0x20] sm:$0xf]
    %v9452 = vld [vmem:[%s7 + $0x24] sm:$0xf]
    %v9453 = vld [vmem:[%s7 + $0x28] sm:$0xf]
    %v9454 = vld [vmem:[%s7 + $0x2c] sm:$0xf]
    %v9455 = vld [vmem:[%s7 + $0x30] sm:$0xf]
    %v9456 = vld [vmem:[%s7 + $0x34] sm:$0xf]
    %v9457 = vld [vmem:[%s7 + $0x38] sm:$0xf]
    %v9458 = vld [vmem:[%s7 + $0x3c] sm:$0xf]
    %v9459 = vld [vmem:[%s7 + $0x40] sm:$0xf]
    %v9460 = vld [vmem:[%s7 + $0x44] sm:$0xf]
    %v9461 = vld [vmem:[%s7 + $0x48] sm:$0xf]
    %v9462 = vld [vmem:[%s7 + $0x4c] sm:$0xf]
    %v9463 = vld [vmem:[%s7 + $0x50] sm:$0xf]
    %v9464 = vld [vmem:[%s7 + $0x54] sm:$0xf]
    %v9465 = vld [vmem:[%s7 + $0x58] sm:$0xf]
    %v9466 = vld [vmem:[%s7 + $0x5c] sm:$0xf]
    %v9467 = vld [vmem:[%s7 + $0x60] sm:$0xf]
    %v9468 = vld [vmem:[%s7 + $0x64] sm:$0xf]
    %v9469 = vld [vmem:[%s7 + $0x68] sm:$0xf]
    %v9470 = vld [vmem:[%s7 + $0x6c] sm:$0xf]
    %v9471 = vld [vmem:[%s7 + $0x70] sm:$0xf]
    %v9472 = vld [vmem:[%s7 + $0x74] sm:$0xf]
    %v9473 = vld [vmem:[%s7 + $0x78] sm:$0xf]
    %v9474 = vld [vmem:[%s7 + $0x7c] sm:$0xf]
    %v9475 = vld [vmem:[%s7 + $0x80] sm:$0xf]
    %v9476 = vld [vmem:[%s7 + $0x84] sm:$0xf]
    %v9477 = vld [vmem:[%s7 + $0x88] sm:$0xf]
    %v9478 = vld [vmem:[%s7 + $0x8c] sm:$0xf]
    %v9479 = vld [vmem:[%s7 + $0x90] sm:$0xf]
    %v9480 = vld [vmem:[%s7 + $0x94] sm:$0xf]
    %v9481 = vld [vmem:[%s7 + $0x98] sm:$0xf]
    %v9482 = vld [vmem:[%s7 + $0x9c] sm:$0xf]
    %v9483 = vld [vmem:[%s7 + $0xa0] sm:$0xf]
    %v9484 = vld [vmem:[%s7 + $0xa4] sm:$0xf]
    %v9485 = vld [vmem:[%s7 + $0xa8] sm:$0xf]
    %v9486 = vld [vmem:[%s7 + $0xac] sm:$0xf]
    %v9487 = vld [vmem:[%s7 + $0xb0] sm:$0xf]
    %v9488 = vld [vmem:[%s7 + $0xb4] sm:$0xf]
    %v9489 = vld [vmem:[%s7 + $0xb8] sm:$0xf]
    %v9490 = vld [vmem:[%s7 + $0xbc] sm:$0xf]
    %v9491 = vld [vmem:[%s7 + $0xc0] sm:$0xf]
    %v9492 = vld [vmem:[%s7 + $0xc4] sm:$0xf]
    %v9493 = vld [vmem:[%s7 + $0xc8] sm:$0xf]
    %v9494 = vld [vmem:[%s7 + $0xcc] sm:$0xf]
    %v9495 = vld [vmem:[%s7 + $0xd0] sm:$0xf]
    %v9496 = vld [vmem:[%s7 + $0xd4] sm:$0xf]
    %v9497 = vld [vmem:[%s7 + $0xd8] sm:$0xf]
    %v9498 = vld [vmem:[%s7 + $0xdc] sm:$0xf]
    %v9499 = vld [vmem:[%s7 + $0xe0] sm:$0xf]
    %v9500 = vld [vmem:[%s7 + $0xe4] sm:$0xf]
    %v9501 = vld [vmem:[%s7 + $0xe8] sm:$0xf]
    %v9502 = vld [vmem:[%s7 + $0xec] sm:$0xf]
    %v9503 = vld [vmem:[%s7 + $0xf0] sm:$0xf]
    %v9504 = vld [vmem:[%s7 + $0xf4] sm:$0xf]
    %v9505 = vld [vmem:[%s7 + $0xf8] sm:$0xf]
    %v9506 = vld [vmem:[%s7 + $0xfc] sm:$0xf]
    %v9507 = vld [vmem:[%s8] sm:$0x1]
    %v9509 = vlaneseq
    %v9510 = vshrl.u32 %v9509, 7
    %v9511 = vsub.s32 0, %v9510
    %v9512 = vrot.slane %v9507, %v9511
    %v9578 = vunpack.c.l.b16 %v9443
    %v9579 = vunpack.c.l.b16 %v9444
    %v9580 = vunpack.c.l.b16 %v9445
    %v9581 = vunpack.c.l.b16 %v9446
    %v9582 = vunpack.c.l.b16 %v9447
    %v9583 = vunpack.c.l.b16 %v9448
    %v9584 = vunpack.c.l.b16 %v9449
    %v9585 = vunpack.c.l.b16 %v9450
    %v9586 = vunpack.c.l.b16 %v9451
    %v9587 = vunpack.c.l.b16 %v9452
    %v9588 = vunpack.c.l.b16 %v9453
    %v9589 = vunpack.c.l.b16 %v9454
    %v9590 = vunpack.c.l.b16 %v9455
    %v9591 = vunpack.c.l.b16 %v9456
    %v9592 = vunpack.c.l.b16 %v9457
    %v9593 = vunpack.c.l.b16 %v9458
    %v9594 = vunpack.c.l.b16 %v9459
    %v9595 = vunpack.c.l.b16 %v9460
    %v9596 = vunpack.c.l.b16 %v9461
    %v9597 = vunpack.c.l.b16 %v9462
    %v9598 = vunpack.c.l.b16 %v9463
    %v9599 = vunpack.c.l.b16 %v9464
    %v9600 = vunpack.c.l.b16 %v9465
    %v9601 = vunpack.c.l.b16 %v9466
    %v9602 = vunpack.c.l.b16 %v9467
    %v9603 = vunpack.c.l.b16 %v9468
    %v9604 = vunpack.c.l.b16 %v9469
    %v9605 = vunpack.c.l.b16 %v9470
    %v9606 = vunpack.c.l.b16 %v9471
    %v9607 = vunpack.c.l.b16 %v9472
    %v9608 = vunpack.c.l.b16 %v9473
    %v9609 = vunpack.c.l.b16 %v9474
    %v9610 = vunpack.c.l.b16 %v9475
    %v9611 = vunpack.c.l.b16 %v9476
    %v9612 = vunpack.c.l.b16 %v9477
    %v9613 = vunpack.c.l.b16 %v9478
    %v9614 = vunpack.c.l.b16 %v9479
    %v9615 = vunpack.c.l.b16 %v9480
    %v9616 = vunpack.c.l.b16 %v9481
    %v9617 = vunpack.c.l.b16 %v9482
    %v9618 = vunpack.c.l.b16 %v9483
    %v9619 = vunpack.c.l.b16 %v9484
    %v9620 = vunpack.c.l.b16 %v9485
    %v9621 = vunpack.c.l.b16 %v9486
    %v9622 = vunpack.c.l.b16 %v9487
    %v9623 = vunpack.c.l.b16 %v9488
    %v9624 = vunpack.c.l.b16 %v9489
    %v9625 = vunpack.c.l.b16 %v9490
    %v9626 = vunpack.c.l.b16 %v9491
    %v9627 = vunpack.c.l.b16 %v9492
    %v9628 = vunpack.c.l.b16 %v9493
    %v9629 = vunpack.c.l.b16 %v9494
    %v9630 = vunpack.c.l.b16 %v9495
    %v9631 = vunpack.c.l.b16 %v9496
    %v9632 = vunpack.c.l.b16 %v9497
    %v9633 = vunpack.c.l.b16 %v9498
    %v9634 = vunpack.c.l.b16 %v9499
    %v9635 = vunpack.c.l.b16 %v9500
    %v9636 = vunpack.c.l.b16 %v9501
    %v9637 = vunpack.c.l.b16 %v9502
    %v9638 = vunpack.c.l.b16 %v9503
    %v9639 = vunpack.c.l.b16 %v9504
    %v9640 = vunpack.c.l.b16 %v9505
    %v9641 = vunpack.c.l.b16 %v9506
    %v9642 = vpack.c.b16 %v9579, %v9578
    %v9643 = vpack.c.b16 %v9581, %v9580
    %v9644 = vpack.c.b16 %v9583, %v9582
    %v9645 = vpack.c.b16 %v9585, %v9584
    %v9646 = vpack.c.b16 %v9587, %v9586
    %v9647 = vpack.c.b16 %v9589, %v9588
    %v9648 = vpack.c.b16 %v9591, %v9590
    %v9649 = vpack.c.b16 %v9593, %v9592
    %v9650 = vpack.c.b16 %v9595, %v9594
    %v9651 = vpack.c.b16 %v9597, %v9596
    %v9652 = vpack.c.b16 %v9599, %v9598
    %v9653 = vpack.c.b16 %v9601, %v9600
    %v9654 = vpack.c.b16 %v9603, %v9602
    %v9655 = vpack.c.b16 %v9605, %v9604
    %v9656 = vpack.c.b16 %v9607, %v9606
    %v9657 = vpack.c.b16 %v9609, %v9608
    %v9658 = vpack.c.b16 %v9611, %v9610
    %v9659 = vpack.c.b16 %v9613, %v9612
    %v9660 = vpack.c.b16 %v9615, %v9614
    %v9661 = vpack.c.b16 %v9617, %v9616
    %v9662 = vpack.c.b16 %v9619, %v9618
    %v9663 = vpack.c.b16 %v9621, %v9620
    %v9664 = vpack.c.b16 %v9623, %v9622
    %v9665 = vpack.c.b16 %v9625, %v9624
    %v9666 = vpack.c.b16 %v9627, %v9626
    %v9667 = vpack.c.b16 %v9629, %v9628
    %v9668 = vpack.c.b16 %v9631, %v9630
    %v9669 = vpack.c.b16 %v9633, %v9632
    %v9670 = vpack.c.b16 %v9635, %v9634
    %v9671 = vpack.c.b16 %v9637, %v9636
    %v9672 = vpack.c.b16 %v9639, %v9638
    %v9673 = vpack.c.b16 %v9641, %v9640
    %9706 = vmatprep.subr.bf16.mxu0 0
    %9707 = vmatpush1.bf16.msra.mxu0 %v9642
    %9708 = vmatprep.subr.bf16.mxu0 0
    %9709 = vmatpush1.bf16.msra.mxu0 %v9643
    %9710 = vmatprep.subr.bf16.mxu0 0
    %9711 = vmatpush1.bf16.msra.mxu0 %v9644
    %9712 = vmatprep.subr.bf16.mxu0 0
    %9713 = vmatpush1.bf16.msra.mxu0 %v9645
    %9714 = vmatprep.subr.bf16.mxu0 0
    %9715 = vmatpush1.bf16.msra.mxu0 %v9646
    %9716 = vmatprep.subr.bf16.mxu0 0
    %9717 = vmatpush1.bf16.msra.mxu0 %v9647
    %9718 = vmatprep.subr.bf16.mxu0 0
    %9719 = vmatpush1.bf16.msra.mxu0 %v9648
    %9720 = vmatprep.subr.bf16.mxu0 0
    %9721 = vmatpush1.bf16.msra.mxu0 %v9649
    %9722 = vmatprep.subr.bf16.mxu0 0
    %9723 = vmatpush1.bf16.msra.mxu0 %v9650
    %9724 = vmatprep.subr.bf16.mxu0 0
    %9725 = vmatpush1.bf16.msra.mxu0 %v9651
    %9726 = vmatprep.subr.bf16.mxu0 0
    %9727 = vmatpush1.bf16.msra.mxu0 %v9652
    %9728 = vmatprep.subr.bf16.mxu0 0
    %9729 = vmatpush1.bf16.msra.mxu0 %v9653
    %9730 = vmatprep.subr.bf16.mxu0 0
    %9731 = vmatpush1.bf16.msra.mxu0 %v9654
    %9732 = vmatprep.subr.bf16.mxu0 0
    %9733 = vmatpush1.bf16.msra.mxu0 %v9655
    %9734 = vmatprep.subr.bf16.mxu0 0
    %9735 = vmatpush1.bf16.msra.mxu0 %v9656
    %9736 = vmatprep.subr.bf16.mxu0 0
    %9737 = vmatpush1.bf16.msra.mxu0 %v9657
    %9738 = vmatprep.mubr.bf16.mxu0 %v9440
    %9739 = vmatmul.mubr.bf16.gmra.mrb[0].mxu0 %v9439
    %v9740 = vpop.f32.mrb[0].mxu0
    %v9741 = vadd.f32 %v9512, %v9740
    %v9742 = vpop.f32.mrb[0].mxu0
    %v9743 = vpop.f32.mrb[0].mxu0
    %v9744 = vpop.f32.mrb[0].mxu0
    %9745 = vdwg.mxu0
    %9746 = vmatprep.subr.bf16.mxu0 0
    %9747 = vmatpush1.bf16.msra.mxu0 %v9658
    %9748 = vmatprep.subr.bf16.mxu0 0
    %9749 = vmatpush1.bf16.msra.mxu0 %v9659
    %9750 = vmatprep.subr.bf16.mxu0 0
    %9751 = vmatpush1.bf16.msra.mxu0 %v9660
    %9752 = vmatprep.subr.bf16.mxu0 0
    %9753 = vmatpush1.bf16.msra.mxu0 %v9661
    %9754 = vmatprep.subr.bf16.mxu0 0
    %9755 = vmatpush1.bf16.msra.mxu0 %v9662
    %9756 = vmatprep.subr.bf16.mxu0 0
    %9757 = vmatpush1.bf16.msra.mxu0 %v9663
    %9758 = vmatprep.subr.bf16.mxu0 0
    %9759 = vmatpush1.bf16.msra.mxu0 %v9664
    %9760 = vmatprep.subr.bf16.mxu0 0
    %9761 = vmatpush1.bf16.msra.mxu0 %v9665
    %9762 = vmatprep.subr.bf16.mxu0 0
    %9763 = vmatpush1.bf16.msra.mxu0 %v9666
    %9764 = vmatprep.subr.bf16.mxu0 0
    %9765 = vmatpush1.bf16.msra.mxu0 %v9667
    %9766 = vmatprep.subr.bf16.mxu0 0
    %9767 = vmatpush1.bf16.msra.mxu0 %v9668
    %9768 = vmatprep.subr.bf16.mxu0 0
    %9769 = vmatpush1.bf16.msra.mxu0 %v9669
    %9770 = vmatprep.subr.bf16.mxu0 0
    %9771 = vmatpush1.bf16.msra.mxu0 %v9670
    %9772 = vmatprep.subr.bf16.mxu0 0
    %9773 = vmatpush1.bf16.msra.mxu0 %v9671
    %9774 = vmatprep.subr.bf16.mxu0 0
    %9775 = vmatpush1.bf16.msra.mxu0 %v9672
    %9776 = vmatprep.subr.bf16.mxu0 0
    %9777 = vmatpush1.bf16.msra.mxu0 %v9673
    %9778 = vmatprep.mubr.bf16.mxu0 %v9442
    %9779 = vmatmul.mubr.bf16.gmra.mrb[0].mxu0 %v9441
    %v9780 = vpop.f32.mrb[0].mxu0
    %v9781 = vadd.f32 %v9741, %v9780
    %v9782 = vpop.f32.mrb[0].mxu0
    %v9783 = vpop.f32.mrb[0].mxu0
    %v9784 = vpop.f32.mrb[0].mxu0
    %9785 = vdwg.mxu0
    %v9786 = vsel %vm1636, %v9781, -inf
    %9787 = vmax.xlane.f32.xlu0 %v9786
    %v9788 = vpop.xlane.xlu0 %9787
    %v9789 = vsub.f32 %v9781, %v9788
    %v9790 = vmul.f32 %v9789, 1.442695
    %v9791 = vpow.pop %v9790
    %v9792 = vsel %vm1636, %v9791, 0.0
    %9793 = vadd.xlane.f32.xlu0 %v9792
    %v9794 = vpop.xlane.xlu0 %9793
    %v9795 = vlog2.pop %v9794
    %v9796 = vmul.f32 %v9795, 0.6931472
    %v9797 = vsub.f32 %v9789, %v9796
    %9798 = vst [vmem:[#allocation2] sm:$0x3] %v9797
    // Predicated region
    $region38: #{membrane_net_forward.1} parent=1 // pred_check
      _
    $region39: #{membrane_net_forward.1} parent=1 // pred_check_branch
      %9800 = sbr.rel (0) target = $region41
    $region40: #{membrane_net_forward.1} parent=1 // pred_region
      %s9802 = ssub.s32 32, 32
      %9803 = vsyncadd [#allocation3], %s9802
      %s9805 = sshll.u32 [#allocation2], 4
      %s9806 = int_to_ptr.vmem [resolvable:$true] %s9805
      %9808 = dma.vmem_to_hbm [thread:$0]  %s9806, 32, %s9, [#allocation3]
    $region41: #{membrane_net_forward.1} parent=1 // pred_fallthru
      _
    // Predicated region
    $region42: #{membrane_net_forward.1} parent=1 // pred_check
      _
    $region43: #{membrane_net_forward.1} parent=1 // pred_check_branch
      %9810 = sbr.rel (0) target = $region45
    $region44: #{membrane_net_forward.1} parent=1 // pred_region
      %9811 = dma.done [#allocation3], 32
    $region45: #{membrane_net_forward.1} parent=1 // pred_fallthru
      _
    %9812 = vsyncpa [#allocation3], 1

</llo_original>
